<compile_context>
chip_gen: v6e
topology: v6e:2x2x1
jax: 0.10.0
libtpu: 0.0.40
codegen_flags: <defaults>
</compile_context>

<pallas_src>
import numpy as np
import jax
import jax.numpy as jnp
from jax.experimental import pallas as pl
from jax.experimental.pallas import tpu as pltpu

# ------------------------- model hyper-parameters (small) -------------------------
C_BASE = 2                 # "C" of FilmedDecoder
COND = 6                   # conditioning_size
D_EMB = 8                  # embedding channels of x
D_F0 = 1                   # f0 channels
T0 = 16                    # input time steps
CH_MULTS = (8, 4, 2, 1)    # decoder block output channels = mult * C
STRIDES = (2, 2, 2, 2)     # upsampling factors (16 -> 256 samples)
DILATIONS = (1, 3, 9)      # residual-unit dilations inside each block
D_IN = D_EMB + D_F0
FIRST_K = 7                # first/last conv kernel size

assert all(s == 2 for s in STRIDES), "polyphase upsampling below hard-codes stride 2"

T_OUT = T0
for _s in STRIDES:
    T_OUT *= _s


def _ceil8(n):
    return (n + 7) // 8 * 8


# Per-residual-unit (8-row-aligned) offsets into the stacked FiLM beta/gamma rows.
FILM_OFFSETS = []
_off = 0
for _mult in CH_MULTS:
    for _ in DILATIONS:
        FILM_OFFSETS.append(_off)
        _off += _ceil8(_mult * C_BASE)
FILM_ROWS = _off  # 120


def _build_wslab_layout():
    # One row band (8-aligned start) per conv entry; cols = k*C_in weight + 1 bias column.
    entries = {}
    row = [0]

    def add(name, rows, cols):
        entries[name] = (row[0], rows, cols)
        row[0] += _ceil8(rows)

    add("first", 16 * C_BASE, FIRST_K * D_IN + 1)
    in_ch = 16 * C_BASE
    for bi, mult in enumerate(CH_MULTS):
        out_ch = mult * C_BASE
        add(f"up{bi}e", out_ch, 3 * in_ch + 1)      # transposed-conv, even output phase
        add(f"up{bi}o", out_ch, 3 * in_ch + 1)      # transposed-conv, odd output phase
        for ui in range(len(DILATIONS)):
            add(f"res{bi}_{ui}a", out_ch, 3 * out_ch + 1)   # k=3 dilated conv
            add(f"res{bi}_{ui}b", out_ch, out_ch + 1)       # 1x1 conv
        in_ch = out_ch
    add("last", 1, FIRST_K * C_BASE + 1)
    cols = max(c for (_, _, c) in entries.values())
    return entries, row[0], cols


W_ENTRIES, W_ROWS, W_COLS = _build_wslab_layout()


def _scratch_dims():
    rows, cols = FIRST_K * D_IN, T0 + FIRST_K - 1
    t, in_ch = T0, 16 * C_BASE
    for mult in CH_MULTS:
        out_ch = mult * C_BASE
        rows = max(rows, 3 * in_ch)
        cols = max(cols, t + 2)
        t *= 2
        for dil in DILATIONS:
            rows = max(rows, 3 * out_ch)
            cols = max(cols, t + 2 * dil)
        in_ch = out_ch
    rows = max(rows, FIRST_K * C_BASE)
    cols = max(cols, t + FIRST_K - 1)
    return _ceil8(rows), cols


SCR_ROWS, SCR_COLS = _scratch_dims()          # (96, 274)
FIRST_SHIFTS = tuple(range(-(FIRST_K // 2), FIRST_K // 2 + 1))


# ------------------------------ in-kernel helpers -----------------------------------
def _im2col(scr_ref, x, shifts, t):
    # Stage len(shifts) time-shifted copies of x (C_in, t) as one (k*C_in, t) window.
    # Band i holds x[:, t' + shifts[i]] (zero outside [0, t)).  Shifts are realised purely
    # with static-offset VMEM stores/loads -- no cross-lane compute, no shift matmuls.
    c_in = x.shape[0]
    k = len(shifts)
    hi = max(max(shifts), 0)
    lo = max(-min(shifts), 0)
    width = t + lo + hi
    kc = k * c_in
    scr_ref[0:kc, 0:width] = jnp.zeros((kc, width), jnp.float32)
    for i, s in enumerate(shifts):
        c0 = hi - s
        scr_ref[i * c_in:(i + 1) * c_in, c0:c0 + t] = x
    return scr_ref[0:kc, hi:hi + t]


def _wdot(wslab_ref, name, xc):
    # One fused conv matmul against the packed weight slab entry; bias is its last column.
    r0, rows, cols = W_ENTRIES[name]
    kc = cols - 1
    assert xc.shape[0] == kc, (name, xc.shape, kc)
    w = wslab_ref[r0:r0 + rows, 0:kc]
    b = wslab_ref[r0:r0 + rows, kc:kc + 1]
    return jnp.dot(w, xc, preferred_element_type=jnp.float32) + b


def _elu(x):
    # ELU(alpha=1): exp only sees clamped-negative values (no EUP overflow on positives).
    # exp(min(x,0)) - 1 instead of expm1 (expm1 lowering not guaranteed in Mosaic).
    return jnp.where(x > 0.0, x, jnp.exp(jnp.minimum(x, 0.0)) - 1.0)


# ------------------------------- the fused kernel ------------------------------------
def _decoder_kernel(x_ref, cond_ref, film_ref, wslab_ref, sct_ref, out_ref, scr_ref):
    # All 12 FiLM layers in one matvec against [conditioning ; 1] -> (2*FILM_ROWS, 1).
    bg = jnp.dot(film_ref[...], cond_ref[...], preferred_element_type=jnp.float32)
    beta_all = bg[0:FILM_ROWS, :]
    gamma_all = bg[FILM_ROWS:2 * FILM_ROWS, :]

    t = T0
    x = x_ref[...]                                                        # (D_IN, T0)
    x = _wdot(wslab_ref, "first", _im2col(scr_ref, x, FIRST_SHIFTS, t))   # first_conv

    unit = 0
    for bi, mult in enumerate(CH_MULTS):
        out_ch = mult * C_BASE
        # Polyphase ConvTranspose1d(k=4, stride=2, pad=1): one im2col staging, two dots.
        #   even: y[2t'] = W3^T x[t'-1] + W1^T x[t'];  odd: y[2t'+1] = W2^T x[t'] + W0^T x[t'+1]
        xc = _im2col(scr_ref, x, (-1, 0, 1), t)
        y_even = _wdot(wslab_ref, f"up{bi}e", xc)                         # (out_ch, t)
        y_odd = _wdot(wslab_ref, f"up{bi}o", xc)                          # (out_ch, t)
        # Interleave the two phases along time with host-precomputed 0/1 scatter matrices
        # (plain MXU dots; no in-kernel iota/select matrix construction).
        x = (jnp.dot(y_even, sct_ref[0:t, 0:2 * t],
                     preferred_element_type=jnp.float32) +
             jnp.dot(y_odd, sct_ref[128:128 + t, 0:2 * t],
                     preferred_element_type=jnp.float32))                 # (out_ch, 2t)
        t = 2 * t
        for ui, dil in enumerate(DILATIONS):
            off = FILM_OFFSETS[unit]
            unit += 1
            beta = beta_all[off:off + out_ch, :]                          # (out_ch, 1)
            gamma = gamma_all[off:off + out_ch, :]                        # (out_ch, 1)
            xf = gamma * x + beta                                         # FiLM affine
            h = _elu(_wdot(wslab_ref, f"res{bi}_{ui}a",
                           _im2col(scr_ref, xf, (-dil, 0, dil), t)))      # dilated conv+ELU
            x = xf + _wdot(wslab_ref, f"res{bi}_{ui}b", h)                # 1x1 conv + skip

    out_ref[...] = _wdot(wslab_ref, "last",
                         _im2col(scr_ref, x, FIRST_SHIFTS, t))            # last_conv (1, T)


# --------------------------- deterministic parameter init ----------------------------
def init_params(key):
    C = C_BASE

    def split():
        nonlocal key
        key, sub = jax.random.split(key)
        return sub

    def rnd(shape, fan_in):
        a = np.asarray(jax.random.normal(split(), shape, jnp.float32))
        return (a / np.sqrt(float(fan_in))).astype(np.float32)

    # FiLM slab: rows [0:FILM_ROWS] = beta, [FILM_ROWS:] = gamma; cols [0:COND] = Linear
    # weight, col COND = Linear bias.  nn.Linear(COND, 2*c_out) rows are [beta ; gamma].
    film = np.zeros((2 * FILM_ROWS, COND + 1), np.float32)
    unit = 0
    for mult in CH_MULTS:
        c_out = mult * C
        for _ in DILATIONS:
            off = FILM_OFFSETS[unit]
            unit += 1
            wf = rnd((2 * c_out, COND), COND)
            bf = rnd((2 * c_out,), 2 * c_out)
            film[off:off + c_out, 0:COND] = wf[:c_out]
            film[off:off + c_out, COND] = bf[:c_out]
            film[FILM_ROWS + off:FILM_ROWS + off + c_out, 0:COND] = wf[c_out:]
            film[FILM_ROWS + off:FILM_ROWS + off + c_out, COND] = bf[c_out:]

    # Conv weight slab (banded-im2col packed, bias in the last column of each entry).
    wslab = np.zeros((W_ROWS, W_COLS), np.float32)

    def put(name, w_packed, bias):
        r0, rows, cols = W_ENTRIES[name]
        kc = cols - 1
        assert w_packed.shape == (rows, kc), (name, w_packed.shape, (rows, kc))
        wslab[r0:r0 + rows, 0:kc] = w_packed
        wslab[r0:r0 + rows, kc] = bias

    # first_conv: Conv1d(D_IN, 16C, 7, padding=3); taps packed along columns in band order.
    fw = rnd((16 * C, D_IN, FIRST_K), D_IN * FIRST_K)
    put("first", np.concatenate([fw[:, :, kk] for kk in range(FIRST_K)], axis=1),
        rnd((16 * C,), 16 * C))

    in_ch = 16 * C
    for bi, mult in enumerate(CH_MULTS):
        out_ch = mult * C
        # ConvTranspose1d(in_ch, out_ch, 4, stride=2, padding=1); PyTorch weight (C_in, C_out, K).
        uw = rnd((in_ch, out_ch, 4), in_ch * 4)
        ub = rnd((out_ch,), out_ch)
        z = np.zeros((out_ch, in_ch), np.float32)
        # bands correspond to input shifts (-1, 0, +1):
        put(f"up{bi}e", np.concatenate([uw[:, :, 3].T, uw[:, :, 1].T, z], axis=1), ub)
        put(f"up{bi}o", np.concatenate([z, uw[:, :, 2].T, uw[:, :, 0].T], axis=1), ub)
        for ui, dil in enumerate(DILATIONS):
            w1 = rnd((out_ch, out_ch, 3), out_ch * 3)    # Conv1d(k=3, dilation=dil, pad=dil)
            put(f"res{bi}_{ui}a",
                np.concatenate([w1[:, :, kk] for kk in range(3)], axis=1),
                rnd((out_ch,), out_ch))
            w2 = rnd((out_ch, out_ch, 1), out_ch)        # 1x1 conv
            put(f"res{bi}_{ui}b", w2[:, :, 0], rnd((out_ch,), out_ch))
        in_ch = out_ch

    # last_conv: Conv1d(C, 1, 7, padding=3)
    lw = rnd((1, C, FIRST_K), C * FIRST_K)
    put("last", np.concatenate([lw[:, :, kk] for kk in range(FIRST_K)], axis=1), rnd((1,), 1))

    # Interleave scatter slab: rows [0:128] = even phase, [128:256] = odd phase (exact 0/1).
    u = np.arange(128)[:, None]
    v = np.arange(256)[None, :]
    sct = np.concatenate([(v == 2 * u).astype(np.float32),
                          (v == 2 * u + 1).astype(np.float32)], axis=0)

    return {"film": jnp.asarray(film), "wslab": jnp.asarray(wslab), "sct": jnp.asarray(sct)}


# ---------------------------------- forward pass -------------------------------------
def filmed_decoder_forward(params, x, f0, conditioning):
    # x: (B, D_EMB, T0) or (D_EMB, T0); f0: (B, D_F0, 1, T0); conditioning: (B, COND)
    if x.ndim == 2:
        x = x[None]                                                       # unsqueeze(0)
    # torch.cat((x, f0.squeeze(-2)), dim=1); permute(0,-2,-1) on a 3-D tensor is the identity.
    x_cat = jnp.concatenate([x, jnp.squeeze(f0, axis=-2)], axis=1).astype(jnp.float32)
    b = x_cat.shape[0]
    cond_ext = jnp.concatenate(
        [conditioning.astype(jnp.float32), jnp.ones((b, 1), jnp.float32)],
        axis=1)[:, :, None]                                               # (B, COND+1, 1)

    in_specs = [
        pl.BlockSpec((None, D_IN, T0), lambda i: (i, 0, 0)),              # x (per batch)
        pl.BlockSpec((None, COND + 1, 1), lambda i: (i, 0, 0)),           # [cond;1] (per batch)
        pl.BlockSpec((2 * FILM_ROWS, COND + 1), lambda i: (0, 0)),        # FiLM slab (broadcast)
        pl.BlockSpec((W_ROWS, W_COLS), lambda i: (0, 0)),                 # conv slab (broadcast)
        pl.BlockSpec((256, 256), lambda i: (0, 0)),                       # interleave (broadcast)
    ]
    return pl.pallas_call(
        _decoder_kernel,
        out_shape=jax.ShapeDtypeStruct((b, 1, T_OUT), jnp.float32),
        grid=(b,),
        in_specs=in_specs,
        out_specs=pl.BlockSpec((None, 1, T_OUT), lambda i: (i, 0, 0)),
        scratch_shapes=[pltpu.VMEM((SCR_ROWS, SCR_COLS), jnp.float32)],   # im2col staging
        compiler_params=pltpu.CompilerParams(
            # one batch element per TensorCore on v7x; plain serial loop on v5e/v6e.
            # NOTE: with B == 1 the second v7x core is idle (perf-review item 8).
            dimension_semantics=("parallel",),
        ),
    )(x_cat, cond_ext, params["film"], params["wslab"], params["sct"])


# -------------------------------------- main -----------------------------------------
if __name__ == "__main__":
    params = init_params(jax.random.PRNGKey(42))

    key = jax.random.PRNGKey(0)
    kx, kf, kc = jax.random.split(key, 3)
    B = 2
    x = jax.random.normal(kx, (B, D_EMB, T0), jnp.float32)
    f0 = jax.random.normal(kf, (B, D_F0, 1, T0), jnp.float32)
    conditioning = jax.random.normal(kc, (B, COND), jnp.float32)

    fwd = jax.jit(filmed_decoder_forward)
    out = jax.block_until_ready(fwd(params, x, f0, conditioning))

    assert out.shape == (B, 1, T_OUT), out.shape
    assert bool(jnp.all(jnp.isfinite(out)))
    print("KERNEL_OK")
</pallas_src>

<mosaic_0001>
module attributes {stable_mosaic.version = 11 : i64} {
  func.func @_decoder_kernel(%arg0: i32, %arg1: memref<1x9x16xf32, #tpu.memory_space<vmem>>, %arg2: memref<1x7x1xf32, #tpu.memory_space<vmem>>, %arg3: memref<240x7xf32, #tpu.memory_space<vmem>>, %arg4: memref<360x97xf32, #tpu.memory_space<vmem>>, %arg5: memref<256x256xf32, #tpu.memory_space<vmem>>, %arg6: memref<1x1x256xf32, #tpu.memory_space<vmem>>, %arg7: memref<96x274xf32, #tpu.memory_space<vmem>>) attributes {dimension_semantics = [#tpu.dimension_semantics<parallel>], iteration_bounds = array<i64: 2>, scalar_prefetch = 0 : i64, scratch_operands = 1 : i64, tpu.core_type = #tpu.core_type<tc>, window_params = [{transform_indices = @transform_0, window_bounds = array<i64: 1, 9, 16>}, {transform_indices = @transform_1, window_bounds = array<i64: 1, 7, 1>}, {pipeline_mode = #tpu.pipeline_mode<synchronous>, transform_indices = @transform_2, window_bounds = array<i64: 240, 7>}, {pipeline_mode = #tpu.pipeline_mode<synchronous>, transform_indices = @transform_3, window_bounds = array<i64: 360, 97>}, {pipeline_mode = #tpu.pipeline_mode<synchronous>, transform_indices = @transform_4, window_bounds = array<i64: 256, 256>}, {transform_indices = @transform_5, window_bounds = array<i64: 1, 1, 256>}]} {
    %c0 = arith.constant 0 : index
    %c0_0 = arith.constant 0 : index
    %0 = vector.load %arg3[%c0, %c0_0] : memref<240x7xf32, #tpu.memory_space<vmem>>, vector<240x7xf32>
    %c0_1 = arith.constant 0 : index
    %c0_2 = arith.constant 0 : index
    %c0_3 = arith.constant 0 : index
    %1 = vector.load %arg2[%c0_1, %c0_2, %c0_3] : memref<1x7x1xf32, #tpu.memory_space<vmem>>, vector<1x7x1xf32>
    %2 = vector.shape_cast %1 : vector<1x7x1xf32> to vector<7x1xf32>
    %cst = arith.constant dense<0.000000e+00> : vector<240x1xf32>
    %3 = tpu.matmul %0, %2, %cst {dimension_numbers = #tpu.dot_dimension_numbers<[1], [0], [0], [1], [0, 0, 1, 1], [], []>} : vector<240x7xf32>, vector<7x1xf32>, vector<240x1xf32> -> vector<240x1xf32>
    %4 = vector.extract_strided_slice %3 {offsets = [0, 0], sizes = [120, 1], strides = [1, 1]} : vector<240x1xf32> to vector<120x1xf32>
    %5 = vector.extract_strided_slice %3 {offsets = [120, 0], sizes = [120, 1], strides = [1, 1]} : vector<240x1xf32> to vector<120x1xf32>
    %c0_4 = arith.constant 0 : index
    %c0_5 = arith.constant 0 : index
    %c0_6 = arith.constant 0 : index
    %6 = vector.load %arg1[%c0_4, %c0_5, %c0_6] : memref<1x9x16xf32, #tpu.memory_space<vmem>>, vector<1x9x16xf32>
    %7 = vector.shape_cast %6 : vector<1x9x16xf32> to vector<9x16xf32>
    %cst_7 = arith.constant 0.000000e+00 : f32
    %8 = vector.broadcast %cst_7 : f32 to vector<63x22xf32>
    %c0_8 = arith.constant 0 : index
    %c0_9 = arith.constant 0 : index
    %9 = vector.load %arg7[%c0_8, %c0_9] : memref<96x274xf32, #tpu.memory_space<vmem>>, vector<63x22xf32>
    tpu.vector_store %arg7[%c0_8, %c0_9], %8 {strides = array<i32>} : memref<96x274xf32, #tpu.memory_space<vmem>>, vector<63x22xf32>,
    %c0_10 = arith.constant 0 : index
    %c6 = arith.constant 6 : index
    %10 = vector.load %arg7[%c0_10, %c6] : memref<96x274xf32, #tpu.memory_space<vmem>>, vector<9x16xf32>
    tpu.vector_store %arg7[%c0_10, %c6], %7 {strides = array<i32>} : memref<96x274xf32, #tpu.memory_space<vmem>>, vector<9x16xf32>,
    %c9 = arith.constant 9 : index
    %c5 = arith.constant 5 : index
    %11 = vector.load %arg7[%c9, %c5] : memref<96x274xf32, #tpu.memory_space<vmem>>, vector<9x16xf32>
    tpu.vector_store %arg7[%c9, %c5], %7 {strides = array<i32>} : memref<96x274xf32, #tpu.memory_space<vmem>>, vector<9x16xf32>,
    %c18 = arith.constant 18 : index
    %c4 = arith.constant 4 : index
    %12 = vector.load %arg7[%c18, %c4] : memref<96x274xf32, #tpu.memory_space<vmem>>, vector<9x16xf32>
    tpu.vector_store %arg7[%c18, %c4], %7 {strides = array<i32>} : memref<96x274xf32, #tpu.memory_space<vmem>>, vector<9x16xf32>,
    %c27 = arith.constant 27 : index
    %c3 = arith.constant 3 : index
    %13 = vector.load %arg7[%c27, %c3] : memref<96x274xf32, #tpu.memory_space<vmem>>, vector<9x16xf32>
    tpu.vector_store %arg7[%c27, %c3], %7 {strides = array<i32>} : memref<96x274xf32, #tpu.memory_space<vmem>>, vector<9x16xf32>,
    %c36 = arith.constant 36 : index
    %c2 = arith.constant 2 : index
    %14 = vector.load %arg7[%c36, %c2] : memref<96x274xf32, #tpu.memory_space<vmem>>, vector<9x16xf32>
    tpu.vector_store %arg7[%c36, %c2], %7 {strides = array<i32>} : memref<96x274xf32, #tpu.memory_space<vmem>>, vector<9x16xf32>,
    %c45 = arith.constant 45 : index
    %c1 = arith.constant 1 : index
    %15 = vector.load %arg7[%c45, %c1] : memref<96x274xf32, #tpu.memory_space<vmem>>, vector<9x16xf32>
    tpu.vector_store %arg7[%c45, %c1], %7 {strides = array<i32>} : memref<96x274xf32, #tpu.memory_space<vmem>>, vector<9x16xf32>,
    %c54 = arith.constant 54 : index
    %c0_11 = arith.constant 0 : index
    %16 = vector.load %arg7[%c54, %c0_11] : memref<96x274xf32, #tpu.memory_space<vmem>>, vector<9x16xf32>
    tpu.vector_store %arg7[%c54, %c0_11], %7 {strides = array<i32>} : memref<96x274xf32, #tpu.memory_space<vmem>>, vector<9x16xf32>,
    %c0_12 = arith.constant 0 : index
    %c3_13 = arith.constant 3 : index
    %17 = vector.load %arg7[%c0_12, %c3_13] : memref<96x274xf32, #tpu.memory_space<vmem>>, vector<63x16xf32>
    %c0_14 = arith.constant 0 : index
    %c0_15 = arith.constant 0 : index
    %18 = vector.load %arg4[%c0_14, %c0_15] : memref<360x97xf32, #tpu.memory_space<vmem>>, vector<32x63xf32>
    %c0_16 = arith.constant 0 : index
    %c63 = arith.constant 63 : index
    %19 = vector.load %arg4[%c0_16, %c63] : memref<360x97xf32, #tpu.memory_space<vmem>>, vector<32x1xf32>
    %cst_17 = arith.constant dense<0.000000e+00> : vector<32x16xf32>
    %20 = tpu.matmul %18, %17, %cst_17 {dimension_numbers = #tpu.dot_dimension_numbers<[1], [0], [0], [1], [0, 0, 1, 1], [], []>} : vector<32x63xf32>, vector<63x16xf32>, vector<32x16xf32> -> vector<32x16xf32>
    %21 = vector.broadcast %19 : vector<32x1xf32> to vector<32x16xf32>
    %22 = arith.addf %20, %21 : vector<32x16xf32>
    %cst_18 = arith.constant 0.000000e+00 : f32
    %23 = vector.broadcast %cst_18 : f32 to vector<96x18xf32>
    %c0_19 = arith.constant 0 : index
    %c0_20 = arith.constant 0 : index
    %24 = vector.load %arg7[%c0_19, %c0_20] : memref<96x274xf32, #tpu.memory_space<vmem>>, vector<96x18xf32>
    tpu.vector_store %arg7[%c0_19, %c0_20], %23 {strides = array<i32>} : memref<96x274xf32, #tpu.memory_space<vmem>>, vector<96x18xf32>,
    %c0_21 = arith.constant 0 : index
    %c2_22 = arith.constant 2 : index
    %25 = vector.load %arg7[%c0_21, %c2_22] : memref<96x274xf32, #tpu.memory_space<vmem>>, vector<32x16xf32>
    tpu.vector_store %arg7[%c0_21, %c2_22], %22 {strides = array<i32>} : memref<96x274xf32, #tpu.memory_space<vmem>>, vector<32x16xf32>,
    %c32 = arith.constant 32 : index
    %c1_23 = arith.constant 1 : index
    %26 = vector.load %arg7[%c32, %c1_23] : memref<96x274xf32, #tpu.memory_space<vmem>>, vector<32x16xf32>
    tpu.vector_store %arg7[%c32, %c1_23], %22 {strides = array<i32>} : memref<96x274xf32, #tpu.memory_space<vmem>>, vector<32x16xf32>,
    %c64 = arith.constant 64 : index
    %c0_24 = arith.constant 0 : index
    %27 = vector.load %arg7[%c64, %c0_24] : memref<96x274xf32, #tpu.memory_space<vmem>>, vector<32x16xf32>
    tpu.vector_store %arg7[%c64, %c0_24], %22 {strides = array<i32>} : memref<96x274xf32, #tpu.memory_space<vmem>>, vector<32x16xf32>,
    %c0_25 = arith.constant 0 : index
    %c1_26 = arith.constant 1 : index
    %28 = vector.load %arg7[%c0_25, %c1_26] : memref<96x274xf32, #tpu.memory_space<vmem>>, vector<96x16xf32>
    %c32_27 = arith.constant 32 : index
    %c0_28 = arith.constant 0 : index
    %29 = vector.load %arg4[%c32_27, %c0_28] : memref<360x97xf32, #tpu.memory_space<vmem>>, vector<16x96xf32>
    %c32_29 = arith.constant 32 : index
    %c96 = arith.constant 96 : index
    %30 = vector.load %arg4[%c32_29, %c96] : memref<360x97xf32, #tpu.memory_space<vmem>>, vector<16x1xf32>
    %cst_30 = arith.constant dense<0.000000e+00> : vector<16x16xf32>
    %31 = tpu.matmul %29, %28, %cst_30 {dimension_numbers = #tpu.dot_dimension_numbers<[1], [0], [0], [1], [0, 0, 1, 1], [], []>} : vector<16x96xf32>, vector<96x16xf32>, vector<16x16xf32> -> vector<16x16xf32>
    %32 = vector.broadcast %30 : vector<16x1xf32> to vector<16x16xf32>
    %33 = arith.addf %31, %32 : vector<16x16xf32>
    %c48 = arith.constant 48 : index
    %c0_31 = arith.constant 0 : index
    %34 = vector.load %arg4[%c48, %c0_31] : memref<360x97xf32, #tpu.memory_space<vmem>>, vector<16x96xf32>
    %c48_32 = arith.constant 48 : index
    %c96_33 = arith.constant 96 : index
    %35 = vector.load %arg4[%c48_32, %c96_33] : memref<360x97xf32, #tpu.memory_space<vmem>>, vector<16x1xf32>
    %cst_34 = arith.constant dense<0.000000e+00> : vector<16x16xf32>
    %36 = tpu.matmul %34, %28, %cst_34 {dimension_numbers = #tpu.dot_dimension_numbers<[1], [0], [0], [1], [0, 0, 1, 1], [], []>} : vector<16x96xf32>, vector<96x16xf32>, vector<16x16xf32> -> vector<16x16xf32>
    %37 = vector.broadcast %35 : vector<16x1xf32> to vector<16x16xf32>
    %38 = arith.addf %36, %37 : vector<16x16xf32>
    %c0_35 = arith.constant 0 : index
    %c0_36 = arith.constant 0 : index
    %39 = vector.load %arg5[%c0_35, %c0_36] : memref<256x256xf32, #tpu.memory_space<vmem>>, vector<16x32xf32>
    %cst_37 = arith.constant dense<0.000000e+00> : vector<16x32xf32>
    %40 = tpu.matmul %33, %39, %cst_37 {dimension_numbers = #tpu.dot_dimension_numbers<[1], [0], [0], [1], [0, 0, 1, 1], [], []>} : vector<16x16xf32>, vector<16x32xf32>, vector<16x32xf32> -> vector<16x32xf32>
    %c128 = arith.constant 128 : index
    %c0_38 = arith.constant 0 : index
    %41 = vector.load %arg5[%c128, %c0_38] : memref<256x256xf32, #tpu.memory_space<vmem>>, vector<16x32xf32>
    %cst_39 = arith.constant dense<0.000000e+00> : vector<16x32xf32>
    %42 = tpu.matmul %38, %41, %cst_39 {dimension_numbers = #tpu.dot_dimension_numbers<[1], [0], [0], [1], [0, 0, 1, 1], [], []>} : vector<16x16xf32>, vector<16x32xf32>, vector<16x32xf32> -> vector<16x32xf32>
    %43 = arith.addf %40, %42 : vector<16x32xf32>
    %44 = vector.extract_strided_slice %4 {offsets = [0, 0], sizes = [16, 1], strides = [1, 1]} : vector<120x1xf32> to vector<16x1xf32>
    %45 = vector.extract_strided_slice %5 {offsets = [0, 0], sizes = [16, 1], strides = [1, 1]} : vector<120x1xf32> to vector<16x1xf32>
    %46 = vector.broadcast %45 : vector<16x1xf32> to vector<16x32xf32>
    %47 = arith.mulf %46, %43 : vector<16x32xf32>
    %48 = vector.broadcast %44 : vector<16x1xf32> to vector<16x32xf32>
    %49 = arith.addf %47, %48 : vector<16x32xf32>
    %cst_40 = arith.constant 0.000000e+00 : f32
    %50 = vector.broadcast %cst_40 : f32 to vector<48x34xf32>
    %c0_41 = arith.constant 0 : index
    %c0_42 = arith.constant 0 : index
    %51 = vector.load %arg7[%c0_41, %c0_42] : memref<96x274xf32, #tpu.memory_space<vmem>>, vector<48x34xf32>
    tpu.vector_store %arg7[%c0_41, %c0_42], %50 {strides = array<i32>} : memref<96x274xf32, #tpu.memory_space<vmem>>, vector<48x34xf32>,
    %c0_43 = arith.constant 0 : index
    %c2_44 = arith.constant 2 : index
    %52 = vector.load %arg7[%c0_43, %c2_44] : memref<96x274xf32, #tpu.memory_space<vmem>>, vector<16x32xf32>
    tpu.vector_store %arg7[%c0_43, %c2_44], %49 {strides = array<i32>} : memref<96x274xf32, #tpu.memory_space<vmem>>, vector<16x32xf32>,
    %c16 = arith.constant 16 : index
    %c1_45 = arith.constant 1 : index
    %53 = vector.load %arg7[%c16, %c1_45] : memref<96x274xf32, #tpu.memory_space<vmem>>, vector<16x32xf32>
    tpu.vector_store %arg7[%c16, %c1_45], %49 {strides = array<i32>} : memref<96x274xf32, #tpu.memory_space<vmem>>, vector<16x32xf32>,
    %c32_46 = arith.constant 32 : index
    %c0_47 = arith.constant 0 : index
    %54 = vector.load %arg7[%c32_46, %c0_47] : memref<96x274xf32, #tpu.memory_space<vmem>>, vector<16x32xf32>
    tpu.vector_store %arg7[%c32_46, %c0_47], %49 {strides = array<i32>} : memref<96x274xf32, #tpu.memory_space<vmem>>, vector<16x32xf32>,
    %c0_48 = arith.constant 0 : index
    %c1_49 = arith.constant 1 : index
    %55 = vector.load %arg7[%c0_48, %c1_49] : memref<96x274xf32, #tpu.memory_space<vmem>>, vector<48x32xf32>
    %c64_50 = arith.constant 64 : index
    %c0_51 = arith.constant 0 : index
    %56 = vector.load %arg4[%c64_50, %c0_51] : memref<360x97xf32, #tpu.memory_space<vmem>>, vector<16x48xf32>
    %c64_52 = arith.constant 64 : index
    %c48_53 = arith.constant 48 : index
    %57 = vector.load %arg4[%c64_52, %c48_53] : memref<360x97xf32, #tpu.memory_space<vmem>>, vector<16x1xf32>
    %cst_54 = arith.constant dense<0.000000e+00> : vector<16x32xf32>
    %58 = tpu.matmul %56, %55, %cst_54 {dimension_numbers = #tpu.dot_dimension_numbers<[1], [0], [0], [1], [0, 0, 1, 1], [], []>} : vector<16x48xf32>, vector<48x32xf32>, vector<16x32xf32> -> vector<16x32xf32>
    %59 = vector.broadcast %57 : vector<16x1xf32> to vector<16x32xf32>
    %60 = arith.addf %58, %59 : vector<16x32xf32>
    %cst_55 = arith.constant 0.000000e+00 : f32
    %61 = vector.broadcast %cst_55 : f32 to vector<16x32xf32>
    %62 = arith.cmpf ogt, %60, %61 : vector<16x32xf32>
    %cst_56 = arith.constant 0.000000e+00 : f32
    %63 = vector.broadcast %cst_56 : f32 to vector<16x32xf32>
    %64 = arith.minimumf %60, %63 : vector<16x32xf32>
    %65 = math.exp %64 : vector<16x32xf32>
    %cst_57 = arith.constant 1.000000e+00 : f32
    %66 = vector.broadcast %cst_57 : f32 to vector<16x32xf32>
    %67 = arith.subf %65, %66 : vector<16x32xf32>
    %68 = arith.select %62, %60, %67 : vector<16x32xi1>, vector<16x32xf32>
    %c80 = arith.constant 80 : index
    %c0_58 = arith.constant 0 : index
    %69 = vector.load %arg4[%c80, %c0_58] : memref<360x97xf32, #tpu.memory_space<vmem>>, vector<16x16xf32>
    %c80_59 = arith.constant 80 : index
    %c16_60 = arith.constant 16 : index
    %70 = vector.load %arg4[%c80_59, %c16_60] : memref<360x97xf32, #tpu.memory_space<vmem>>, vector<16x1xf32>
    %cst_61 = arith.constant dense<0.000000e+00> : vector<16x32xf32>
    %71 = tpu.matmul %69, %68, %cst_61 {dimension_numbers = #tpu.dot_dimension_numbers<[1], [0], [0], [1], [0, 0, 1, 1], [], []>} : vector<16x16xf32>, vector<16x32xf32>, vector<16x32xf32> -> vector<16x32xf32>
    %72 = vector.broadcast %70 : vector<16x1xf32> to vector<16x32xf32>
    %73 = arith.addf %71, %72 : vector<16x32xf32>
    %74 = arith.addf %49, %73 : vector<16x32xf32>
    %75 = vector.extract_strided_slice %4 {offsets = [16, 0], sizes = [16, 1], strides = [1, 1]} : vector<120x1xf32> to vector<16x1xf32>
    %76 = vector.extract_strided_slice %5 {offsets = [16, 0], sizes = [16, 1], strides = [1, 1]} : vector<120x1xf32> to vector<16x1xf32>
    %77 = vector.broadcast %76 : vector<16x1xf32> to vector<16x32xf32>
    %78 = arith.mulf %77, %74 : vector<16x32xf32>
    %79 = vector.broadcast %75 : vector<16x1xf32> to vector<16x32xf32>
    %80 = arith.addf %78, %79 : vector<16x32xf32>
    %cst_62 = arith.constant 0.000000e+00 : f32
    %81 = vector.broadcast %cst_62 : f32 to vector<48x38xf32>
    %c0_63 = arith.constant 0 : index
    %c0_64 = arith.constant 0 : index
    %82 = vector.load %arg7[%c0_63, %c0_64] : memref<96x274xf32, #tpu.memory_space<vmem>>, vector<48x38xf32>
    tpu.vector_store %arg7[%c0_63, %c0_64], %81 {strides = array<i32>} : memref<96x274xf32, #tpu.memory_space<vmem>>, vector<48x38xf32>,
    %c0_65 = arith.constant 0 : index
    %c6_66 = arith.constant 6 : index
    %83 = vector.load %arg7[%c0_65, %c6_66] : memref<96x274xf32, #tpu.memory_space<vmem>>, vector<16x32xf32>
    tpu.vector_store %arg7[%c0_65, %c6_66], %80 {strides = array<i32>} : memref<96x274xf32, #tpu.memory_space<vmem>>, vector<16x32xf32>,
    %c16_67 = arith.constant 16 : index
    %c3_68 = arith.constant 3 : index
    %84 = vector.load %arg7[%c16_67, %c3_68] : memref<96x274xf32, #tpu.memory_space<vmem>>, vector<16x32xf32>
    tpu.vector_store %arg7[%c16_67, %c3_68], %80 {strides = array<i32>} : memref<96x274xf32, #tpu.memory_space<vmem>>, vector<16x32xf32>,
    %c32_69 = arith.constant 32 : index
    %c0_70 = arith.constant 0 : index
    %85 = vector.load %arg7[%c32_69, %c0_70] : memref<96x274xf32, #tpu.memory_space<vmem>>, vector<16x32xf32>
    tpu.vector_store %arg7[%c32_69, %c0_70], %80 {strides = array<i32>} : memref<96x274xf32, #tpu.memory_space<vmem>>, vector<16x32xf32>,
    %c0_71 = arith.constant 0 : index
    %c3_72 = arith.constant 3 : index
    %86 = vector.load %arg7[%c0_71, %c3_72] : memref<96x274xf32, #tpu.memory_space<vmem>>, vector<48x32xf32>
    %c96_73 = arith.constant 96 : index
    %c0_74 = arith.constant 0 : index
    %87 = vector.load %arg4[%c96_73, %c0_74] : memref<360x97xf32, #tpu.memory_space<vmem>>, vector<16x48xf32>
    %c96_75 = arith.constant 96 : index
    %c48_76 = arith.constant 48 : index
    %88 = vector.load %arg4[%c96_75, %c48_76] : memref<360x97xf32, #tpu.memory_space<vmem>>, vector<16x1xf32>
    %cst_77 = arith.constant dense<0.000000e+00> : vector<16x32xf32>
    %89 = tpu.matmul %87, %86, %cst_77 {dimension_numbers = #tpu.dot_dimension_numbers<[1], [0], [0], [1], [0, 0, 1, 1], [], []>} : vector<16x48xf32>, vector<48x32xf32>, vector<16x32xf32> -> vector<16x32xf32>
    %90 = vector.broadcast %88 : vector<16x1xf32> to vector<16x32xf32>
    %91 = arith.addf %89, %90 : vector<16x32xf32>
    %cst_78 = arith.constant 0.000000e+00 : f32
    %92 = vector.broadcast %cst_78 : f32 to vector<16x32xf32>
    %93 = arith.cmpf ogt, %91, %92 : vector<16x32xf32>
    %cst_79 = arith.constant 0.000000e+00 : f32
    %94 = vector.broadcast %cst_79 : f32 to vector<16x32xf32>
    %95 = arith.minimumf %91, %94 : vector<16x32xf32>
    %96 = math.exp %95 : vector<16x32xf32>
    %cst_80 = arith.constant 1.000000e+00 : f32
    %97 = vector.broadcast %cst_80 : f32 to vector<16x32xf32>
    %98 = arith.subf %96, %97 : vector<16x32xf32>
    %99 = arith.select %93, %91, %98 : vector<16x32xi1>, vector<16x32xf32>
    %c112 = arith.constant 112 : index
    %c0_81 = arith.constant 0 : index
    %100 = vector.load %arg4[%c112, %c0_81] : memref<360x97xf32, #tpu.memory_space<vmem>>, vector<16x16xf32>
    %c112_82 = arith.constant 112 : index
    %c16_83 = arith.constant 16 : index
    %101 = vector.load %arg4[%c112_82, %c16_83] : memref<360x97xf32, #tpu.memory_space<vmem>>, vector<16x1xf32>
    %cst_84 = arith.constant dense<0.000000e+00> : vector<16x32xf32>
    %102 = tpu.matmul %100, %99, %cst_84 {dimension_numbers = #tpu.dot_dimension_numbers<[1], [0], [0], [1], [0, 0, 1, 1], [], []>} : vector<16x16xf32>, vector<16x32xf32>, vector<16x32xf32> -> vector<16x32xf32>
    %103 = vector.broadcast %101 : vector<16x1xf32> to vector<16x32xf32>
    %104 = arith.addf %102, %103 : vector<16x32xf32>
    %105 = arith.addf %80, %104 : vector<16x32xf32>
    %106 = vector.extract_strided_slice %4 {offsets = [32, 0], sizes = [16, 1], strides = [1, 1]} : vector<120x1xf32> to vector<16x1xf32>
    %107 = vector.extract_strided_slice %5 {offsets = [32, 0], sizes = [16, 1], strides = [1, 1]} : vector<120x1xf32> to vector<16x1xf32>
    %108 = vector.broadcast %107 : vector<16x1xf32> to vector<16x32xf32>
    %109 = arith.mulf %108, %105 : vector<16x32xf32>
    %110 = vector.broadcast %106 : vector<16x1xf32> to vector<16x32xf32>
    %111 = arith.addf %109, %110 : vector<16x32xf32>
    %cst_85 = arith.constant 0.000000e+00 : f32
    %112 = vector.broadcast %cst_85 : f32 to vector<48x50xf32>
    %c0_86 = arith.constant 0 : index
    %c0_87 = arith.constant 0 : index
    %113 = vector.load %arg7[%c0_86, %c0_87] : memref<96x274xf32, #tpu.memory_space<vmem>>, vector<48x50xf32>
    tpu.vector_store %arg7[%c0_86, %c0_87], %112 {strides = array<i32>} : memref<96x274xf32, #tpu.memory_space<vmem>>, vector<48x50xf32>,
    %c0_88 = arith.constant 0 : index
    %c18_89 = arith.constant 18 : index
    %114 = vector.load %arg7[%c0_88, %c18_89] : memref<96x274xf32, #tpu.memory_space<vmem>>, vector<16x32xf32>
    tpu.vector_store %arg7[%c0_88, %c18_89], %111 {strides = array<i32>} : memref<96x274xf32, #tpu.memory_space<vmem>>, vector<16x32xf32>,
    %c16_90 = arith.constant 16 : index
    %c9_91 = arith.constant 9 : index
    %115 = vector.load %arg7[%c16_90, %c9_91] : memref<96x274xf32, #tpu.memory_space<vmem>>, vector<16x32xf32>
    tpu.vector_store %arg7[%c16_90, %c9_91], %111 {strides = array<i32>} : memref<96x274xf32, #tpu.memory_space<vmem>>, vector<16x32xf32>,
    %c32_92 = arith.constant 32 : index
    %c0_93 = arith.constant 0 : index
    %116 = vector.load %arg7[%c32_92, %c0_93] : memref<96x274xf32, #tpu.memory_space<vmem>>, vector<16x32xf32>
    tpu.vector_store %arg7[%c32_92, %c0_93], %111 {strides = array<i32>} : memref<96x274xf32, #tpu.memory_space<vmem>>, vector<16x32xf32>,
    %c0_94 = arith.constant 0 : index
    %c9_95 = arith.constant 9 : index
    %117 = vector.load %arg7[%c0_94, %c9_95] : memref<96x274xf32, #tpu.memory_space<vmem>>, vector<48x32xf32>
    %c128_96 = arith.constant 128 : index
    %c0_97 = arith.constant 0 : index
    %118 = vector.load %arg4[%c128_96, %c0_97] : memref<360x97xf32, #tpu.memory_space<vmem>>, vector<16x48xf32>
    %c128_98 = arith.constant 128 : index
    %c48_99 = arith.constant 48 : index
    %119 = vector.load %arg4[%c128_98, %c48_99] : memref<360x97xf32, #tpu.memory_space<vmem>>, vector<16x1xf32>
    %cst_100 = arith.constant dense<0.000000e+00> : vector<16x32xf32>
    %120 = tpu.matmul %118, %117, %cst_100 {dimension_numbers = #tpu.dot_dimension_numbers<[1], [0], [0], [1], [0, 0, 1, 1], [], []>} : vector<16x48xf32>, vector<48x32xf32>, vector<16x32xf32> -> vector<16x32xf32>
    %121 = vector.broadcast %119 : vector<16x1xf32> to vector<16x32xf32>
    %122 = arith.addf %120, %121 : vector<16x32xf32>
    %cst_101 = arith.constant 0.000000e+00 : f32
    %123 = vector.broadcast %cst_101 : f32 to vector<16x32xf32>
    %124 = arith.cmpf ogt, %122, %123 : vector<16x32xf32>
    %cst_102 = arith.constant 0.000000e+00 : f32
    %125 = vector.broadcast %cst_102 : f32 to vector<16x32xf32>
    %126 = arith.minimumf %122, %125 : vector<16x32xf32>
    %127 = math.exp %126 : vector<16x32xf32>
    %cst_103 = arith.constant 1.000000e+00 : f32
    %128 = vector.broadcast %cst_103 : f32 to vector<16x32xf32>
    %129 = arith.subf %127, %128 : vector<16x32xf32>
    %130 = arith.select %124, %122, %129 : vector<16x32xi1>, vector<16x32xf32>
    %c144 = arith.constant 144 : index
    %c0_104 = arith.constant 0 : index
    %131 = vector.load %arg4[%c144, %c0_104] : memref<360x97xf32, #tpu.memory_space<vmem>>, vector<16x16xf32>
    %c144_105 = arith.constant 144 : index
    %c16_106 = arith.constant 16 : index
    %132 = vector.load %arg4[%c144_105, %c16_106] : memref<360x97xf32, #tpu.memory_space<vmem>>, vector<16x1xf32>
    %cst_107 = arith.constant dense<0.000000e+00> : vector<16x32xf32>
    %133 = tpu.matmul %131, %130, %cst_107 {dimension_numbers = #tpu.dot_dimension_numbers<[1], [0], [0], [1], [0, 0, 1, 1], [], []>} : vector<16x16xf32>, vector<16x32xf32>, vector<16x32xf32> -> vector<16x32xf32>
    %134 = vector.broadcast %132 : vector<16x1xf32> to vector<16x32xf32>
    %135 = arith.addf %133, %134 : vector<16x32xf32>
    %136 = arith.addf %111, %135 : vector<16x32xf32>
    %cst_108 = arith.constant 0.000000e+00 : f32
    %137 = vector.broadcast %cst_108 : f32 to vector<48x34xf32>
    %c0_109 = arith.constant 0 : index
    %c0_110 = arith.constant 0 : index
    %138 = vector.load %arg7[%c0_109, %c0_110] : memref<96x274xf32, #tpu.memory_space<vmem>>, vector<48x34xf32>
    tpu.vector_store %arg7[%c0_109, %c0_110], %137 {strides = array<i32>} : memref<96x274xf32, #tpu.memory_space<vmem>>, vector<48x34xf32>,
    %c0_111 = arith.constant 0 : index
    %c2_112 = arith.constant 2 : index
    %139 = vector.load %arg7[%c0_111, %c2_112] : memref<96x274xf32, #tpu.memory_space<vmem>>, vector<16x32xf32>
    tpu.vector_store %arg7[%c0_111, %c2_112], %136 {strides = array<i32>} : memref<96x274xf32, #tpu.memory_space<vmem>>, vector<16x32xf32>,
    %c16_113 = arith.constant 16 : index
    %c1_114 = arith.constant 1 : index
    %140 = vector.load %arg7[%c16_113, %c1_114] : memref<96x274xf32, #tpu.memory_space<vmem>>, vector<16x32xf32>
    tpu.vector_store %arg7[%c16_113, %c1_114], %136 {strides = array<i32>} : memref<96x274xf32, #tpu.memory_space<vmem>>, vector<16x32xf32>,
    %c32_115 = arith.constant 32 : index
    %c0_116 = arith.constant 0 : index
    %141 = vector.load %arg7[%c32_115, %c0_116] : memref<96x274xf32, #tpu.memory_space<vmem>>, vector<16x32xf32>
    tpu.vector_store %arg7[%c32_115, %c0_116], %136 {strides = array<i32>} : memref<96x274xf32, #tpu.memory_space<vmem>>, vector<16x32xf32>,
    %c0_117 = arith.constant 0 : index
    %c1_118 = arith.constant 1 : index
    %142 = vector.load %arg7[%c0_117, %c1_118] : memref<96x274xf32, #tpu.memory_space<vmem>>, vector<48x32xf32>
    %c160 = arith.constant 160 : index
    %c0_119 = arith.constant 0 : index
    %143 = vector.load %arg4[%c160, %c0_119] : memref<360x97xf32, #tpu.memory_space<vmem>>, vector<8x48xf32>
    %c160_120 = arith.constant 160 : index
    %c48_121 = arith.constant 48 : index
    %144 = vector.load %arg4[%c160_120, %c48_121] : memref<360x97xf32, #tpu.memory_space<vmem>>, vector<8x1xf32>
    %cst_122 = arith.constant dense<0.000000e+00> : vector<8x32xf32>
    %145 = tpu.matmul %143, %142, %cst_122 {dimension_numbers = #tpu.dot_dimension_numbers<[1], [0], [0], [1], [0, 0, 1, 1], [], []>} : vector<8x48xf32>, vector<48x32xf32>, vector<8x32xf32> -> vector<8x32xf32>
    %146 = vector.broadcast %144 : vector<8x1xf32> to vector<8x32xf32>
    %147 = arith.addf %145, %146 : vector<8x32xf32>
    %c168 = arith.constant 168 : index
    %c0_123 = arith.constant 0 : index
    %148 = vector.load %arg4[%c168, %c0_123] : memref<360x97xf32, #tpu.memory_space<vmem>>, vector<8x48xf32>
    %c168_124 = arith.constant 168 : index
    %c48_125 = arith.constant 48 : index
    %149 = vector.load %arg4[%c168_124, %c48_125] : memref<360x97xf32, #tpu.memory_space<vmem>>, vector<8x1xf32>
    %cst_126 = arith.constant dense<0.000000e+00> : vector<8x32xf32>
    %150 = tpu.matmul %148, %142, %cst_126 {dimension_numbers = #tpu.dot_dimension_numbers<[1], [0], [0], [1], [0, 0, 1, 1], [], []>} : vector<8x48xf32>, vector<48x32xf32>, vector<8x32xf32> -> vector<8x32xf32>
    %151 = vector.broadcast %149 : vector<8x1xf32> to vector<8x32xf32>
    %152 = arith.addf %150, %151 : vector<8x32xf32>
    %c0_127 = arith.constant 0 : index
    %c0_128 = arith.constant 0 : index
    %153 = vector.load %arg5[%c0_127, %c0_128] : memref<256x256xf32, #tpu.memory_space<vmem>>, vector<32x64xf32>
    %cst_129 = arith.constant dense<0.000000e+00> : vector<8x64xf32>
    %154 = tpu.matmul %147, %153, %cst_129 {dimension_numbers = #tpu.dot_dimension_numbers<[1], [0], [0], [1], [0, 0, 1, 1], [], []>} : vector<8x32xf32>, vector<32x64xf32>, vector<8x64xf32> -> vector<8x64xf32>
    %c128_130 = arith.constant 128 : index
    %c0_131 = arith.constant 0 : index
    %155 = vector.load %arg5[%c128_130, %c0_131] : memref<256x256xf32, #tpu.memory_space<vmem>>, vector<32x64xf32>
    %cst_132 = arith.constant dense<0.000000e+00> : vector<8x64xf32>
    %156 = tpu.matmul %152, %155, %cst_132 {dimension_numbers = #tpu.dot_dimension_numbers<[1], [0], [0], [1], [0, 0, 1, 1], [], []>} : vector<8x32xf32>, vector<32x64xf32>, vector<8x64xf32> -> vector<8x64xf32>
    %157 = arith.addf %154, %156 : vector<8x64xf32>
    %158 = vector.extract_strided_slice %4 {offsets = [48, 0], sizes = [8, 1], strides = [1, 1]} : vector<120x1xf32> to vector<8x1xf32>
    %159 = vector.extract_strided_slice %5 {offsets = [48, 0], sizes = [8, 1], strides = [1, 1]} : vector<120x1xf32> to vector<8x1xf32>
    %160 = vector.broadcast %159 : vector<8x1xf32> to vector<8x64xf32>
    %161 = arith.mulf %160, %157 : vector<8x64xf32>
    %162 = vector.broadcast %158 : vector<8x1xf32> to vector<8x64xf32>
    %163 = arith.addf %161, %162 : vector<8x64xf32>
    %cst_133 = arith.constant 0.000000e+00 : f32
    %164 = vector.broadcast %cst_133 : f32 to vector<24x66xf32>
    %c0_134 = arith.constant 0 : index
    %c0_135 = arith.constant 0 : index
    %165 = vector.load %arg7[%c0_134, %c0_135] : memref<96x274xf32, #tpu.memory_space<vmem>>, vector<24x66xf32>
    tpu.vector_store %arg7[%c0_134, %c0_135], %164 {strides = array<i32>} : memref<96x274xf32, #tpu.memory_space<vmem>>, vector<24x66xf32>,
    %c0_136 = arith.constant 0 : index
    %c2_137 = arith.constant 2 : index
    %166 = vector.load %arg7[%c0_136, %c2_137] : memref<96x274xf32, #tpu.memory_space<vmem>>, vector<8x64xf32>
    tpu.vector_store %arg7[%c0_136, %c2_137], %163 {strides = array<i32>} : memref<96x274xf32, #tpu.memory_space<vmem>>, vector<8x64xf32>,
    %c8 = arith.constant 8 : index
    %c1_138 = arith.constant 1 : index
    %167 = vector.load %arg7[%c8, %c1_138] : memref<96x274xf32, #tpu.memory_space<vmem>>, vector<8x64xf32>
    tpu.vector_store %arg7[%c8, %c1_138], %163 {strides = array<i32>} : memref<96x274xf32, #tpu.memory_space<vmem>>, vector<8x64xf32>,
    %c16_139 = arith.constant 16 : index
    %c0_140 = arith.constant 0 : index
    %168 = vector.load %arg7[%c16_139, %c0_140] : memref<96x274xf32, #tpu.memory_space<vmem>>, vector<8x64xf32>
    tpu.vector_store %arg7[%c16_139, %c0_140], %163 {strides = array<i32>} : memref<96x274xf32, #tpu.memory_space<vmem>>, vector<8x64xf32>,
    %c0_141 = arith.constant 0 : index
    %c1_142 = arith.constant 1 : index
    %169 = vector.load %arg7[%c0_141, %c1_142] : memref<96x274xf32, #tpu.memory_space<vmem>>, vector<24x64xf32>
    %c176 = arith.constant 176 : index
    %c0_143 = arith.constant 0 : index
    %170 = vector.load %arg4[%c176, %c0_143] : memref<360x97xf32, #tpu.memory_space<vmem>>, vector<8x24xf32>
    %c176_144 = arith.constant 176 : index
    %c24 = arith.constant 24 : index
    %171 = vector.load %arg4[%c176_144, %c24] : memref<360x97xf32, #tpu.memory_space<vmem>>, vector<8x1xf32>
    %cst_145 = arith.constant dense<0.000000e+00> : vector<8x64xf32>
    %172 = tpu.matmul %170, %169, %cst_145 {dimension_numbers = #tpu.dot_dimension_numbers<[1], [0], [0], [1], [0, 0, 1, 1], [], []>} : vector<8x24xf32>, vector<24x64xf32>, vector<8x64xf32> -> vector<8x64xf32>
    %173 = vector.broadcast %171 : vector<8x1xf32> to vector<8x64xf32>
    %174 = arith.addf %172, %173 : vector<8x64xf32>
    %cst_146 = arith.constant 0.000000e+00 : f32
    %175 = vector.broadcast %cst_146 : f32 to vector<8x64xf32>
    %176 = arith.cmpf ogt, %174, %175 : vector<8x64xf32>
    %cst_147 = arith.constant 0.000000e+00 : f32
    %177 = vector.broadcast %cst_147 : f32 to vector<8x64xf32>
    %178 = arith.minimumf %174, %177 : vector<8x64xf32>
    %179 = math.exp %178 : vector<8x64xf32>
    %cst_148 = arith.constant 1.000000e+00 : f32
    %180 = vector.broadcast %cst_148 : f32 to vector<8x64xf32>
    %181 = arith.subf %179, %180 : vector<8x64xf32>
    %182 = arith.select %176, %174, %181 : vector<8x64xi1>, vector<8x64xf32>
    %c184 = arith.constant 184 : index
    %c0_149 = arith.constant 0 : index
    %183 = vector.load %arg4[%c184, %c0_149] : memref<360x97xf32, #tpu.memory_space<vmem>>, vector<8x8xf32>
    %c184_150 = arith.constant 184 : index
    %c8_151 = arith.constant 8 : index
    %184 = vector.load %arg4[%c184_150, %c8_151] : memref<360x97xf32, #tpu.memory_space<vmem>>, vector<8x1xf32>
    %cst_152 = arith.constant dense<0.000000e+00> : vector<8x64xf32>
    %185 = tpu.matmul %183, %182, %cst_152 {dimension_numbers = #tpu.dot_dimension_numbers<[1], [0], [0], [1], [0, 0, 1, 1], [], []>} : vector<8x8xf32>, vector<8x64xf32>, vector<8x64xf32> -> vector<8x64xf32>
    %186 = vector.broadcast %184 : vector<8x1xf32> to vector<8x64xf32>
    %187 = arith.addf %185, %186 : vector<8x64xf32>
    %188 = arith.addf %163, %187 : vector<8x64xf32>
    %189 = vector.extract_strided_slice %4 {offsets = [56, 0], sizes = [8, 1], strides = [1, 1]} : vector<120x1xf32> to vector<8x1xf32>
    %190 = vector.extract_strided_slice %5 {offsets = [56, 0], sizes = [8, 1], strides = [1, 1]} : vector<120x1xf32> to vector<8x1xf32>
    %191 = vector.broadcast %190 : vector<8x1xf32> to vector<8x64xf32>
    %192 = arith.mulf %191, %188 : vector<8x64xf32>
    %193 = vector.broadcast %189 : vector<8x1xf32> to vector<8x64xf32>
    %194 = arith.addf %192, %193 : vector<8x64xf32>
    %cst_153 = arith.constant 0.000000e+00 : f32
    %195 = vector.broadcast %cst_153 : f32 to vector<24x70xf32>
    %c0_154 = arith.constant 0 : index
    %c0_155 = arith.constant 0 : index
    %196 = vector.load %arg7[%c0_154, %c0_155] : memref<96x274xf32, #tpu.memory_space<vmem>>, vector<24x70xf32>
    tpu.vector_store %arg7[%c0_154, %c0_155], %195 {strides = array<i32>} : memref<96x274xf32, #tpu.memory_space<vmem>>, vector<24x70xf32>,
    %c0_156 = arith.constant 0 : index
    %c6_157 = arith.constant 6 : index
    %197 = vector.load %arg7[%c0_156, %c6_157] : memref<96x274xf32, #tpu.memory_space<vmem>>, vector<8x64xf32>
    tpu.vector_store %arg7[%c0_156, %c6_157], %194 {strides = array<i32>} : memref<96x274xf32, #tpu.memory_space<vmem>>, vector<8x64xf32>,
    %c8_158 = arith.constant 8 : index
    %c3_159 = arith.constant 3 : index
    %198 = vector.load %arg7[%c8_158, %c3_159] : memref<96x274xf32, #tpu.memory_space<vmem>>, vector<8x64xf32>
    tpu.vector_store %arg7[%c8_158, %c3_159], %194 {strides = array<i32>} : memref<96x274xf32, #tpu.memory_space<vmem>>, vector<8x64xf32>,
    %c16_160 = arith.constant 16 : index
    %c0_161 = arith.constant 0 : index
    %199 = vector.load %arg7[%c16_160, %c0_161] : memref<96x274xf32, #tpu.memory_space<vmem>>, vector<8x64xf32>
    tpu.vector_store %arg7[%c16_160, %c0_161], %194 {strides = array<i32>} : memref<96x274xf32, #tpu.memory_space<vmem>>, vector<8x64xf32>,
    %c0_162 = arith.constant 0 : index
    %c3_163 = arith.constant 3 : index
    %200 = vector.load %arg7[%c0_162, %c3_163] : memref<96x274xf32, #tpu.memory_space<vmem>>, vector<24x64xf32>
    %c192 = arith.constant 192 : index
    %c0_164 = arith.constant 0 : index
    %201 = vector.load %arg4[%c192, %c0_164] : memref<360x97xf32, #tpu.memory_space<vmem>>, vector<8x24xf32>
    %c192_165 = arith.constant 192 : index
    %c24_166 = arith.constant 24 : index
    %202 = vector.load %arg4[%c192_165, %c24_166] : memref<360x97xf32, #tpu.memory_space<vmem>>, vector<8x1xf32>
    %cst_167 = arith.constant dense<0.000000e+00> : vector<8x64xf32>
    %203 = tpu.matmul %201, %200, %cst_167 {dimension_numbers = #tpu.dot_dimension_numbers<[1], [0], [0], [1], [0, 0, 1, 1], [], []>} : vector<8x24xf32>, vector<24x64xf32>, vector<8x64xf32> -> vector<8x64xf32>
    %204 = vector.broadcast %202 : vector<8x1xf32> to vector<8x64xf32>
    %205 = arith.addf %203, %204 : vector<8x64xf32>
    %cst_168 = arith.constant 0.000000e+00 : f32
    %206 = vector.broadcast %cst_168 : f32 to vector<8x64xf32>
    %207 = arith.cmpf ogt, %205, %206 : vector<8x64xf32>
    %cst_169 = arith.constant 0.000000e+00 : f32
    %208 = vector.broadcast %cst_169 : f32 to vector<8x64xf32>
    %209 = arith.minimumf %205, %208 : vector<8x64xf32>
    %210 = math.exp %209 : vector<8x64xf32>
    %cst_170 = arith.constant 1.000000e+00 : f32
    %211 = vector.broadcast %cst_170 : f32 to vector<8x64xf32>
    %212 = arith.subf %210, %211 : vector<8x64xf32>
    %213 = arith.select %207, %205, %212 : vector<8x64xi1>, vector<8x64xf32>
    %c200 = arith.constant 200 : index
    %c0_171 = arith.constant 0 : index
    %214 = vector.load %arg4[%c200, %c0_171] : memref<360x97xf32, #tpu.memory_space<vmem>>, vector<8x8xf32>
    %c200_172 = arith.constant 200 : index
    %c8_173 = arith.constant 8 : index
    %215 = vector.load %arg4[%c200_172, %c8_173] : memref<360x97xf32, #tpu.memory_space<vmem>>, vector<8x1xf32>
    %cst_174 = arith.constant dense<0.000000e+00> : vector<8x64xf32>
    %216 = tpu.matmul %214, %213, %cst_174 {dimension_numbers = #tpu.dot_dimension_numbers<[1], [0], [0], [1], [0, 0, 1, 1], [], []>} : vector<8x8xf32>, vector<8x64xf32>, vector<8x64xf32> -> vector<8x64xf32>
    %217 = vector.broadcast %215 : vector<8x1xf32> to vector<8x64xf32>
    %218 = arith.addf %216, %217 : vector<8x64xf32>
    %219 = arith.addf %194, %218 : vector<8x64xf32>
    %220 = vector.extract_strided_slice %4 {offsets = [64, 0], sizes = [8, 1], strides = [1, 1]} : vector<120x1xf32> to vector<8x1xf32>
    %221 = vector.extract_strided_slice %5 {offsets = [64, 0], sizes = [8, 1], strides = [1, 1]} : vector<120x1xf32> to vector<8x1xf32>
    %222 = vector.broadcast %221 : vector<8x1xf32> to vector<8x64xf32>
    %223 = arith.mulf %222, %219 : vector<8x64xf32>
    %224 = vector.broadcast %220 : vector<8x1xf32> to vector<8x64xf32>
    %225 = arith.addf %223, %224 : vector<8x64xf32>
    %cst_175 = arith.constant 0.000000e+00 : f32
    %226 = vector.broadcast %cst_175 : f32 to vector<24x82xf32>
    %c0_176 = arith.constant 0 : index
    %c0_177 = arith.constant 0 : index
    %227 = vector.load %arg7[%c0_176, %c0_177] : memref<96x274xf32, #tpu.memory_space<vmem>>, vector<24x82xf32>
    tpu.vector_store %arg7[%c0_176, %c0_177], %226 {strides = array<i32>} : memref<96x274xf32, #tpu.memory_space<vmem>>, vector<24x82xf32>,
    %c0_178 = arith.constant 0 : index
    %c18_179 = arith.constant 18 : index
    %228 = vector.load %arg7[%c0_178, %c18_179] : memref<96x274xf32, #tpu.memory_space<vmem>>, vector<8x64xf32>
    tpu.vector_store %arg7[%c0_178, %c18_179], %225 {strides = array<i32>} : memref<96x274xf32, #tpu.memory_space<vmem>>, vector<8x64xf32>,
    %c8_180 = arith.constant 8 : index
    %c9_181 = arith.constant 9 : index
    %229 = vector.load %arg7[%c8_180, %c9_181] : memref<96x274xf32, #tpu.memory_space<vmem>>, vector<8x64xf32>
    tpu.vector_store %arg7[%c8_180, %c9_181], %225 {strides = array<i32>} : memref<96x274xf32, #tpu.memory_space<vmem>>, vector<8x64xf32>,
    %c16_182 = arith.constant 16 : index
    %c0_183 = arith.constant 0 : index
    %230 = vector.load %arg7[%c16_182, %c0_183] : memref<96x274xf32, #tpu.memory_space<vmem>>, vector<8x64xf32>
    tpu.vector_store %arg7[%c16_182, %c0_183], %225 {strides = array<i32>} : memref<96x274xf32, #tpu.memory_space<vmem>>, vector<8x64xf32>,
    %c0_184 = arith.constant 0 : index
    %c9_185 = arith.constant 9 : index
    %231 = vector.load %arg7[%c0_184, %c9_185] : memref<96x274xf32, #tpu.memory_space<vmem>>, vector<24x64xf32>
    %c208 = arith.constant 208 : index
    %c0_186 = arith.constant 0 : index
    %232 = vector.load %arg4[%c208, %c0_186] : memref<360x97xf32, #tpu.memory_space<vmem>>, vector<8x24xf32>
    %c208_187 = arith.constant 208 : index
    %c24_188 = arith.constant 24 : index
    %233 = vector.load %arg4[%c208_187, %c24_188] : memref<360x97xf32, #tpu.memory_space<vmem>>, vector<8x1xf32>
    %cst_189 = arith.constant dense<0.000000e+00> : vector<8x64xf32>
    %234 = tpu.matmul %232, %231, %cst_189 {dimension_numbers = #tpu.dot_dimension_numbers<[1], [0], [0], [1], [0, 0, 1, 1], [], []>} : vector<8x24xf32>, vector<24x64xf32>, vector<8x64xf32> -> vector<8x64xf32>
    %235 = vector.broadcast %233 : vector<8x1xf32> to vector<8x64xf32>
    %236 = arith.addf %234, %235 : vector<8x64xf32>
    %cst_190 = arith.constant 0.000000e+00 : f32
    %237 = vector.broadcast %cst_190 : f32 to vector<8x64xf32>
    %238 = arith.cmpf ogt, %236, %237 : vector<8x64xf32>
    %cst_191 = arith.constant 0.000000e+00 : f32
    %239 = vector.broadcast %cst_191 : f32 to vector<8x64xf32>
    %240 = arith.minimumf %236, %239 : vector<8x64xf32>
    %241 = math.exp %240 : vector<8x64xf32>
    %cst_192 = arith.constant 1.000000e+00 : f32
    %242 = vector.broadcast %cst_192 : f32 to vector<8x64xf32>
    %243 = arith.subf %241, %242 : vector<8x64xf32>
    %244 = arith.select %238, %236, %243 : vector<8x64xi1>, vector<8x64xf32>
    %c216 = arith.constant 216 : index
    %c0_193 = arith.constant 0 : index
    %245 = vector.load %arg4[%c216, %c0_193] : memref<360x97xf32, #tpu.memory_space<vmem>>, vector<8x8xf32>
    %c216_194 = arith.constant 216 : index
    %c8_195 = arith.constant 8 : index
    %246 = vector.load %arg4[%c216_194, %c8_195] : memref<360x97xf32, #tpu.memory_space<vmem>>, vector<8x1xf32>
    %cst_196 = arith.constant dense<0.000000e+00> : vector<8x64xf32>
    %247 = tpu.matmul %245, %244, %cst_196 {dimension_numbers = #tpu.dot_dimension_numbers<[1], [0], [0], [1], [0, 0, 1, 1], [], []>} : vector<8x8xf32>, vector<8x64xf32>, vector<8x64xf32> -> vector<8x64xf32>
    %248 = vector.broadcast %246 : vector<8x1xf32> to vector<8x64xf32>
    %249 = arith.addf %247, %248 : vector<8x64xf32>
    %250 = arith.addf %225, %249 : vector<8x64xf32>
    %cst_197 = arith.constant 0.000000e+00 : f32
    %251 = vector.broadcast %cst_197 : f32 to vector<24x66xf32>
    %c0_198 = arith.constant 0 : index
    %c0_199 = arith.constant 0 : index
    %252 = vector.load %arg7[%c0_198, %c0_199] : memref<96x274xf32, #tpu.memory_space<vmem>>, vector<24x66xf32>
    tpu.vector_store %arg7[%c0_198, %c0_199], %251 {strides = array<i32>} : memref<96x274xf32, #tpu.memory_space<vmem>>, vector<24x66xf32>,
    %c0_200 = arith.constant 0 : index
    %c2_201 = arith.constant 2 : index
    %253 = vector.load %arg7[%c0_200, %c2_201] : memref<96x274xf32, #tpu.memory_space<vmem>>, vector<8x64xf32>
    tpu.vector_store %arg7[%c0_200, %c2_201], %250 {strides = array<i32>} : memref<96x274xf32, #tpu.memory_space<vmem>>, vector<8x64xf32>,
    %c8_202 = arith.constant 8 : index
    %c1_203 = arith.constant 1 : index
    %254 = vector.load %arg7[%c8_202, %c1_203] : memref<96x274xf32, #tpu.memory_space<vmem>>, vector<8x64xf32>
    tpu.vector_store %arg7[%c8_202, %c1_203], %250 {strides = array<i32>} : memref<96x274xf32, #tpu.memory_space<vmem>>, vector<8x64xf32>,
    %c16_204 = arith.constant 16 : index
    %c0_205 = arith.constant 0 : index
    %255 = vector.load %arg7[%c16_204, %c0_205] : memref<96x274xf32, #tpu.memory_space<vmem>>, vector<8x64xf32>
    tpu.vector_store %arg7[%c16_204, %c0_205], %250 {strides = array<i32>} : memref<96x274xf32, #tpu.memory_space<vmem>>, vector<8x64xf32>,
    %c0_206 = arith.constant 0 : index
    %c1_207 = arith.constant 1 : index
    %256 = vector.load %arg7[%c0_206, %c1_207] : memref<96x274xf32, #tpu.memory_space<vmem>>, vector<24x64xf32>
    %c224 = arith.constant 224 : index
    %c0_208 = arith.constant 0 : index
    %257 = vector.load %arg4[%c224, %c0_208] : memref<360x97xf32, #tpu.memory_space<vmem>>, vector<4x24xf32>
    %c224_209 = arith.constant 224 : index
    %c24_210 = arith.constant 24 : index
    %258 = vector.load %arg4[%c224_209, %c24_210] : memref<360x97xf32, #tpu.memory_space<vmem>>, vector<4x1xf32>
    %cst_211 = arith.constant dense<0.000000e+00> : vector<4x64xf32>
    %259 = tpu.matmul %257, %256, %cst_211 {dimension_numbers = #tpu.dot_dimension_numbers<[1], [0], [0], [1], [0, 0, 1, 1], [], []>} : vector<4x24xf32>, vector<24x64xf32>, vector<4x64xf32> -> vector<4x64xf32>
    %260 = vector.broadcast %258 : vector<4x1xf32> to vector<4x64xf32>
    %261 = arith.addf %259, %260 : vector<4x64xf32>
    %c232 = arith.constant 232 : index
    %c0_212 = arith.constant 0 : index
    %262 = vector.load %arg4[%c232, %c0_212] : memref<360x97xf32, #tpu.memory_space<vmem>>, vector<4x24xf32>
    %c232_213 = arith.constant 232 : index
    %c24_214 = arith.constant 24 : index
    %263 = vector.load %arg4[%c232_213, %c24_214] : memref<360x97xf32, #tpu.memory_space<vmem>>, vector<4x1xf32>
    %cst_215 = arith.constant dense<0.000000e+00> : vector<4x64xf32>
    %264 = tpu.matmul %262, %256, %cst_215 {dimension_numbers = #tpu.dot_dimension_numbers<[1], [0], [0], [1], [0, 0, 1, 1], [], []>} : vector<4x24xf32>, vector<24x64xf32>, vector<4x64xf32> -> vector<4x64xf32>
    %265 = vector.broadcast %263 : vector<4x1xf32> to vector<4x64xf32>
    %266 = arith.addf %264, %265 : vector<4x64xf32>
    %c0_216 = arith.constant 0 : index
    %c0_217 = arith.constant 0 : index
    %267 = vector.load %arg5[%c0_216, %c0_217] : memref<256x256xf32, #tpu.memory_space<vmem>>, vector<64x128xf32>
    %cst_218 = arith.constant dense<0.000000e+00> : vector<4x128xf32>
    %268 = tpu.matmul %261, %267, %cst_218 {dimension_numbers = #tpu.dot_dimension_numbers<[1], [0], [0], [1], [0, 0, 1, 1], [], []>} : vector<4x64xf32>, vector<64x128xf32>, vector<4x128xf32> -> vector<4x128xf32>
    %c128_219 = arith.constant 128 : index
    %c0_220 = arith.constant 0 : index
    %269 = vector.load %arg5[%c128_219, %c0_220] : memref<256x256xf32, #tpu.memory_space<vmem>>, vector<64x128xf32>
    %cst_221 = arith.constant dense<0.000000e+00> : vector<4x128xf32>
    %270 = tpu.matmul %266, %269, %cst_221 {dimension_numbers = #tpu.dot_dimension_numbers<[1], [0], [0], [1], [0, 0, 1, 1], [], []>} : vector<4x64xf32>, vector<64x128xf32>, vector<4x128xf32> -> vector<4x128xf32>
    %271 = arith.addf %268, %270 : vector<4x128xf32>
    %272 = vector.extract_strided_slice %4 {offsets = [72, 0], sizes = [4, 1], strides = [1, 1]} : vector<120x1xf32> to vector<4x1xf32>
    %273 = vector.extract_strided_slice %5 {offsets = [72, 0], sizes = [4, 1], strides = [1, 1]} : vector<120x1xf32> to vector<4x1xf32>
    %274 = vector.broadcast %273 : vector<4x1xf32> to vector<4x128xf32>
    %275 = arith.mulf %274, %271 : vector<4x128xf32>
    %276 = vector.broadcast %272 : vector<4x1xf32> to vector<4x128xf32>
    %277 = arith.addf %275, %276 : vector<4x128xf32>
    %cst_222 = arith.constant 0.000000e+00 : f32
    %278 = vector.broadcast %cst_222 : f32 to vector<12x130xf32>
    %c0_223 = arith.constant 0 : index
    %c0_224 = arith.constant 0 : index
    %279 = vector.load %arg7[%c0_223, %c0_224] : memref<96x274xf32, #tpu.memory_space<vmem>>, vector<12x130xf32>
    tpu.vector_store %arg7[%c0_223, %c0_224], %278 {strides = array<i32>} : memref<96x274xf32, #tpu.memory_space<vmem>>, vector<12x130xf32>,
    %c0_225 = arith.constant 0 : index
    %c2_226 = arith.constant 2 : index
    %280 = vector.load %arg7[%c0_225, %c2_226] : memref<96x274xf32, #tpu.memory_space<vmem>>, vector<4x128xf32>
    tpu.vector_store %arg7[%c0_225, %c2_226], %277 {strides = array<i32>} : memref<96x274xf32, #tpu.memory_space<vmem>>, vector<4x128xf32>,
    %c4_227 = arith.constant 4 : index
    %c1_228 = arith.constant 1 : index
    %281 = vector.load %arg7[%c4_227, %c1_228] : memref<96x274xf32, #tpu.memory_space<vmem>>, vector<4x128xf32>
    tpu.vector_store %arg7[%c4_227, %c1_228], %277 {strides = array<i32>} : memref<96x274xf32, #tpu.memory_space<vmem>>, vector<4x128xf32>,
    %c8_229 = arith.constant 8 : index
    %c0_230 = arith.constant 0 : index
    %282 = vector.load %arg7[%c8_229, %c0_230] : memref<96x274xf32, #tpu.memory_space<vmem>>, vector<4x128xf32>
    tpu.vector_store %arg7[%c8_229, %c0_230], %277 {strides = array<i32>} : memref<96x274xf32, #tpu.memory_space<vmem>>, vector<4x128xf32>,
    %c0_231 = arith.constant 0 : index
    %c1_232 = arith.constant 1 : index
    %283 = vector.load %arg7[%c0_231, %c1_232] : memref<96x274xf32, #tpu.memory_space<vmem>>, vector<12x128xf32>
    %c240 = arith.constant 240 : index
    %c0_233 = arith.constant 0 : index
    %284 = vector.load %arg4[%c240, %c0_233] : memref<360x97xf32, #tpu.memory_space<vmem>>, vector<4x12xf32>
    %c240_234 = arith.constant 240 : index
    %c12 = arith.constant 12 : index
    %285 = vector.load %arg4[%c240_234, %c12] : memref<360x97xf32, #tpu.memory_space<vmem>>, vector<4x1xf32>
    %cst_235 = arith.constant dense<0.000000e+00> : vector<4x128xf32>
    %286 = tpu.matmul %284, %283, %cst_235 {dimension_numbers = #tpu.dot_dimension_numbers<[1], [0], [0], [1], [0, 0, 1, 1], [], []>} : vector<4x12xf32>, vector<12x128xf32>, vector<4x128xf32> -> vector<4x128xf32>
    %287 = vector.broadcast %285 : vector<4x1xf32> to vector<4x128xf32>
    %288 = arith.addf %286, %287 : vector<4x128xf32>
    %cst_236 = arith.constant 0.000000e+00 : f32
    %289 = vector.broadcast %cst_236 : f32 to vector<4x128xf32>
    %290 = arith.cmpf ogt, %288, %289 : vector<4x128xf32>
    %cst_237 = arith.constant 0.000000e+00 : f32
    %291 = vector.broadcast %cst_237 : f32 to vector<4x128xf32>
    %292 = arith.minimumf %288, %291 : vector<4x128xf32>
    %293 = math.exp %292 : vector<4x128xf32>
    %cst_238 = arith.constant 1.000000e+00 : f32
    %294 = vector.broadcast %cst_238 : f32 to vector<4x128xf32>
    %295 = arith.subf %293, %294 : vector<4x128xf32>
    %296 = arith.select %290, %288, %295 : vector<4x128xi1>, vector<4x128xf32>
    %c248 = arith.constant 248 : index
    %c0_239 = arith.constant 0 : index
    %297 = vector.load %arg4[%c248, %c0_239] : memref<360x97xf32, #tpu.memory_space<vmem>>, vector<4x4xf32>
    %c248_240 = arith.constant 248 : index
    %c4_241 = arith.constant 4 : index
    %298 = vector.load %arg4[%c248_240, %c4_241] : memref<360x97xf32, #tpu.memory_space<vmem>>, vector<4x1xf32>
    %cst_242 = arith.constant dense<0.000000e+00> : vector<4x128xf32>
    %299 = tpu.matmul %297, %296, %cst_242 {dimension_numbers = #tpu.dot_dimension_numbers<[1], [0], [0], [1], [0, 0, 1, 1], [], []>} : vector<4x4xf32>, vector<4x128xf32>, vector<4x128xf32> -> vector<4x128xf32>
    %300 = vector.broadcast %298 : vector<4x1xf32> to vector<4x128xf32>
    %301 = arith.addf %299, %300 : vector<4x128xf32>
    %302 = arith.addf %277, %301 : vector<4x128xf32>
    %303 = vector.extract_strided_slice %4 {offsets = [80, 0], sizes = [4, 1], strides = [1, 1]} : vector<120x1xf32> to vector<4x1xf32>
    %304 = vector.extract_strided_slice %5 {offsets = [80, 0], sizes = [4, 1], strides = [1, 1]} : vector<120x1xf32> to vector<4x1xf32>
    %305 = vector.broadcast %304 : vector<4x1xf32> to vector<4x128xf32>
    %306 = arith.mulf %305, %302 : vector<4x128xf32>
    %307 = vector.broadcast %303 : vector<4x1xf32> to vector<4x128xf32>
    %308 = arith.addf %306, %307 : vector<4x128xf32>
    %cst_243 = arith.constant 0.000000e+00 : f32
    %309 = vector.broadcast %cst_243 : f32 to vector<12x134xf32>
    %c0_244 = arith.constant 0 : index
    %c0_245 = arith.constant 0 : index
    %310 = vector.load %arg7[%c0_244, %c0_245] : memref<96x274xf32, #tpu.memory_space<vmem>>, vector<12x134xf32>
    tpu.vector_store %arg7[%c0_244, %c0_245], %309 {strides = array<i32>} : memref<96x274xf32, #tpu.memory_space<vmem>>, vector<12x134xf32>,
    %c0_246 = arith.constant 0 : index
    %c6_247 = arith.constant 6 : index
    %311 = vector.load %arg7[%c0_246, %c6_247] : memref<96x274xf32, #tpu.memory_space<vmem>>, vector<4x128xf32>
    tpu.vector_store %arg7[%c0_246, %c6_247], %308 {strides = array<i32>} : memref<96x274xf32, #tpu.memory_space<vmem>>, vector<4x128xf32>,
    %c4_248 = arith.constant 4 : index
    %c3_249 = arith.constant 3 : index
    %312 = vector.load %arg7[%c4_248, %c3_249] : memref<96x274xf32, #tpu.memory_space<vmem>>, vector<4x128xf32>
    tpu.vector_store %arg7[%c4_248, %c3_249], %308 {strides = array<i32>} : memref<96x274xf32, #tpu.memory_space<vmem>>, vector<4x128xf32>,
    %c8_250 = arith.constant 8 : index
    %c0_251 = arith.constant 0 : index
    %313 = vector.load %arg7[%c8_250, %c0_251] : memref<96x274xf32, #tpu.memory_space<vmem>>, vector<4x128xf32>
    tpu.vector_store %arg7[%c8_250, %c0_251], %308 {strides = array<i32>} : memref<96x274xf32, #tpu.memory_space<vmem>>, vector<4x128xf32>,
    %c0_252 = arith.constant 0 : index
    %c3_253 = arith.constant 3 : index
    %314 = vector.load %arg7[%c0_252, %c3_253] : memref<96x274xf32, #tpu.memory_space<vmem>>, vector<12x128xf32>
    %c256 = arith.constant 256 : index
    %c0_254 = arith.constant 0 : index
    %315 = vector.load %arg4[%c256, %c0_254] : memref<360x97xf32, #tpu.memory_space<vmem>>, vector<4x12xf32>
    %c256_255 = arith.constant 256 : index
    %c12_256 = arith.constant 12 : index
    %316 = vector.load %arg4[%c256_255, %c12_256] : memref<360x97xf32, #tpu.memory_space<vmem>>, vector<4x1xf32>
    %cst_257 = arith.constant dense<0.000000e+00> : vector<4x128xf32>
    %317 = tpu.matmul %315, %314, %cst_257 {dimension_numbers = #tpu.dot_dimension_numbers<[1], [0], [0], [1], [0, 0, 1, 1], [], []>} : vector<4x12xf32>, vector<12x128xf32>, vector<4x128xf32> -> vector<4x128xf32>
    %318 = vector.broadcast %316 : vector<4x1xf32> to vector<4x128xf32>
    %319 = arith.addf %317, %318 : vector<4x128xf32>
    %cst_258 = arith.constant 0.000000e+00 : f32
    %320 = vector.broadcast %cst_258 : f32 to vector<4x128xf32>
    %321 = arith.cmpf ogt, %319, %320 : vector<4x128xf32>
    %cst_259 = arith.constant 0.000000e+00 : f32
    %322 = vector.broadcast %cst_259 : f32 to vector<4x128xf32>
    %323 = arith.minimumf %319, %322 : vector<4x128xf32>
    %324 = math.exp %323 : vector<4x128xf32>
    %cst_260 = arith.constant 1.000000e+00 : f32
    %325 = vector.broadcast %cst_260 : f32 to vector<4x128xf32>
    %326 = arith.subf %324, %325 : vector<4x128xf32>
    %327 = arith.select %321, %319, %326 : vector<4x128xi1>, vector<4x128xf32>
    %c264 = arith.constant 264 : index
    %c0_261 = arith.constant 0 : index
    %328 = vector.load %arg4[%c264, %c0_261] : memref<360x97xf32, #tpu.memory_space<vmem>>, vector<4x4xf32>
    %c264_262 = arith.constant 264 : index
    %c4_263 = arith.constant 4 : index
    %329 = vector.load %arg4[%c264_262, %c4_263] : memref<360x97xf32, #tpu.memory_space<vmem>>, vector<4x1xf32>
    %cst_264 = arith.constant dense<0.000000e+00> : vector<4x128xf32>
    %330 = tpu.matmul %328, %327, %cst_264 {dimension_numbers = #tpu.dot_dimension_numbers<[1], [0], [0], [1], [0, 0, 1, 1], [], []>} : vector<4x4xf32>, vector<4x128xf32>, vector<4x128xf32> -> vector<4x128xf32>
    %331 = vector.broadcast %329 : vector<4x1xf32> to vector<4x128xf32>
    %332 = arith.addf %330, %331 : vector<4x128xf32>
    %333 = arith.addf %308, %332 : vector<4x128xf32>
    %334 = vector.extract_strided_slice %4 {offsets = [88, 0], sizes = [4, 1], strides = [1, 1]} : vector<120x1xf32> to vector<4x1xf32>
    %335 = vector.extract_strided_slice %5 {offsets = [88, 0], sizes = [4, 1], strides = [1, 1]} : vector<120x1xf32> to vector<4x1xf32>
    %336 = vector.broadcast %335 : vector<4x1xf32> to vector<4x128xf32>
    %337 = arith.mulf %336, %333 : vector<4x128xf32>
    %338 = vector.broadcast %334 : vector<4x1xf32> to vector<4x128xf32>
    %339 = arith.addf %337, %338 : vector<4x128xf32>
    %cst_265 = arith.constant 0.000000e+00 : f32
    %340 = vector.broadcast %cst_265 : f32 to vector<12x146xf32>
    %c0_266 = arith.constant 0 : index
    %c0_267 = arith.constant 0 : index
    %341 = vector.load %arg7[%c0_266, %c0_267] : memref<96x274xf32, #tpu.memory_space<vmem>>, vector<12x146xf32>
    tpu.vector_store %arg7[%c0_266, %c0_267], %340 {strides = array<i32>} : memref<96x274xf32, #tpu.memory_space<vmem>>, vector<12x146xf32>,
    %c0_268 = arith.constant 0 : index
    %c18_269 = arith.constant 18 : index
    %342 = vector.load %arg7[%c0_268, %c18_269] : memref<96x274xf32, #tpu.memory_space<vmem>>, vector<4x128xf32>
    tpu.vector_store %arg7[%c0_268, %c18_269], %339 {strides = array<i32>} : memref<96x274xf32, #tpu.memory_space<vmem>>, vector<4x128xf32>,
    %c4_270 = arith.constant 4 : index
    %c9_271 = arith.constant 9 : index
    %343 = vector.load %arg7[%c4_270, %c9_271] : memref<96x274xf32, #tpu.memory_space<vmem>>, vector<4x128xf32>
    tpu.vector_store %arg7[%c4_270, %c9_271], %339 {strides = array<i32>} : memref<96x274xf32, #tpu.memory_space<vmem>>, vector<4x128xf32>,
    %c8_272 = arith.constant 8 : index
    %c0_273 = arith.constant 0 : index
    %344 = vector.load %arg7[%c8_272, %c0_273] : memref<96x274xf32, #tpu.memory_space<vmem>>, vector<4x128xf32>
    tpu.vector_store %arg7[%c8_272, %c0_273], %339 {strides = array<i32>} : memref<96x274xf32, #tpu.memory_space<vmem>>, vector<4x128xf32>,
    %c0_274 = arith.constant 0 : index
    %c9_275 = arith.constant 9 : index
    %345 = vector.load %arg7[%c0_274, %c9_275] : memref<96x274xf32, #tpu.memory_space<vmem>>, vector<12x128xf32>
    %c272 = arith.constant 272 : index
    %c0_276 = arith.constant 0 : index
    %346 = vector.load %arg4[%c272, %c0_276] : memref<360x97xf32, #tpu.memory_space<vmem>>, vector<4x12xf32>
    %c272_277 = arith.constant 272 : index
    %c12_278 = arith.constant 12 : index
    %347 = vector.load %arg4[%c272_277, %c12_278] : memref<360x97xf32, #tpu.memory_space<vmem>>, vector<4x1xf32>
    %cst_279 = arith.constant dense<0.000000e+00> : vector<4x128xf32>
    %348 = tpu.matmul %346, %345, %cst_279 {dimension_numbers = #tpu.dot_dimension_numbers<[1], [0], [0], [1], [0, 0, 1, 1], [], []>} : vector<4x12xf32>, vector<12x128xf32>, vector<4x128xf32> -> vector<4x128xf32>
    %349 = vector.broadcast %347 : vector<4x1xf32> to vector<4x128xf32>
    %350 = arith.addf %348, %349 : vector<4x128xf32>
    %cst_280 = arith.constant 0.000000e+00 : f32
    %351 = vector.broadcast %cst_280 : f32 to vector<4x128xf32>
    %352 = arith.cmpf ogt, %350, %351 : vector<4x128xf32>
    %cst_281 = arith.constant 0.000000e+00 : f32
    %353 = vector.broadcast %cst_281 : f32 to vector<4x128xf32>
    %354 = arith.minimumf %350, %353 : vector<4x128xf32>
    %355 = math.exp %354 : vector<4x128xf32>
    %cst_282 = arith.constant 1.000000e+00 : f32
    %356 = vector.broadcast %cst_282 : f32 to vector<4x128xf32>
    %357 = arith.subf %355, %356 : vector<4x128xf32>
    %358 = arith.select %352, %350, %357 : vector<4x128xi1>, vector<4x128xf32>
    %c280 = arith.constant 280 : index
    %c0_283 = arith.constant 0 : index
    %359 = vector.load %arg4[%c280, %c0_283] : memref<360x97xf32, #tpu.memory_space<vmem>>, vector<4x4xf32>
    %c280_284 = arith.constant 280 : index
    %c4_285 = arith.constant 4 : index
    %360 = vector.load %arg4[%c280_284, %c4_285] : memref<360x97xf32, #tpu.memory_space<vmem>>, vector<4x1xf32>
    %cst_286 = arith.constant dense<0.000000e+00> : vector<4x128xf32>
    %361 = tpu.matmul %359, %358, %cst_286 {dimension_numbers = #tpu.dot_dimension_numbers<[1], [0], [0], [1], [0, 0, 1, 1], [], []>} : vector<4x4xf32>, vector<4x128xf32>, vector<4x128xf32> -> vector<4x128xf32>
    %362 = vector.broadcast %360 : vector<4x1xf32> to vector<4x128xf32>
    %363 = arith.addf %361, %362 : vector<4x128xf32>
    %364 = arith.addf %339, %363 : vector<4x128xf32>
    %cst_287 = arith.constant 0.000000e+00 : f32
    %365 = vector.broadcast %cst_287 : f32 to vector<12x130xf32>
    %c0_288 = arith.constant 0 : index
    %c0_289 = arith.constant 0 : index
    %366 = vector.load %arg7[%c0_288, %c0_289] : memref<96x274xf32, #tpu.memory_space<vmem>>, vector<12x130xf32>
    tpu.vector_store %arg7[%c0_288, %c0_289], %365 {strides = array<i32>} : memref<96x274xf32, #tpu.memory_space<vmem>>, vector<12x130xf32>,
    %c0_290 = arith.constant 0 : index
    %c2_291 = arith.constant 2 : index
    %367 = vector.load %arg7[%c0_290, %c2_291] : memref<96x274xf32, #tpu.memory_space<vmem>>, vector<4x128xf32>
    tpu.vector_store %arg7[%c0_290, %c2_291], %364 {strides = array<i32>} : memref<96x274xf32, #tpu.memory_space<vmem>>, vector<4x128xf32>,
    %c4_292 = arith.constant 4 : index
    %c1_293 = arith.constant 1 : index
    %368 = vector.load %arg7[%c4_292, %c1_293] : memref<96x274xf32, #tpu.memory_space<vmem>>, vector<4x128xf32>
    tpu.vector_store %arg7[%c4_292, %c1_293], %364 {strides = array<i32>} : memref<96x274xf32, #tpu.memory_space<vmem>>, vector<4x128xf32>,
    %c8_294 = arith.constant 8 : index
    %c0_295 = arith.constant 0 : index
    %369 = vector.load %arg7[%c8_294, %c0_295] : memref<96x274xf32, #tpu.memory_space<vmem>>, vector<4x128xf32>
    tpu.vector_store %arg7[%c8_294, %c0_295], %364 {strides = array<i32>} : memref<96x274xf32, #tpu.memory_space<vmem>>, vector<4x128xf32>,
    %c0_296 = arith.constant 0 : index
    %c1_297 = arith.constant 1 : index
    %370 = vector.load %arg7[%c0_296, %c1_297] : memref<96x274xf32, #tpu.memory_space<vmem>>, vector<12x128xf32>
    %c288 = arith.constant 288 : index
    %c0_298 = arith.constant 0 : index
    %371 = vector.load %arg4[%c288, %c0_298] : memref<360x97xf32, #tpu.memory_space<vmem>>, vector<2x12xf32>
    %c288_299 = arith.constant 288 : index
    %c12_300 = arith.constant 12 : index
    %372 = vector.load %arg4[%c288_299, %c12_300] : memref<360x97xf32, #tpu.memory_space<vmem>>, vector<2x1xf32>
    %cst_301 = arith.constant dense<0.000000e+00> : vector<2x128xf32>
    %373 = tpu.matmul %371, %370, %cst_301 {dimension_numbers = #tpu.dot_dimension_numbers<[1], [0], [0], [1], [0, 0, 1, 1], [], []>} : vector<2x12xf32>, vector<12x128xf32>, vector<2x128xf32> -> vector<2x128xf32>
    %374 = vector.broadcast %372 : vector<2x1xf32> to vector<2x128xf32>
    %375 = arith.addf %373, %374 : vector<2x128xf32>
    %c296 = arith.constant 296 : index
    %c0_302 = arith.constant 0 : index
    %376 = vector.load %arg4[%c296, %c0_302] : memref<360x97xf32, #tpu.memory_space<vmem>>, vector<2x12xf32>
    %c296_303 = arith.constant 296 : index
    %c12_304 = arith.constant 12 : index
    %377 = vector.load %arg4[%c296_303, %c12_304] : memref<360x97xf32, #tpu.memory_space<vmem>>, vector<2x1xf32>
    %cst_305 = arith.constant dense<0.000000e+00> : vector<2x128xf32>
    %378 = tpu.matmul %376, %370, %cst_305 {dimension_numbers = #tpu.dot_dimension_numbers<[1], [0], [0], [1], [0, 0, 1, 1], [], []>} : vector<2x12xf32>, vector<12x128xf32>, vector<2x128xf32> -> vector<2x128xf32>
    %379 = vector.broadcast %377 : vector<2x1xf32> to vector<2x128xf32>
    %380 = arith.addf %378, %379 : vector<2x128xf32>
    %c0_306 = arith.constant 0 : index
    %c0_307 = arith.constant 0 : index
    %381 = vector.load %arg5[%c0_306, %c0_307] : memref<256x256xf32, #tpu.memory_space<vmem>>, vector<128x256xf32>
    %cst_308 = arith.constant dense<0.000000e+00> : vector<2x256xf32>
    %382 = tpu.matmul %375, %381, %cst_308 {dimension_numbers = #tpu.dot_dimension_numbers<[1], [0], [0], [1], [0, 0, 1, 1], [], []>} : vector<2x128xf32>, vector<128x256xf32>, vector<2x256xf32> -> vector<2x256xf32>
    %c128_309 = arith.constant 128 : index
    %c0_310 = arith.constant 0 : index
    %383 = vector.load %arg5[%c128_309, %c0_310] : memref<256x256xf32, #tpu.memory_space<vmem>>, vector<128x256xf32>
    %cst_311 = arith.constant dense<0.000000e+00> : vector<2x256xf32>
    %384 = tpu.matmul %380, %383, %cst_311 {dimension_numbers = #tpu.dot_dimension_numbers<[1], [0], [0], [1], [0, 0, 1, 1], [], []>} : vector<2x128xf32>, vector<128x256xf32>, vector<2x256xf32> -> vector<2x256xf32>
    %385 = arith.addf %382, %384 : vector<2x256xf32>
    %386 = vector.extract_strided_slice %4 {offsets = [96, 0], sizes = [2, 1], strides = [1, 1]} : vector<120x1xf32> to vector<2x1xf32>
    %387 = vector.extract_strided_slice %5 {offsets = [96, 0], sizes = [2, 1], strides = [1, 1]} : vector<120x1xf32> to vector<2x1xf32>
    %388 = vector.broadcast %387 : vector<2x1xf32> to vector<2x256xf32>
    %389 = arith.mulf %388, %385 : vector<2x256xf32>
    %390 = vector.broadcast %386 : vector<2x1xf32> to vector<2x256xf32>
    %391 = arith.addf %389, %390 : vector<2x256xf32>
    %cst_312 = arith.constant 0.000000e+00 : f32
    %392 = vector.broadcast %cst_312 : f32 to vector<6x258xf32>
    %c0_313 = arith.constant 0 : index
    %c0_314 = arith.constant 0 : index
    %393 = vector.load %arg7[%c0_313, %c0_314] : memref<96x274xf32, #tpu.memory_space<vmem>>, vector<6x258xf32>
    tpu.vector_store %arg7[%c0_313, %c0_314], %392 {strides = array<i32>} : memref<96x274xf32, #tpu.memory_space<vmem>>, vector<6x258xf32>,
    %c0_315 = arith.constant 0 : index
    %c2_316 = arith.constant 2 : index
    %394 = vector.load %arg7[%c0_315, %c2_316] : memref<96x274xf32, #tpu.memory_space<vmem>>, vector<2x256xf32>
    tpu.vector_store %arg7[%c0_315, %c2_316], %391 {strides = array<i32>} : memref<96x274xf32, #tpu.memory_space<vmem>>, vector<2x256xf32>,
    %c2_317 = arith.constant 2 : index
    %c1_318 = arith.constant 1 : index
    %395 = vector.load %arg7[%c2_317, %c1_318] : memref<96x274xf32, #tpu.memory_space<vmem>>, vector<2x256xf32>
    tpu.vector_store %arg7[%c2_317, %c1_318], %391 {strides = array<i32>} : memref<96x274xf32, #tpu.memory_space<vmem>>, vector<2x256xf32>,
    %c4_319 = arith.constant 4 : index
    %c0_320 = arith.constant 0 : index
    %396 = vector.load %arg7[%c4_319, %c0_320] : memref<96x274xf32, #tpu.memory_space<vmem>>, vector<2x256xf32>
    tpu.vector_store %arg7[%c4_319, %c0_320], %391 {strides = array<i32>} : memref<96x274xf32, #tpu.memory_space<vmem>>, vector<2x256xf32>,
    %c0_321 = arith.constant 0 : index
    %c1_322 = arith.constant 1 : index
    %397 = vector.load %arg7[%c0_321, %c1_322] : memref<96x274xf32, #tpu.memory_space<vmem>>, vector<6x256xf32>
    %c304 = arith.constant 304 : index
    %c0_323 = arith.constant 0 : index
    %398 = vector.load %arg4[%c304, %c0_323] : memref<360x97xf32, #tpu.memory_space<vmem>>, vector<2x6xf32>
    %c304_324 = arith.constant 304 : index
    %c6_325 = arith.constant 6 : index
    %399 = vector.load %arg4[%c304_324, %c6_325] : memref<360x97xf32, #tpu.memory_space<vmem>>, vector<2x1xf32>
    %cst_326 = arith.constant dense<0.000000e+00> : vector<2x256xf32>
    %400 = tpu.matmul %398, %397, %cst_326 {dimension_numbers = #tpu.dot_dimension_numbers<[1], [0], [0], [1], [0, 0, 1, 1], [], []>} : vector<2x6xf32>, vector<6x256xf32>, vector<2x256xf32> -> vector<2x256xf32>
    %401 = vector.broadcast %399 : vector<2x1xf32> to vector<2x256xf32>
    %402 = arith.addf %400, %401 : vector<2x256xf32>
    %cst_327 = arith.constant 0.000000e+00 : f32
    %403 = vector.broadcast %cst_327 : f32 to vector<2x256xf32>
    %404 = arith.cmpf ogt, %402, %403 : vector<2x256xf32>
    %cst_328 = arith.constant 0.000000e+00 : f32
    %405 = vector.broadcast %cst_328 : f32 to vector<2x256xf32>
    %406 = arith.minimumf %402, %405 : vector<2x256xf32>
    %407 = math.exp %406 : vector<2x256xf32>
    %cst_329 = arith.constant 1.000000e+00 : f32
    %408 = vector.broadcast %cst_329 : f32 to vector<2x256xf32>
    %409 = arith.subf %407, %408 : vector<2x256xf32>
    %410 = arith.select %404, %402, %409 : vector<2x256xi1>, vector<2x256xf32>
    %c312 = arith.constant 312 : index
    %c0_330 = arith.constant 0 : index
    %411 = vector.load %arg4[%c312, %c0_330] : memref<360x97xf32, #tpu.memory_space<vmem>>, vector<2x2xf32>
    %c312_331 = arith.constant 312 : index
    %c2_332 = arith.constant 2 : index
    %412 = vector.load %arg4[%c312_331, %c2_332] : memref<360x97xf32, #tpu.memory_space<vmem>>, vector<2x1xf32>
    %cst_333 = arith.constant dense<0.000000e+00> : vector<2x256xf32>
    %413 = tpu.matmul %411, %410, %cst_333 {dimension_numbers = #tpu.dot_dimension_numbers<[1], [0], [0], [1], [0, 0, 1, 1], [], []>} : vector<2x2xf32>, vector<2x256xf32>, vector<2x256xf32> -> vector<2x256xf32>
    %414 = vector.broadcast %412 : vector<2x1xf32> to vector<2x256xf32>
    %415 = arith.addf %413, %414 : vector<2x256xf32>
    %416 = arith.addf %391, %415 : vector<2x256xf32>
    %417 = vector.extract_strided_slice %4 {offsets = [104, 0], sizes = [2, 1], strides = [1, 1]} : vector<120x1xf32> to vector<2x1xf32>
    %418 = vector.extract_strided_slice %5 {offsets = [104, 0], sizes = [2, 1], strides = [1, 1]} : vector<120x1xf32> to vector<2x1xf32>
    %419 = vector.broadcast %418 : vector<2x1xf32> to vector<2x256xf32>
    %420 = arith.mulf %419, %416 : vector<2x256xf32>
    %421 = vector.broadcast %417 : vector<2x1xf32> to vector<2x256xf32>
    %422 = arith.addf %420, %421 : vector<2x256xf32>
    %cst_334 = arith.constant 0.000000e+00 : f32
    %423 = vector.broadcast %cst_334 : f32 to vector<6x262xf32>
    %c0_335 = arith.constant 0 : index
    %c0_336 = arith.constant 0 : index
    %424 = vector.load %arg7[%c0_335, %c0_336] : memref<96x274xf32, #tpu.memory_space<vmem>>, vector<6x262xf32>
    tpu.vector_store %arg7[%c0_335, %c0_336], %423 {strides = array<i32>} : memref<96x274xf32, #tpu.memory_space<vmem>>, vector<6x262xf32>,
    %c0_337 = arith.constant 0 : index
    %c6_338 = arith.constant 6 : index
    %425 = vector.load %arg7[%c0_337, %c6_338] : memref<96x274xf32, #tpu.memory_space<vmem>>, vector<2x256xf32>
    tpu.vector_store %arg7[%c0_337, %c6_338], %422 {strides = array<i32>} : memref<96x274xf32, #tpu.memory_space<vmem>>, vector<2x256xf32>,
    %c2_339 = arith.constant 2 : index
    %c3_340 = arith.constant 3 : index
    %426 = vector.load %arg7[%c2_339, %c3_340] : memref<96x274xf32, #tpu.memory_space<vmem>>, vector<2x256xf32>
    tpu.vector_store %arg7[%c2_339, %c3_340], %422 {strides = array<i32>} : memref<96x274xf32, #tpu.memory_space<vmem>>, vector<2x256xf32>,
    %c4_341 = arith.constant 4 : index
    %c0_342 = arith.constant 0 : index
    %427 = vector.load %arg7[%c4_341, %c0_342] : memref<96x274xf32, #tpu.memory_space<vmem>>, vector<2x256xf32>
    tpu.vector_store %arg7[%c4_341, %c0_342], %422 {strides = array<i32>} : memref<96x274xf32, #tpu.memory_space<vmem>>, vector<2x256xf32>,
    %c0_343 = arith.constant 0 : index
    %c3_344 = arith.constant 3 : index
    %428 = vector.load %arg7[%c0_343, %c3_344] : memref<96x274xf32, #tpu.memory_space<vmem>>, vector<6x256xf32>
    %c320 = arith.constant 320 : index
    %c0_345 = arith.constant 0 : index
    %429 = vector.load %arg4[%c320, %c0_345] : memref<360x97xf32, #tpu.memory_space<vmem>>, vector<2x6xf32>
    %c320_346 = arith.constant 320 : index
    %c6_347 = arith.constant 6 : index
    %430 = vector.load %arg4[%c320_346, %c6_347] : memref<360x97xf32, #tpu.memory_space<vmem>>, vector<2x1xf32>
    %cst_348 = arith.constant dense<0.000000e+00> : vector<2x256xf32>
    %431 = tpu.matmul %429, %428, %cst_348 {dimension_numbers = #tpu.dot_dimension_numbers<[1], [0], [0], [1], [0, 0, 1, 1], [], []>} : vector<2x6xf32>, vector<6x256xf32>, vector<2x256xf32> -> vector<2x256xf32>
    %432 = vector.broadcast %430 : vector<2x1xf32> to vector<2x256xf32>
    %433 = arith.addf %431, %432 : vector<2x256xf32>
    %cst_349 = arith.constant 0.000000e+00 : f32
    %434 = vector.broadcast %cst_349 : f32 to vector<2x256xf32>
    %435 = arith.cmpf ogt, %433, %434 : vector<2x256xf32>
    %cst_350 = arith.constant 0.000000e+00 : f32
    %436 = vector.broadcast %cst_350 : f32 to vector<2x256xf32>
    %437 = arith.minimumf %433, %436 : vector<2x256xf32>
    %438 = math.exp %437 : vector<2x256xf32>
    %cst_351 = arith.constant 1.000000e+00 : f32
    %439 = vector.broadcast %cst_351 : f32 to vector<2x256xf32>
    %440 = arith.subf %438, %439 : vector<2x256xf32>
    %441 = arith.select %435, %433, %440 : vector<2x256xi1>, vector<2x256xf32>
    %c328 = arith.constant 328 : index
    %c0_352 = arith.constant 0 : index
    %442 = vector.load %arg4[%c328, %c0_352] : memref<360x97xf32, #tpu.memory_space<vmem>>, vector<2x2xf32>
    %c328_353 = arith.constant 328 : index
    %c2_354 = arith.constant 2 : index
    %443 = vector.load %arg4[%c328_353, %c2_354] : memref<360x97xf32, #tpu.memory_space<vmem>>, vector<2x1xf32>
    %cst_355 = arith.constant dense<0.000000e+00> : vector<2x256xf32>
    %444 = tpu.matmul %442, %441, %cst_355 {dimension_numbers = #tpu.dot_dimension_numbers<[1], [0], [0], [1], [0, 0, 1, 1], [], []>} : vector<2x2xf32>, vector<2x256xf32>, vector<2x256xf32> -> vector<2x256xf32>
    %445 = vector.broadcast %443 : vector<2x1xf32> to vector<2x256xf32>
    %446 = arith.addf %444, %445 : vector<2x256xf32>
    %447 = arith.addf %422, %446 : vector<2x256xf32>
    %448 = vector.extract_strided_slice %4 {offsets = [112, 0], sizes = [2, 1], strides = [1, 1]} : vector<120x1xf32> to vector<2x1xf32>
    %449 = vector.extract_strided_slice %5 {offsets = [112, 0], sizes = [2, 1], strides = [1, 1]} : vector<120x1xf32> to vector<2x1xf32>
    %450 = vector.broadcast %449 : vector<2x1xf32> to vector<2x256xf32>
    %451 = arith.mulf %450, %447 : vector<2x256xf32>
    %452 = vector.broadcast %448 : vector<2x1xf32> to vector<2x256xf32>
    %453 = arith.addf %451, %452 : vector<2x256xf32>
    %cst_356 = arith.constant 0.000000e+00 : f32
    %454 = vector.broadcast %cst_356 : f32 to vector<6x274xf32>
    %c0_357 = arith.constant 0 : index
    %c0_358 = arith.constant 0 : index
    %455 = vector.load %arg7[%c0_357, %c0_358] : memref<96x274xf32, #tpu.memory_space<vmem>>, vector<6x274xf32>
    tpu.vector_store %arg7[%c0_357, %c0_358], %454 {strides = array<i32>} : memref<96x274xf32, #tpu.memory_space<vmem>>, vector<6x274xf32>,
    %c0_359 = arith.constant 0 : index
    %c18_360 = arith.constant 18 : index
    %456 = vector.load %arg7[%c0_359, %c18_360] : memref<96x274xf32, #tpu.memory_space<vmem>>, vector<2x256xf32>
    tpu.vector_store %arg7[%c0_359, %c18_360], %453 {strides = array<i32>} : memref<96x274xf32, #tpu.memory_space<vmem>>, vector<2x256xf32>,
    %c2_361 = arith.constant 2 : index
    %c9_362 = arith.constant 9 : index
    %457 = vector.load %arg7[%c2_361, %c9_362] : memref<96x274xf32, #tpu.memory_space<vmem>>, vector<2x256xf32>
    tpu.vector_store %arg7[%c2_361, %c9_362], %453 {strides = array<i32>} : memref<96x274xf32, #tpu.memory_space<vmem>>, vector<2x256xf32>,
    %c4_363 = arith.constant 4 : index
    %c0_364 = arith.constant 0 : index
    %458 = vector.load %arg7[%c4_363, %c0_364] : memref<96x274xf32, #tpu.memory_space<vmem>>, vector<2x256xf32>
    tpu.vector_store %arg7[%c4_363, %c0_364], %453 {strides = array<i32>} : memref<96x274xf32, #tpu.memory_space<vmem>>, vector<2x256xf32>,
    %c0_365 = arith.constant 0 : index
    %c9_366 = arith.constant 9 : index
    %459 = vector.load %arg7[%c0_365, %c9_366] : memref<96x274xf32, #tpu.memory_space<vmem>>, vector<6x256xf32>
    %c336 = arith.constant 336 : index
    %c0_367 = arith.constant 0 : index
    %460 = vector.load %arg4[%c336, %c0_367] : memref<360x97xf32, #tpu.memory_space<vmem>>, vector<2x6xf32>
    %c336_368 = arith.constant 336 : index
    %c6_369 = arith.constant 6 : index
    %461 = vector.load %arg4[%c336_368, %c6_369] : memref<360x97xf32, #tpu.memory_space<vmem>>, vector<2x1xf32>
    %cst_370 = arith.constant dense<0.000000e+00> : vector<2x256xf32>
    %462 = tpu.matmul %460, %459, %cst_370 {dimension_numbers = #tpu.dot_dimension_numbers<[1], [0], [0], [1], [0, 0, 1, 1], [], []>} : vector<2x6xf32>, vector<6x256xf32>, vector<2x256xf32> -> vector<2x256xf32>
    %463 = vector.broadcast %461 : vector<2x1xf32> to vector<2x256xf32>
    %464 = arith.addf %462, %463 : vector<2x256xf32>
    %cst_371 = arith.constant 0.000000e+00 : f32
    %465 = vector.broadcast %cst_371 : f32 to vector<2x256xf32>
    %466 = arith.cmpf ogt, %464, %465 : vector<2x256xf32>
    %cst_372 = arith.constant 0.000000e+00 : f32
    %467 = vector.broadcast %cst_372 : f32 to vector<2x256xf32>
    %468 = arith.minimumf %464, %467 : vector<2x256xf32>
    %469 = math.exp %468 : vector<2x256xf32>
    %cst_373 = arith.constant 1.000000e+00 : f32
    %470 = vector.broadcast %cst_373 : f32 to vector<2x256xf32>
    %471 = arith.subf %469, %470 : vector<2x256xf32>
    %472 = arith.select %466, %464, %471 : vector<2x256xi1>, vector<2x256xf32>
    %c344 = arith.constant 344 : index
    %c0_374 = arith.constant 0 : index
    %473 = vector.load %arg4[%c344, %c0_374] : memref<360x97xf32, #tpu.memory_space<vmem>>, vector<2x2xf32>
    %c344_375 = arith.constant 344 : index
    %c2_376 = arith.constant 2 : index
    %474 = vector.load %arg4[%c344_375, %c2_376] : memref<360x97xf32, #tpu.memory_space<vmem>>, vector<2x1xf32>
    %cst_377 = arith.constant dense<0.000000e+00> : vector<2x256xf32>
    %475 = tpu.matmul %473, %472, %cst_377 {dimension_numbers = #tpu.dot_dimension_numbers<[1], [0], [0], [1], [0, 0, 1, 1], [], []>} : vector<2x2xf32>, vector<2x256xf32>, vector<2x256xf32> -> vector<2x256xf32>
    %476 = vector.broadcast %474 : vector<2x1xf32> to vector<2x256xf32>
    %477 = arith.addf %475, %476 : vector<2x256xf32>
    %478 = arith.addf %453, %477 : vector<2x256xf32>
    %cst_378 = arith.constant 0.000000e+00 : f32
    %479 = vector.broadcast %cst_378 : f32 to vector<14x262xf32>
    %c0_379 = arith.constant 0 : index
    %c0_380 = arith.constant 0 : index
    %480 = vector.load %arg7[%c0_379, %c0_380] : memref<96x274xf32, #tpu.memory_space<vmem>>, vector<14x262xf32>
    tpu.vector_store %arg7[%c0_379, %c0_380], %479 {strides = array<i32>} : memref<96x274xf32, #tpu.memory_space<vmem>>, vector<14x262xf32>,
    %c0_381 = arith.constant 0 : index
    %c6_382 = arith.constant 6 : index
    %481 = vector.load %arg7[%c0_381, %c6_382] : memref<96x274xf32, #tpu.memory_space<vmem>>, vector<2x256xf32>
    tpu.vector_store %arg7[%c0_381, %c6_382], %478 {strides = array<i32>} : memref<96x274xf32, #tpu.memory_space<vmem>>, vector<2x256xf32>,
    %c2_383 = arith.constant 2 : index
    %c5_384 = arith.constant 5 : index
    %482 = vector.load %arg7[%c2_383, %c5_384] : memref<96x274xf32, #tpu.memory_space<vmem>>, vector<2x256xf32>
    tpu.vector_store %arg7[%c2_383, %c5_384], %478 {strides = array<i32>} : memref<96x274xf32, #tpu.memory_space<vmem>>, vector<2x256xf32>,
    %c4_385 = arith.constant 4 : index
    %c4_386 = arith.constant 4 : index
    %483 = vector.load %arg7[%c4_385, %c4_386] : memref<96x274xf32, #tpu.memory_space<vmem>>, vector<2x256xf32>
    tpu.vector_store %arg7[%c4_385, %c4_386], %478 {strides = array<i32>} : memref<96x274xf32, #tpu.memory_space<vmem>>, vector<2x256xf32>,
    %c6_387 = arith.constant 6 : index
    %c3_388 = arith.constant 3 : index
    %484 = vector.load %arg7[%c6_387, %c3_388] : memref<96x274xf32, #tpu.memory_space<vmem>>, vector<2x256xf32>
    tpu.vector_store %arg7[%c6_387, %c3_388], %478 {strides = array<i32>} : memref<96x274xf32, #tpu.memory_space<vmem>>, vector<2x256xf32>,
    %c8_389 = arith.constant 8 : index
    %c2_390 = arith.constant 2 : index
    %485 = vector.load %arg7[%c8_389, %c2_390] : memref<96x274xf32, #tpu.memory_space<vmem>>, vector<2x256xf32>
    tpu.vector_store %arg7[%c8_389, %c2_390], %478 {strides = array<i32>} : memref<96x274xf32, #tpu.memory_space<vmem>>, vector<2x256xf32>,
    %c10 = arith.constant 10 : index
    %c1_391 = arith.constant 1 : index
    %486 = vector.load %arg7[%c10, %c1_391] : memref<96x274xf32, #tpu.memory_space<vmem>>, vector<2x256xf32>
    tpu.vector_store %arg7[%c10, %c1_391], %478 {strides = array<i32>} : memref<96x274xf32, #tpu.memory_space<vmem>>, vector<2x256xf32>,
    %c12_392 = arith.constant 12 : index
    %c0_393 = arith.constant 0 : index
    %487 = vector.load %arg7[%c12_392, %c0_393] : memref<96x274xf32, #tpu.memory_space<vmem>>, vector<2x256xf32>
    tpu.vector_store %arg7[%c12_392, %c0_393], %478 {strides = array<i32>} : memref<96x274xf32, #tpu.memory_space<vmem>>, vector<2x256xf32>,
    %c0_394 = arith.constant 0 : index
    %c3_395 = arith.constant 3 : index
    %488 = vector.load %arg7[%c0_394, %c3_395] : memref<96x274xf32, #tpu.memory_space<vmem>>, vector<14x256xf32>
    %c352 = arith.constant 352 : index
    %c0_396 = arith.constant 0 : index
    %489 = vector.load %arg4[%c352, %c0_396] : memref<360x97xf32, #tpu.memory_space<vmem>>, vector<1x14xf32>
    %c352_397 = arith.constant 352 : index
    %c14 = arith.constant 14 : index
    %490 = vector.load %arg4[%c352_397, %c14] : memref<360x97xf32, #tpu.memory_space<vmem>>, vector<1x1xf32>
    %cst_398 = arith.constant dense<0.000000e+00> : vector<1x256xf32>
    %491 = tpu.matmul %489, %488, %cst_398 {dimension_numbers = #tpu.dot_dimension_numbers<[1], [0], [0], [1], [0, 0, 1, 1], [], []>} : vector<1x14xf32>, vector<14x256xf32>, vector<1x256xf32> -> vector<1x256xf32>
    %492 = vector.broadcast %490 : vector<1x1xf32> to vector<1x256xf32>
    %493 = arith.addf %491, %492 : vector<1x256xf32>
    %c0_399 = arith.constant 0 : index
    %c0_400 = arith.constant 0 : index
    %c0_401 = arith.constant 0 : index
    %494 = vector.load %arg6[%c0_399, %c0_400, %c0_401] : memref<1x1x256xf32, #tpu.memory_space<vmem>>, vector<1x1x256xf32>
    %495 = vector.shape_cast %494 : vector<1x1x256xf32> to vector<1x256xf32>
    %496 = vector.shape_cast %493 : vector<1x256xf32> to vector<1x1x256xf32>
    tpu.vector_store %arg6[%c0_399, %c0_400, %c0_401], %496 {strides = array<i32>} : memref<1x1x256xf32, #tpu.memory_space<vmem>>, vector<1x1x256xf32>,
    return
  }
  func.func @transform_0(%arg0: i32) -> (i32, i32, i32) {
    %c0_i32 = arith.constant 0 : i32
    %c0_i32_0 = arith.constant 0 : i32
    %c0_i32_1 = arith.constant 0 : i32
    return %arg0, %c0_i32, %c0_i32_0 : i32, i32, i32
  }
  func.func @transform_1(%arg0: i32) -> (i32, i32, i32) {
    %c0_i32 = arith.constant 0 : i32
    %c0_i32_0 = arith.constant 0 : i32
    %c0_i32_1 = arith.constant 0 : i32
    return %arg0, %c0_i32, %c0_i32_0 : i32, i32, i32
  }
  func.func @transform_2(%arg0: i32) -> (i32, i32) {
    %c0_i32 = arith.constant 0 : i32
    %c0_i32_0 = arith.constant 0 : i32
    %c0_i32_1 = arith.constant 0 : i32
    return %c0_i32, %c0_i32_0 : i32, i32
  }
  func.func @transform_3(%arg0: i32) -> (i32, i32) {
    %c0_i32 = arith.constant 0 : i32
    %c0_i32_0 = arith.constant 0 : i32
    %c0_i32_1 = arith.constant 0 : i32
    return %c0_i32, %c0_i32_0 : i32, i32
  }
  func.func @transform_4(%arg0: i32) -> (i32, i32) {
    %c0_i32 = arith.constant 0 : i32
    %c0_i32_0 = arith.constant 0 : i32
    %c0_i32_1 = arith.constant 0 : i32
    return %c0_i32, %c0_i32_0 : i32, i32
  }
  func.func @transform_5(%arg0: i32) -> (i32, i32, i32) {
    %c0_i32 = arith.constant 0 : i32
    %c0_i32_0 = arith.constant 0 : i32
    %c0_i32_1 = arith.constant 0 : i32
    return %arg0, %c0_i32, %c0_i32_0 : i32, i32, i32
  }
}

</mosaic_0001>

<llo_original>
// kernel: filmed_decoder_forward.1
$region0: #{filmed_decoder_forward.1}
  #allocation0 [shape = 'u32[]', space=smem, size = 0x4, offset = 0x4, fixed_abs, tag = 'smem constant byte address 0x4 - core index']
  #allocation1 [shape = 'u32[144,128]{1,0:T(1,128)}', space=vmem, size = 0x12000, scoped, tag = 'internal scratch']
  #allocation2 [shape = 'f32[96,274]{1,0:T(8,128)}', space=vmem, size = 0x24000, scoped, tag = 'scratch operand']
  %s0 = inlined_call_operand.vmem [shape: f32[2,9,16], index: 0, kind: input, shape index: {}]
  %s1 = inlined_call_operand.vmem [shape: f32[2,7,1], index: 1, kind: input, shape index: {}]
  %s2 = inlined_call_operand.vmem [shape: f32[240,7], index: 2, kind: input, shape index: {}]
  %s3 = inlined_call_operand.vmem [shape: f32[360,97], index: 3, kind: input, shape index: {}]
  %s4 = inlined_call_operand.vmem [shape: f32[256,256], index: 4, kind: input, shape index: {}]
  %s5 = inlined_call_operand.hbm [shape: f32[2,1,256], index: 5, kind: output, shape index: {}]
  %s6 = sld [smem:[#allocation0]]
  $region53: #{filmed_decoder_forward.1} parent=0
    _
  %s8 = ssub.s32 1, %s6
  %s9 = scalar_select 0, %s8, %s6
  $region1: #{filmed_decoder_forward.1} parent=0
    #allocation3 [shape = 'u8[2048]{0}', space=vmem, size = 0x800, scoped, tag = 'output window, operand 0']
    #allocation4 [shape = 's32[2]{0}', space=sflag, size = 0x8, scoped, tag = 'scoped memory for filmed_decoder_forward.1']
    %10 = vsyncpa [#allocation4], 0
    %s11 = scalar_lea.sflag [#allocation4], 1
    %12 = vsyncpa %s11, 0
    loop: start=0, step=1, limit=4
    $region2: #{filmed_decoder_forward.1} parent=1 // loop_pre_header
      _
    $region3: #{filmed_decoder_forward.1} parent=1 // loop_header
      %s14 = sphi 0, %s18
      %p15 = scmp.ge.s32.totalorder %s14, 4
      %s24 = sphi 0, %s26
      %s27 = sphi 0, %s24
      %s28 = sphi 0, %s27
      %s44 = sphi 0, %s28
      %s50 = sphi 0, %s52
      %s53 = sphi 0, %s50
      %s54 = sphi 0, %s53
      %s70 = sphi 0, %s54
      %s74 = sphi 0, %s74
      %s76 = sphi 0, %s74
      %s77 = sphi 0, %s76
      %s91 = sphi 0, %s77
      %s95 = sphi 0, %s95
      %s97 = sphi 0, %s95
      %s98 = sphi 0, %s97
      %s112 = sphi 0, %s98
      %s116 = sphi 0, %s116
      %s118 = sphi 0, %s116
      %s119 = sphi 0, %s118
      %s133 = sphi 0, %s119
      %s139 = sphi 0, %s141
      %s142 = sphi 0, %s139
      %s143 = sphi 0, %s142
      %s159 = sphi 0, %s143
    $region4: #{filmed_decoder_forward.1} parent=1 // loop_header_branch
      %17 = sbr.rel (%p15) target = $region8
    $region5: #{filmed_decoder_forward.1} parent=1 // loop_body
      %s19 = ssub.s32 %s14, 1
      %s20 = ssub.s32 %s14, 2
      %s21 = sadd.s32 %s14, 1
      %s22 = ssub.s32 %s14, %s21
      %p23 = scmp.eq.s32.totalorder %s22, 0
      %s25 = sadd.s32 %s24, 1
      %s26 = scalar_select %p23, %s24, %s25
      %p29 = pneg %p23
      %p30 = scmp.eq.s32.totalorder %s14, 1
      %p31 = por %p29, %p30
      %p32 = scmp.ne.s32.totalorder %s24, %s27
      %p33 = scmp.eq.s32.totalorder %s14, 0
      %p34 = por %p32, %p33
      %p35 = scmp.ne.s32.totalorder %s24, %s27
      %p36 = scmp.eq.s32.totalorder %s19, 1
      %p37 = por %p35, %p36
      %p38 = scmp.ne.s32.totalorder %s27, %s28
      %p39 = scmp.eq.s32.totalorder %s19, 0
      %p40 = por %p38, %p39
      %p41 = scmp.ne.s32.totalorder %s27, %s28
      %p42 = scmp.eq.s32.totalorder %s20, 1
      %p43 = por %p41, %p42
      %p45 = scmp.ne.s32.totalorder %s28, %s44
      %p46 = scmp.eq.s32.totalorder %s20, 0
      %p47 = por %p45, %p46
      %s48 = ssub.s32 %s14, %s21
      %p49 = scmp.eq.s32.totalorder %s48, 0
      %s51 = sadd.s32 %s50, 1
      %s52 = scalar_select %p49, %s50, %s51
      %p55 = pneg %p49
      %p56 = scmp.eq.s32.totalorder %s14, 1
      %p57 = por %p55, %p56
      %p58 = scmp.ne.s32.totalorder %s50, %s53
      %p59 = scmp.eq.s32.totalorder %s14, 0
      %p60 = por %p58, %p59
      %p61 = scmp.ne.s32.totalorder %s50, %s53
      %p62 = scmp.eq.s32.totalorder %s19, 1
      %p63 = por %p61, %p62
      %p64 = scmp.ne.s32.totalorder %s53, %s54
      %p65 = scmp.eq.s32.totalorder %s19, 0
      %p66 = por %p64, %p65
      %p67 = scmp.ne.s32.totalorder %s53, %s54
      %p68 = scmp.eq.s32.totalorder %s20, 1
      %p69 = por %p67, %p68
      %p71 = scmp.ne.s32.totalorder %s54, %s70
      %p72 = scmp.eq.s32.totalorder %s20, 0
      %p73 = por %p71, %p72
      %s75 = sadd.s32 %s74, 1
      %p78 = scmp.eq.s32.totalorder %s14, 1
      %p79 = scmp.ne.s32.totalorder %s74, %s76
      %p80 = scmp.eq.s32.totalorder %s14, 0
      %p81 = por %p79, %p80
      %p82 = scmp.ne.s32.totalorder %s74, %s76
      %p83 = scmp.eq.s32.totalorder %s19, 1
      %p84 = por %p82, %p83
      %p85 = scmp.ne.s32.totalorder %s76, %s77
      %p86 = scmp.eq.s32.totalorder %s19, 0
      %p87 = por %p85, %p86
      %p88 = scmp.ne.s32.totalorder %s76, %s77
      %p89 = scmp.eq.s32.totalorder %s20, 1
      %p90 = por %p88, %p89
      %p92 = scmp.ne.s32.totalorder %s77, %s91
      %p93 = scmp.eq.s32.totalorder %s20, 0
      %p94 = por %p92, %p93
      %s96 = sadd.s32 %s95, 1
      %p99 = scmp.eq.s32.totalorder %s14, 1
      %p100 = scmp.ne.s32.totalorder %s95, %s97
      %p101 = scmp.eq.s32.totalorder %s14, 0
      %p102 = por %p100, %p101
      %p103 = scmp.ne.s32.totalorder %s95, %s97
      %p104 = scmp.eq.s32.totalorder %s19, 1
      %p105 = por %p103, %p104
      %p106 = scmp.ne.s32.totalorder %s97, %s98
      %p107 = scmp.eq.s32.totalorder %s19, 0
      %p108 = por %p106, %p107
      %p109 = scmp.ne.s32.totalorder %s97, %s98
      %p110 = scmp.eq.s32.totalorder %s20, 1
      %p111 = por %p109, %p110
      %p113 = scmp.ne.s32.totalorder %s98, %s112
      %p114 = scmp.eq.s32.totalorder %s20, 0
      %p115 = por %p113, %p114
      %s117 = sadd.s32 %s116, 1
      %p120 = scmp.eq.s32.totalorder %s14, 1
      %p121 = scmp.ne.s32.totalorder %s116, %s118
      %p122 = scmp.eq.s32.totalorder %s14, 0
      %p123 = por %p121, %p122
      %p124 = scmp.ne.s32.totalorder %s116, %s118
      %p125 = scmp.eq.s32.totalorder %s19, 1
      %p126 = por %p124, %p125
      %p127 = scmp.ne.s32.totalorder %s118, %s119
      %p128 = scmp.eq.s32.totalorder %s19, 0
      %p129 = por %p127, %p128
      %p130 = scmp.ne.s32.totalorder %s118, %s119
      %p131 = scmp.eq.s32.totalorder %s20, 1
      %p132 = por %p130, %p131
      %p134 = scmp.ne.s32.totalorder %s119, %s133
      %p135 = scmp.eq.s32.totalorder %s20, 0
      %p136 = por %p134, %p135
      %s137 = ssub.s32 %s14, %s21
      %p138 = scmp.eq.s32.totalorder %s137, 0
      %s140 = sadd.s32 %s139, 1
      %s141 = scalar_select %p138, %s139, %s140
      %p144 = pneg %p138
      %p145 = scmp.eq.s32.totalorder %s14, 1
      %p146 = por %p144, %p145
      %p147 = scmp.ne.s32.totalorder %s139, %s142
      %p148 = scmp.eq.s32.totalorder %s14, 0
      %p149 = por %p147, %p148
      %p150 = scmp.ne.s32.totalorder %s139, %s142
      %p151 = scmp.eq.s32.totalorder %s19, 1
      %p152 = por %p150, %p151
      %p153 = scmp.ne.s32.totalorder %s142, %s143
      %p154 = scmp.eq.s32.totalorder %s19, 0
      %p155 = por %p153, %p154
      %p156 = scmp.ne.s32.totalorder %s142, %s143
      %p157 = scmp.eq.s32.totalorder %s20, 1
      %p158 = por %p156, %p157
      %p160 = scmp.ne.s32.totalorder %s143, %s159
      %p161 = scmp.eq.s32.totalorder %s20, 0
      %p162 = por %p160, %p161
      %p163 = scmp.le.s32.totalorder 1, %s14
      %p164 = scmp.lt.s32.totalorder %s14, 3
      %p165 = pnand %p163, %p164
      %p166 = pneg %p165
      // Predicated region
      $region9: #{filmed_decoder_forward.1} parent=5 // pred_check
        _
      $region10: #{filmed_decoder_forward.1} parent=5 // pred_check_branch
        %168 = sbr.rel (%p165) target = $region12
      $region11: #{filmed_decoder_forward.1} parent=5 // pred_region
        %s169 = ssub.s32 %s14, 1
        // Predicated region
        $region13: #{filmed_decoder_forward.1} parent=11 // pred_check
          %p170 = pneg %p87
        $region14: #{filmed_decoder_forward.1} parent=11 // pred_check_branch
          %172 = sbr.rel (%p170) target = $region16
        $region15: #{filmed_decoder_forward.1} parent=11 // pred_region
          _
        $region16: #{filmed_decoder_forward.1} parent=11 // pred_fallthru
          _
        // Predicated region
        $region17: #{filmed_decoder_forward.1} parent=11 // pred_check
          %p173 = pneg %p108
        $region18: #{filmed_decoder_forward.1} parent=11 // pred_check_branch
          %175 = sbr.rel (%p173) target = $region20
        $region19: #{filmed_decoder_forward.1} parent=11 // pred_region
          _
        $region20: #{filmed_decoder_forward.1} parent=11 // pred_fallthru
          _
        // Predicated region
        $region21: #{filmed_decoder_forward.1} parent=11 // pred_check
          %p176 = pneg %p129
        $region22: #{filmed_decoder_forward.1} parent=11 // pred_check_branch
          %178 = sbr.rel (%p176) target = $region24
        $region23: #{filmed_decoder_forward.1} parent=11 // pred_region
          _
        $region24: #{filmed_decoder_forward.1} parent=11 // pred_fallthru
          _
      $region12: #{filmed_decoder_forward.1} parent=5 // pred_fallthru
        _
      %p179 = scmp.lt.s32.totalorder %s14, 2
      // Predicated region
      $region25: #{filmed_decoder_forward.1} parent=5 // pred_check
        %p180 = pneg %p179
      $region26: #{filmed_decoder_forward.1} parent=5 // pred_check_branch
        %182 = sbr.rel (%p180) target = $region28
      $region27: #{filmed_decoder_forward.1} parent=5 // pred_region
        // Predicated region
        $region29: #{filmed_decoder_forward.1} parent=27 // pred_check
          %p183 = pneg %p34
        $region30: #{filmed_decoder_forward.1} parent=27 // pred_check_branch
          %185 = sbr.rel (%p183) target = $region32
        $region31: #{filmed_decoder_forward.1} parent=27 // pred_region
          %p186 = scmp.lt.s32.totalorder %s14, 1
          %s187 = scalar_select %p186, %s14, 1
          %s188 = smul.addr %s187, 2
          %s189 = smul.addr %s188, 8
          %s190 = scalar_lea.vmem %s0, %s189
        $region32: #{filmed_decoder_forward.1} parent=27 // pred_fallthru
          _
        // Predicated region
        $region33: #{filmed_decoder_forward.1} parent=27 // pred_check
          %p191 = pneg %p60
        $region34: #{filmed_decoder_forward.1} parent=27 // pred_check_branch
          %193 = sbr.rel (%p191) target = $region36
        $region35: #{filmed_decoder_forward.1} parent=27 // pred_region
          %p194 = scmp.lt.s32.totalorder %s14, 1
          %s195 = scalar_select %p194, %s14, 1
          %s196 = smul.addr %s195, 8
          %s197 = scalar_lea.vmem %s1, %s196
        $region36: #{filmed_decoder_forward.1} parent=27 // pred_fallthru
          _
      $region28: #{filmed_decoder_forward.1} parent=5 // pred_fallthru
        _
      %p198 = scmp.le.s32.totalorder 1, %s14
      %p199 = scmp.lt.s32.totalorder %s14, 3
      %p200 = pnand %p198, %p199
      %p201 = pneg %p200
      // Predicated region
      $region37: #{filmed_decoder_forward.1} parent=5 // pred_check
        _
      $region38: #{filmed_decoder_forward.1} parent=5 // pred_check_branch
        %203 = sbr.rel (%p200) target = $region40
      $region39: #{filmed_decoder_forward.1} parent=5 // pred_region
        %s204 = ssub.s32 %s14, 1
        %p205 = scmp.lt.s32.totalorder %s19, 1
        %s206 = scalar_select %p205, %s19, 1
        %s207 = smul.addr %s206, 2
        %s208 = smul.addr %s207, 8
        %s209 = scalar_lea.vmem %s0, %s208
        %p210 = pneg %p40
        %p211 = pneg %p37
        %p212 = scmp.lt.s32.totalorder %s19, 1
        %s213 = scalar_select %p212, %s19, 1
        %s214 = smul.addr %s213, 8
        %s215 = scalar_lea.vmem %s1, %s214
        %p216 = pneg %p66
        %p217 = pneg %p63
        %p218 = pneg %p87
        %p219 = pneg %p84
        %p220 = pneg %p108
        %p221 = pneg %p105
        %p222 = pneg %p129
        %p223 = pneg %p126
        %p224 = pneg %p155
        %p225 = pneg %p152
        %s226 = sand.u32 %s142, 1
        %s227 = scalar_lea.sflag [#allocation4], %s226
        %s228 = sand.u32 %s142, 1
        %s229 = smul.addr %s228, 2
        %s230 = scalar_lea.vmem [#allocation3], %s229
        %p231 = scmp.lt.s32.totalorder %s19, 1
        %s232 = scalar_select %p231, %s19, 1
        %s233 = smul.addr %s232, 2
        %s234 = smul.addr %s233, 8
        %s235 = scalar_lea.vmem %s0, %s234
        %p236 = scmp.lt.s32.totalorder %s19, 1
        %s237 = scalar_select %p236, %s19, 1
        %s238 = smul.addr %s237, 8
        %s239 = scalar_lea.vmem %s1, %s238
        %v240 = vld [vmem:[%s2] sm:$0xff]
        %v241 = vld [vmem:[%s2 + $0x8] sm:$0xff]
        %v242 = vld [vmem:[%s2 + $0x10] sm:$0xff]
        %v243 = vld [vmem:[%s2 + $0x18] sm:$0xff]
        %v244 = vld [vmem:[%s2 + $0x20] sm:$0xff]
        %v245 = vld [vmem:[%s2 + $0x28] sm:$0xff]
        %v246 = vld [vmem:[%s2 + $0x30] sm:$0xff]
        %v247 = vld [vmem:[%s2 + $0x38] sm:$0xff]
        %v248 = vld [vmem:[%s2 + $0x40] sm:$0xff]
        %v249 = vld [vmem:[%s2 + $0x48] sm:$0xff]
        %v250 = vld [vmem:[%s2 + $0x50] sm:$0xff]
        %v251 = vld [vmem:[%s2 + $0x58] sm:$0xff]
        %v252 = vld [vmem:[%s2 + $0x60] sm:$0xff]
        %v253 = vld [vmem:[%s2 + $0x68] sm:$0xff]
        %v254 = vld [vmem:[%s2 + $0x70] sm:$0xff]
        %v255 = vld [vmem:[%s2 + $0x78] sm:$0xff]
        %v256 = vld [vmem:[%s2 + $0x80] sm:$0xff]
        %v257 = vld [vmem:[%s2 + $0x88] sm:$0xff]
        %v258 = vld [vmem:[%s2 + $0x90] sm:$0xff]
        %v259 = vld [vmem:[%s2 + $0x98] sm:$0xff]
        %v260 = vld [vmem:[%s2 + $0xa0] sm:$0xff]
        %v261 = vld [vmem:[%s2 + $0xa8] sm:$0xff]
        %v262 = vld [vmem:[%s2 + $0xb0] sm:$0xff]
        %v263 = vld [vmem:[%s2 + $0xb8] sm:$0xff]
        %v264 = vld [vmem:[%s2 + $0xc0] sm:$0xff]
        %v265 = vld [vmem:[%s2 + $0xc8] sm:$0xff]
        %v266 = vld [vmem:[%s2 + $0xd0] sm:$0xff]
        %v267 = vld [vmem:[%s2 + $0xd8] sm:$0xff]
        %v268 = vld [vmem:[%s2 + $0xe0] sm:$0xff]
        %v269 = vld [vmem:[%s2 + $0xe8] sm:$0xff]
        %v270 = vld [vmem:[%s239] sm:$0x7f]
        %vm271 = vcmask 56320
        %v273 = vsel %vm271, %v240, 0
        %v276 = vsel %vm271, %v241, 0
        %v279 = vsel %vm271, %v242, 0
        %v282 = vsel %vm271, %v243, 0
        %v285 = vsel %vm271, %v244, 0
        %v288 = vsel %vm271, %v245, 0
        %v291 = vsel %vm271, %v246, 0
        %v294 = vsel %vm271, %v247, 0
        %v297 = vsel %vm271, %v248, 0
        %v300 = vsel %vm271, %v249, 0
        %v303 = vsel %vm271, %v250, 0
        %v306 = vsel %vm271, %v251, 0
        %v309 = vsel %vm271, %v252, 0
        %v312 = vsel %vm271, %v253, 0
        %v315 = vsel %vm271, %v254, 0
        %v318 = vsel %vm271, %v255, 0
        %v321 = vsel %vm271, %v256, 0
        %v324 = vsel %vm271, %v257, 0
        %v327 = vsel %vm271, %v258, 0
        %v330 = vsel %vm271, %v259, 0
        %v333 = vsel %vm271, %v260, 0
        %v336 = vsel %vm271, %v261, 0
        %v339 = vsel %vm271, %v262, 0
        %v342 = vsel %vm271, %v263, 0
        %v345 = vsel %vm271, %v264, 0
        %v348 = vsel %vm271, %v265, 0
        %v351 = vsel %vm271, %v266, 0
        %v354 = vsel %vm271, %v267, 0
        %v357 = vsel %vm271, %v268, 0
        %v360 = vsel %vm271, %v269, 0
        %vm362 = vcmask 1046528
        %v364 = vsel %vm362, %v270, 0
        %366 = vmatprep.subr.mxu0 0.0
        %367 = vmatpush1.msra.mxu0 0.0
        %368 = vmatprep.subr.mxu0 0.0
        %369 = vmatpush1.msra.mxu0 0.0
        %370 = vmatprep.subr.mxu0 0.0
        %371 = vmatpush1.msra.mxu0 0.0
        %372 = vmatprep.subr.mxu0 0.0
        %373 = vmatpush1.msra.mxu0 0.0
        %374 = vmatprep.subr.mxu0 0.0
        %375 = vmatpush1.msra.mxu0 0.0
        %376 = vmatprep.subr.mxu0 0.0
        %377 = vmatpush1.msra.mxu0 0.0
        %378 = vmatprep.subr.mxu0 0.0
        %379 = vmatpush1.msra.mxu0 0.0
        %380 = vmatprep.subr.mxu0 0.0
        %381 = vmatpush1.msra.mxu0 0.0
        %382 = vmatprep.subr.mxu0 0.0
        %383 = vmatpush1.msra.mxu0 0.0
        %384 = vmatprep.subr.mxu0 0.0
        %385 = vmatpush1.msra.mxu0 0.0
        %386 = vmatprep.subr.mxu0 0.0
        %387 = vmatpush1.msra.mxu0 0.0
        %388 = vmatprep.subr.mxu0 0.0
        %389 = vmatpush1.msra.mxu0 0.0
        %390 = vmatprep.subr.mxu0 0.0
        %391 = vmatpush1.msra.mxu0 0.0
        %392 = vmatprep.subr.mxu0 0.0
        %393 = vmatpush1.msra.mxu0 0.0
        %394 = vmatprep.subr.mxu0 0.0
        %395 = vmatpush1.msra.mxu0 0.0
        %396 = vmatprep.subr.mxu0 0.0
        %397 = vmatpush1.msra.mxu0 %v364
        %398 = vmatprep.subr.mxu0 0.0
        %399 = vmatpush2.msra.mxu0 0.0
        %400 = vmatprep.subr.mxu0 0.0
        %401 = vmatpush2.msra.mxu0 0.0
        %402 = vmatprep.subr.mxu0 0.0
        %403 = vmatpush2.msra.mxu0 0.0
        %404 = vmatprep.subr.mxu0 0.0
        %405 = vmatpush2.msra.mxu0 0.0
        %406 = vmatprep.subr.mxu0 0.0
        %407 = vmatpush2.msra.mxu0 0.0
        %408 = vmatprep.subr.mxu0 0.0
        %409 = vmatpush2.msra.mxu0 0.0
        %410 = vmatprep.subr.mxu0 0.0
        %411 = vmatpush2.msra.mxu0 0.0
        %412 = vmatprep.subr.mxu0 0.0
        %413 = vmatpush2.msra.mxu0 0.0
        %414 = vmatprep.subr.mxu0 0.0
        %415 = vmatpush2.msra.mxu0 0.0
        %416 = vmatprep.subr.mxu0 0.0
        %417 = vmatpush2.msra.mxu0 0.0
        %418 = vmatprep.subr.mxu0 0.0
        %419 = vmatpush2.msra.mxu0 0.0
        %420 = vmatprep.subr.mxu0 0.0
        %421 = vmatpush2.msra.mxu0 0.0
        %422 = vmatprep.subr.mxu0 0.0
        %423 = vmatpush2.msra.mxu0 0.0
        %424 = vmatprep.subr.mxu0 0.0
        %425 = vmatpush2.msra.mxu0 0.0
        %426 = vmatprep.subr.mxu0 0.0
        %427 = vmatpush2.msra.mxu0 0.0
        %428 = vmatprep.subr.mxu0 0.0
        %429 = vmatpush2.msra.mxu0 0.0
        %430 = vmatprep.mubr.f32.mxu0 0.0
        %431 = vmatmul.mubr.f32.gmra.mxu0 %v273
        %v432 = vpop.f32.mrf.mxu0
        %v433 = vadd.f32 0.0, %v432
        %v434 = vpop.f32.mrf.mxu0
        %435 = vmatprep.mubr.f32.mxu0 0.0
        %436 = vmatmul.mubr.f32.gmra.mxu0 %v276
        %v437 = vpop.f32.mrf.mxu0
        %v438 = vadd.f32 0.0, %v437
        %v439 = vpop.f32.mrf.mxu0
        %440 = vmatprep.mubr.f32.mxu0 0.0
        %441 = vmatmul.mubr.f32.gmra.mxu0 %v279
        %v442 = vpop.f32.mrf.mxu0
        %v443 = vadd.f32 0.0, %v442
        %v444 = vpop.f32.mrf.mxu0
        %445 = vmatprep.mubr.f32.mxu0 0.0
        %446 = vmatmul.mubr.f32.gmra.mxu0 %v282
        %v447 = vpop.f32.mrf.mxu0
        %v448 = vadd.f32 0.0, %v447
        %v449 = vpop.f32.mrf.mxu0
        %450 = vmatprep.mubr.f32.mxu0 0.0
        %451 = vmatmul.mubr.f32.gmra.mxu0 %v285
        %v452 = vpop.f32.mrf.mxu0
        %v453 = vadd.f32 0.0, %v452
        %v454 = vpop.f32.mrf.mxu0
        %455 = vmatprep.mubr.f32.mxu0 0.0
        %456 = vmatmul.mubr.f32.gmra.mxu0 %v288
        %v457 = vpop.f32.mrf.mxu0
        %v458 = vadd.f32 0.0, %v457
        %v459 = vpop.f32.mrf.mxu0
        %460 = vmatprep.mubr.f32.mxu0 0.0
        %461 = vmatmul.mubr.f32.gmra.mxu0 %v291
        %v462 = vpop.f32.mrf.mxu0
        %v463 = vadd.f32 0.0, %v462
        %v464 = vpop.f32.mrf.mxu0
        %465 = vmatprep.mubr.f32.mxu0 0.0
        %466 = vmatmul.mubr.f32.gmra.mxu0 %v294
        %v467 = vpop.f32.mrf.mxu0
        %v468 = vadd.f32 0.0, %v467
        %v469 = vpop.f32.mrf.mxu0
        %470 = vmatprep.mubr.f32.mxu0 0.0
        %471 = vmatmul.mubr.f32.gmra.mxu0 %v297
        %v472 = vpop.f32.mrf.mxu0
        %v473 = vadd.f32 0.0, %v472
        %v474 = vpop.f32.mrf.mxu0
        %475 = vmatprep.mubr.f32.mxu0 0.0
        %476 = vmatmul.mubr.f32.gmra.mxu0 %v300
        %v477 = vpop.f32.mrf.mxu0
        %v478 = vadd.f32 0.0, %v477
        %v479 = vpop.f32.mrf.mxu0
        %480 = vmatprep.mubr.f32.mxu0 0.0
        %481 = vmatmul.mubr.f32.gmra.mxu0 %v303
        %v482 = vpop.f32.mrf.mxu0
        %v483 = vadd.f32 0.0, %v482
        %v484 = vpop.f32.mrf.mxu0
        %485 = vmatprep.mubr.f32.mxu0 0.0
        %486 = vmatmul.mubr.f32.gmra.mxu0 %v306
        %v487 = vpop.f32.mrf.mxu0
        %v488 = vadd.f32 0.0, %v487
        %v489 = vpop.f32.mrf.mxu0
        %490 = vmatprep.mubr.f32.mxu0 0.0
        %491 = vmatmul.mubr.f32.gmra.mxu0 %v309
        %v492 = vpop.f32.mrf.mxu0
        %v493 = vadd.f32 0.0, %v492
        %v494 = vpop.f32.mrf.mxu0
        %495 = vmatprep.mubr.f32.mxu0 0.0
        %496 = vmatmul.mubr.f32.gmra.mxu0 %v312
        %v497 = vpop.f32.mrf.mxu0
        %v498 = vadd.f32 0.0, %v497
        %v499 = vpop.f32.mrf.mxu0
        %500 = vmatprep.mubr.f32.mxu0 0.0
        %501 = vmatmul.mubr.f32.gmra.mxu0 %v315
        %v502 = vpop.f32.mrf.mxu0
        %v503 = vadd.f32 0.0, %v502
        %v504 = vpop.f32.mrf.mxu0
        %505 = vmatprep.mubr.f32.mxu0 0.0
        %506 = vmatmul.mubr.f32.gmra.mxu0 %v318
        %v507 = vpop.f32.mrf.mxu0
        %v508 = vadd.f32 0.0, %v507
        %v509 = vpop.f32.mrf.mxu0
        %510 = vmatprep.mubr.f32.mxu0 0.0
        %511 = vmatmul.mubr.f32.gmra.mxu0 %v321
        %v512 = vpop.f32.mrf.mxu0
        %v513 = vadd.f32 0.0, %v512
        %v514 = vpop.f32.mrf.mxu0
        %515 = vmatprep.mubr.f32.mxu0 0.0
        %516 = vmatmul.mubr.f32.gmra.mxu0 %v324
        %v517 = vpop.f32.mrf.mxu0
        %v518 = vadd.f32 0.0, %v517
        %v519 = vpop.f32.mrf.mxu0
        %520 = vmatprep.mubr.f32.mxu0 0.0
        %521 = vmatmul.mubr.f32.gmra.mxu0 %v327
        %v522 = vpop.f32.mrf.mxu0
        %v523 = vadd.f32 0.0, %v522
        %v524 = vpop.f32.mrf.mxu0
        %525 = vmatprep.mubr.f32.mxu0 0.0
        %526 = vmatmul.mubr.f32.gmra.mxu0 %v330
        %v527 = vpop.f32.mrf.mxu0
        %v528 = vadd.f32 0.0, %v527
        %v529 = vpop.f32.mrf.mxu0
        %530 = vmatprep.mubr.f32.mxu0 0.0
        %531 = vmatmul.mubr.f32.gmra.mxu0 %v333
        %v532 = vpop.f32.mrf.mxu0
        %v533 = vadd.f32 0.0, %v532
        %v534 = vpop.f32.mrf.mxu0
        %535 = vmatprep.mubr.f32.mxu0 0.0
        %536 = vmatmul.mubr.f32.gmra.mxu0 %v336
        %v537 = vpop.f32.mrf.mxu0
        %v538 = vadd.f32 0.0, %v537
        %v539 = vpop.f32.mrf.mxu0
        %540 = vmatprep.mubr.f32.mxu0 0.0
        %541 = vmatmul.mubr.f32.gmra.mxu0 %v339
        %v542 = vpop.f32.mrf.mxu0
        %v543 = vadd.f32 0.0, %v542
        %v544 = vpop.f32.mrf.mxu0
        %545 = vmatprep.mubr.f32.mxu0 0.0
        %546 = vmatmul.mubr.f32.gmra.mxu0 %v342
        %v547 = vpop.f32.mrf.mxu0
        %v548 = vadd.f32 0.0, %v547
        %v549 = vpop.f32.mrf.mxu0
        %550 = vmatprep.mubr.f32.mxu0 0.0
        %551 = vmatmul.mubr.f32.gmra.mxu0 %v345
        %v552 = vpop.f32.mrf.mxu0
        %v553 = vadd.f32 0.0, %v552
        %v554 = vpop.f32.mrf.mxu0
        %555 = vmatprep.mubr.f32.mxu0 0.0
        %556 = vmatmul.mubr.f32.gmra.mxu0 %v348
        %v557 = vpop.f32.mrf.mxu0
        %v558 = vadd.f32 0.0, %v557
        %v559 = vpop.f32.mrf.mxu0
        %560 = vmatprep.mubr.f32.mxu0 0.0
        %561 = vmatmul.mubr.f32.gmra.mxu0 %v351
        %v562 = vpop.f32.mrf.mxu0
        %v563 = vadd.f32 0.0, %v562
        %v564 = vpop.f32.mrf.mxu0
        %565 = vmatprep.mubr.f32.mxu0 0.0
        %566 = vmatmul.mubr.f32.gmra.mxu0 %v354
        %v567 = vpop.f32.mrf.mxu0
        %v568 = vadd.f32 0.0, %v567
        %v569 = vpop.f32.mrf.mxu0
        %570 = vmatprep.mubr.f32.mxu0 0.0
        %571 = vmatmul.mubr.f32.gmra.mxu0 %v357
        %v572 = vpop.f32.mrf.mxu0
        %v573 = vadd.f32 0.0, %v572
        %v574 = vpop.f32.mrf.mxu0
        %575 = vmatprep.mubr.f32.mxu0 0.0
        %576 = vmatmul.mubr.f32.gmra.mxu0 %v360
        %v577 = vpop.f32.mrf.mxu0
        %v578 = vadd.f32 0.0, %v577
        %v579 = vpop.f32.mrf.mxu0
        %580 = vdwg.mxu0
        %v581 = vld [vmem:[%s235] sm:$0xff]
        %v582 = vld [vmem:[%s235 + $0x8] sm:$0x1]
        %vm583 = vcmask 179200
        %584 = vst.msk [vmem:[#allocation2] sm:$0xff] %vm583, 0.0
        %585 = vst.msk [vmem:[#allocation2 + $0x18] sm:$0xff] %vm583, 0.0
        %586 = vst.msk [vmem:[#allocation2 + $0x30] sm:$0xff] %vm583, 0.0
        %587 = vst.msk [vmem:[#allocation2 + $0x48] sm:$0xff] %vm583, 0.0
        %588 = vst.msk [vmem:[#allocation2 + $0x60] sm:$0xff] %vm583, 0.0
        %589 = vst.msk [vmem:[#allocation2 + $0x78] sm:$0xff] %vm583, 0.0
        %590 = vst.msk [vmem:[#allocation2 + $0x90] sm:$0xff] %vm583, 0.0
        %vm591 = vcmask 178176
        %592 = vst.msk [vmem:[#allocation2 + $0xa8] sm:$0x7f] %vm591, 0.0
        %595 = vrot.lane.b32.xlu0 %v581, 6
        %v596 = vpop.permute.xlu0 %595
        %597 = vrot.lane.b32.xlu0 %v582, 6
        %v598 = vpop.permute.xlu0 %597
        %vm601 = vcmask 179248
        %602 = vst.msk [vmem:[#allocation2] sm:$0xff] %vm601, %v596
        %vm603 = vcmask 172080
        %604 = vst.msk [vmem:[#allocation2 + $0x18] sm:$0x1] %vm603, %v598
        %vm605 = vcmask 1040384
        %v606 = vrot.slane %v581, 7
        %v607 = vrot.slane %v582, 7
        %v608 = vsel %vm605, %v606, %v607
        %609 = vrot.lane.b32.xlu0 %v606, 5
        %v610 = vpop.permute.xlu0 %609
        %611 = vrot.lane.b32.xlu0 %v608, 5
        %v612 = vpop.permute.xlu0 %611
        %vm615 = vcmask 171049
        %616 = vst.msk [vmem:[#allocation2 + $0x18] sm:$0xfe] %vm615, %v610
        %vm617 = vcmask 164904
        %618 = vst.msk [vmem:[#allocation2 + $0x30] sm:$0x3] %vm617, %v612
        %vm619 = vcmask 1041408
        %v620 = vrot.slane %v581, 6
        %v621 = vrot.slane %v582, 6
        %v622 = vsel %vm619, %v620, %v621
        %623 = vrot.lane.b32.xlu0 %v620, 4
        %v624 = vpop.permute.xlu0 %623
        %625 = vrot.lane.b32.xlu0 %v622, 4
        %v626 = vpop.permute.xlu0 %625
        %vm629 = vcmask 162850
        %630 = vst.msk [vmem:[#allocation2 + $0x30] sm:$0xfc] %vm629, %v624
        %vm631 = vcmask 157728
        %632 = vst.msk [vmem:[#allocation2 + $0x48] sm:$0x7] %vm631, %v626
        %vm633 = vcmask 1042432
        %v634 = vrot.slane %v581, 5
        %v635 = vrot.slane %v582, 5
        %v636 = vsel %vm633, %v634, %v635
        %637 = vrot.lane.b32.xlu0 %v634, 3
        %v638 = vpop.permute.xlu0 %637
        %639 = vrot.lane.b32.xlu0 %v636, 3
        %v640 = vpop.permute.xlu0 %639
        %vm643 = vcmask 154651
        %644 = vst.msk [vmem:[#allocation2 + $0x48] sm:$0xf8] %vm643, %v638
        %vm645 = vcmask 150552
        %646 = vst.msk [vmem:[#allocation2 + $0x60] sm:$0xf] %vm645, %v640
        %vm647 = vcmask 1043456
        %v648 = vrot.slane %v581, 4
        %v649 = vrot.slane %v582, 4
        %v650 = vsel %vm647, %v648, %v649
        %651 = vrot.lane.b32.xlu0 %v648, 2
        %v652 = vpop.permute.xlu0 %651
        %653 = vrot.lane.b32.xlu0 %v650, 2
        %v654 = vpop.permute.xlu0 %653
        %vm657 = vcmask 146452
        %658 = vst.msk [vmem:[#allocation2 + $0x60] sm:$0xf0] %vm657, %v652
        %vm659 = vcmask 143376
        %660 = vst.msk [vmem:[#allocation2 + $0x78] sm:$0x1f] %vm659, %v654
        %vm661 = vcmask 1044480
        %v662 = vrot.slane %v581, 3
        %v663 = vrot.slane %v582, 3
        %v664 = vsel %vm661, %v662, %v663
        %665 = vrot.lane.b32.xlu0 %v662, 1
        %v666 = vpop.permute.xlu0 %665
        %667 = vrot.lane.b32.xlu0 %v664, 1
        %v668 = vpop.permute.xlu0 %667
        %vm671 = vcmask 138253
        %672 = vst.msk [vmem:[#allocation2 + $0x78] sm:$0xe0] %vm671, %v666
        %vm673 = vcmask 136200
        %674 = vst.msk [vmem:[#allocation2 + $0x90] sm:$0x3f] %vm673, %v668
        %vm675 = vcmask 1045504
        %v676 = vrot.slane %v581, 2
        %v677 = vrot.slane %v582, 2
        %v678 = vsel %vm675, %v676, %v677
        %vm681 = vcmask 130054
        %682 = vst.msk [vmem:[#allocation2 + $0x90] sm:$0xc0] %vm681, %v676
        %vm683 = vcmask 129024
        %684 = vst.msk [vmem:[#allocation2 + $0xa8] sm:$0x7f] %vm683, %v678
        %v685 = vld [vmem:[#allocation2] sm:$0xff]
        %v686 = vld [vmem:[#allocation2 + $0x18] sm:$0xff]
        %v687 = vld [vmem:[#allocation2 + $0x30] sm:$0xff]
        %v688 = vld [vmem:[#allocation2 + $0x48] sm:$0xff]
        %v689 = vld [vmem:[#allocation2 + $0x60] sm:$0xff]
        %v690 = vld [vmem:[#allocation2 + $0x78] sm:$0xff]
        %v691 = vld [vmem:[#allocation2 + $0x90] sm:$0xff]
        %v692 = vld [vmem:[#allocation2 + $0xa8] sm:$0x7f]
        %v693 = vld [vmem:[%s3] sm:$0xff]
        %v694 = vld [vmem:[%s3 + $0x8] sm:$0xff]
        %v695 = vld [vmem:[%s3 + $0x10] sm:$0xff]
        %v696 = vld [vmem:[%s3 + $0x18] sm:$0xff]
        %698 = vset.pattern.permute.xlu0 63
        %699 = vperm.xlu0 %698, %v693
        %v700 = vpop.permute.xlu0 %699
        %703 = vset.pattern.permute.xlu0 63
        %704 = vperm.xlu0 %703, %v694
        %v705 = vpop.permute.xlu0 %704
        %708 = vset.pattern.permute.xlu0 63
        %709 = vperm.xlu0 %708, %v695
        %v710 = vpop.permute.xlu0 %709
        %713 = vset.pattern.permute.xlu0 63
        %714 = vperm.xlu0 %713, %v696
        %v715 = vpop.permute.xlu0 %714
        %725 = vrot.lane.b32.xlu0 %v685, 125
        %v726 = vpop.permute.xlu0 %725
        %727 = vrot.lane.b32.xlu0 %v686, 125
        %v728 = vpop.permute.xlu0 %727
        %729 = vrot.lane.b32.xlu0 %v687, 125
        %v730 = vpop.permute.xlu0 %729
        %731 = vrot.lane.b32.xlu0 %v688, 125
        %v732 = vpop.permute.xlu0 %731
        %733 = vrot.lane.b32.xlu0 %v689, 125
        %v734 = vpop.permute.xlu0 %733
        %735 = vrot.lane.b32.xlu0 %v690, 125
        %v736 = vpop.permute.xlu0 %735
        %737 = vrot.lane.b32.xlu0 %v691, 125
        %v738 = vpop.permute.xlu0 %737
        %739 = vrot.lane.b32.xlu0 %v692, 125
        %v740 = vpop.permute.xlu0 %739
        %vm748 = vcmask 515072
        %v749 = vsel %vm748, %v693, 0
        %v751 = vsel %vm748, %v694, 0
        %v753 = vsel %vm748, %v695, 0
        %v755 = vsel %vm748, %v696, 0
        %v757 = vsel %vm362, %v740, 0
        %759 = vmatprep.subr.mxu0 0.0
        %760 = vmatpush1.msra.mxu0 0.0
        %761 = vmatprep.subr.mxu0 0.0
        %762 = vmatpush1.msra.mxu0 0.0
        %763 = vmatprep.subr.mxu0 0.0
        %764 = vmatpush1.msra.mxu0 0.0
        %765 = vmatprep.subr.mxu0 0.0
        %766 = vmatpush1.msra.mxu0 0.0
        %767 = vmatprep.subr.mxu0 0.0
        %768 = vmatpush1.msra.mxu0 0.0
        %769 = vmatprep.subr.mxu0 0.0
        %770 = vmatpush1.msra.mxu0 0.0
        %771 = vmatprep.subr.mxu0 0.0
        %772 = vmatpush1.msra.mxu0 0.0
        %773 = vmatprep.subr.mxu0 0.0
        %774 = vmatpush1.msra.mxu0 0.0
        %775 = vmatprep.subr.mxu0 0.0
        %776 = vmatpush1.msra.mxu0 %v757
        %777 = vmatprep.subr.mxu0 0.0
        %778 = vmatpush1.msra.mxu0 %v738
        %779 = vmatprep.subr.mxu0 0.0
        %780 = vmatpush1.msra.mxu0 %v736
        %781 = vmatprep.subr.mxu0 0.0
        %782 = vmatpush1.msra.mxu0 %v734
        %783 = vmatprep.subr.mxu0 0.0
        %784 = vmatpush1.msra.mxu0 %v732
        %785 = vmatprep.subr.mxu0 0.0
        %786 = vmatpush1.msra.mxu0 %v730
        %787 = vmatprep.subr.mxu0 0.0
        %788 = vmatpush1.msra.mxu0 %v728
        %789 = vmatprep.subr.mxu0 0.0
        %790 = vmatpush1.msra.mxu0 %v726
        %791 = vmatprep.subr.mxu0 0.0
        %792 = vmatpush2.msra.mxu0 0.0
        %793 = vmatprep.subr.mxu0 0.0
        %794 = vmatpush2.msra.mxu0 0.0
        %795 = vmatprep.subr.mxu0 0.0
        %796 = vmatpush2.msra.mxu0 0.0
        %797 = vmatprep.subr.mxu0 0.0
        %798 = vmatpush2.msra.mxu0 0.0
        %799 = vmatprep.subr.mxu0 0.0
        %800 = vmatpush2.msra.mxu0 0.0
        %801 = vmatprep.subr.mxu0 0.0
        %802 = vmatpush2.msra.mxu0 0.0
        %803 = vmatprep.subr.mxu0 0.0
        %804 = vmatpush2.msra.mxu0 0.0
        %805 = vmatprep.subr.mxu0 0.0
        %806 = vmatpush2.msra.mxu0 0.0
        %807 = vmatprep.subr.mxu0 0.0
        %808 = vmatpush2.msra.mxu0 0.0
        %809 = vmatprep.subr.mxu0 0.0
        %810 = vmatpush2.msra.mxu0 0.0
        %811 = vmatprep.subr.mxu0 0.0
        %812 = vmatpush2.msra.mxu0 0.0
        %813 = vmatprep.subr.mxu0 0.0
        %814 = vmatpush2.msra.mxu0 0.0
        %815 = vmatprep.subr.mxu0 0.0
        %816 = vmatpush2.msra.mxu0 0.0
        %817 = vmatprep.subr.mxu0 0.0
        %818 = vmatpush2.msra.mxu0 0.0
        %819 = vmatprep.subr.mxu0 0.0
        %820 = vmatpush2.msra.mxu0 0.0
        %821 = vmatprep.subr.mxu0 0.0
        %822 = vmatpush2.msra.mxu0 0.0
        %823 = vmatprep.mubr.f32.mxu0 0.0
        %824 = vmatmul.mubr.f32.gmra.mxu0 %v749
        %v825 = vpop.f32.mrf.mxu0
        %v826 = vadd.f32 %v700, %v825
        %v827 = vpop.f32.mrf.mxu0
        %828 = vmatprep.mubr.f32.mxu0 0.0
        %829 = vmatmul.mubr.f32.gmra.mxu0 %v751
        %v830 = vpop.f32.mrf.mxu0
        %v831 = vadd.f32 %v705, %v830
        %v832 = vpop.f32.mrf.mxu0
        %833 = vmatprep.mubr.f32.mxu0 0.0
        %834 = vmatmul.mubr.f32.gmra.mxu0 %v753
        %v835 = vpop.f32.mrf.mxu0
        %v836 = vadd.f32 %v710, %v835
        %v837 = vpop.f32.mrf.mxu0
        %838 = vmatprep.mubr.f32.mxu0 0.0
        %839 = vmatmul.mubr.f32.gmra.mxu0 %v755
        %v840 = vpop.f32.mrf.mxu0
        %v841 = vadd.f32 %v715, %v840
        %v842 = vpop.f32.mrf.mxu0
        %843 = vdwg.mxu0
        %vm844 = vcmask 146432
        %845 = vst.msk [vmem:[#allocation2] sm:$0xff] %vm844, 0.0
        %846 = vst.msk [vmem:[#allocation2 + $0x18] sm:$0xff] %vm844, 0.0
        %847 = vst.msk [vmem:[#allocation2 + $0x30] sm:$0xff] %vm844, 0.0
        %848 = vst.msk [vmem:[#allocation2 + $0x48] sm:$0xff] %vm844, 0.0
        %849 = vst.msk [vmem:[#allocation2 + $0x60] sm:$0xff] %vm844, 0.0
        %850 = vst.msk [vmem:[#allocation2 + $0x78] sm:$0xff] %vm844, 0.0
        %851 = vst.msk [vmem:[#allocation2 + $0x90] sm:$0xff] %vm844, 0.0
        %852 = vst.msk [vmem:[#allocation2 + $0xa8] sm:$0xff] %vm844, 0.0
        %853 = vst.msk [vmem:[#allocation2 + $0xc0] sm:$0xff] %vm844, 0.0
        %854 = vst.msk [vmem:[#allocation2 + $0xd8] sm:$0xff] %vm844, 0.0
        %855 = vst.msk [vmem:[#allocation2 + $0xf0] sm:$0xff] %vm844, 0.0
        %856 = vst.msk [vmem:[#allocation2 + $0x108] sm:$0xff] %vm844, 0.0
        %861 = vrot.lane.b32.xlu0 %v826, 2
        %v862 = vpop.permute.xlu0 %861
        %863 = vrot.lane.b32.xlu0 %v831, 2
        %v864 = vpop.permute.xlu0 %863
        %865 = vrot.lane.b32.xlu0 %v836, 2
        %v866 = vpop.permute.xlu0 %865
        %867 = vrot.lane.b32.xlu0 %v841, 2
        %v868 = vpop.permute.xlu0 %867
        %vm873 = vcmask 146448
        %874 = vst.msk [vmem:[#allocation2] sm:$0xff] %vm873, %v862
        %875 = vst.msk [vmem:[#allocation2 + $0x18] sm:$0xff] %vm873, %v864
        %876 = vst.msk [vmem:[#allocation2 + $0x30] sm:$0xff] %vm873, %v866
        %877 = vst.msk [vmem:[#allocation2 + $0x48] sm:$0xff] %vm873, %v868
        %878 = vrot.lane.b32.xlu0 %v826, 1
        %v879 = vpop.permute.xlu0 %878
        %880 = vrot.lane.b32.xlu0 %v831, 1
        %v881 = vpop.permute.xlu0 %880
        %882 = vrot.lane.b32.xlu0 %v836, 1
        %v883 = vpop.permute.xlu0 %882
        %884 = vrot.lane.b32.xlu0 %v841, 1
        %v885 = vpop.permute.xlu0 %884
        %vm890 = vcmask 138248
        %891 = vst.msk [vmem:[#allocation2 + $0x60] sm:$0xff] %vm890, %v879
        %892 = vst.msk [vmem:[#allocation2 + $0x78] sm:$0xff] %vm890, %v881
        %893 = vst.msk [vmem:[#allocation2 + $0x90] sm:$0xff] %vm890, %v883
        %894 = vst.msk [vmem:[#allocation2 + $0xa8] sm:$0xff] %vm890, %v885
        %vm895 = vcmask 130048
        %896 = vst.msk [vmem:[#allocation2 + $0xc0] sm:$0xff] %vm895, %v826
        %897 = vst.msk [vmem:[#allocation2 + $0xd8] sm:$0xff] %vm895, %v831
        %898 = vst.msk [vmem:[#allocation2 + $0xf0] sm:$0xff] %vm895, %v836
        %899 = vst.msk [vmem:[#allocation2 + $0x108] sm:$0xff] %vm895, %v841
        %v900 = vld [vmem:[#allocation2] sm:$0xff]
        %v901 = vld [vmem:[#allocation2 + $0x18] sm:$0xff]
        %v902 = vld [vmem:[#allocation2 + $0x30] sm:$0xff]
        %v903 = vld [vmem:[#allocation2 + $0x48] sm:$0xff]
        %v904 = vld [vmem:[#allocation2 + $0x60] sm:$0xff]
        %v905 = vld [vmem:[#allocation2 + $0x78] sm:$0xff]
        %v906 = vld [vmem:[#allocation2 + $0x90] sm:$0xff]
        %v907 = vld [vmem:[#allocation2 + $0xa8] sm:$0xff]
        %v908 = vld [vmem:[#allocation2 + $0xc0] sm:$0xff]
        %v909 = vld [vmem:[#allocation2 + $0xd8] sm:$0xff]
        %v910 = vld [vmem:[#allocation2 + $0xf0] sm:$0xff]
        %v911 = vld [vmem:[#allocation2 + $0x108] sm:$0xff]
        %v912 = vld [vmem:[%s3 + $0x20] sm:$0xff]
        %v913 = vld [vmem:[%s3 + $0x28] sm:$0xff]
        %915 = vset.pattern.permute.xlu0 96
        %916 = vperm.xlu0 %915, %v912
        %v917 = vpop.permute.xlu0 %916
        %920 = vset.pattern.permute.xlu0 96
        %921 = vperm.xlu0 %920, %v913
        %v922 = vpop.permute.xlu0 %921
        %936 = vrot.lane.b32.xlu0 %v900, 127
        %v937 = vpop.permute.xlu0 %936
        %938 = vrot.lane.b32.xlu0 %v901, 127
        %v939 = vpop.permute.xlu0 %938
        %940 = vrot.lane.b32.xlu0 %v902, 127
        %v941 = vpop.permute.xlu0 %940
        %942 = vrot.lane.b32.xlu0 %v903, 127
        %v943 = vpop.permute.xlu0 %942
        %944 = vrot.lane.b32.xlu0 %v904, 127
        %v945 = vpop.permute.xlu0 %944
        %946 = vrot.lane.b32.xlu0 %v905, 127
        %v947 = vpop.permute.xlu0 %946
        %948 = vrot.lane.b32.xlu0 %v906, 127
        %v949 = vpop.permute.xlu0 %948
        %950 = vrot.lane.b32.xlu0 %v907, 127
        %v951 = vpop.permute.xlu0 %950
        %952 = vrot.lane.b32.xlu0 %v908, 127
        %v953 = vpop.permute.xlu0 %952
        %954 = vrot.lane.b32.xlu0 %v909, 127
        %v955 = vpop.permute.xlu0 %954
        %956 = vrot.lane.b32.xlu0 %v910, 127
        %v957 = vpop.permute.xlu0 %956
        %958 = vrot.lane.b32.xlu0 %v911, 127
        %v959 = vpop.permute.xlu0 %958
        %vm972 = vcmask 785408
        %v973 = vsel %vm972, %v912, 0
        %v975 = vsel %vm972, %v913, 0
        %977 = vmatprep.subr.mxu0 0.0
        %978 = vmatpush1.msra.mxu0 0.0
        %979 = vmatprep.subr.mxu0 0.0
        %980 = vmatpush1.msra.mxu0 0.0
        %981 = vmatprep.subr.mxu0 0.0
        %982 = vmatpush1.msra.mxu0 0.0
        %983 = vmatprep.subr.mxu0 0.0
        %984 = vmatpush1.msra.mxu0 0.0
        %985 = vmatprep.subr.mxu0 0.0
        %986 = vmatpush1.msra.mxu0 %v959
        %987 = vmatprep.subr.mxu0 0.0
        %988 = vmatpush1.msra.mxu0 %v957
        %989 = vmatprep.subr.mxu0 0.0
        %990 = vmatpush1.msra.mxu0 %v955
        %991 = vmatprep.subr.mxu0 0.0
        %992 = vmatpush1.msra.mxu0 %v953
        %993 = vmatprep.subr.mxu0 0.0
        %994 = vmatpush1.msra.mxu0 %v951
        %995 = vmatprep.subr.mxu0 0.0
        %996 = vmatpush1.msra.mxu0 %v949
        %997 = vmatprep.subr.mxu0 0.0
        %998 = vmatpush1.msra.mxu0 %v947
        %999 = vmatprep.subr.mxu0 0.0
        %1000 = vmatpush1.msra.mxu0 %v945
        %1001 = vmatprep.subr.mxu0 0.0
        %1002 = vmatpush1.msra.mxu0 %v943
        %1003 = vmatprep.subr.mxu0 0.0
        %1004 = vmatpush1.msra.mxu0 %v941
        %1005 = vmatprep.subr.mxu0 0.0
        %1006 = vmatpush1.msra.mxu0 %v939
        %1007 = vmatprep.subr.mxu0 0.0
        %1008 = vmatpush1.msra.mxu0 %v937
        %1009 = vmatprep.subr.mxu0 0.0
        %1010 = vmatpush2.msra.mxu0 0.0
        %1011 = vmatprep.subr.mxu0 0.0
        %1012 = vmatpush2.msra.mxu0 0.0
        %1013 = vmatprep.subr.mxu0 0.0
        %1014 = vmatpush2.msra.mxu0 0.0
        %1015 = vmatprep.subr.mxu0 0.0
        %1016 = vmatpush2.msra.mxu0 0.0
        %1017 = vmatprep.subr.mxu0 0.0
        %1018 = vmatpush2.msra.mxu0 0.0
        %1019 = vmatprep.subr.mxu0 0.0
        %1020 = vmatpush2.msra.mxu0 0.0
        %1021 = vmatprep.subr.mxu0 0.0
        %1022 = vmatpush2.msra.mxu0 0.0
        %1023 = vmatprep.subr.mxu0 0.0
        %1024 = vmatpush2.msra.mxu0 0.0
        %1025 = vmatprep.subr.mxu0 0.0
        %1026 = vmatpush2.msra.mxu0 0.0
        %1027 = vmatprep.subr.mxu0 0.0
        %1028 = vmatpush2.msra.mxu0 0.0
        %1029 = vmatprep.subr.mxu0 0.0
        %1030 = vmatpush2.msra.mxu0 0.0
        %1031 = vmatprep.subr.mxu0 0.0
        %1032 = vmatpush2.msra.mxu0 0.0
        %1033 = vmatprep.subr.mxu0 0.0
        %1034 = vmatpush2.msra.mxu0 0.0
        %1035 = vmatprep.subr.mxu0 0.0
        %1036 = vmatpush2.msra.mxu0 0.0
        %1037 = vmatprep.subr.mxu0 0.0
        %1038 = vmatpush2.msra.mxu0 0.0
        %1039 = vmatprep.subr.mxu0 0.0
        %1040 = vmatpush2.msra.mxu0 0.0
        %1041 = vmatprep.mubr.f32.mxu0 0.0
        %1042 = vmatmul.mubr.f32.gmra.mxu0 %v973
        %v1043 = vpop.f32.mrf.mxu0
        %v1044 = vadd.f32 %v917, %v1043
        %v1045 = vpop.f32.mrf.mxu0
        %1046 = vmatprep.mubr.f32.mxu0 0.0
        %1047 = vmatmul.mubr.f32.gmra.mxu0 %v975
        %v1048 = vpop.f32.mrf.mxu0
        %v1049 = vadd.f32 %v922, %v1048
        %v1050 = vpop.f32.mrf.mxu0
        %1051 = vdwg.mxu0
        %v1052 = vld [vmem:[%s3 + $0x30] sm:$0xff]
        %v1053 = vld [vmem:[%s3 + $0x38] sm:$0xff]
        %1055 = vset.pattern.permute.xlu0 96
        %1056 = vperm.xlu0 %1055, %v1052
        %v1057 = vpop.permute.xlu0 %1056
        %1060 = vset.pattern.permute.xlu0 96
        %1061 = vperm.xlu0 %1060, %v1053
        %v1062 = vpop.permute.xlu0 %1061
        %v1064 = vsel %vm972, %v1052, 0
        %v1066 = vsel %vm972, %v1053, 0
        %1068 = vmatprep.subr.mxu0 0.0
        %1069 = vmatpush1.msra.mxu0 0.0
        %1070 = vmatprep.subr.mxu0 0.0
        %1071 = vmatpush1.msra.mxu0 0.0
        %1072 = vmatprep.subr.mxu0 0.0
        %1073 = vmatpush1.msra.mxu0 0.0
        %1074 = vmatprep.subr.mxu0 0.0
        %1075 = vmatpush1.msra.mxu0 0.0
        %1076 = vmatprep.subr.mxu0 0.0
        %1077 = vmatpush1.msra.mxu0 %v959
        %1078 = vmatprep.subr.mxu0 0.0
        %1079 = vmatpush1.msra.mxu0 %v957
        %1080 = vmatprep.subr.mxu0 0.0
        %1081 = vmatpush1.msra.mxu0 %v955
        %1082 = vmatprep.subr.mxu0 0.0
        %1083 = vmatpush1.msra.mxu0 %v953
        %1084 = vmatprep.subr.mxu0 0.0
        %1085 = vmatpush1.msra.mxu0 %v951
        %1086 = vmatprep.subr.mxu0 0.0
        %1087 = vmatpush1.msra.mxu0 %v949
        %1088 = vmatprep.subr.mxu0 0.0
        %1089 = vmatpush1.msra.mxu0 %v947
        %1090 = vmatprep.subr.mxu0 0.0
        %1091 = vmatpush1.msra.mxu0 %v945
        %1092 = vmatprep.subr.mxu0 0.0
        %1093 = vmatpush1.msra.mxu0 %v943
        %1094 = vmatprep.subr.mxu0 0.0
        %1095 = vmatpush1.msra.mxu0 %v941
        %1096 = vmatprep.subr.mxu0 0.0
        %1097 = vmatpush1.msra.mxu0 %v939
        %1098 = vmatprep.subr.mxu0 0.0
        %1099 = vmatpush1.msra.mxu0 %v937
        %1100 = vmatprep.subr.mxu0 0.0
        %1101 = vmatpush2.msra.mxu0 0.0
        %1102 = vmatprep.subr.mxu0 0.0
        %1103 = vmatpush2.msra.mxu0 0.0
        %1104 = vmatprep.subr.mxu0 0.0
        %1105 = vmatpush2.msra.mxu0 0.0
        %1106 = vmatprep.subr.mxu0 0.0
        %1107 = vmatpush2.msra.mxu0 0.0
        %1108 = vmatprep.subr.mxu0 0.0
        %1109 = vmatpush2.msra.mxu0 0.0
        %1110 = vmatprep.subr.mxu0 0.0
        %1111 = vmatpush2.msra.mxu0 0.0
        %1112 = vmatprep.subr.mxu0 0.0
        %1113 = vmatpush2.msra.mxu0 0.0
        %1114 = vmatprep.subr.mxu0 0.0
        %1115 = vmatpush2.msra.mxu0 0.0
        %1116 = vmatprep.subr.mxu0 0.0
        %1117 = vmatpush2.msra.mxu0 0.0
        %1118 = vmatprep.subr.mxu0 0.0
        %1119 = vmatpush2.msra.mxu0 0.0
        %1120 = vmatprep.subr.mxu0 0.0
        %1121 = vmatpush2.msra.mxu0 0.0
        %1122 = vmatprep.subr.mxu0 0.0
        %1123 = vmatpush2.msra.mxu0 0.0
        %1124 = vmatprep.subr.mxu0 0.0
        %1125 = vmatpush2.msra.mxu0 0.0
        %1126 = vmatprep.subr.mxu0 0.0
        %1127 = vmatpush2.msra.mxu0 0.0
        %1128 = vmatprep.subr.mxu0 0.0
        %1129 = vmatpush2.msra.mxu0 0.0
        %1130 = vmatprep.subr.mxu0 0.0
        %1131 = vmatpush2.msra.mxu0 0.0
        %1132 = vmatprep.mubr.f32.mxu0 0.0
        %1133 = vmatmul.mubr.f32.gmra.mxu0 %v1064
        %v1134 = vpop.f32.mrf.mxu0
        %v1135 = vadd.f32 %v1057, %v1134
        %v1136 = vpop.f32.mrf.mxu0
        %1137 = vmatprep.mubr.f32.mxu0 0.0
        %1138 = vmatmul.mubr.f32.gmra.mxu0 %v1066
        %v1139 = vpop.f32.mrf.mxu0
        %v1140 = vadd.f32 %v1062, %v1139
        %v1141 = vpop.f32.mrf.mxu0
        %1142 = vdwg.mxu0
        %v1143 = vld [vmem:[%s4] sm:$0xff]
        %v1144 = vld [vmem:[%s4 + $0x10] sm:$0xff]
        %v1145 = vld [vmem:[%s4 + $0x100] sm:$0xff]
        %v1146 = vld [vmem:[%s4 + $0x110] sm:$0xff]
        %v1148 = vsel %vm895, %v1135, 0
        %v1151 = vsel %vm895, %v1140, 0
        %1153 = vmatprep.subr.mxu0 0.0
        %1154 = vmatpush1.msra.mxu0 0.0
        %1155 = vmatprep.subr.mxu0 0.0
        %1156 = vmatpush1.msra.mxu0 0.0
        %1157 = vmatprep.subr.mxu0 0.0
        %1158 = vmatpush1.msra.mxu0 0.0
        %1159 = vmatprep.subr.mxu0 0.0
        %1160 = vmatpush1.msra.mxu0 0.0
        %1161 = vmatprep.subr.mxu0 0.0
        %1162 = vmatpush1.msra.mxu0 0.0
        %1163 = vmatprep.subr.mxu0 0.0
        %1164 = vmatpush1.msra.mxu0 0.0
        %1165 = vmatprep.subr.mxu0 0.0
        %1166 = vmatpush1.msra.mxu0 0.0
        %1167 = vmatprep.subr.mxu0 0.0
        %1168 = vmatpush1.msra.mxu0 0.0
        %1169 = vmatprep.subr.mxu0 0.0
        %1170 = vmatpush1.msra.mxu0 0.0
        %1171 = vmatprep.subr.mxu0 0.0
        %1172 = vmatpush1.msra.mxu0 0.0
        %1173 = vmatprep.subr.mxu0 0.0
        %1174 = vmatpush1.msra.mxu0 0.0
        %1175 = vmatprep.subr.mxu0 0.0
        %1176 = vmatpush1.msra.mxu0 0.0
        %1177 = vmatprep.subr.mxu0 0.0
        %1178 = vmatpush1.msra.mxu0 0.0
        %1179 = vmatprep.subr.mxu0 0.0
        %1180 = vmatpush1.msra.mxu0 0.0
        %1181 = vmatprep.subr.mxu0 0.0
        %1182 = vmatpush1.msra.mxu0 %v1146
        %1183 = vmatprep.subr.mxu0 0.0
        %1184 = vmatpush1.msra.mxu0 %v1145
        %1185 = vmatprep.subr.mxu0 0.0
        %1186 = vmatpush2.msra.mxu0 0.0
        %1187 = vmatprep.subr.mxu0 0.0
        %1188 = vmatpush2.msra.mxu0 0.0
        %1189 = vmatprep.subr.mxu0 0.0
        %1190 = vmatpush2.msra.mxu0 0.0
        %1191 = vmatprep.subr.mxu0 0.0
        %1192 = vmatpush2.msra.mxu0 0.0
        %1193 = vmatprep.subr.mxu0 0.0
        %1194 = vmatpush2.msra.mxu0 0.0
        %1195 = vmatprep.subr.mxu0 0.0
        %1196 = vmatpush2.msra.mxu0 0.0
        %1197 = vmatprep.subr.mxu0 0.0
        %1198 = vmatpush2.msra.mxu0 0.0
        %1199 = vmatprep.subr.mxu0 0.0
        %1200 = vmatpush2.msra.mxu0 0.0
        %1201 = vmatprep.subr.mxu0 0.0
        %1202 = vmatpush2.msra.mxu0 0.0
        %1203 = vmatprep.subr.mxu0 0.0
        %1204 = vmatpush2.msra.mxu0 0.0
        %1205 = vmatprep.subr.mxu0 0.0
        %1206 = vmatpush2.msra.mxu0 0.0
        %1207 = vmatprep.subr.mxu0 0.0
        %1208 = vmatpush2.msra.mxu0 0.0
        %1209 = vmatprep.subr.mxu0 0.0
        %1210 = vmatpush2.msra.mxu0 0.0
        %1211 = vmatprep.subr.mxu0 0.0
        %1212 = vmatpush2.msra.mxu0 0.0
        %1213 = vmatprep.subr.mxu0 0.0
        %1214 = vmatpush2.msra.mxu0 0.0
        %1215 = vmatprep.subr.mxu0 0.0
        %1216 = vmatpush2.msra.mxu0 0.0
        %1217 = vmatprep.mubr.f32.mxu0 0.0
        %1218 = vmatmul.mubr.f32.gmra.mxu0 %v1148
        %v1219 = vpop.f32.mrf.mxu0
        %v1220 = vadd.f32 0.0, %v1219
        %v1221 = vpop.f32.mrf.mxu0
        %1222 = vmatprep.mubr.f32.mxu0 0.0
        %1223 = vmatmul.mubr.f32.gmra.mxu0 %v1151
        %v1224 = vpop.f32.mrf.mxu0
        %v1225 = vadd.f32 0.0, %v1224
        %v1226 = vpop.f32.mrf.mxu0
        %1227 = vdwg.mxu0
        %v1229 = vsel %vm895, %v1044, 0
        %v1232 = vsel %vm895, %v1049, 0
        %1234 = vmatprep.subr.mxu0 0.0
        %1235 = vmatpush1.msra.mxu0 0.0
        %1236 = vmatprep.subr.mxu0 0.0
        %1237 = vmatpush1.msra.mxu0 0.0
        %1238 = vmatprep.subr.mxu0 0.0
        %1239 = vmatpush1.msra.mxu0 0.0
        %1240 = vmatprep.subr.mxu0 0.0
        %1241 = vmatpush1.msra.mxu0 0.0
        %1242 = vmatprep.subr.mxu0 0.0
        %1243 = vmatpush1.msra.mxu0 0.0
        %1244 = vmatprep.subr.mxu0 0.0
        %1245 = vmatpush1.msra.mxu0 0.0
        %1246 = vmatprep.subr.mxu0 0.0
        %1247 = vmatpush1.msra.mxu0 0.0
        %1248 = vmatprep.subr.mxu0 0.0
        %1249 = vmatpush1.msra.mxu0 0.0
        %1250 = vmatprep.subr.mxu0 0.0
        %1251 = vmatpush1.msra.mxu0 0.0
        %1252 = vmatprep.subr.mxu0 0.0
        %1253 = vmatpush1.msra.mxu0 0.0
        %1254 = vmatprep.subr.mxu0 0.0
        %1255 = vmatpush1.msra.mxu0 0.0
        %1256 = vmatprep.subr.mxu0 0.0
        %1257 = vmatpush1.msra.mxu0 0.0
        %1258 = vmatprep.subr.mxu0 0.0
        %1259 = vmatpush1.msra.mxu0 0.0
        %1260 = vmatprep.subr.mxu0 0.0
        %1261 = vmatpush1.msra.mxu0 0.0
        %1262 = vmatprep.subr.mxu0 0.0
        %1263 = vmatpush1.msra.mxu0 %v1144
        %1264 = vmatprep.subr.mxu0 0.0
        %1265 = vmatpush1.msra.mxu0 %v1143
        %1266 = vmatprep.subr.mxu0 0.0
        %1267 = vmatpush2.msra.mxu0 0.0
        %1268 = vmatprep.subr.mxu0 0.0
        %1269 = vmatpush2.msra.mxu0 0.0
        %1270 = vmatprep.subr.mxu0 0.0
        %1271 = vmatpush2.msra.mxu0 0.0
        %1272 = vmatprep.subr.mxu0 0.0
        %1273 = vmatpush2.msra.mxu0 0.0
        %1274 = vmatprep.subr.mxu0 0.0
        %1275 = vmatpush2.msra.mxu0 0.0
        %1276 = vmatprep.subr.mxu0 0.0
        %1277 = vmatpush2.msra.mxu0 0.0
        %1278 = vmatprep.subr.mxu0 0.0
        %1279 = vmatpush2.msra.mxu0 0.0
        %1280 = vmatprep.subr.mxu0 0.0
        %1281 = vmatpush2.msra.mxu0 0.0
        %1282 = vmatprep.subr.mxu0 0.0
        %1283 = vmatpush2.msra.mxu0 0.0
        %1284 = vmatprep.subr.mxu0 0.0
        %1285 = vmatpush2.msra.mxu0 0.0
        %1286 = vmatprep.subr.mxu0 0.0
        %1287 = vmatpush2.msra.mxu0 0.0
        %1288 = vmatprep.subr.mxu0 0.0
        %1289 = vmatpush2.msra.mxu0 0.0
        %1290 = vmatprep.subr.mxu0 0.0
        %1291 = vmatpush2.msra.mxu0 0.0
        %1292 = vmatprep.subr.mxu0 0.0
        %1293 = vmatpush2.msra.mxu0 0.0
        %1294 = vmatprep.subr.mxu0 0.0
        %1295 = vmatpush2.msra.mxu0 0.0
        %1296 = vmatprep.subr.mxu0 0.0
        %1297 = vmatpush2.msra.mxu0 0.0
        %1298 = vmatprep.mubr.f32.mxu0 0.0
        %1299 = vmatmul.mubr.f32.gmra.mxu0 %v1229
        %v1300 = vpop.f32.mrf.mxu0
        %v1301 = vadd.f32 %v1220, %v1300
        %v1302 = vpop.f32.mrf.mxu0
        %1303 = vmatprep.mubr.f32.mxu0 0.0
        %1304 = vmatmul.mubr.f32.gmra.mxu0 %v1232
        %v1305 = vpop.f32.mrf.mxu0
        %v1306 = vadd.f32 %v1225, %v1305
        %v1307 = vpop.f32.mrf.mxu0
        %1308 = vdwg.mxu0
        %1310 = vset.pattern.permute.xlu0 0
        %1311 = vperm.xlu0 %1310, %v508
        %v1312 = vpop.permute.xlu0 %1311
        %1315 = vset.pattern.permute.xlu0 0
        %1316 = vperm.xlu0 %1315, %v513
        %v1317 = vpop.permute.xlu0 %1316
        %v1319 = vmul.f32 %v1312, %v1301
        %v1320 = vmul.f32 %v1317, %v1306
        %1322 = vset.pattern.permute.xlu0 0
        %1323 = vperm.xlu0 %1322, %v433
        %v1324 = vpop.permute.xlu0 %1323
        %1327 = vset.pattern.permute.xlu0 0
        %1328 = vperm.xlu0 %1327, %v438
        %v1329 = vpop.permute.xlu0 %1328
        %v1331 = vadd.f32 %v1319, %v1324
        %v1332 = vadd.f32 %v1320, %v1329
        %vm1333 = vcmask 277504
        %1334 = vst.msk [vmem:[#allocation2] sm:$0xff] %vm1333, 0.0
        %1335 = vst.msk [vmem:[#allocation2 + $0x18] sm:$0xff] %vm1333, 0.0
        %1336 = vst.msk [vmem:[#allocation2 + $0x30] sm:$0xff] %vm1333, 0.0
        %1337 = vst.msk [vmem:[#allocation2 + $0x48] sm:$0xff] %vm1333, 0.0
        %1338 = vst.msk [vmem:[#allocation2 + $0x60] sm:$0xff] %vm1333, 0.0
        %1339 = vst.msk [vmem:[#allocation2 + $0x78] sm:$0xff] %vm1333, 0.0
        %1342 = vrot.lane.b32.xlu0 %v1331, 2
        %v1343 = vpop.permute.xlu0 %1342
        %1344 = vrot.lane.b32.xlu0 %v1332, 2
        %v1345 = vpop.permute.xlu0 %1344
        %vm1348 = vcmask 277520
        %1349 = vst.msk [vmem:[#allocation2] sm:$0xff] %vm1348, %v1343
        %1350 = vst.msk [vmem:[#allocation2 + $0x18] sm:$0xff] %vm1348, %v1345
        %1351 = vrot.lane.b32.xlu0 %v1331, 1
        %v1352 = vpop.permute.xlu0 %1351
        %1353 = vrot.lane.b32.xlu0 %v1332, 1
        %v1354 = vpop.permute.xlu0 %1353
        %vm1357 = vcmask 269320
        %1358 = vst.msk [vmem:[#allocation2 + $0x30] sm:$0xff] %vm1357, %v1352
        %1359 = vst.msk [vmem:[#allocation2 + $0x48] sm:$0xff] %vm1357, %v1354
        %vm1360 = vcmask 261120
        %1361 = vst.msk [vmem:[#allocation2 + $0x60] sm:$0xff] %vm1360, %v1331
        %1362 = vst.msk [vmem:[#allocation2 + $0x78] sm:$0xff] %vm1360, %v1332
        %v1363 = vld [vmem:[#allocation2] sm:$0xff]
        %v1364 = vld [vmem:[#allocation2 + $0x18] sm:$0xff]
        %v1365 = vld [vmem:[#allocation2 + $0x30] sm:$0xff]
        %v1366 = vld [vmem:[#allocation2 + $0x48] sm:$0xff]
        %v1367 = vld [vmem:[#allocation2 + $0x60] sm:$0xff]
        %v1368 = vld [vmem:[#allocation2 + $0x78] sm:$0xff]
        %v1369 = vld [vmem:[%s3 + $0x40] sm:$0xff]
        %v1370 = vld [vmem:[%s3 + $0x48] sm:$0xff]
        %1372 = vset.pattern.permute.xlu0 48
        %1373 = vperm.xlu0 %1372, %v1369
        %v1374 = vpop.permute.xlu0 %1373
        %1377 = vset.pattern.permute.xlu0 48
        %1378 = vperm.xlu0 %1377, %v1370
        %v1379 = vpop.permute.xlu0 %1378
        %1387 = vrot.lane.b32.xlu0 %v1363, 127
        %v1388 = vpop.permute.xlu0 %1387
        %1389 = vrot.lane.b32.xlu0 %v1364, 127
        %v1390 = vpop.permute.xlu0 %1389
        %1391 = vrot.lane.b32.xlu0 %v1365, 127
        %v1392 = vpop.permute.xlu0 %1391
        %1393 = vrot.lane.b32.xlu0 %v1366, 127
        %v1394 = vpop.permute.xlu0 %1393
        %1395 = vrot.lane.b32.xlu0 %v1367, 127
        %v1396 = vpop.permute.xlu0 %1395
        %1397 = vrot.lane.b32.xlu0 %v1368, 127
        %v1398 = vpop.permute.xlu0 %1397
        %vm1405 = vcmask 392192
        %v1406 = vsel %vm1405, %v1369, 0
        %v1408 = vsel %vm1405, %v1370, 0
        %1410 = vmatprep.subr.mxu0 0.0
        %1411 = vmatpush1.msra.mxu0 0.0
        %1412 = vmatprep.subr.mxu0 0.0
        %1413 = vmatpush1.msra.mxu0 0.0
        %1414 = vmatprep.subr.mxu0 0.0
        %1415 = vmatpush1.msra.mxu0 0.0
        %1416 = vmatprep.subr.mxu0 0.0
        %1417 = vmatpush1.msra.mxu0 0.0
        %1418 = vmatprep.subr.mxu0 0.0
        %1419 = vmatpush1.msra.mxu0 0.0
        %1420 = vmatprep.subr.mxu0 0.0
        %1421 = vmatpush1.msra.mxu0 0.0
        %1422 = vmatprep.subr.mxu0 0.0
        %1423 = vmatpush1.msra.mxu0 0.0
        %1424 = vmatprep.subr.mxu0 0.0
        %1425 = vmatpush1.msra.mxu0 0.0
        %1426 = vmatprep.subr.mxu0 0.0
        %1427 = vmatpush1.msra.mxu0 0.0
        %1428 = vmatprep.subr.mxu0 0.0
        %1429 = vmatpush1.msra.mxu0 0.0
        %1430 = vmatprep.subr.mxu0 0.0
        %1431 = vmatpush1.msra.mxu0 %v1398
        %1432 = vmatprep.subr.mxu0 0.0
        %1433 = vmatpush1.msra.mxu0 %v1396
        %1434 = vmatprep.subr.mxu0 0.0
        %1435 = vmatpush1.msra.mxu0 %v1394
        %1436 = vmatprep.subr.mxu0 0.0
        %1437 = vmatpush1.msra.mxu0 %v1392
        %1438 = vmatprep.subr.mxu0 0.0
        %1439 = vmatpush1.msra.mxu0 %v1390
        %1440 = vmatprep.subr.mxu0 0.0
        %1441 = vmatpush1.msra.mxu0 %v1388
        %1442 = vmatprep.subr.mxu0 0.0
        %1443 = vmatpush2.msra.mxu0 0.0
        %1444 = vmatprep.subr.mxu0 0.0
        %1445 = vmatpush2.msra.mxu0 0.0
        %1446 = vmatprep.subr.mxu0 0.0
        %1447 = vmatpush2.msra.mxu0 0.0
        %1448 = vmatprep.subr.mxu0 0.0
        %1449 = vmatpush2.msra.mxu0 0.0
        %1450 = vmatprep.subr.mxu0 0.0
        %1451 = vmatpush2.msra.mxu0 0.0
        %1452 = vmatprep.subr.mxu0 0.0
        %1453 = vmatpush2.msra.mxu0 0.0
        %1454 = vmatprep.subr.mxu0 0.0
        %1455 = vmatpush2.msra.mxu0 0.0
        %1456 = vmatprep.subr.mxu0 0.0
        %1457 = vmatpush2.msra.mxu0 0.0
        %1458 = vmatprep.subr.mxu0 0.0
        %1459 = vmatpush2.msra.mxu0 0.0
        %1460 = vmatprep.subr.mxu0 0.0
        %1461 = vmatpush2.msra.mxu0 0.0
        %1462 = vmatprep.subr.mxu0 0.0
        %1463 = vmatpush2.msra.mxu0 0.0
        %1464 = vmatprep.subr.mxu0 0.0
        %1465 = vmatpush2.msra.mxu0 0.0
        %1466 = vmatprep.subr.mxu0 0.0
        %1467 = vmatpush2.msra.mxu0 0.0
        %1468 = vmatprep.subr.mxu0 0.0
        %1469 = vmatpush2.msra.mxu0 0.0
        %1470 = vmatprep.subr.mxu0 0.0
        %1471 = vmatpush2.msra.mxu0 0.0
        %1472 = vmatprep.subr.mxu0 0.0
        %1473 = vmatpush2.msra.mxu0 0.0
        %1474 = vmatprep.mubr.f32.mxu0 0.0
        %1475 = vmatmul.mubr.f32.gmra.mxu0 %v1406
        %v1476 = vpop.f32.mrf.mxu0
        %v1477 = vadd.f32 %v1374, %v1476
        %v1478 = vpop.f32.mrf.mxu0
        %1479 = vmatprep.mubr.f32.mxu0 0.0
        %1480 = vmatmul.mubr.f32.gmra.mxu0 %v1408
        %v1481 = vpop.f32.mrf.mxu0
        %v1482 = vadd.f32 %v1379, %v1481
        %v1483 = vpop.f32.mrf.mxu0
        %1484 = vdwg.mxu0
        %vm1485 = vcmp.gt.f32.partialorder %v1477, 0.0
        %vm1486 = vcmp.gt.f32.partialorder %v1482, 0.0
        %v1487 = vmin.f32 %v1477, 0.0
        %v1488 = vmin.f32 %v1482, 0.0
        %v1489 = vmul.f32 %v1487, 1.442695
        %v1490 = vpow.pop %v1489
        %v1491 = vmul.f32 %v1488, 1.442695
        %v1492 = vpow.pop %v1491
        %v1493 = vsub.f32 %v1490, 1.0
        %v1494 = vsub.f32 %v1492, 1.0
        %v1495 = vsel %vm1485, %v1477, %v1493
        %v1496 = vsel %vm1486, %v1482, %v1494
        %v1497 = vld [vmem:[%s3 + $0x50] sm:$0xff]
        %v1498 = vld [vmem:[%s3 + $0x58] sm:$0xff]
        %1500 = vset.pattern.permute.xlu0 16
        %1501 = vperm.xlu0 %1500, %v1497
        %v1502 = vpop.permute.xlu0 %1501
        %1505 = vset.pattern.permute.xlu0 16
        %1506 = vperm.xlu0 %1505, %v1498
        %v1507 = vpop.permute.xlu0 %1506
        %v1509 = vsel %vm895, %v1497, 0
        %v1511 = vsel %vm895, %v1498, 0
        %1513 = vmatprep.subr.mxu0 0.0
        %1514 = vmatpush1.msra.mxu0 0.0
        %1515 = vmatprep.subr.mxu0 0.0
        %1516 = vmatpush1.msra.mxu0 0.0
        %1517 = vmatprep.subr.mxu0 0.0
        %1518 = vmatpush1.msra.mxu0 0.0
        %1519 = vmatprep.subr.mxu0 0.0
        %1520 = vmatpush1.msra.mxu0 0.0
        %1521 = vmatprep.subr.mxu0 0.0
        %1522 = vmatpush1.msra.mxu0 0.0
        %1523 = vmatprep.subr.mxu0 0.0
        %1524 = vmatpush1.msra.mxu0 0.0
        %1525 = vmatprep.subr.mxu0 0.0
        %1526 = vmatpush1.msra.mxu0 0.0
        %1527 = vmatprep.subr.mxu0 0.0
        %1528 = vmatpush1.msra.mxu0 0.0
        %1529 = vmatprep.subr.mxu0 0.0
        %1530 = vmatpush1.msra.mxu0 0.0
        %1531 = vmatprep.subr.mxu0 0.0
        %1532 = vmatpush1.msra.mxu0 0.0
        %1533 = vmatprep.subr.mxu0 0.0
        %1534 = vmatpush1.msra.mxu0 0.0
        %1535 = vmatprep.subr.mxu0 0.0
        %1536 = vmatpush1.msra.mxu0 0.0
        %1537 = vmatprep.subr.mxu0 0.0
        %1538 = vmatpush1.msra.mxu0 0.0
        %1539 = vmatprep.subr.mxu0 0.0
        %1540 = vmatpush1.msra.mxu0 0.0
        %1541 = vmatprep.subr.mxu0 0.0
        %1542 = vmatpush1.msra.mxu0 %v1496
        %1543 = vmatprep.subr.mxu0 0.0
        %1544 = vmatpush1.msra.mxu0 %v1495
        %1545 = vmatprep.subr.mxu0 0.0
        %1546 = vmatpush2.msra.mxu0 0.0
        %1547 = vmatprep.subr.mxu0 0.0
        %1548 = vmatpush2.msra.mxu0 0.0
        %1549 = vmatprep.subr.mxu0 0.0
        %1550 = vmatpush2.msra.mxu0 0.0
        %1551 = vmatprep.subr.mxu0 0.0
        %1552 = vmatpush2.msra.mxu0 0.0
        %1553 = vmatprep.subr.mxu0 0.0
        %1554 = vmatpush2.msra.mxu0 0.0
        %1555 = vmatprep.subr.mxu0 0.0
        %1556 = vmatpush2.msra.mxu0 0.0
        %1557 = vmatprep.subr.mxu0 0.0
        %1558 = vmatpush2.msra.mxu0 0.0
        %1559 = vmatprep.subr.mxu0 0.0
        %1560 = vmatpush2.msra.mxu0 0.0
        %1561 = vmatprep.subr.mxu0 0.0
        %1562 = vmatpush2.msra.mxu0 0.0
        %1563 = vmatprep.subr.mxu0 0.0
        %1564 = vmatpush2.msra.mxu0 0.0
        %1565 = vmatprep.subr.mxu0 0.0
        %1566 = vmatpush2.msra.mxu0 0.0
        %1567 = vmatprep.subr.mxu0 0.0
        %1568 = vmatpush2.msra.mxu0 0.0
        %1569 = vmatprep.subr.mxu0 0.0
        %1570 = vmatpush2.msra.mxu0 0.0
        %1571 = vmatprep.subr.mxu0 0.0
        %1572 = vmatpush2.msra.mxu0 0.0
        %1573 = vmatprep.subr.mxu0 0.0
        %1574 = vmatpush2.msra.mxu0 0.0
        %1575 = vmatprep.subr.mxu0 0.0
        %1576 = vmatpush2.msra.mxu0 0.0
        %1577 = vmatprep.mubr.f32.mxu0 0.0
        %1578 = vmatmul.mubr.f32.gmra.mxu0 %v1509
        %v1579 = vpop.f32.mrf.mxu0
        %v1580 = vadd.f32 %v1502, %v1579
        %v1581 = vpop.f32.mrf.mxu0
        %1582 = vmatprep.mubr.f32.mxu0 0.0
        %1583 = vmatmul.mubr.f32.gmra.mxu0 %v1511
        %v1584 = vpop.f32.mrf.mxu0
        %v1585 = vadd.f32 %v1507, %v1584
        %v1586 = vpop.f32.mrf.mxu0
        %1587 = vdwg.mxu0
        %v1588 = vadd.f32 %v1331, %v1580
        %v1589 = vadd.f32 %v1332, %v1585
        %1591 = vset.pattern.permute.xlu0 0
        %1592 = vperm.xlu0 %1591, %v518
        %v1593 = vpop.permute.xlu0 %1592
        %1596 = vset.pattern.permute.xlu0 0
        %1597 = vperm.xlu0 %1596, %v523
        %v1598 = vpop.permute.xlu0 %1597
        %v1600 = vmul.f32 %v1593, %v1588
        %v1601 = vmul.f32 %v1598, %v1589
        %1603 = vset.pattern.permute.xlu0 0
        %1604 = vperm.xlu0 %1603, %v443
        %v1605 = vpop.permute.xlu0 %1604
        %1608 = vset.pattern.permute.xlu0 0
        %1609 = vperm.xlu0 %1608, %v448
        %v1610 = vpop.permute.xlu0 %1609
        %v1612 = vadd.f32 %v1600, %v1605
        %v1613 = vadd.f32 %v1601, %v1610
        %vm1614 = vcmask 310272
        %1615 = vst.msk [vmem:[#allocation2] sm:$0xff] %vm1614, 0.0
        %1616 = vst.msk [vmem:[#allocation2 + $0x18] sm:$0xff] %vm1614, 0.0
        %1617 = vst.msk [vmem:[#allocation2 + $0x30] sm:$0xff] %vm1614, 0.0
        %1618 = vst.msk [vmem:[#allocation2 + $0x48] sm:$0xff] %vm1614, 0.0
        %1619 = vst.msk [vmem:[#allocation2 + $0x60] sm:$0xff] %vm1614, 0.0
        %1620 = vst.msk [vmem:[#allocation2 + $0x78] sm:$0xff] %vm1614, 0.0
        %1623 = vrot.lane.b32.xlu0 %v1612, 6
        %v1624 = vpop.permute.xlu0 %1623
        %1625 = vrot.lane.b32.xlu0 %v1613, 6
        %v1626 = vpop.permute.xlu0 %1625
        %vm1629 = vcmask 310320
        %1630 = vst.msk [vmem:[#allocation2] sm:$0xff] %vm1629, %v1624
        %1631 = vst.msk [vmem:[#allocation2 + $0x18] sm:$0xff] %vm1629, %v1626
        %1632 = vrot.lane.b32.xlu0 %v1612, 3
        %v1633 = vpop.permute.xlu0 %1632
        %1634 = vrot.lane.b32.xlu0 %v1613, 3
        %v1635 = vpop.permute.xlu0 %1634
        %vm1638 = vcmask 285720
        %1639 = vst.msk [vmem:[#allocation2 + $0x30] sm:$0xff] %vm1638, %v1633
        %1640 = vst.msk [vmem:[#allocation2 + $0x48] sm:$0xff] %vm1638, %v1635
        %1641 = vst.msk [vmem:[#allocation2 + $0x60] sm:$0xff] %vm1360, %v1612
        %1642 = vst.msk [vmem:[#allocation2 + $0x78] sm:$0xff] %vm1360, %v1613
        %v1643 = vld [vmem:[#allocation2] sm:$0xff]
        %v1644 = vld [vmem:[#allocation2 + $0x18] sm:$0xff]
        %v1645 = vld [vmem:[#allocation2 + $0x30] sm:$0xff]
        %v1646 = vld [vmem:[#allocation2 + $0x48] sm:$0xff]
        %v1647 = vld [vmem:[#allocation2 + $0x60] sm:$0xff]
        %v1648 = vld [vmem:[#allocation2 + $0x78] sm:$0xff]
        %v1649 = vld [vmem:[%s3 + $0x60] sm:$0xff]
        %v1650 = vld [vmem:[%s3 + $0x68] sm:$0xff]
        %1652 = vset.pattern.permute.xlu0 48
        %1653 = vperm.xlu0 %1652, %v1649
        %v1654 = vpop.permute.xlu0 %1653
        %1657 = vset.pattern.permute.xlu0 48
        %1658 = vperm.xlu0 %1657, %v1650
        %v1659 = vpop.permute.xlu0 %1658
        %1667 = vrot.lane.b32.xlu0 %v1643, 125
        %v1668 = vpop.permute.xlu0 %1667
        %1669 = vrot.lane.b32.xlu0 %v1644, 125
        %v1670 = vpop.permute.xlu0 %1669
        %1671 = vrot.lane.b32.xlu0 %v1645, 125
        %v1672 = vpop.permute.xlu0 %1671
        %1673 = vrot.lane.b32.xlu0 %v1646, 125
        %v1674 = vpop.permute.xlu0 %1673
        %1675 = vrot.lane.b32.xlu0 %v1647, 125
        %v1676 = vpop.permute.xlu0 %1675
        %1677 = vrot.lane.b32.xlu0 %v1648, 125
        %v1678 = vpop.permute.xlu0 %1677
        %v1685 = vsel %vm1405, %v1649, 0
        %v1687 = vsel %vm1405, %v1650, 0
        %1689 = vmatprep.subr.mxu0 0.0
        %1690 = vmatpush1.msra.mxu0 0.0
        %1691 = vmatprep.subr.mxu0 0.0
        %1692 = vmatpush1.msra.mxu0 0.0
        %1693 = vmatprep.subr.mxu0 0.0
        %1694 = vmatpush1.msra.mxu0 0.0
        %1695 = vmatprep.subr.mxu0 0.0
        %1696 = vmatpush1.msra.mxu0 0.0
        %1697 = vmatprep.subr.mxu0 0.0
        %1698 = vmatpush1.msra.mxu0 0.0
        %1699 = vmatprep.subr.mxu0 0.0
        %1700 = vmatpush1.msra.mxu0 0.0
        %1701 = vmatprep.subr.mxu0 0.0
        %1702 = vmatpush1.msra.mxu0 0.0
        %1703 = vmatprep.subr.mxu0 0.0
        %1704 = vmatpush1.msra.mxu0 0.0
        %1705 = vmatprep.subr.mxu0 0.0
        %1706 = vmatpush1.msra.mxu0 0.0
        %1707 = vmatprep.subr.mxu0 0.0
        %1708 = vmatpush1.msra.mxu0 0.0
        %1709 = vmatprep.subr.mxu0 0.0
        %1710 = vmatpush1.msra.mxu0 %v1678
        %1711 = vmatprep.subr.mxu0 0.0
        %1712 = vmatpush1.msra.mxu0 %v1676
        %1713 = vmatprep.subr.mxu0 0.0
        %1714 = vmatpush1.msra.mxu0 %v1674
        %1715 = vmatprep.subr.mxu0 0.0
        %1716 = vmatpush1.msra.mxu0 %v1672
        %1717 = vmatprep.subr.mxu0 0.0
        %1718 = vmatpush1.msra.mxu0 %v1670
        %1719 = vmatprep.subr.mxu0 0.0
        %1720 = vmatpush1.msra.mxu0 %v1668
        %1721 = vmatprep.subr.mxu0 0.0
        %1722 = vmatpush2.msra.mxu0 0.0
        %1723 = vmatprep.subr.mxu0 0.0
        %1724 = vmatpush2.msra.mxu0 0.0
        %1725 = vmatprep.subr.mxu0 0.0
        %1726 = vmatpush2.msra.mxu0 0.0
        %1727 = vmatprep.subr.mxu0 0.0
        %1728 = vmatpush2.msra.mxu0 0.0
        %1729 = vmatprep.subr.mxu0 0.0
        %1730 = vmatpush2.msra.mxu0 0.0
        %1731 = vmatprep.subr.mxu0 0.0
        %1732 = vmatpush2.msra.mxu0 0.0
        %1733 = vmatprep.subr.mxu0 0.0
        %1734 = vmatpush2.msra.mxu0 0.0
        %1735 = vmatprep.subr.mxu0 0.0
        %1736 = vmatpush2.msra.mxu0 0.0
        %1737 = vmatprep.subr.mxu0 0.0
        %1738 = vmatpush2.msra.mxu0 0.0
        %1739 = vmatprep.subr.mxu0 0.0
        %1740 = vmatpush2.msra.mxu0 0.0
        %1741 = vmatprep.subr.mxu0 0.0
        %1742 = vmatpush2.msra.mxu0 0.0
        %1743 = vmatprep.subr.mxu0 0.0
        %1744 = vmatpush2.msra.mxu0 0.0
        %1745 = vmatprep.subr.mxu0 0.0
        %1746 = vmatpush2.msra.mxu0 0.0
        %1747 = vmatprep.subr.mxu0 0.0
        %1748 = vmatpush2.msra.mxu0 0.0
        %1749 = vmatprep.subr.mxu0 0.0
        %1750 = vmatpush2.msra.mxu0 0.0
        %1751 = vmatprep.subr.mxu0 0.0
        %1752 = vmatpush2.msra.mxu0 0.0
        %1753 = vmatprep.mubr.f32.mxu0 0.0
        %1754 = vmatmul.mubr.f32.gmra.mxu0 %v1685
        %v1755 = vpop.f32.mrf.mxu0
        %v1756 = vadd.f32 %v1654, %v1755
        %v1757 = vpop.f32.mrf.mxu0
        %1758 = vmatprep.mubr.f32.mxu0 0.0
        %1759 = vmatmul.mubr.f32.gmra.mxu0 %v1687
        %v1760 = vpop.f32.mrf.mxu0
        %v1761 = vadd.f32 %v1659, %v1760
        %v1762 = vpop.f32.mrf.mxu0
        %1763 = vdwg.mxu0
        %vm1764 = vcmp.gt.f32.partialorder %v1756, 0.0
        %vm1765 = vcmp.gt.f32.partialorder %v1761, 0.0
        %v1766 = vmin.f32 %v1756, 0.0
        %v1767 = vmin.f32 %v1761, 0.0
        %v1768 = vmul.f32 %v1766, 1.442695
        %v1769 = vpow.pop %v1768
        %v1770 = vmul.f32 %v1767, 1.442695
        %v1771 = vpow.pop %v1770
        %v1772 = vsub.f32 %v1769, 1.0
        %v1773 = vsub.f32 %v1771, 1.0
        %v1774 = vsel %vm1764, %v1756, %v1772
        %v1775 = vsel %vm1765, %v1761, %v1773
        %v1776 = vld [vmem:[%s3 + $0x70] sm:$0xff]
        %v1777 = vld [vmem:[%s3 + $0x78] sm:$0xff]
        %1779 = vset.pattern.permute.xlu0 16
        %1780 = vperm.xlu0 %1779, %v1776
        %v1781 = vpop.permute.xlu0 %1780
        %1784 = vset.pattern.permute.xlu0 16
        %1785 = vperm.xlu0 %1784, %v1777
        %v1786 = vpop.permute.xlu0 %1785
        %v1788 = vsel %vm895, %v1776, 0
        %v1790 = vsel %vm895, %v1777, 0
        %1792 = vmatprep.subr.mxu0 0.0
        %1793 = vmatpush1.msra.mxu0 0.0
        %1794 = vmatprep.subr.mxu0 0.0
        %1795 = vmatpush1.msra.mxu0 0.0
        %1796 = vmatprep.subr.mxu0 0.0
        %1797 = vmatpush1.msra.mxu0 0.0
        %1798 = vmatprep.subr.mxu0 0.0
        %1799 = vmatpush1.msra.mxu0 0.0
        %1800 = vmatprep.subr.mxu0 0.0
        %1801 = vmatpush1.msra.mxu0 0.0
        %1802 = vmatprep.subr.mxu0 0.0
        %1803 = vmatpush1.msra.mxu0 0.0
        %1804 = vmatprep.subr.mxu0 0.0
        %1805 = vmatpush1.msra.mxu0 0.0
        %1806 = vmatprep.subr.mxu0 0.0
        %1807 = vmatpush1.msra.mxu0 0.0
        %1808 = vmatprep.subr.mxu0 0.0
        %1809 = vmatpush1.msra.mxu0 0.0
        %1810 = vmatprep.subr.mxu0 0.0
        %1811 = vmatpush1.msra.mxu0 0.0
        %1812 = vmatprep.subr.mxu0 0.0
        %1813 = vmatpush1.msra.mxu0 0.0
        %1814 = vmatprep.subr.mxu0 0.0
        %1815 = vmatpush1.msra.mxu0 0.0
        %1816 = vmatprep.subr.mxu0 0.0
        %1817 = vmatpush1.msra.mxu0 0.0
        %1818 = vmatprep.subr.mxu0 0.0
        %1819 = vmatpush1.msra.mxu0 0.0
        %1820 = vmatprep.subr.mxu0 0.0
        %1821 = vmatpush1.msra.mxu0 %v1775
        %1822 = vmatprep.subr.mxu0 0.0
        %1823 = vmatpush1.msra.mxu0 %v1774
        %1824 = vmatprep.subr.mxu0 0.0
        %1825 = vmatpush2.msra.mxu0 0.0
        %1826 = vmatprep.subr.mxu0 0.0
        %1827 = vmatpush2.msra.mxu0 0.0
        %1828 = vmatprep.subr.mxu0 0.0
        %1829 = vmatpush2.msra.mxu0 0.0
        %1830 = vmatprep.subr.mxu0 0.0
        %1831 = vmatpush2.msra.mxu0 0.0
        %1832 = vmatprep.subr.mxu0 0.0
        %1833 = vmatpush2.msra.mxu0 0.0
        %1834 = vmatprep.subr.mxu0 0.0
        %1835 = vmatpush2.msra.mxu0 0.0
        %1836 = vmatprep.subr.mxu0 0.0
        %1837 = vmatpush2.msra.mxu0 0.0
        %1838 = vmatprep.subr.mxu0 0.0
        %1839 = vmatpush2.msra.mxu0 0.0
        %1840 = vmatprep.subr.mxu0 0.0
        %1841 = vmatpush2.msra.mxu0 0.0
        %1842 = vmatprep.subr.mxu0 0.0
        %1843 = vmatpush2.msra.mxu0 0.0
        %1844 = vmatprep.subr.mxu0 0.0
        %1845 = vmatpush2.msra.mxu0 0.0
        %1846 = vmatprep.subr.mxu0 0.0
        %1847 = vmatpush2.msra.mxu0 0.0
        %1848 = vmatprep.subr.mxu0 0.0
        %1849 = vmatpush2.msra.mxu0 0.0
        %1850 = vmatprep.subr.mxu0 0.0
        %1851 = vmatpush2.msra.mxu0 0.0
        %1852 = vmatprep.subr.mxu0 0.0
        %1853 = vmatpush2.msra.mxu0 0.0
        %1854 = vmatprep.subr.mxu0 0.0
        %1855 = vmatpush2.msra.mxu0 0.0
        %1856 = vmatprep.mubr.f32.mxu0 0.0
        %1857 = vmatmul.mubr.f32.gmra.mxu0 %v1788
        %v1858 = vpop.f32.mrf.mxu0
        %v1859 = vadd.f32 %v1781, %v1858
        %v1860 = vpop.f32.mrf.mxu0
        %1861 = vmatprep.mubr.f32.mxu0 0.0
        %1862 = vmatmul.mubr.f32.gmra.mxu0 %v1790
        %v1863 = vpop.f32.mrf.mxu0
        %v1864 = vadd.f32 %v1786, %v1863
        %v1865 = vpop.f32.mrf.mxu0
        %1866 = vdwg.mxu0
        %v1867 = vadd.f32 %v1612, %v1859
        %v1868 = vadd.f32 %v1613, %v1864
        %1870 = vset.pattern.permute.xlu0 0
        %1871 = vperm.xlu0 %1870, %v528
        %v1872 = vpop.permute.xlu0 %1871
        %1875 = vset.pattern.permute.xlu0 0
        %1876 = vperm.xlu0 %1875, %v533
        %v1877 = vpop.permute.xlu0 %1876
        %v1879 = vmul.f32 %v1872, %v1867
        %v1880 = vmul.f32 %v1877, %v1868
        %1882 = vset.pattern.permute.xlu0 0
        %1883 = vperm.xlu0 %1882, %v453
        %v1884 = vpop.permute.xlu0 %1883
        %1887 = vset.pattern.permute.xlu0 0
        %1888 = vperm.xlu0 %1887, %v458
        %v1889 = vpop.permute.xlu0 %1888
        %v1891 = vadd.f32 %v1879, %v1884
        %v1892 = vadd.f32 %v1880, %v1889
        %vm1893 = vcmask 408576
        %1894 = vst.msk [vmem:[#allocation2] sm:$0xff] %vm1893, 0.0
        %1895 = vst.msk [vmem:[#allocation2 + $0x18] sm:$0xff] %vm1893, 0.0
        %1896 = vst.msk [vmem:[#allocation2 + $0x30] sm:$0xff] %vm1893, 0.0
        %1897 = vst.msk [vmem:[#allocation2 + $0x48] sm:$0xff] %vm1893, 0.0
        %1898 = vst.msk [vmem:[#allocation2 + $0x60] sm:$0xff] %vm1893, 0.0
        %1899 = vst.msk [vmem:[#allocation2 + $0x78] sm:$0xff] %vm1893, 0.0
        %1902 = vrot.lane.b32.xlu0 %v1891, 18
        %v1903 = vpop.permute.xlu0 %1902
        %1904 = vrot.lane.b32.xlu0 %v1892, 18
        %v1905 = vpop.permute.xlu0 %1904
        %vm1908 = vcmask 408720
        %1909 = vst.msk [vmem:[#allocation2] sm:$0xff] %vm1908, %v1903
        %1910 = vst.msk [vmem:[#allocation2 + $0x18] sm:$0xff] %vm1908, %v1905
        %1911 = vrot.lane.b32.xlu0 %v1891, 9
        %v1912 = vpop.permute.xlu0 %1911
        %1913 = vrot.lane.b32.xlu0 %v1892, 9
        %v1914 = vpop.permute.xlu0 %1913
        %vm1917 = vcmask 334920
        %1918 = vst.msk [vmem:[#allocation2 + $0x30] sm:$0xff] %vm1917, %v1912
        %1919 = vst.msk [vmem:[#allocation2 + $0x48] sm:$0xff] %vm1917, %v1914
        %1920 = vst.msk [vmem:[#allocation2 + $0x60] sm:$0xff] %vm1360, %v1891
        %1921 = vst.msk [vmem:[#allocation2 + $0x78] sm:$0xff] %vm1360, %v1892
        %v1922 = vld [vmem:[#allocation2] sm:$0xff]
        %v1923 = vld [vmem:[#allocation2 + $0x18] sm:$0xff]
        %v1924 = vld [vmem:[#allocation2 + $0x30] sm:$0xff]
        %v1925 = vld [vmem:[#allocation2 + $0x48] sm:$0xff]
        %v1926 = vld [vmem:[#allocation2 + $0x60] sm:$0xff]
        %v1927 = vld [vmem:[#allocation2 + $0x78] sm:$0xff]
        %v1928 = vld [vmem:[%s3 + $0x80] sm:$0xff]
        %v1929 = vld [vmem:[%s3 + $0x88] sm:$0xff]
        %1931 = vset.pattern.permute.xlu0 48
        %1932 = vperm.xlu0 %1931, %v1928
        %v1933 = vpop.permute.xlu0 %1932
        %1936 = vset.pattern.permute.xlu0 48
        %1937 = vperm.xlu0 %1936, %v1929
        %v1938 = vpop.permute.xlu0 %1937
        %1946 = vrot.lane.b32.xlu0 %v1922, 119
        %v1947 = vpop.permute.xlu0 %1946
        %1948 = vrot.lane.b32.xlu0 %v1923, 119
        %v1949 = vpop.permute.xlu0 %1948
        %1950 = vrot.lane.b32.xlu0 %v1924, 119
        %v1951 = vpop.permute.xlu0 %1950
        %1952 = vrot.lane.b32.xlu0 %v1925, 119
        %v1953 = vpop.permute.xlu0 %1952
        %1954 = vrot.lane.b32.xlu0 %v1926, 119
        %v1955 = vpop.permute.xlu0 %1954
        %1956 = vrot.lane.b32.xlu0 %v1927, 119
        %v1957 = vpop.permute.xlu0 %1956
        %v1964 = vsel %vm1405, %v1928, 0
        %v1966 = vsel %vm1405, %v1929, 0
        %1968 = vmatprep.subr.mxu0 0.0
        %1969 = vmatpush1.msra.mxu0 0.0
        %1970 = vmatprep.subr.mxu0 0.0
        %1971 = vmatpush1.msra.mxu0 0.0
        %1972 = vmatprep.subr.mxu0 0.0
        %1973 = vmatpush1.msra.mxu0 0.0
        %1974 = vmatprep.subr.mxu0 0.0
        %1975 = vmatpush1.msra.mxu0 0.0
        %1976 = vmatprep.subr.mxu0 0.0
        %1977 = vmatpush1.msra.mxu0 0.0
        %1978 = vmatprep.subr.mxu0 0.0
        %1979 = vmatpush1.msra.mxu0 0.0
        %1980 = vmatprep.subr.mxu0 0.0
        %1981 = vmatpush1.msra.mxu0 0.0
        %1982 = vmatprep.subr.mxu0 0.0
        %1983 = vmatpush1.msra.mxu0 0.0
        %1984 = vmatprep.subr.mxu0 0.0
        %1985 = vmatpush1.msra.mxu0 0.0
        %1986 = vmatprep.subr.mxu0 0.0
        %1987 = vmatpush1.msra.mxu0 0.0
        %1988 = vmatprep.subr.mxu0 0.0
        %1989 = vmatpush1.msra.mxu0 %v1957
        %1990 = vmatprep.subr.mxu0 0.0
        %1991 = vmatpush1.msra.mxu0 %v1955
        %1992 = vmatprep.subr.mxu0 0.0
        %1993 = vmatpush1.msra.mxu0 %v1953
        %1994 = vmatprep.subr.mxu0 0.0
        %1995 = vmatpush1.msra.mxu0 %v1951
        %1996 = vmatprep.subr.mxu0 0.0
        %1997 = vmatpush1.msra.mxu0 %v1949
        %1998 = vmatprep.subr.mxu0 0.0
        %1999 = vmatpush1.msra.mxu0 %v1947
        %2000 = vmatprep.subr.mxu0 0.0
        %2001 = vmatpush2.msra.mxu0 0.0
        %2002 = vmatprep.subr.mxu0 0.0
        %2003 = vmatpush2.msra.mxu0 0.0
        %2004 = vmatprep.subr.mxu0 0.0
        %2005 = vmatpush2.msra.mxu0 0.0
        %2006 = vmatprep.subr.mxu0 0.0
        %2007 = vmatpush2.msra.mxu0 0.0
        %2008 = vmatprep.subr.mxu0 0.0
        %2009 = vmatpush2.msra.mxu0 0.0
        %2010 = vmatprep.subr.mxu0 0.0
        %2011 = vmatpush2.msra.mxu0 0.0
        %2012 = vmatprep.subr.mxu0 0.0
        %2013 = vmatpush2.msra.mxu0 0.0
        %2014 = vmatprep.subr.mxu0 0.0
        %2015 = vmatpush2.msra.mxu0 0.0
        %2016 = vmatprep.subr.mxu0 0.0
        %2017 = vmatpush2.msra.mxu0 0.0
        %2018 = vmatprep.subr.mxu0 0.0
        %2019 = vmatpush2.msra.mxu0 0.0
        %2020 = vmatprep.subr.mxu0 0.0
        %2021 = vmatpush2.msra.mxu0 0.0
        %2022 = vmatprep.subr.mxu0 0.0
        %2023 = vmatpush2.msra.mxu0 0.0
        %2024 = vmatprep.subr.mxu0 0.0
        %2025 = vmatpush2.msra.mxu0 0.0
        %2026 = vmatprep.subr.mxu0 0.0
        %2027 = vmatpush2.msra.mxu0 0.0
        %2028 = vmatprep.subr.mxu0 0.0
        %2029 = vmatpush2.msra.mxu0 0.0
        %2030 = vmatprep.subr.mxu0 0.0
        %2031 = vmatpush2.msra.mxu0 0.0
        %2032 = vmatprep.mubr.f32.mxu0 0.0
        %2033 = vmatmul.mubr.f32.gmra.mxu0 %v1964
        %v2034 = vpop.f32.mrf.mxu0
        %v2035 = vadd.f32 %v1933, %v2034
        %v2036 = vpop.f32.mrf.mxu0
        %2037 = vmatprep.mubr.f32.mxu0 0.0
        %2038 = vmatmul.mubr.f32.gmra.mxu0 %v1966
        %v2039 = vpop.f32.mrf.mxu0
        %v2040 = vadd.f32 %v1938, %v2039
        %v2041 = vpop.f32.mrf.mxu0
        %2042 = vdwg.mxu0
        %vm2043 = vcmp.gt.f32.partialorder %v2035, 0.0
        %vm2044 = vcmp.gt.f32.partialorder %v2040, 0.0
        %v2045 = vmin.f32 %v2035, 0.0
        %v2046 = vmin.f32 %v2040, 0.0
        %v2047 = vmul.f32 %v2045, 1.442695
        %v2048 = vpow.pop %v2047
        %v2049 = vmul.f32 %v2046, 1.442695
        %v2050 = vpow.pop %v2049
        %v2051 = vsub.f32 %v2048, 1.0
        %v2052 = vsub.f32 %v2050, 1.0
        %v2053 = vsel %vm2043, %v2035, %v2051
        %v2054 = vsel %vm2044, %v2040, %v2052
        %v2055 = vld [vmem:[%s3 + $0x90] sm:$0xff]
        %v2056 = vld [vmem:[%s3 + $0x98] sm:$0xff]
        %2058 = vset.pattern.permute.xlu0 16
        %2059 = vperm.xlu0 %2058, %v2055
        %v2060 = vpop.permute.xlu0 %2059
        %2063 = vset.pattern.permute.xlu0 16
        %2064 = vperm.xlu0 %2063, %v2056
        %v2065 = vpop.permute.xlu0 %2064
        %v2067 = vsel %vm895, %v2055, 0
        %v2069 = vsel %vm895, %v2056, 0
        %2071 = vmatprep.subr.mxu0 0.0
        %2072 = vmatpush1.msra.mxu0 0.0
        %2073 = vmatprep.subr.mxu0 0.0
        %2074 = vmatpush1.msra.mxu0 0.0
        %2075 = vmatprep.subr.mxu0 0.0
        %2076 = vmatpush1.msra.mxu0 0.0
        %2077 = vmatprep.subr.mxu0 0.0
        %2078 = vmatpush1.msra.mxu0 0.0
        %2079 = vmatprep.subr.mxu0 0.0
        %2080 = vmatpush1.msra.mxu0 0.0
        %2081 = vmatprep.subr.mxu0 0.0
        %2082 = vmatpush1.msra.mxu0 0.0
        %2083 = vmatprep.subr.mxu0 0.0
        %2084 = vmatpush1.msra.mxu0 0.0
        %2085 = vmatprep.subr.mxu0 0.0
        %2086 = vmatpush1.msra.mxu0 0.0
        %2087 = vmatprep.subr.mxu0 0.0
        %2088 = vmatpush1.msra.mxu0 0.0
        %2089 = vmatprep.subr.mxu0 0.0
        %2090 = vmatpush1.msra.mxu0 0.0
        %2091 = vmatprep.subr.mxu0 0.0
        %2092 = vmatpush1.msra.mxu0 0.0
        %2093 = vmatprep.subr.mxu0 0.0
        %2094 = vmatpush1.msra.mxu0 0.0
        %2095 = vmatprep.subr.mxu0 0.0
        %2096 = vmatpush1.msra.mxu0 0.0
        %2097 = vmatprep.subr.mxu0 0.0
        %2098 = vmatpush1.msra.mxu0 0.0
        %2099 = vmatprep.subr.mxu0 0.0
        %2100 = vmatpush1.msra.mxu0 %v2054
        %2101 = vmatprep.subr.mxu0 0.0
        %2102 = vmatpush1.msra.mxu0 %v2053
        %2103 = vmatprep.subr.mxu0 0.0
        %2104 = vmatpush2.msra.mxu0 0.0
        %2105 = vmatprep.subr.mxu0 0.0
        %2106 = vmatpush2.msra.mxu0 0.0
        %2107 = vmatprep.subr.mxu0 0.0
        %2108 = vmatpush2.msra.mxu0 0.0
        %2109 = vmatprep.subr.mxu0 0.0
        %2110 = vmatpush2.msra.mxu0 0.0
        %2111 = vmatprep.subr.mxu0 0.0
        %2112 = vmatpush2.msra.mxu0 0.0
        %2113 = vmatprep.subr.mxu0 0.0
        %2114 = vmatpush2.msra.mxu0 0.0
        %2115 = vmatprep.subr.mxu0 0.0
        %2116 = vmatpush2.msra.mxu0 0.0
        %2117 = vmatprep.subr.mxu0 0.0
        %2118 = vmatpush2.msra.mxu0 0.0
        %2119 = vmatprep.subr.mxu0 0.0
        %2120 = vmatpush2.msra.mxu0 0.0
        %2121 = vmatprep.subr.mxu0 0.0
        %2122 = vmatpush2.msra.mxu0 0.0
        %2123 = vmatprep.subr.mxu0 0.0
        %2124 = vmatpush2.msra.mxu0 0.0
        %2125 = vmatprep.subr.mxu0 0.0
        %2126 = vmatpush2.msra.mxu0 0.0
        %2127 = vmatprep.subr.mxu0 0.0
        %2128 = vmatpush2.msra.mxu0 0.0
        %2129 = vmatprep.subr.mxu0 0.0
        %2130 = vmatpush2.msra.mxu0 0.0
        %2131 = vmatprep.subr.mxu0 0.0
        %2132 = vmatpush2.msra.mxu0 0.0
        %2133 = vmatprep.subr.mxu0 0.0
        %2134 = vmatpush2.msra.mxu0 0.0
        %2135 = vmatprep.mubr.f32.mxu0 0.0
        %2136 = vmatmul.mubr.f32.gmra.mxu0 %v2067
        %v2137 = vpop.f32.mrf.mxu0
        %v2138 = vadd.f32 %v2060, %v2137
        %v2139 = vpop.f32.mrf.mxu0
        %2140 = vmatprep.mubr.f32.mxu0 0.0
        %2141 = vmatmul.mubr.f32.gmra.mxu0 %v2069
        %v2142 = vpop.f32.mrf.mxu0
        %v2143 = vadd.f32 %v2065, %v2142
        %v2144 = vpop.f32.mrf.mxu0
        %2145 = vdwg.mxu0
        %v2146 = vadd.f32 %v1891, %v2138
        %v2147 = vadd.f32 %v1892, %v2143
        %2148 = vst.msk [vmem:[#allocation2] sm:$0xff] %vm1333, 0.0
        %2149 = vst.msk [vmem:[#allocation2 + $0x18] sm:$0xff] %vm1333, 0.0
        %2150 = vst.msk [vmem:[#allocation2 + $0x30] sm:$0xff] %vm1333, 0.0
        %2151 = vst.msk [vmem:[#allocation2 + $0x48] sm:$0xff] %vm1333, 0.0
        %2152 = vst.msk [vmem:[#allocation2 + $0x60] sm:$0xff] %vm1333, 0.0
        %2153 = vst.msk [vmem:[#allocation2 + $0x78] sm:$0xff] %vm1333, 0.0
        %2156 = vrot.lane.b32.xlu0 %v2146, 2
        %v2157 = vpop.permute.xlu0 %2156
        %2158 = vrot.lane.b32.xlu0 %v2147, 2
        %v2159 = vpop.permute.xlu0 %2158
        %2162 = vst.msk [vmem:[#allocation2] sm:$0xff] %vm1348, %v2157
        %2163 = vst.msk [vmem:[#allocation2 + $0x18] sm:$0xff] %vm1348, %v2159
        %2164 = vrot.lane.b32.xlu0 %v2146, 1
        %v2165 = vpop.permute.xlu0 %2164
        %2166 = vrot.lane.b32.xlu0 %v2147, 1
        %v2167 = vpop.permute.xlu0 %2166
        %2170 = vst.msk [vmem:[#allocation2 + $0x30] sm:$0xff] %vm1357, %v2165
        %2171 = vst.msk [vmem:[#allocation2 + $0x48] sm:$0xff] %vm1357, %v2167
        %2172 = vst.msk [vmem:[#allocation2 + $0x60] sm:$0xff] %vm1360, %v2146
        %2173 = vst.msk [vmem:[#allocation2 + $0x78] sm:$0xff] %vm1360, %v2147
        %v2174 = vld [vmem:[#allocation2] sm:$0xff]
        %v2175 = vld [vmem:[#allocation2 + $0x18] sm:$0xff]
        %v2176 = vld [vmem:[#allocation2 + $0x30] sm:$0xff]
        %v2177 = vld [vmem:[#allocation2 + $0x48] sm:$0xff]
        %v2178 = vld [vmem:[#allocation2 + $0x60] sm:$0xff]
        %v2179 = vld [vmem:[#allocation2 + $0x78] sm:$0xff]
        %v2180 = vld [vmem:[%s3 + $0xa0] sm:$0xff]
        %2182 = vset.pattern.permute.xlu0 48
        %2183 = vperm.xlu0 %2182, %v2180
        %v2184 = vpop.permute.xlu0 %2183
        %2192 = vrot.lane.b32.xlu0 %v2174, 127
        %v2193 = vpop.permute.xlu0 %2192
        %2194 = vrot.lane.b32.xlu0 %v2175, 127
        %v2195 = vpop.permute.xlu0 %2194
        %2196 = vrot.lane.b32.xlu0 %v2176, 127
        %v2197 = vpop.permute.xlu0 %2196
        %2198 = vrot.lane.b32.xlu0 %v2177, 127
        %v2199 = vpop.permute.xlu0 %2198
        %2200 = vrot.lane.b32.xlu0 %v2178, 127
        %v2201 = vpop.permute.xlu0 %2200
        %2202 = vrot.lane.b32.xlu0 %v2179, 127
        %v2203 = vpop.permute.xlu0 %2202
        %v2210 = vsel %vm1405, %v2180, 0
        %2212 = vmatprep.subr.mxu0 0.0
        %2213 = vmatpush1.msra.mxu0 0.0
        %2214 = vmatprep.subr.mxu0 0.0
        %2215 = vmatpush1.msra.mxu0 0.0
        %2216 = vmatprep.subr.mxu0 0.0
        %2217 = vmatpush1.msra.mxu0 0.0
        %2218 = vmatprep.subr.mxu0 0.0
        %2219 = vmatpush1.msra.mxu0 0.0
        %2220 = vmatprep.subr.mxu0 0.0
        %2221 = vmatpush1.msra.mxu0 0.0
        %2222 = vmatprep.subr.mxu0 0.0
        %2223 = vmatpush1.msra.mxu0 0.0
        %2224 = vmatprep.subr.mxu0 0.0
        %2225 = vmatpush1.msra.mxu0 0.0
        %2226 = vmatprep.subr.mxu0 0.0
        %2227 = vmatpush1.msra.mxu0 0.0
        %2228 = vmatprep.subr.mxu0 0.0
        %2229 = vmatpush1.msra.mxu0 0.0
        %2230 = vmatprep.subr.mxu0 0.0
        %2231 = vmatpush1.msra.mxu0 0.0
        %2232 = vmatprep.subr.mxu0 0.0
        %2233 = vmatpush1.msra.mxu0 %v2203
        %2234 = vmatprep.subr.mxu0 0.0
        %2235 = vmatpush1.msra.mxu0 %v2201
        %2236 = vmatprep.subr.mxu0 0.0
        %2237 = vmatpush1.msra.mxu0 %v2199
        %2238 = vmatprep.subr.mxu0 0.0
        %2239 = vmatpush1.msra.mxu0 %v2197
        %2240 = vmatprep.subr.mxu0 0.0
        %2241 = vmatpush1.msra.mxu0 %v2195
        %2242 = vmatprep.subr.mxu0 0.0
        %2243 = vmatpush1.msra.mxu0 %v2193
        %2244 = vmatprep.subr.mxu0 0.0
        %2245 = vmatpush2.msra.mxu0 0.0
        %2246 = vmatprep.subr.mxu0 0.0
        %2247 = vmatpush2.msra.mxu0 0.0
        %2248 = vmatprep.subr.mxu0 0.0
        %2249 = vmatpush2.msra.mxu0 0.0
        %2250 = vmatprep.subr.mxu0 0.0
        %2251 = vmatpush2.msra.mxu0 0.0
        %2252 = vmatprep.subr.mxu0 0.0
        %2253 = vmatpush2.msra.mxu0 0.0
        %2254 = vmatprep.subr.mxu0 0.0
        %2255 = vmatpush2.msra.mxu0 0.0
        %2256 = vmatprep.subr.mxu0 0.0
        %2257 = vmatpush2.msra.mxu0 0.0
        %2258 = vmatprep.subr.mxu0 0.0
        %2259 = vmatpush2.msra.mxu0 0.0
        %2260 = vmatprep.subr.mxu0 0.0
        %2261 = vmatpush2.msra.mxu0 0.0
        %2262 = vmatprep.subr.mxu0 0.0
        %2263 = vmatpush2.msra.mxu0 0.0
        %2264 = vmatprep.subr.mxu0 0.0
        %2265 = vmatpush2.msra.mxu0 0.0
        %2266 = vmatprep.subr.mxu0 0.0
        %2267 = vmatpush2.msra.mxu0 0.0
        %2268 = vmatprep.subr.mxu0 0.0
        %2269 = vmatpush2.msra.mxu0 0.0
        %2270 = vmatprep.subr.mxu0 0.0
        %2271 = vmatpush2.msra.mxu0 0.0
        %2272 = vmatprep.subr.mxu0 0.0
        %2273 = vmatpush2.msra.mxu0 0.0
        %2274 = vmatprep.subr.mxu0 0.0
        %2275 = vmatpush2.msra.mxu0 0.0
        %2276 = vmatprep.mubr.f32.mxu0 0.0
        %2277 = vmatmul.mubr.f32.gmra.mxu0 %v2210
        %v2278 = vpop.f32.mrf.mxu0
        %v2279 = vadd.f32 %v2184, %v2278
        %v2280 = vpop.f32.mrf.mxu0
        %2281 = vdwg.mxu0
        %v2282 = vld [vmem:[%s3 + $0xa8] sm:$0xff]
        %2284 = vset.pattern.permute.xlu0 48
        %2285 = vperm.xlu0 %2284, %v2282
        %v2286 = vpop.permute.xlu0 %2285
        %v2288 = vsel %vm1405, %v2282, 0
        %2290 = vmatprep.subr.mxu0 0.0
        %2291 = vmatpush1.msra.mxu0 0.0
        %2292 = vmatprep.subr.mxu0 0.0
        %2293 = vmatpush1.msra.mxu0 0.0
        %2294 = vmatprep.subr.mxu0 0.0
        %2295 = vmatpush1.msra.mxu0 0.0
        %2296 = vmatprep.subr.mxu0 0.0
        %2297 = vmatpush1.msra.mxu0 0.0
        %2298 = vmatprep.subr.mxu0 0.0
        %2299 = vmatpush1.msra.mxu0 0.0
        %2300 = vmatprep.subr.mxu0 0.0
        %2301 = vmatpush1.msra.mxu0 0.0
        %2302 = vmatprep.subr.mxu0 0.0
        %2303 = vmatpush1.msra.mxu0 0.0
        %2304 = vmatprep.subr.mxu0 0.0
        %2305 = vmatpush1.msra.mxu0 0.0
        %2306 = vmatprep.subr.mxu0 0.0
        %2307 = vmatpush1.msra.mxu0 0.0
        %2308 = vmatprep.subr.mxu0 0.0
        %2309 = vmatpush1.msra.mxu0 0.0
        %2310 = vmatprep.subr.mxu0 0.0
        %2311 = vmatpush1.msra.mxu0 %v2203
        %2312 = vmatprep.subr.mxu0 0.0
        %2313 = vmatpush1.msra.mxu0 %v2201
        %2314 = vmatprep.subr.mxu0 0.0
        %2315 = vmatpush1.msra.mxu0 %v2199
        %2316 = vmatprep.subr.mxu0 0.0
        %2317 = vmatpush1.msra.mxu0 %v2197
        %2318 = vmatprep.subr.mxu0 0.0
        %2319 = vmatpush1.msra.mxu0 %v2195
        %2320 = vmatprep.subr.mxu0 0.0
        %2321 = vmatpush1.msra.mxu0 %v2193
        %2322 = vmatprep.subr.mxu0 0.0
        %2323 = vmatpush2.msra.mxu0 0.0
        %2324 = vmatprep.subr.mxu0 0.0
        %2325 = vmatpush2.msra.mxu0 0.0
        %2326 = vmatprep.subr.mxu0 0.0
        %2327 = vmatpush2.msra.mxu0 0.0
        %2328 = vmatprep.subr.mxu0 0.0
        %2329 = vmatpush2.msra.mxu0 0.0
        %2330 = vmatprep.subr.mxu0 0.0
        %2331 = vmatpush2.msra.mxu0 0.0
        %2332 = vmatprep.subr.mxu0 0.0
        %2333 = vmatpush2.msra.mxu0 0.0
        %2334 = vmatprep.subr.mxu0 0.0
        %2335 = vmatpush2.msra.mxu0 0.0
        %2336 = vmatprep.subr.mxu0 0.0
        %2337 = vmatpush2.msra.mxu0 0.0
        %2338 = vmatprep.subr.mxu0 0.0
        %2339 = vmatpush2.msra.mxu0 0.0
        %2340 = vmatprep.subr.mxu0 0.0
        %2341 = vmatpush2.msra.mxu0 0.0
        %2342 = vmatprep.subr.mxu0 0.0
        %2343 = vmatpush2.msra.mxu0 0.0
        %2344 = vmatprep.subr.mxu0 0.0
        %2345 = vmatpush2.msra.mxu0 0.0
        %2346 = vmatprep.subr.mxu0 0.0
        %2347 = vmatpush2.msra.mxu0 0.0
        %2348 = vmatprep.subr.mxu0 0.0
        %2349 = vmatpush2.msra.mxu0 0.0
        %2350 = vmatprep.subr.mxu0 0.0
        %2351 = vmatpush2.msra.mxu0 0.0
        %2352 = vmatprep.subr.mxu0 0.0
        %2353 = vmatpush2.msra.mxu0 0.0
        %2354 = vmatprep.mubr.f32.mxu0 0.0
        %2355 = vmatmul.mubr.f32.gmra.mxu0 %v2288
        %v2356 = vpop.f32.mrf.mxu0
        %v2357 = vadd.f32 %v2286, %v2356
        %v2358 = vpop.f32.mrf.mxu0
        %2359 = vdwg.mxu0
        %v2360 = vld [vmem:[%s4] sm:$0xff]
        %v2361 = vld [vmem:[%s4 + $0x10] sm:$0xff]
        %v2362 = vld [vmem:[%s4 + $0x20] sm:$0xff]
        %v2363 = vld [vmem:[%s4 + $0x30] sm:$0xff]
        %v2364 = vld [vmem:[%s4 + $0x100] sm:$0xff]
        %v2365 = vld [vmem:[%s4 + $0x110] sm:$0xff]
        %v2366 = vld [vmem:[%s4 + $0x120] sm:$0xff]
        %v2367 = vld [vmem:[%s4 + $0x130] sm:$0xff]
        %v2369 = vsel %vm1360, %v2357, 0
        %2371 = vmatprep.subr.mxu0 0.0
        %2372 = vmatpush1.msra.mxu0 0.0
        %2373 = vmatprep.subr.mxu0 0.0
        %2374 = vmatpush1.msra.mxu0 0.0
        %2375 = vmatprep.subr.mxu0 0.0
        %2376 = vmatpush1.msra.mxu0 0.0
        %2377 = vmatprep.subr.mxu0 0.0
        %2378 = vmatpush1.msra.mxu0 0.0
        %2379 = vmatprep.subr.mxu0 0.0
        %2380 = vmatpush1.msra.mxu0 0.0
        %2381 = vmatprep.subr.mxu0 0.0
        %2382 = vmatpush1.msra.mxu0 0.0
        %2383 = vmatprep.subr.mxu0 0.0
        %2384 = vmatpush1.msra.mxu0 0.0
        %2385 = vmatprep.subr.mxu0 0.0
        %2386 = vmatpush1.msra.mxu0 0.0
        %2387 = vmatprep.subr.mxu0 0.0
        %2388 = vmatpush1.msra.mxu0 0.0
        %2389 = vmatprep.subr.mxu0 0.0
        %2390 = vmatpush1.msra.mxu0 0.0
        %2391 = vmatprep.subr.mxu0 0.0
        %2392 = vmatpush1.msra.mxu0 0.0
        %2393 = vmatprep.subr.mxu0 0.0
        %2394 = vmatpush1.msra.mxu0 0.0
        %2395 = vmatprep.subr.mxu0 0.0
        %2396 = vmatpush1.msra.mxu0 %v2367
        %2397 = vmatprep.subr.mxu0 0.0
        %2398 = vmatpush1.msra.mxu0 %v2366
        %2399 = vmatprep.subr.mxu0 0.0
        %2400 = vmatpush1.msra.mxu0 %v2365
        %2401 = vmatprep.subr.mxu0 0.0
        %2402 = vmatpush1.msra.mxu0 %v2364
        %2403 = vmatprep.subr.mxu0 0.0
        %2404 = vmatpush2.msra.mxu0 0.0
        %2405 = vmatprep.subr.mxu0 0.0
        %2406 = vmatpush2.msra.mxu0 0.0
        %2407 = vmatprep.subr.mxu0 0.0
        %2408 = vmatpush2.msra.mxu0 0.0
        %2409 = vmatprep.subr.mxu0 0.0
        %2410 = vmatpush2.msra.mxu0 0.0
        %2411 = vmatprep.subr.mxu0 0.0
        %2412 = vmatpush2.msra.mxu0 0.0
        %2413 = vmatprep.subr.mxu0 0.0
        %2414 = vmatpush2.msra.mxu0 0.0
        %2415 = vmatprep.subr.mxu0 0.0
        %2416 = vmatpush2.msra.mxu0 0.0
        %2417 = vmatprep.subr.mxu0 0.0
        %2418 = vmatpush2.msra.mxu0 0.0
        %2419 = vmatprep.subr.mxu0 0.0
        %2420 = vmatpush2.msra.mxu0 0.0
        %2421 = vmatprep.subr.mxu0 0.0
        %2422 = vmatpush2.msra.mxu0 0.0
        %2423 = vmatprep.subr.mxu0 0.0
        %2424 = vmatpush2.msra.mxu0 0.0
        %2425 = vmatprep.subr.mxu0 0.0
        %2426 = vmatpush2.msra.mxu0 0.0
        %2427 = vmatprep.subr.mxu0 0.0
        %2428 = vmatpush2.msra.mxu0 0.0
        %2429 = vmatprep.subr.mxu0 0.0
        %2430 = vmatpush2.msra.mxu0 0.0
        %2431 = vmatprep.subr.mxu0 0.0
        %2432 = vmatpush2.msra.mxu0 0.0
        %2433 = vmatprep.subr.mxu0 0.0
        %2434 = vmatpush2.msra.mxu0 0.0
        %2435 = vmatprep.mubr.f32.mxu0 0.0
        %2436 = vmatmul.mubr.f32.gmra.mxu0 %v2369
        %v2437 = vpop.f32.mrf.mxu0
        %v2438 = vadd.f32 0.0, %v2437
        %v2439 = vpop.f32.mrf.mxu0
        %2440 = vdwg.mxu0
        %v2442 = vsel %vm1360, %v2279, 0
        %2444 = vmatprep.subr.mxu0 0.0
        %2445 = vmatpush1.msra.mxu0 0.0
        %2446 = vmatprep.subr.mxu0 0.0
        %2447 = vmatpush1.msra.mxu0 0.0
        %2448 = vmatprep.subr.mxu0 0.0
        %2449 = vmatpush1.msra.mxu0 0.0
        %2450 = vmatprep.subr.mxu0 0.0
        %2451 = vmatpush1.msra.mxu0 0.0
        %2452 = vmatprep.subr.mxu0 0.0
        %2453 = vmatpush1.msra.mxu0 0.0
        %2454 = vmatprep.subr.mxu0 0.0
        %2455 = vmatpush1.msra.mxu0 0.0
        %2456 = vmatprep.subr.mxu0 0.0
        %2457 = vmatpush1.msra.mxu0 0.0
        %2458 = vmatprep.subr.mxu0 0.0
        %2459 = vmatpush1.msra.mxu0 0.0
        %2460 = vmatprep.subr.mxu0 0.0
        %2461 = vmatpush1.msra.mxu0 0.0
        %2462 = vmatprep.subr.mxu0 0.0
        %2463 = vmatpush1.msra.mxu0 0.0
        %2464 = vmatprep.subr.mxu0 0.0
        %2465 = vmatpush1.msra.mxu0 0.0
        %2466 = vmatprep.subr.mxu0 0.0
        %2467 = vmatpush1.msra.mxu0 0.0
        %2468 = vmatprep.subr.mxu0 0.0
        %2469 = vmatpush1.msra.mxu0 %v2363
        %2470 = vmatprep.subr.mxu0 0.0
        %2471 = vmatpush1.msra.mxu0 %v2362
        %2472 = vmatprep.subr.mxu0 0.0
        %2473 = vmatpush1.msra.mxu0 %v2361
        %2474 = vmatprep.subr.mxu0 0.0
        %2475 = vmatpush1.msra.mxu0 %v2360
        %2476 = vmatprep.subr.mxu0 0.0
        %2477 = vmatpush2.msra.mxu0 0.0
        %2478 = vmatprep.subr.mxu0 0.0
        %2479 = vmatpush2.msra.mxu0 0.0
        %2480 = vmatprep.subr.mxu0 0.0
        %2481 = vmatpush2.msra.mxu0 0.0
        %2482 = vmatprep.subr.mxu0 0.0
        %2483 = vmatpush2.msra.mxu0 0.0
        %2484 = vmatprep.subr.mxu0 0.0
        %2485 = vmatpush2.msra.mxu0 0.0
        %2486 = vmatprep.subr.mxu0 0.0
        %2487 = vmatpush2.msra.mxu0 0.0
        %2488 = vmatprep.subr.mxu0 0.0
        %2489 = vmatpush2.msra.mxu0 0.0
        %2490 = vmatprep.subr.mxu0 0.0
        %2491 = vmatpush2.msra.mxu0 0.0
        %2492 = vmatprep.subr.mxu0 0.0
        %2493 = vmatpush2.msra.mxu0 0.0
        %2494 = vmatprep.subr.mxu0 0.0
        %2495 = vmatpush2.msra.mxu0 0.0
        %2496 = vmatprep.subr.mxu0 0.0
        %2497 = vmatpush2.msra.mxu0 0.0
        %2498 = vmatprep.subr.mxu0 0.0
        %2499 = vmatpush2.msra.mxu0 0.0
        %2500 = vmatprep.subr.mxu0 0.0
        %2501 = vmatpush2.msra.mxu0 0.0
        %2502 = vmatprep.subr.mxu0 0.0
        %2503 = vmatpush2.msra.mxu0 0.0
        %2504 = vmatprep.subr.mxu0 0.0
        %2505 = vmatpush2.msra.mxu0 0.0
        %2506 = vmatprep.subr.mxu0 0.0
        %2507 = vmatpush2.msra.mxu0 0.0
        %2508 = vmatprep.mubr.f32.mxu0 0.0
        %2509 = vmatmul.mubr.f32.gmra.mxu0 %v2442
        %v2510 = vpop.f32.mrf.mxu0
        %v2511 = vadd.f32 %v2438, %v2510
        %v2512 = vpop.f32.mrf.mxu0
        %2513 = vdwg.mxu0
        %2515 = vset.pattern.permute.xlu0 0
        %2516 = vperm.xlu0 %2515, %v538
        %v2517 = vpop.permute.xlu0 %2516
        %v2519 = vmul.f32 %v2517, %v2511
        %2521 = vset.pattern.permute.xlu0 0
        %2522 = vperm.xlu0 %2521, %v463
        %v2523 = vpop.permute.xlu0 %2522
        %v2525 = vadd.f32 %v2519, %v2523
        %vm2526 = vcmask 539648
        %2527 = vst.msk [vmem:[#allocation2] sm:$0xff] %vm2526, 0.0
        %2528 = vst.msk [vmem:[#allocation2 + $0x18] sm:$0xff] %vm2526, 0.0
        %2529 = vst.msk [vmem:[#allocation2 + $0x30] sm:$0xff] %vm2526, 0.0
        %2531 = vrot.lane.b32.xlu0 %v2525, 2
        %v2532 = vpop.permute.xlu0 %2531
        %vm2534 = vcmask 539664
        %2535 = vst.msk [vmem:[#allocation2] sm:$0xff] %vm2534, %v2532
        %2536 = vrot.lane.b32.xlu0 %v2525, 1
        %v2537 = vpop.permute.xlu0 %2536
        %vm2539 = vcmask 531464
        %2540 = vst.msk [vmem:[#allocation2 + $0x18] sm:$0xff] %vm2539, %v2537
        %vm2541 = vcmask 523264
        %2542 = vst.msk [vmem:[#allocation2 + $0x30] sm:$0xff] %vm2541, %v2525
        %v2543 = vld [vmem:[#allocation2] sm:$0xff]
        %v2544 = vld [vmem:[#allocation2 + $0x18] sm:$0xff]
        %v2545 = vld [vmem:[#allocation2 + $0x30] sm:$0xff]
        %v2546 = vld [vmem:[%s3 + $0xb0] sm:$0xff]
        %2548 = vset.pattern.permute.xlu0 24
        %2549 = vperm.xlu0 %2548, %v2546
        %v2550 = vpop.permute.xlu0 %2549
        %2555 = vrot.lane.b32.xlu0 %v2543, 127
        %v2556 = vpop.permute.xlu0 %2555
        %2557 = vrot.lane.b32.xlu0 %v2544, 127
        %v2558 = vpop.permute.xlu0 %2557
        %2559 = vrot.lane.b32.xlu0 %v2545, 127
        %v2560 = vpop.permute.xlu0 %2559
        %vm2564 = vcmask 195584
        %v2565 = vsel %vm2564, %v2546, 0
        %2567 = vmatprep.subr.mxu0 0.0
        %2568 = vmatpush1.msra.mxu0 0.0
        %2569 = vmatprep.subr.mxu0 0.0
        %2570 = vmatpush1.msra.mxu0 0.0
        %2571 = vmatprep.subr.mxu0 0.0
        %2572 = vmatpush1.msra.mxu0 0.0
        %2573 = vmatprep.subr.mxu0 0.0
        %2574 = vmatpush1.msra.mxu0 0.0
        %2575 = vmatprep.subr.mxu0 0.0
        %2576 = vmatpush1.msra.mxu0 0.0
        %2577 = vmatprep.subr.mxu0 0.0
        %2578 = vmatpush1.msra.mxu0 0.0
        %2579 = vmatprep.subr.mxu0 0.0
        %2580 = vmatpush1.msra.mxu0 0.0
        %2581 = vmatprep.subr.mxu0 0.0
        %2582 = vmatpush1.msra.mxu0 0.0
        %2583 = vmatprep.subr.mxu0 0.0
        %2584 = vmatpush1.msra.mxu0 0.0
        %2585 = vmatprep.subr.mxu0 0.0
        %2586 = vmatpush1.msra.mxu0 0.0
        %2587 = vmatprep.subr.mxu0 0.0
        %2588 = vmatpush1.msra.mxu0 0.0
        %2589 = vmatprep.subr.mxu0 0.0
        %2590 = vmatpush1.msra.mxu0 0.0
        %2591 = vmatprep.subr.mxu0 0.0
        %2592 = vmatpush1.msra.mxu0 0.0
        %2593 = vmatprep.subr.mxu0 0.0
        %2594 = vmatpush1.msra.mxu0 %v2560
        %2595 = vmatprep.subr.mxu0 0.0
        %2596 = vmatpush1.msra.mxu0 %v2558
        %2597 = vmatprep.subr.mxu0 0.0
        %2598 = vmatpush1.msra.mxu0 %v2556
        %2599 = vmatprep.subr.mxu0 0.0
        %2600 = vmatpush2.msra.mxu0 0.0
        %2601 = vmatprep.subr.mxu0 0.0
        %2602 = vmatpush2.msra.mxu0 0.0
        %2603 = vmatprep.subr.mxu0 0.0
        %2604 = vmatpush2.msra.mxu0 0.0
        %2605 = vmatprep.subr.mxu0 0.0
        %2606 = vmatpush2.msra.mxu0 0.0
        %2607 = vmatprep.subr.mxu0 0.0
        %2608 = vmatpush2.msra.mxu0 0.0
        %2609 = vmatprep.subr.mxu0 0.0
        %2610 = vmatpush2.msra.mxu0 0.0
        %2611 = vmatprep.subr.mxu0 0.0
        %2612 = vmatpush2.msra.mxu0 0.0
        %2613 = vmatprep.subr.mxu0 0.0
        %2614 = vmatpush2.msra.mxu0 0.0
        %2615 = vmatprep.subr.mxu0 0.0
        %2616 = vmatpush2.msra.mxu0 0.0
        %2617 = vmatprep.subr.mxu0 0.0
        %2618 = vmatpush2.msra.mxu0 0.0
        %2619 = vmatprep.subr.mxu0 0.0
        %2620 = vmatpush2.msra.mxu0 0.0
        %2621 = vmatprep.subr.mxu0 0.0
        %2622 = vmatpush2.msra.mxu0 0.0
        %2623 = vmatprep.subr.mxu0 0.0
        %2624 = vmatpush2.msra.mxu0 0.0
        %2625 = vmatprep.subr.mxu0 0.0
        %2626 = vmatpush2.msra.mxu0 0.0
        %2627 = vmatprep.subr.mxu0 0.0
        %2628 = vmatpush2.msra.mxu0 0.0
        %2629 = vmatprep.subr.mxu0 0.0
        %2630 = vmatpush2.msra.mxu0 0.0
        %2631 = vmatprep.mubr.f32.mxu0 0.0
        %2632 = vmatmul.mubr.f32.gmra.mxu0 %v2565
        %v2633 = vpop.f32.mrf.mxu0
        %v2634 = vadd.f32 %v2550, %v2633
        %v2635 = vpop.f32.mrf.mxu0
        %2636 = vdwg.mxu0
        %vm2637 = vcmp.gt.f32.partialorder %v2634, 0.0
        %v2638 = vmin.f32 %v2634, 0.0
        %v2639 = vmul.f32 %v2638, 1.442695
        %v2640 = vpow.pop %v2639
        %v2641 = vsub.f32 %v2640, 1.0
        %v2642 = vsel %vm2637, %v2634, %v2641
        %v2643 = vld [vmem:[%s3 + $0xb8] sm:$0xff]
        %2645 = vset.pattern.permute.xlu0 8
        %2646 = vperm.xlu0 %2645, %v2643
        %v2647 = vpop.permute.xlu0 %2646
        %vm2649 = vcmask 64512
        %v2650 = vsel %vm2649, %v2643, 0
        %2652 = vmatprep.subr.mxu0 0.0
        %2653 = vmatpush1.msra.mxu0 0.0
        %2654 = vmatprep.subr.mxu0 0.0
        %2655 = vmatpush1.msra.mxu0 0.0
        %2656 = vmatprep.subr.mxu0 0.0
        %2657 = vmatpush1.msra.mxu0 0.0
        %2658 = vmatprep.subr.mxu0 0.0
        %2659 = vmatpush1.msra.mxu0 0.0
        %2660 = vmatprep.subr.mxu0 0.0
        %2661 = vmatpush1.msra.mxu0 0.0
        %2662 = vmatprep.subr.mxu0 0.0
        %2663 = vmatpush1.msra.mxu0 0.0
        %2664 = vmatprep.subr.mxu0 0.0
        %2665 = vmatpush1.msra.mxu0 0.0
        %2666 = vmatprep.subr.mxu0 0.0
        %2667 = vmatpush1.msra.mxu0 0.0
        %2668 = vmatprep.subr.mxu0 0.0
        %2669 = vmatpush1.msra.mxu0 0.0
        %2670 = vmatprep.subr.mxu0 0.0
        %2671 = vmatpush1.msra.mxu0 0.0
        %2672 = vmatprep.subr.mxu0 0.0
        %2673 = vmatpush1.msra.mxu0 0.0
        %2674 = vmatprep.subr.mxu0 0.0
        %2675 = vmatpush1.msra.mxu0 0.0
        %2676 = vmatprep.subr.mxu0 0.0
        %2677 = vmatpush1.msra.mxu0 0.0
        %2678 = vmatprep.subr.mxu0 0.0
        %2679 = vmatpush1.msra.mxu0 0.0
        %2680 = vmatprep.subr.mxu0 0.0
        %2681 = vmatpush1.msra.mxu0 0.0
        %2682 = vmatprep.subr.mxu0 0.0
        %2683 = vmatpush1.msra.mxu0 %v2642
        %2684 = vmatprep.subr.mxu0 0.0
        %2685 = vmatpush2.msra.mxu0 0.0
        %2686 = vmatprep.subr.mxu0 0.0
        %2687 = vmatpush2.msra.mxu0 0.0
        %2688 = vmatprep.subr.mxu0 0.0
        %2689 = vmatpush2.msra.mxu0 0.0
        %2690 = vmatprep.subr.mxu0 0.0
        %2691 = vmatpush2.msra.mxu0 0.0
        %2692 = vmatprep.subr.mxu0 0.0
        %2693 = vmatpush2.msra.mxu0 0.0
        %2694 = vmatprep.subr.mxu0 0.0
        %2695 = vmatpush2.msra.mxu0 0.0
        %2696 = vmatprep.subr.mxu0 0.0
        %2697 = vmatpush2.msra.mxu0 0.0
        %2698 = vmatprep.subr.mxu0 0.0
        %2699 = vmatpush2.msra.mxu0 0.0
        %2700 = vmatprep.subr.mxu0 0.0
        %2701 = vmatpush2.msra.mxu0 0.0
        %2702 = vmatprep.subr.mxu0 0.0
        %2703 = vmatpush2.msra.mxu0 0.0
        %2704 = vmatprep.subr.mxu0 0.0
        %2705 = vmatpush2.msra.mxu0 0.0
        %2706 = vmatprep.subr.mxu0 0.0
        %2707 = vmatpush2.msra.mxu0 0.0
        %2708 = vmatprep.subr.mxu0 0.0
        %2709 = vmatpush2.msra.mxu0 0.0
        %2710 = vmatprep.subr.mxu0 0.0
        %2711 = vmatpush2.msra.mxu0 0.0
        %2712 = vmatprep.subr.mxu0 0.0
        %2713 = vmatpush2.msra.mxu0 0.0
        %2714 = vmatprep.subr.mxu0 0.0
        %2715 = vmatpush2.msra.mxu0 0.0
        %2716 = vmatprep.mubr.f32.mxu0 0.0
        %2717 = vmatmul.mubr.f32.gmra.mxu0 %v2650
        %v2718 = vpop.f32.mrf.mxu0
        %v2719 = vadd.f32 %v2647, %v2718
        %v2720 = vpop.f32.mrf.mxu0
        %2721 = vdwg.mxu0
        %v2722 = vadd.f32 %v2525, %v2719
        %2724 = vset.pattern.permute.xlu0 0
        %2725 = vperm.xlu0 %2724, %v543
        %v2726 = vpop.permute.xlu0 %2725
        %v2728 = vmul.f32 %v2726, %v2722
        %2730 = vset.pattern.permute.xlu0 0
        %2731 = vperm.xlu0 %2730, %v468
        %v2732 = vpop.permute.xlu0 %2731
        %v2734 = vadd.f32 %v2728, %v2732
        %vm2735 = vcmask 572416
        %2736 = vst.msk [vmem:[#allocation2] sm:$0xff] %vm2735, 0.0
        %2737 = vst.msk [vmem:[#allocation2 + $0x18] sm:$0xff] %vm2735, 0.0
        %2738 = vst.msk [vmem:[#allocation2 + $0x30] sm:$0xff] %vm2735, 0.0
        %2740 = vrot.lane.b32.xlu0 %v2734, 6
        %v2741 = vpop.permute.xlu0 %2740
        %vm2743 = vcmask 572464
        %2744 = vst.msk [vmem:[#allocation2] sm:$0xff] %vm2743, %v2741
        %2745 = vrot.lane.b32.xlu0 %v2734, 3
        %v2746 = vpop.permute.xlu0 %2745
        %vm2748 = vcmask 547864
        %2749 = vst.msk [vmem:[#allocation2 + $0x18] sm:$0xff] %vm2748, %v2746
        %2750 = vst.msk [vmem:[#allocation2 + $0x30] sm:$0xff] %vm2541, %v2734
        %v2751 = vld [vmem:[#allocation2] sm:$0xff]
        %v2752 = vld [vmem:[#allocation2 + $0x18] sm:$0xff]
        %v2753 = vld [vmem:[#allocation2 + $0x30] sm:$0xff]
        %v2754 = vld [vmem:[%s3 + $0xc0] sm:$0xff]
        %2756 = vset.pattern.permute.xlu0 24
        %2757 = vperm.xlu0 %2756, %v2754
        %v2758 = vpop.permute.xlu0 %2757
        %2763 = vrot.lane.b32.xlu0 %v2751, 125
        %v2764 = vpop.permute.xlu0 %2763
        %2765 = vrot.lane.b32.xlu0 %v2752, 125
        %v2766 = vpop.permute.xlu0 %2765
        %2767 = vrot.lane.b32.xlu0 %v2753, 125
        %v2768 = vpop.permute.xlu0 %2767
        %v2772 = vsel %vm2564, %v2754, 0
        %2774 = vmatprep.subr.mxu0 0.0
        %2775 = vmatpush1.msra.mxu0 0.0
        %2776 = vmatprep.subr.mxu0 0.0
        %2777 = vmatpush1.msra.mxu0 0.0
        %2778 = vmatprep.subr.mxu0 0.0
        %2779 = vmatpush1.msra.mxu0 0.0
        %2780 = vmatprep.subr.mxu0 0.0
        %2781 = vmatpush1.msra.mxu0 0.0
        %2782 = vmatprep.subr.mxu0 0.0
        %2783 = vmatpush1.msra.mxu0 0.0
        %2784 = vmatprep.subr.mxu0 0.0
        %2785 = vmatpush1.msra.mxu0 0.0
        %2786 = vmatprep.subr.mxu0 0.0
        %2787 = vmatpush1.msra.mxu0 0.0
        %2788 = vmatprep.subr.mxu0 0.0
        %2789 = vmatpush1.msra.mxu0 0.0
        %2790 = vmatprep.subr.mxu0 0.0
        %2791 = vmatpush1.msra.mxu0 0.0
        %2792 = vmatprep.subr.mxu0 0.0
        %2793 = vmatpush1.msra.mxu0 0.0
        %2794 = vmatprep.subr.mxu0 0.0
        %2795 = vmatpush1.msra.mxu0 0.0
        %2796 = vmatprep.subr.mxu0 0.0
        %2797 = vmatpush1.msra.mxu0 0.0
        %2798 = vmatprep.subr.mxu0 0.0
        %2799 = vmatpush1.msra.mxu0 0.0
        %2800 = vmatprep.subr.mxu0 0.0
        %2801 = vmatpush1.msra.mxu0 %v2768
        %2802 = vmatprep.subr.mxu0 0.0
        %2803 = vmatpush1.msra.mxu0 %v2766
        %2804 = vmatprep.subr.mxu0 0.0
        %2805 = vmatpush1.msra.mxu0 %v2764
        %2806 = vmatprep.subr.mxu0 0.0
        %2807 = vmatpush2.msra.mxu0 0.0
        %2808 = vmatprep.subr.mxu0 0.0
        %2809 = vmatpush2.msra.mxu0 0.0
        %2810 = vmatprep.subr.mxu0 0.0
        %2811 = vmatpush2.msra.mxu0 0.0
        %2812 = vmatprep.subr.mxu0 0.0
        %2813 = vmatpush2.msra.mxu0 0.0
        %2814 = vmatprep.subr.mxu0 0.0
        %2815 = vmatpush2.msra.mxu0 0.0
        %2816 = vmatprep.subr.mxu0 0.0
        %2817 = vmatpush2.msra.mxu0 0.0
        %2818 = vmatprep.subr.mxu0 0.0
        %2819 = vmatpush2.msra.mxu0 0.0
        %2820 = vmatprep.subr.mxu0 0.0
        %2821 = vmatpush2.msra.mxu0 0.0
        %2822 = vmatprep.subr.mxu0 0.0
        %2823 = vmatpush2.msra.mxu0 0.0
        %2824 = vmatprep.subr.mxu0 0.0
        %2825 = vmatpush2.msra.mxu0 0.0
        %2826 = vmatprep.subr.mxu0 0.0
        %2827 = vmatpush2.msra.mxu0 0.0
        %2828 = vmatprep.subr.mxu0 0.0
        %2829 = vmatpush2.msra.mxu0 0.0
        %2830 = vmatprep.subr.mxu0 0.0
        %2831 = vmatpush2.msra.mxu0 0.0
        %2832 = vmatprep.subr.mxu0 0.0
        %2833 = vmatpush2.msra.mxu0 0.0
        %2834 = vmatprep.subr.mxu0 0.0
        %2835 = vmatpush2.msra.mxu0 0.0
        %2836 = vmatprep.subr.mxu0 0.0
        %2837 = vmatpush2.msra.mxu0 0.0
        %2838 = vmatprep.mubr.f32.mxu0 0.0
        %2839 = vmatmul.mubr.f32.gmra.mxu0 %v2772
        %v2840 = vpop.f32.mrf.mxu0
        %v2841 = vadd.f32 %v2758, %v2840
        %v2842 = vpop.f32.mrf.mxu0
        %2843 = vdwg.mxu0
        %vm2844 = vcmp.gt.f32.partialorder %v2841, 0.0
        %v2845 = vmin.f32 %v2841, 0.0
        %v2846 = vmul.f32 %v2845, 1.442695
        %v2847 = vpow.pop %v2846
        %v2848 = vsub.f32 %v2847, 1.0
        %v2849 = vsel %vm2844, %v2841, %v2848
        %v2850 = vld [vmem:[%s3 + $0xc8] sm:$0xff]
        %2852 = vset.pattern.permute.xlu0 8
        %2853 = vperm.xlu0 %2852, %v2850
        %v2854 = vpop.permute.xlu0 %2853
        %v2856 = vsel %vm2649, %v2850, 0
        %2858 = vmatprep.subr.mxu0 0.0
        %2859 = vmatpush1.msra.mxu0 0.0
        %2860 = vmatprep.subr.mxu0 0.0
        %2861 = vmatpush1.msra.mxu0 0.0
        %2862 = vmatprep.subr.mxu0 0.0
        %2863 = vmatpush1.msra.mxu0 0.0
        %2864 = vmatprep.subr.mxu0 0.0
        %2865 = vmatpush1.msra.mxu0 0.0
        %2866 = vmatprep.subr.mxu0 0.0
        %2867 = vmatpush1.msra.mxu0 0.0
        %2868 = vmatprep.subr.mxu0 0.0
        %2869 = vmatpush1.msra.mxu0 0.0
        %2870 = vmatprep.subr.mxu0 0.0
        %2871 = vmatpush1.msra.mxu0 0.0
        %2872 = vmatprep.subr.mxu0 0.0
        %2873 = vmatpush1.msra.mxu0 0.0
        %2874 = vmatprep.subr.mxu0 0.0
        %2875 = vmatpush1.msra.mxu0 0.0
        %2876 = vmatprep.subr.mxu0 0.0
        %2877 = vmatpush1.msra.mxu0 0.0
        %2878 = vmatprep.subr.mxu0 0.0
        %2879 = vmatpush1.msra.mxu0 0.0
        %2880 = vmatprep.subr.mxu0 0.0
        %2881 = vmatpush1.msra.mxu0 0.0
        %2882 = vmatprep.subr.mxu0 0.0
        %2883 = vmatpush1.msra.mxu0 0.0
        %2884 = vmatprep.subr.mxu0 0.0
        %2885 = vmatpush1.msra.mxu0 0.0
        %2886 = vmatprep.subr.mxu0 0.0
        %2887 = vmatpush1.msra.mxu0 0.0
        %2888 = vmatprep.subr.mxu0 0.0
        %2889 = vmatpush1.msra.mxu0 %v2849
        %2890 = vmatprep.subr.mxu0 0.0
        %2891 = vmatpush2.msra.mxu0 0.0
        %2892 = vmatprep.subr.mxu0 0.0
        %2893 = vmatpush2.msra.mxu0 0.0
        %2894 = vmatprep.subr.mxu0 0.0
        %2895 = vmatpush2.msra.mxu0 0.0
        %2896 = vmatprep.subr.mxu0 0.0
        %2897 = vmatpush2.msra.mxu0 0.0
        %2898 = vmatprep.subr.mxu0 0.0
        %2899 = vmatpush2.msra.mxu0 0.0
        %2900 = vmatprep.subr.mxu0 0.0
        %2901 = vmatpush2.msra.mxu0 0.0
        %2902 = vmatprep.subr.mxu0 0.0
        %2903 = vmatpush2.msra.mxu0 0.0
        %2904 = vmatprep.subr.mxu0 0.0
        %2905 = vmatpush2.msra.mxu0 0.0
        %2906 = vmatprep.subr.mxu0 0.0
        %2907 = vmatpush2.msra.mxu0 0.0
        %2908 = vmatprep.subr.mxu0 0.0
        %2909 = vmatpush2.msra.mxu0 0.0
        %2910 = vmatprep.subr.mxu0 0.0
        %2911 = vmatpush2.msra.mxu0 0.0
        %2912 = vmatprep.subr.mxu0 0.0
        %2913 = vmatpush2.msra.mxu0 0.0
        %2914 = vmatprep.subr.mxu0 0.0
        %2915 = vmatpush2.msra.mxu0 0.0
        %2916 = vmatprep.subr.mxu0 0.0
        %2917 = vmatpush2.msra.mxu0 0.0
        %2918 = vmatprep.subr.mxu0 0.0
        %2919 = vmatpush2.msra.mxu0 0.0
        %2920 = vmatprep.subr.mxu0 0.0
        %2921 = vmatpush2.msra.mxu0 0.0
        %2922 = vmatprep.mubr.f32.mxu0 0.0
        %2923 = vmatmul.mubr.f32.gmra.mxu0 %v2856
        %v2924 = vpop.f32.mrf.mxu0
        %v2925 = vadd.f32 %v2854, %v2924
        %v2926 = vpop.f32.mrf.mxu0
        %2927 = vdwg.mxu0
        %v2928 = vadd.f32 %v2734, %v2925
        %2930 = vset.pattern.permute.xlu0 0
        %2931 = vperm.xlu0 %2930, %v548
        %v2932 = vpop.permute.xlu0 %2931
        %v2934 = vmul.f32 %v2932, %v2928
        %2936 = vset.pattern.permute.xlu0 0
        %2937 = vperm.xlu0 %2936, %v473
        %v2938 = vpop.permute.xlu0 %2937
        %v2940 = vadd.f32 %v2934, %v2938
        %vm2941 = vcmask 670720
        %2942 = vst.msk [vmem:[#allocation2] sm:$0xff] %vm2941, 0.0
        %2943 = vst.msk [vmem:[#allocation2 + $0x18] sm:$0xff] %vm2941, 0.0
        %2944 = vst.msk [vmem:[#allocation2 + $0x30] sm:$0xff] %vm2941, 0.0
        %2946 = vrot.lane.b32.xlu0 %v2940, 18
        %v2947 = vpop.permute.xlu0 %2946
        %vm2949 = vcmask 670864
        %2950 = vst.msk [vmem:[#allocation2] sm:$0xff] %vm2949, %v2947
        %2951 = vrot.lane.b32.xlu0 %v2940, 9
        %v2952 = vpop.permute.xlu0 %2951
        %vm2954 = vcmask 597064
        %2955 = vst.msk [vmem:[#allocation2 + $0x18] sm:$0xff] %vm2954, %v2952
        %2956 = vst.msk [vmem:[#allocation2 + $0x30] sm:$0xff] %vm2541, %v2940
        %v2957 = vld [vmem:[#allocation2] sm:$0xff]
        %v2958 = vld [vmem:[#allocation2 + $0x18] sm:$0xff]
        %v2959 = vld [vmem:[#allocation2 + $0x30] sm:$0xff]
        %v2960 = vld [vmem:[%s3 + $0xd0] sm:$0xff]
        %2962 = vset.pattern.permute.xlu0 24
        %2963 = vperm.xlu0 %2962, %v2960
        %v2964 = vpop.permute.xlu0 %2963
        %2969 = vrot.lane.b32.xlu0 %v2957, 119
        %v2970 = vpop.permute.xlu0 %2969
        %2971 = vrot.lane.b32.xlu0 %v2958, 119
        %v2972 = vpop.permute.xlu0 %2971
        %2973 = vrot.lane.b32.xlu0 %v2959, 119
        %v2974 = vpop.permute.xlu0 %2973
        %v2978 = vsel %vm2564, %v2960, 0
        %2980 = vmatprep.subr.mxu0 0.0
        %2981 = vmatpush1.msra.mxu0 0.0
        %2982 = vmatprep.subr.mxu0 0.0
        %2983 = vmatpush1.msra.mxu0 0.0
        %2984 = vmatprep.subr.mxu0 0.0
        %2985 = vmatpush1.msra.mxu0 0.0
        %2986 = vmatprep.subr.mxu0 0.0
        %2987 = vmatpush1.msra.mxu0 0.0
        %2988 = vmatprep.subr.mxu0 0.0
        %2989 = vmatpush1.msra.mxu0 0.0
        %2990 = vmatprep.subr.mxu0 0.0
        %2991 = vmatpush1.msra.mxu0 0.0
        %2992 = vmatprep.subr.mxu0 0.0
        %2993 = vmatpush1.msra.mxu0 0.0
        %2994 = vmatprep.subr.mxu0 0.0
        %2995 = vmatpush1.msra.mxu0 0.0
        %2996 = vmatprep.subr.mxu0 0.0
        %2997 = vmatpush1.msra.mxu0 0.0
        %2998 = vmatprep.subr.mxu0 0.0
        %2999 = vmatpush1.msra.mxu0 0.0
        %3000 = vmatprep.subr.mxu0 0.0
        %3001 = vmatpush1.msra.mxu0 0.0
        %3002 = vmatprep.subr.mxu0 0.0
        %3003 = vmatpush1.msra.mxu0 0.0
        %3004 = vmatprep.subr.mxu0 0.0
        %3005 = vmatpush1.msra.mxu0 0.0
        %3006 = vmatprep.subr.mxu0 0.0
        %3007 = vmatpush1.msra.mxu0 %v2974
        %3008 = vmatprep.subr.mxu0 0.0
        %3009 = vmatpush1.msra.mxu0 %v2972
        %3010 = vmatprep.subr.mxu0 0.0
        %3011 = vmatpush1.msra.mxu0 %v2970
        %3012 = vmatprep.subr.mxu0 0.0
        %3013 = vmatpush2.msra.mxu0 0.0
        %3014 = vmatprep.subr.mxu0 0.0
        %3015 = vmatpush2.msra.mxu0 0.0
        %3016 = vmatprep.subr.mxu0 0.0
        %3017 = vmatpush2.msra.mxu0 0.0
        %3018 = vmatprep.subr.mxu0 0.0
        %3019 = vmatpush2.msra.mxu0 0.0
        %3020 = vmatprep.subr.mxu0 0.0
        %3021 = vmatpush2.msra.mxu0 0.0
        %3022 = vmatprep.subr.mxu0 0.0
        %3023 = vmatpush2.msra.mxu0 0.0
        %3024 = vmatprep.subr.mxu0 0.0
        %3025 = vmatpush2.msra.mxu0 0.0
        %3026 = vmatprep.subr.mxu0 0.0
        %3027 = vmatpush2.msra.mxu0 0.0
        %3028 = vmatprep.subr.mxu0 0.0
        %3029 = vmatpush2.msra.mxu0 0.0
        %3030 = vmatprep.subr.mxu0 0.0
        %3031 = vmatpush2.msra.mxu0 0.0
        %3032 = vmatprep.subr.mxu0 0.0
        %3033 = vmatpush2.msra.mxu0 0.0
        %3034 = vmatprep.subr.mxu0 0.0
        %3035 = vmatpush2.msra.mxu0 0.0
        %3036 = vmatprep.subr.mxu0 0.0
        %3037 = vmatpush2.msra.mxu0 0.0
        %3038 = vmatprep.subr.mxu0 0.0
        %3039 = vmatpush2.msra.mxu0 0.0
        %3040 = vmatprep.subr.mxu0 0.0
        %3041 = vmatpush2.msra.mxu0 0.0
        %3042 = vmatprep.subr.mxu0 0.0
        %3043 = vmatpush2.msra.mxu0 0.0
        %3044 = vmatprep.mubr.f32.mxu0 0.0
        %3045 = vmatmul.mubr.f32.gmra.mxu0 %v2978
        %v3046 = vpop.f32.mrf.mxu0
        %v3047 = vadd.f32 %v2964, %v3046
        %v3048 = vpop.f32.mrf.mxu0
        %3049 = vdwg.mxu0
        %vm3050 = vcmp.gt.f32.partialorder %v3047, 0.0
        %v3051 = vmin.f32 %v3047, 0.0
        %v3052 = vmul.f32 %v3051, 1.442695
        %v3053 = vpow.pop %v3052
        %v3054 = vsub.f32 %v3053, 1.0
        %v3055 = vsel %vm3050, %v3047, %v3054
        %v3056 = vld [vmem:[%s3 + $0xd8] sm:$0xff]
        %3058 = vset.pattern.permute.xlu0 8
        %3059 = vperm.xlu0 %3058, %v3056
        %v3060 = vpop.permute.xlu0 %3059
        %v3062 = vsel %vm2649, %v3056, 0
        %3064 = vmatprep.subr.mxu0 0.0
        %3065 = vmatpush1.msra.mxu0 0.0
        %3066 = vmatprep.subr.mxu0 0.0
        %3067 = vmatpush1.msra.mxu0 0.0
        %3068 = vmatprep.subr.mxu0 0.0
        %3069 = vmatpush1.msra.mxu0 0.0
        %3070 = vmatprep.subr.mxu0 0.0
        %3071 = vmatpush1.msra.mxu0 0.0
        %3072 = vmatprep.subr.mxu0 0.0
        %3073 = vmatpush1.msra.mxu0 0.0
        %3074 = vmatprep.subr.mxu0 0.0
        %3075 = vmatpush1.msra.mxu0 0.0
        %3076 = vmatprep.subr.mxu0 0.0
        %3077 = vmatpush1.msra.mxu0 0.0
        %3078 = vmatprep.subr.mxu0 0.0
        %3079 = vmatpush1.msra.mxu0 0.0
        %3080 = vmatprep.subr.mxu0 0.0
        %3081 = vmatpush1.msra.mxu0 0.0
        %3082 = vmatprep.subr.mxu0 0.0
        %3083 = vmatpush1.msra.mxu0 0.0
        %3084 = vmatprep.subr.mxu0 0.0
        %3085 = vmatpush1.msra.mxu0 0.0
        %3086 = vmatprep.subr.mxu0 0.0
        %3087 = vmatpush1.msra.mxu0 0.0
        %3088 = vmatprep.subr.mxu0 0.0
        %3089 = vmatpush1.msra.mxu0 0.0
        %3090 = vmatprep.subr.mxu0 0.0
        %3091 = vmatpush1.msra.mxu0 0.0
        %3092 = vmatprep.subr.mxu0 0.0
        %3093 = vmatpush1.msra.mxu0 0.0
        %3094 = vmatprep.subr.mxu0 0.0
        %3095 = vmatpush1.msra.mxu0 %v3055
        %3096 = vmatprep.subr.mxu0 0.0
        %3097 = vmatpush2.msra.mxu0 0.0
        %3098 = vmatprep.subr.mxu0 0.0
        %3099 = vmatpush2.msra.mxu0 0.0
        %3100 = vmatprep.subr.mxu0 0.0
        %3101 = vmatpush2.msra.mxu0 0.0
        %3102 = vmatprep.subr.mxu0 0.0
        %3103 = vmatpush2.msra.mxu0 0.0
        %3104 = vmatprep.subr.mxu0 0.0
        %3105 = vmatpush2.msra.mxu0 0.0
        %3106 = vmatprep.subr.mxu0 0.0
        %3107 = vmatpush2.msra.mxu0 0.0
        %3108 = vmatprep.subr.mxu0 0.0
        %3109 = vmatpush2.msra.mxu0 0.0
        %3110 = vmatprep.subr.mxu0 0.0
        %3111 = vmatpush2.msra.mxu0 0.0
        %3112 = vmatprep.subr.mxu0 0.0
        %3113 = vmatpush2.msra.mxu0 0.0
        %3114 = vmatprep.subr.mxu0 0.0
        %3115 = vmatpush2.msra.mxu0 0.0
        %3116 = vmatprep.subr.mxu0 0.0
        %3117 = vmatpush2.msra.mxu0 0.0
        %3118 = vmatprep.subr.mxu0 0.0
        %3119 = vmatpush2.msra.mxu0 0.0
        %3120 = vmatprep.subr.mxu0 0.0
        %3121 = vmatpush2.msra.mxu0 0.0
        %3122 = vmatprep.subr.mxu0 0.0
        %3123 = vmatpush2.msra.mxu0 0.0
        %3124 = vmatprep.subr.mxu0 0.0
        %3125 = vmatpush2.msra.mxu0 0.0
        %3126 = vmatprep.subr.mxu0 0.0
        %3127 = vmatpush2.msra.mxu0 0.0
        %3128 = vmatprep.mubr.f32.mxu0 0.0
        %3129 = vmatmul.mubr.f32.gmra.mxu0 %v3062
        %v3130 = vpop.f32.mrf.mxu0
        %v3131 = vadd.f32 %v3060, %v3130
        %v3132 = vpop.f32.mrf.mxu0
        %3133 = vdwg.mxu0
        %v3134 = vadd.f32 %v2940, %v3131
        %3135 = vst.msk [vmem:[#allocation2] sm:$0xff] %vm2526, 0.0
        %3136 = vst.msk [vmem:[#allocation2 + $0x18] sm:$0xff] %vm2526, 0.0
        %3137 = vst.msk [vmem:[#allocation2 + $0x30] sm:$0xff] %vm2526, 0.0
        %3139 = vrot.lane.b32.xlu0 %v3134, 2
        %v3140 = vpop.permute.xlu0 %3139
        %3142 = vst.msk [vmem:[#allocation2] sm:$0xff] %vm2534, %v3140
        %3143 = vrot.lane.b32.xlu0 %v3134, 1
        %v3144 = vpop.permute.xlu0 %3143
        %3146 = vst.msk [vmem:[#allocation2 + $0x18] sm:$0xff] %vm2539, %v3144
        %3147 = vst.msk [vmem:[#allocation2 + $0x30] sm:$0xff] %vm2541, %v3134
        %v3148 = vld [vmem:[#allocation2] sm:$0xff]
        %v3149 = vld [vmem:[#allocation2 + $0x18] sm:$0xff]
        %v3150 = vld [vmem:[#allocation2 + $0x30] sm:$0xff]
        %v3151 = vld [vmem:[%s3 + $0xe0] sm:$0xf]
        %3153 = vset.pattern.permute.xlu0 24
        %3154 = vperm.xlu0 %3153, %v3151
        %v3155 = vpop.permute.xlu0 %3154
        %3160 = vrot.lane.b32.xlu0 %v3148, 127
        %v3161 = vpop.permute.xlu0 %3160
        %3162 = vrot.lane.b32.xlu0 %v3149, 127
        %v3163 = vpop.permute.xlu0 %3162
        %3164 = vrot.lane.b32.xlu0 %v3150, 127
        %v3165 = vpop.permute.xlu0 %3164
        %v3169 = vsel %vm2564, %v3151, 0
        %3171 = vmatprep.subr.mxu0 0.0
        %3172 = vmatpush1.msra.mxu0 0.0
        %3173 = vmatprep.subr.mxu0 0.0
        %3174 = vmatpush1.msra.mxu0 0.0
        %3175 = vmatprep.subr.mxu0 0.0
        %3176 = vmatpush1.msra.mxu0 0.0
        %3177 = vmatprep.subr.mxu0 0.0
        %3178 = vmatpush1.msra.mxu0 0.0
        %3179 = vmatprep.subr.mxu0 0.0
        %3180 = vmatpush1.msra.mxu0 0.0
        %3181 = vmatprep.subr.mxu0 0.0
        %3182 = vmatpush1.msra.mxu0 0.0
        %3183 = vmatprep.subr.mxu0 0.0
        %3184 = vmatpush1.msra.mxu0 0.0
        %3185 = vmatprep.subr.mxu0 0.0
        %3186 = vmatpush1.msra.mxu0 0.0
        %3187 = vmatprep.subr.mxu0 0.0
        %3188 = vmatpush1.msra.mxu0 0.0
        %3189 = vmatprep.subr.mxu0 0.0
        %3190 = vmatpush1.msra.mxu0 0.0
        %3191 = vmatprep.subr.mxu0 0.0
        %3192 = vmatpush1.msra.mxu0 0.0
        %3193 = vmatprep.subr.mxu0 0.0
        %3194 = vmatpush1.msra.mxu0 0.0
        %3195 = vmatprep.subr.mxu0 0.0
        %3196 = vmatpush1.msra.mxu0 0.0
        %3197 = vmatprep.subr.mxu0 0.0
        %3198 = vmatpush1.msra.mxu0 %v3165
        %3199 = vmatprep.subr.mxu0 0.0
        %3200 = vmatpush1.msra.mxu0 %v3163
        %3201 = vmatprep.subr.mxu0 0.0
        %3202 = vmatpush1.msra.mxu0 %v3161
        %3203 = vmatprep.subr.mxu0 0.0
        %3204 = vmatpush2.msra.mxu0 0.0
        %3205 = vmatprep.subr.mxu0 0.0
        %3206 = vmatpush2.msra.mxu0 0.0
        %3207 = vmatprep.subr.mxu0 0.0
        %3208 = vmatpush2.msra.mxu0 0.0
        %3209 = vmatprep.subr.mxu0 0.0
        %3210 = vmatpush2.msra.mxu0 0.0
        %3211 = vmatprep.subr.mxu0 0.0
        %3212 = vmatpush2.msra.mxu0 0.0
        %3213 = vmatprep.subr.mxu0 0.0
        %3214 = vmatpush2.msra.mxu0 0.0
        %3215 = vmatprep.subr.mxu0 0.0
        %3216 = vmatpush2.msra.mxu0 0.0
        %3217 = vmatprep.subr.mxu0 0.0
        %3218 = vmatpush2.msra.mxu0 0.0
        %3219 = vmatprep.subr.mxu0 0.0
        %3220 = vmatpush2.msra.mxu0 0.0
        %3221 = vmatprep.subr.mxu0 0.0
        %3222 = vmatpush2.msra.mxu0 0.0
        %3223 = vmatprep.subr.mxu0 0.0
        %3224 = vmatpush2.msra.mxu0 0.0
        %3225 = vmatprep.subr.mxu0 0.0
        %3226 = vmatpush2.msra.mxu0 0.0
        %3227 = vmatprep.subr.mxu0 0.0
        %3228 = vmatpush2.msra.mxu0 0.0
        %3229 = vmatprep.subr.mxu0 0.0
        %3230 = vmatpush2.msra.mxu0 0.0
        %3231 = vmatprep.subr.mxu0 0.0
        %3232 = vmatpush2.msra.mxu0 0.0
        %3233 = vmatprep.subr.mxu0 0.0
        %3234 = vmatpush2.msra.mxu0 0.0
        %3235 = vmatprep.mubr.f32.mxu0 0.0
        %3236 = vmatmul.mubr.f32.gmra.mxu0 %v3169
        %v3237 = vpop.f32.mrf.mxu0
        %v3238 = vadd.f32 %v3155, %v3237
        %v3239 = vpop.f32.mrf.mxu0
        %3240 = vdwg.mxu0
        %v3241 = vld [vmem:[%s3 + $0xe8] sm:$0xf]
        %3243 = vset.pattern.permute.xlu0 24
        %3244 = vperm.xlu0 %3243, %v3241
        %v3245 = vpop.permute.xlu0 %3244
        %v3247 = vsel %vm2564, %v3241, 0
        %3249 = vmatprep.subr.mxu0 0.0
        %3250 = vmatpush1.msra.mxu0 0.0
        %3251 = vmatprep.subr.mxu0 0.0
        %3252 = vmatpush1.msra.mxu0 0.0
        %3253 = vmatprep.subr.mxu0 0.0
        %3254 = vmatpush1.msra.mxu0 0.0
        %3255 = vmatprep.subr.mxu0 0.0
        %3256 = vmatpush1.msra.mxu0 0.0
        %3257 = vmatprep.subr.mxu0 0.0
        %3258 = vmatpush1.msra.mxu0 0.0
        %3259 = vmatprep.subr.mxu0 0.0
        %3260 = vmatpush1.msra.mxu0 0.0
        %3261 = vmatprep.subr.mxu0 0.0
        %3262 = vmatpush1.msra.mxu0 0.0
        %3263 = vmatprep.subr.mxu0 0.0
        %3264 = vmatpush1.msra.mxu0 0.0
        %3265 = vmatprep.subr.mxu0 0.0
        %3266 = vmatpush1.msra.mxu0 0.0
        %3267 = vmatprep.subr.mxu0 0.0
        %3268 = vmatpush1.msra.mxu0 0.0
        %3269 = vmatprep.subr.mxu0 0.0
        %3270 = vmatpush1.msra.mxu0 0.0
        %3271 = vmatprep.subr.mxu0 0.0
        %3272 = vmatpush1.msra.mxu0 0.0
        %3273 = vmatprep.subr.mxu0 0.0
        %3274 = vmatpush1.msra.mxu0 0.0
        %3275 = vmatprep.subr.mxu0 0.0
        %3276 = vmatpush1.msra.mxu0 %v3165
        %3277 = vmatprep.subr.mxu0 0.0
        %3278 = vmatpush1.msra.mxu0 %v3163
        %3279 = vmatprep.subr.mxu0 0.0
        %3280 = vmatpush1.msra.mxu0 %v3161
        %3281 = vmatprep.subr.mxu0 0.0
        %3282 = vmatpush2.msra.mxu0 0.0
        %3283 = vmatprep.subr.mxu0 0.0
        %3284 = vmatpush2.msra.mxu0 0.0
        %3285 = vmatprep.subr.mxu0 0.0
        %3286 = vmatpush2.msra.mxu0 0.0
        %3287 = vmatprep.subr.mxu0 0.0
        %3288 = vmatpush2.msra.mxu0 0.0
        %3289 = vmatprep.subr.mxu0 0.0
        %3290 = vmatpush2.msra.mxu0 0.0
        %3291 = vmatprep.subr.mxu0 0.0
        %3292 = vmatpush2.msra.mxu0 0.0
        %3293 = vmatprep.subr.mxu0 0.0
        %3294 = vmatpush2.msra.mxu0 0.0
        %3295 = vmatprep.subr.mxu0 0.0
        %3296 = vmatpush2.msra.mxu0 0.0
        %3297 = vmatprep.subr.mxu0 0.0
        %3298 = vmatpush2.msra.mxu0 0.0
        %3299 = vmatprep.subr.mxu0 0.0
        %3300 = vmatpush2.msra.mxu0 0.0
        %3301 = vmatprep.subr.mxu0 0.0
        %3302 = vmatpush2.msra.mxu0 0.0
        %3303 = vmatprep.subr.mxu0 0.0
        %3304 = vmatpush2.msra.mxu0 0.0
        %3305 = vmatprep.subr.mxu0 0.0
        %3306 = vmatpush2.msra.mxu0 0.0
        %3307 = vmatprep.subr.mxu0 0.0
        %3308 = vmatpush2.msra.mxu0 0.0
        %3309 = vmatprep.subr.mxu0 0.0
        %3310 = vmatpush2.msra.mxu0 0.0
        %3311 = vmatprep.subr.mxu0 0.0
        %3312 = vmatpush2.msra.mxu0 0.0
        %3313 = vmatprep.mubr.f32.mxu0 0.0
        %3314 = vmatmul.mubr.f32.gmra.mxu0 %v3247
        %v3315 = vpop.f32.mrf.mxu0
        %v3316 = vadd.f32 %v3245, %v3315
        %v3317 = vpop.f32.mrf.mxu0
        %3318 = vdwg.mxu0
        %v3319 = vld [vmem:[%s4] sm:$0xff]
        %v3320 = vld [vmem:[%s4 + $0x10] sm:$0xff]
        %v3321 = vld [vmem:[%s4 + $0x20] sm:$0xff]
        %v3322 = vld [vmem:[%s4 + $0x30] sm:$0xff]
        %v3323 = vld [vmem:[%s4 + $0x40] sm:$0xff]
        %v3324 = vld [vmem:[%s4 + $0x50] sm:$0xff]
        %v3325 = vld [vmem:[%s4 + $0x60] sm:$0xff]
        %v3326 = vld [vmem:[%s4 + $0x70] sm:$0xff]
        %v3327 = vld [vmem:[%s4 + $0x100] sm:$0xff]
        %v3328 = vld [vmem:[%s4 + $0x110] sm:$0xff]
        %v3329 = vld [vmem:[%s4 + $0x120] sm:$0xff]
        %v3330 = vld [vmem:[%s4 + $0x130] sm:$0xff]
        %v3331 = vld [vmem:[%s4 + $0x140] sm:$0xff]
        %v3332 = vld [vmem:[%s4 + $0x150] sm:$0xff]
        %v3333 = vld [vmem:[%s4 + $0x160] sm:$0xff]
        %v3334 = vld [vmem:[%s4 + $0x170] sm:$0xff]
        %v3336 = vsel %vm2541, %v3316, 0
        %3338 = vmatprep.subr.mxu0 0.0
        %3339 = vmatpush1.msra.mxu0 0.0
        %3340 = vmatprep.subr.mxu0 0.0
        %3341 = vmatpush1.msra.mxu0 0.0
        %3342 = vmatprep.subr.mxu0 0.0
        %3343 = vmatpush1.msra.mxu0 0.0
        %3344 = vmatprep.subr.mxu0 0.0
        %3345 = vmatpush1.msra.mxu0 0.0
        %3346 = vmatprep.subr.mxu0 0.0
        %3347 = vmatpush1.msra.mxu0 0.0
        %3348 = vmatprep.subr.mxu0 0.0
        %3349 = vmatpush1.msra.mxu0 0.0
        %3350 = vmatprep.subr.mxu0 0.0
        %3351 = vmatpush1.msra.mxu0 0.0
        %3352 = vmatprep.subr.mxu0 0.0
        %3353 = vmatpush1.msra.mxu0 0.0
        %3354 = vmatprep.subr.mxu0 0.0
        %3355 = vmatpush1.msra.mxu0 %v3334
        %3356 = vmatprep.subr.mxu0 0.0
        %3357 = vmatpush1.msra.mxu0 %v3333
        %3358 = vmatprep.subr.mxu0 0.0
        %3359 = vmatpush1.msra.mxu0 %v3332
        %3360 = vmatprep.subr.mxu0 0.0
        %3361 = vmatpush1.msra.mxu0 %v3331
        %3362 = vmatprep.subr.mxu0 0.0
        %3363 = vmatpush1.msra.mxu0 %v3330
        %3364 = vmatprep.subr.mxu0 0.0
        %3365 = vmatpush1.msra.mxu0 %v3329
        %3366 = vmatprep.subr.mxu0 0.0
        %3367 = vmatpush1.msra.mxu0 %v3328
        %3368 = vmatprep.subr.mxu0 0.0
        %3369 = vmatpush1.msra.mxu0 %v3327
        %3370 = vmatprep.subr.mxu0 0.0
        %3371 = vmatpush2.msra.mxu0 0.0
        %3372 = vmatprep.subr.mxu0 0.0
        %3373 = vmatpush2.msra.mxu0 0.0
        %3374 = vmatprep.subr.mxu0 0.0
        %3375 = vmatpush2.msra.mxu0 0.0
        %3376 = vmatprep.subr.mxu0 0.0
        %3377 = vmatpush2.msra.mxu0 0.0
        %3378 = vmatprep.subr.mxu0 0.0
        %3379 = vmatpush2.msra.mxu0 0.0
        %3380 = vmatprep.subr.mxu0 0.0
        %3381 = vmatpush2.msra.mxu0 0.0
        %3382 = vmatprep.subr.mxu0 0.0
        %3383 = vmatpush2.msra.mxu0 0.0
        %3384 = vmatprep.subr.mxu0 0.0
        %3385 = vmatpush2.msra.mxu0 0.0
        %3386 = vmatprep.subr.mxu0 0.0
        %3387 = vmatpush2.msra.mxu0 0.0
        %3388 = vmatprep.subr.mxu0 0.0
        %3389 = vmatpush2.msra.mxu0 0.0
        %3390 = vmatprep.subr.mxu0 0.0
        %3391 = vmatpush2.msra.mxu0 0.0
        %3392 = vmatprep.subr.mxu0 0.0
        %3393 = vmatpush2.msra.mxu0 0.0
        %3394 = vmatprep.subr.mxu0 0.0
        %3395 = vmatpush2.msra.mxu0 0.0
        %3396 = vmatprep.subr.mxu0 0.0
        %3397 = vmatpush2.msra.mxu0 0.0
        %3398 = vmatprep.subr.mxu0 0.0
        %3399 = vmatpush2.msra.mxu0 0.0
        %3400 = vmatprep.subr.mxu0 0.0
        %3401 = vmatpush2.msra.mxu0 0.0
        %3402 = vmatprep.mubr.f32.mxu0 0.0
        %3403 = vmatmul.mubr.f32.gmra.mxu0 %v3336
        %v3404 = vpop.f32.mrf.mxu0
        %v3405 = vadd.f32 0.0, %v3404
        %v3406 = vpop.f32.mrf.mxu0
        %3407 = vdwg.mxu0
        %v3409 = vsel %vm2541, %v3238, 0
        %3411 = vmatprep.subr.mxu0 0.0
        %3412 = vmatpush1.msra.mxu0 0.0
        %3413 = vmatprep.subr.mxu0 0.0
        %3414 = vmatpush1.msra.mxu0 0.0
        %3415 = vmatprep.subr.mxu0 0.0
        %3416 = vmatpush1.msra.mxu0 0.0
        %3417 = vmatprep.subr.mxu0 0.0
        %3418 = vmatpush1.msra.mxu0 0.0
        %3419 = vmatprep.subr.mxu0 0.0
        %3420 = vmatpush1.msra.mxu0 0.0
        %3421 = vmatprep.subr.mxu0 0.0
        %3422 = vmatpush1.msra.mxu0 0.0
        %3423 = vmatprep.subr.mxu0 0.0
        %3424 = vmatpush1.msra.mxu0 0.0
        %3425 = vmatprep.subr.mxu0 0.0
        %3426 = vmatpush1.msra.mxu0 0.0
        %3427 = vmatprep.subr.mxu0 0.0
        %3428 = vmatpush1.msra.mxu0 %v3326
        %3429 = vmatprep.subr.mxu0 0.0
        %3430 = vmatpush1.msra.mxu0 %v3325
        %3431 = vmatprep.subr.mxu0 0.0
        %3432 = vmatpush1.msra.mxu0 %v3324
        %3433 = vmatprep.subr.mxu0 0.0
        %3434 = vmatpush1.msra.mxu0 %v3323
        %3435 = vmatprep.subr.mxu0 0.0
        %3436 = vmatpush1.msra.mxu0 %v3322
        %3437 = vmatprep.subr.mxu0 0.0
        %3438 = vmatpush1.msra.mxu0 %v3321
        %3439 = vmatprep.subr.mxu0 0.0
        %3440 = vmatpush1.msra.mxu0 %v3320
        %3441 = vmatprep.subr.mxu0 0.0
        %3442 = vmatpush1.msra.mxu0 %v3319
        %3443 = vmatprep.subr.mxu0 0.0
        %3444 = vmatpush2.msra.mxu0 0.0
        %3445 = vmatprep.subr.mxu0 0.0
        %3446 = vmatpush2.msra.mxu0 0.0
        %3447 = vmatprep.subr.mxu0 0.0
        %3448 = vmatpush2.msra.mxu0 0.0
        %3449 = vmatprep.subr.mxu0 0.0
        %3450 = vmatpush2.msra.mxu0 0.0
        %3451 = vmatprep.subr.mxu0 0.0
        %3452 = vmatpush2.msra.mxu0 0.0
        %3453 = vmatprep.subr.mxu0 0.0
        %3454 = vmatpush2.msra.mxu0 0.0
        %3455 = vmatprep.subr.mxu0 0.0
        %3456 = vmatpush2.msra.mxu0 0.0
        %3457 = vmatprep.subr.mxu0 0.0
        %3458 = vmatpush2.msra.mxu0 0.0
        %3459 = vmatprep.subr.mxu0 0.0
        %3460 = vmatpush2.msra.mxu0 0.0
        %3461 = vmatprep.subr.mxu0 0.0
        %3462 = vmatpush2.msra.mxu0 0.0
        %3463 = vmatprep.subr.mxu0 0.0
        %3464 = vmatpush2.msra.mxu0 0.0
        %3465 = vmatprep.subr.mxu0 0.0
        %3466 = vmatpush2.msra.mxu0 0.0
        %3467 = vmatprep.subr.mxu0 0.0
        %3468 = vmatpush2.msra.mxu0 0.0
        %3469 = vmatprep.subr.mxu0 0.0
        %3470 = vmatpush2.msra.mxu0 0.0
        %3471 = vmatprep.subr.mxu0 0.0
        %3472 = vmatpush2.msra.mxu0 0.0
        %3473 = vmatprep.subr.mxu0 0.0
        %3474 = vmatpush2.msra.mxu0 0.0
        %3475 = vmatprep.mubr.f32.mxu0 0.0
        %3476 = vmatmul.mubr.f32.gmra.mxu0 %v3409
        %v3477 = vpop.f32.mrf.mxu0
        %v3478 = vadd.f32 %v3405, %v3477
        %v3479 = vpop.f32.mrf.mxu0
        %3480 = vdwg.mxu0
        %3482 = vset.pattern.permute.xlu0 0
        %3483 = vperm.xlu0 %3482, %v553
        %v3484 = vpop.permute.xlu0 %3483
        %v3486 = vmul.f32 %v3484, %v3478
        %3488 = vset.pattern.permute.xlu0 0
        %3489 = vperm.xlu0 %3488, %v478
        %v3490 = vpop.permute.xlu0 %3489
        %v3492 = vadd.f32 %v3486, %v3490
        %3493 = vst [vmem:[#allocation2] sm:$0xff] 0.0
        %vm3494 = vcmask 15360
        %3495 = vst.msk [vmem:[#allocation2 + $0x8] sm:$0xff] %vm3494, 0.0
        %3496 = vst [vmem:[#allocation2 + $0x18] sm:$0xf] 0.0
        %vm3497 = vcmask 11264
        %3498 = vst.msk [vmem:[#allocation2 + $0x20] sm:$0xf] %vm3497, 0.0
        %3500 = vrot.lane.b32.xlu0 %v3492, 2
        %v3501 = vpop.permute.xlu0 %3500
        %vm3503 = vcmask 1043472
        %3504 = vst.msk [vmem:[#allocation2] sm:$0xf] %vm3503, %v3501
        %3505 = vst.msk [vmem:[#allocation2 + $0x8] sm:$0xf] %vm3497, %v3501
        %v3506 = vrot.slane %v3492, 4
        %3507 = vrot.lane.b32.xlu0 %v3506, 1
        %v3508 = vpop.permute.xlu0 %3507
        %vm3510 = vcmask 1047564
        %3511 = vst.msk [vmem:[#allocation2] sm:$0xf0] %vm3510, %v3508
        %vm3512 = vcmask 7172
        %3513 = vst.msk [vmem:[#allocation2 + $0x8] sm:$0xf0] %vm3512, %v3508
        %3514 = vst [vmem:[#allocation2 + $0x18] sm:$0xf] %v3492
        %v3515 = vld [vmem:[#allocation2] sm:$0xff]
        %v3516 = vld [vmem:[#allocation2 + $0x8] sm:$0xff]
        %v3517 = vld [vmem:[#allocation2 + $0x18] sm:$0xf]
        %v3518 = vld [vmem:[#allocation2 + $0x20] sm:$0xf]
        %v3519 = vld [vmem:[%s3 + $0xf0] sm:$0xf]
        %3521 = vset.pattern.permute.xlu0 12
        %3522 = vperm.xlu0 %3521, %v3519
        %v3523 = vpop.permute.xlu0 %3522
        %3529 = vrot.lane.b32.xlu0 %v3515, 127
        %v3530 = vpop.permute.xlu0 %3529
        %3531 = vrot.lane.b32.xlu0 %v3516, 127
        %v3532 = vpop.permute.xlu0 %3531
        %3533 = vrot.lane.b32.xlu0 %v3517, 127
        %v3534 = vpop.permute.xlu0 %3533
        %3535 = vrot.lane.b32.xlu0 %v3518, 127
        %v3536 = vpop.permute.xlu0 %3535
        %vm3537 = vcmask 1039360
        %v3538 = vsel %vm3537, %v3530, %v3532
        %v3539 = vsel %vm3537, %v3534, %v3536
        %vm3541 = vcmask 97280
        %v3542 = vsel %vm3541, %v3519, 0
        %v3544 = vsel %vm647, %v3539, 0
        %3546 = vmatprep.subr.mxu0 0.0
        %3547 = vmatpush1.msra.mxu0 0.0
        %3548 = vmatprep.subr.mxu0 0.0
        %3549 = vmatpush1.msra.mxu0 0.0
        %3550 = vmatprep.subr.mxu0 0.0
        %3551 = vmatpush1.msra.mxu0 0.0
        %3552 = vmatprep.subr.mxu0 0.0
        %3553 = vmatpush1.msra.mxu0 0.0
        %3554 = vmatprep.subr.mxu0 0.0
        %3555 = vmatpush1.msra.mxu0 0.0
        %3556 = vmatprep.subr.mxu0 0.0
        %3557 = vmatpush1.msra.mxu0 0.0
        %3558 = vmatprep.subr.mxu0 0.0
        %3559 = vmatpush1.msra.mxu0 0.0
        %3560 = vmatprep.subr.mxu0 0.0
        %3561 = vmatpush1.msra.mxu0 0.0
        %3562 = vmatprep.subr.mxu0 0.0
        %3563 = vmatpush1.msra.mxu0 0.0
        %3564 = vmatprep.subr.mxu0 0.0
        %3565 = vmatpush1.msra.mxu0 0.0
        %3566 = vmatprep.subr.mxu0 0.0
        %3567 = vmatpush1.msra.mxu0 0.0
        %3568 = vmatprep.subr.mxu0 0.0
        %3569 = vmatpush1.msra.mxu0 0.0
        %3570 = vmatprep.subr.mxu0 0.0
        %3571 = vmatpush1.msra.mxu0 0.0
        %3572 = vmatprep.subr.mxu0 0.0
        %3573 = vmatpush1.msra.mxu0 0.0
        %3574 = vmatprep.subr.mxu0 0.0
        %3575 = vmatpush1.msra.mxu0 %v3544
        %3576 = vmatprep.subr.mxu0 0.0
        %3577 = vmatpush1.msra.mxu0 %v3538
        %3578 = vmatprep.subr.mxu0 0.0
        %3579 = vmatpush2.msra.mxu0 0.0
        %3580 = vmatprep.subr.mxu0 0.0
        %3581 = vmatpush2.msra.mxu0 0.0
        %3582 = vmatprep.subr.mxu0 0.0
        %3583 = vmatpush2.msra.mxu0 0.0
        %3584 = vmatprep.subr.mxu0 0.0
        %3585 = vmatpush2.msra.mxu0 0.0
        %3586 = vmatprep.subr.mxu0 0.0
        %3587 = vmatpush2.msra.mxu0 0.0
        %3588 = vmatprep.subr.mxu0 0.0
        %3589 = vmatpush2.msra.mxu0 0.0
        %3590 = vmatprep.subr.mxu0 0.0
        %3591 = vmatpush2.msra.mxu0 0.0
        %3592 = vmatprep.subr.mxu0 0.0
        %3593 = vmatpush2.msra.mxu0 0.0
        %3594 = vmatprep.subr.mxu0 0.0
        %3595 = vmatpush2.msra.mxu0 0.0
        %3596 = vmatprep.subr.mxu0 0.0
        %3597 = vmatpush2.msra.mxu0 0.0
        %3598 = vmatprep.subr.mxu0 0.0
        %3599 = vmatpush2.msra.mxu0 0.0
        %3600 = vmatprep.subr.mxu0 0.0
        %3601 = vmatpush2.msra.mxu0 0.0
        %3602 = vmatprep.subr.mxu0 0.0
        %3603 = vmatpush2.msra.mxu0 0.0
        %3604 = vmatprep.subr.mxu0 0.0
        %3605 = vmatpush2.msra.mxu0 0.0
        %3606 = vmatprep.subr.mxu0 0.0
        %3607 = vmatpush2.msra.mxu0 0.0
        %3608 = vmatprep.subr.mxu0 0.0
        %3609 = vmatpush2.msra.mxu0 0.0
        %3610 = vmatprep.mubr.f32.mxu0 0.0
        %3611 = vmatmul.mubr.f32.gmra.mxu0 %v3542
        %v3612 = vpop.f32.mrf.mxu0
        %v3613 = vadd.f32 %v3523, %v3612
        %v3614 = vpop.f32.mrf.mxu0
        %3615 = vdwg.mxu0
        %vm3616 = vcmp.gt.f32.partialorder %v3613, 0.0
        %v3617 = vmin.f32 %v3613, 0.0
        %v3618 = vmul.f32 %v3617, 1.442695
        %v3619 = vpow.pop %v3618
        %v3620 = vsub.f32 %v3619, 1.0
        %v3621 = vsel %vm3616, %v3613, %v3620
        %v3622 = vld [vmem:[%s3 + $0xf8] sm:$0xf]
        %3624 = vset.pattern.permute.xlu0 4
        %3625 = vperm.xlu0 %3624, %v3622
        %v3626 = vpop.permute.xlu0 %3625
        %vm3628 = vcmask 31744
        %v3629 = vsel %vm3628, %v3622, 0
        %v3632 = vsel %vm647, %v3621, 0
        %3634 = vmatprep.subr.mxu0 0.0
        %3635 = vmatpush1.msra.mxu0 0.0
        %3636 = vmatprep.subr.mxu0 0.0
        %3637 = vmatpush1.msra.mxu0 0.0
        %3638 = vmatprep.subr.mxu0 0.0
        %3639 = vmatpush1.msra.mxu0 0.0
        %3640 = vmatprep.subr.mxu0 0.0
        %3641 = vmatpush1.msra.mxu0 0.0
        %3642 = vmatprep.subr.mxu0 0.0
        %3643 = vmatpush1.msra.mxu0 0.0
        %3644 = vmatprep.subr.mxu0 0.0
        %3645 = vmatpush1.msra.mxu0 0.0
        %3646 = vmatprep.subr.mxu0 0.0
        %3647 = vmatpush1.msra.mxu0 0.0
        %3648 = vmatprep.subr.mxu0 0.0
        %3649 = vmatpush1.msra.mxu0 0.0
        %3650 = vmatprep.subr.mxu0 0.0
        %3651 = vmatpush1.msra.mxu0 0.0
        %3652 = vmatprep.subr.mxu0 0.0
        %3653 = vmatpush1.msra.mxu0 0.0
        %3654 = vmatprep.subr.mxu0 0.0
        %3655 = vmatpush1.msra.mxu0 0.0
        %3656 = vmatprep.subr.mxu0 0.0
        %3657 = vmatpush1.msra.mxu0 0.0
        %3658 = vmatprep.subr.mxu0 0.0
        %3659 = vmatpush1.msra.mxu0 0.0
        %3660 = vmatprep.subr.mxu0 0.0
        %3661 = vmatpush1.msra.mxu0 0.0
        %3662 = vmatprep.subr.mxu0 0.0
        %3663 = vmatpush1.msra.mxu0 0.0
        %3664 = vmatprep.subr.mxu0 0.0
        %3665 = vmatpush1.msra.mxu0 %v3632
        %3666 = vmatprep.subr.mxu0 0.0
        %3667 = vmatpush2.msra.mxu0 0.0
        %3668 = vmatprep.subr.mxu0 0.0
        %3669 = vmatpush2.msra.mxu0 0.0
        %3670 = vmatprep.subr.mxu0 0.0
        %3671 = vmatpush2.msra.mxu0 0.0
        %3672 = vmatprep.subr.mxu0 0.0
        %3673 = vmatpush2.msra.mxu0 0.0
        %3674 = vmatprep.subr.mxu0 0.0
        %3675 = vmatpush2.msra.mxu0 0.0
        %3676 = vmatprep.subr.mxu0 0.0
        %3677 = vmatpush2.msra.mxu0 0.0
        %3678 = vmatprep.subr.mxu0 0.0
        %3679 = vmatpush2.msra.mxu0 0.0
        %3680 = vmatprep.subr.mxu0 0.0
        %3681 = vmatpush2.msra.mxu0 0.0
        %3682 = vmatprep.subr.mxu0 0.0
        %3683 = vmatpush2.msra.mxu0 0.0
        %3684 = vmatprep.subr.mxu0 0.0
        %3685 = vmatpush2.msra.mxu0 0.0
        %3686 = vmatprep.subr.mxu0 0.0
        %3687 = vmatpush2.msra.mxu0 0.0
        %3688 = vmatprep.subr.mxu0 0.0
        %3689 = vmatpush2.msra.mxu0 0.0
        %3690 = vmatprep.subr.mxu0 0.0
        %3691 = vmatpush2.msra.mxu0 0.0
        %3692 = vmatprep.subr.mxu0 0.0
        %3693 = vmatpush2.msra.mxu0 0.0
        %3694 = vmatprep.subr.mxu0 0.0
        %3695 = vmatpush2.msra.mxu0 0.0
        %3696 = vmatprep.subr.mxu0 0.0
        %3697 = vmatpush2.msra.mxu0 0.0
        %3698 = vmatprep.mubr.f32.mxu0 0.0
        %3699 = vmatmul.mubr.f32.gmra.mxu0 %v3629
        %v3700 = vpop.f32.mrf.mxu0
        %v3701 = vadd.f32 %v3626, %v3700
        %v3702 = vpop.f32.mrf.mxu0
        %3703 = vdwg.mxu0
        %v3704 = vadd.f32 %v3492, %v3701
        %3706 = vset.pattern.permute.xlu0 0
        %3707 = vperm.xlu0 %3706, %v558
        %v3708 = vpop.permute.xlu0 %3707
        %v3710 = vmul.f32 %v3708, %v3704
        %3712 = vset.pattern.permute.xlu0 0
        %3713 = vperm.xlu0 %3712, %v483
        %v3714 = vpop.permute.xlu0 %3713
        %v3716 = vadd.f32 %v3710, %v3714
        %3717 = vst [vmem:[#allocation2] sm:$0xff] 0.0
        %vm3718 = vcmask 48128
        %3719 = vst.msk [vmem:[#allocation2 + $0x8] sm:$0xff] %vm3718, 0.0
        %3720 = vst [vmem:[#allocation2 + $0x18] sm:$0xf] 0.0
        %vm3721 = vcmask 44032
        %3722 = vst.msk [vmem:[#allocation2 + $0x20] sm:$0xf] %vm3721, 0.0
        %3724 = vrot.lane.b32.xlu0 %v3716, 6
        %v3725 = vpop.permute.xlu0 %3724
        %vm3727 = vcmask 1043504
        %3728 = vst.msk [vmem:[#allocation2] sm:$0xf] %vm3727, %v3725
        %3729 = vst.msk [vmem:[#allocation2 + $0x8] sm:$0xf] %vm3721, %v3725
        %v3730 = vrot.slane %v3716, 4
        %3731 = vrot.lane.b32.xlu0 %v3730, 3
        %v3732 = vpop.permute.xlu0 %3731
        %vm3734 = vcmask 1047580
        %3735 = vst.msk [vmem:[#allocation2] sm:$0xf0] %vm3734, %v3732
        %vm3736 = vcmask 23556
        %3737 = vst.msk [vmem:[#allocation2 + $0x8] sm:$0xf0] %vm3736, %v3732
        %3738 = vst [vmem:[#allocation2 + $0x18] sm:$0xf] %v3716
        %v3739 = vld [vmem:[#allocation2] sm:$0xff]
        %v3740 = vld [vmem:[#allocation2 + $0x8] sm:$0xff]
        %v3741 = vld [vmem:[#allocation2 + $0x18] sm:$0xf]
        %v3742 = vld [vmem:[#allocation2 + $0x20] sm:$0xf]
        %v3743 = vld [vmem:[%s3 + $0x100] sm:$0xf]
        %3745 = vset.pattern.permute.xlu0 12
        %3746 = vperm.xlu0 %3745, %v3743
        %v3747 = vpop.permute.xlu0 %3746
        %3753 = vrot.lane.b32.xlu0 %v3739, 125
        %v3754 = vpop.permute.xlu0 %3753
        %3755 = vrot.lane.b32.xlu0 %v3740, 125
        %v3756 = vpop.permute.xlu0 %3755
        %3757 = vrot.lane.b32.xlu0 %v3741, 125
        %v3758 = vpop.permute.xlu0 %3757
        %3759 = vrot.lane.b32.xlu0 %v3742, 125
        %v3760 = vpop.permute.xlu0 %3759
        %vm3761 = vcmask 1022976
        %v3762 = vsel %vm3761, %v3754, %v3756
        %v3763 = vsel %vm3761, %v3758, %v3760
        %v3765 = vsel %vm3541, %v3743, 0
        %v3767 = vsel %vm647, %v3763, 0
        %3769 = vmatprep.subr.mxu0 0.0
        %3770 = vmatpush1.msra.mxu0 0.0
        %3771 = vmatprep.subr.mxu0 0.0
        %3772 = vmatpush1.msra.mxu0 0.0
        %3773 = vmatprep.subr.mxu0 0.0
        %3774 = vmatpush1.msra.mxu0 0.0
        %3775 = vmatprep.subr.mxu0 0.0
        %3776 = vmatpush1.msra.mxu0 0.0
        %3777 = vmatprep.subr.mxu0 0.0
        %3778 = vmatpush1.msra.mxu0 0.0
        %3779 = vmatprep.subr.mxu0 0.0
        %3780 = vmatpush1.msra.mxu0 0.0
        %3781 = vmatprep.subr.mxu0 0.0
        %3782 = vmatpush1.msra.mxu0 0.0
        %3783 = vmatprep.subr.mxu0 0.0
        %3784 = vmatpush1.msra.mxu0 0.0
        %3785 = vmatprep.subr.mxu0 0.0
        %3786 = vmatpush1.msra.mxu0 0.0
        %3787 = vmatprep.subr.mxu0 0.0
        %3788 = vmatpush1.msra.mxu0 0.0
        %3789 = vmatprep.subr.mxu0 0.0
        %3790 = vmatpush1.msra.mxu0 0.0
        %3791 = vmatprep.subr.mxu0 0.0
        %3792 = vmatpush1.msra.mxu0 0.0
        %3793 = vmatprep.subr.mxu0 0.0
        %3794 = vmatpush1.msra.mxu0 0.0
        %3795 = vmatprep.subr.mxu0 0.0
        %3796 = vmatpush1.msra.mxu0 0.0
        %3797 = vmatprep.subr.mxu0 0.0
        %3798 = vmatpush1.msra.mxu0 %v3767
        %3799 = vmatprep.subr.mxu0 0.0
        %3800 = vmatpush1.msra.mxu0 %v3762
        %3801 = vmatprep.subr.mxu0 0.0
        %3802 = vmatpush2.msra.mxu0 0.0
        %3803 = vmatprep.subr.mxu0 0.0
        %3804 = vmatpush2.msra.mxu0 0.0
        %3805 = vmatprep.subr.mxu0 0.0
        %3806 = vmatpush2.msra.mxu0 0.0
        %3807 = vmatprep.subr.mxu0 0.0
        %3808 = vmatpush2.msra.mxu0 0.0
        %3809 = vmatprep.subr.mxu0 0.0
        %3810 = vmatpush2.msra.mxu0 0.0
        %3811 = vmatprep.subr.mxu0 0.0
        %3812 = vmatpush2.msra.mxu0 0.0
        %3813 = vmatprep.subr.mxu0 0.0
        %3814 = vmatpush2.msra.mxu0 0.0
        %3815 = vmatprep.subr.mxu0 0.0
        %3816 = vmatpush2.msra.mxu0 0.0
        %3817 = vmatprep.subr.mxu0 0.0
        %3818 = vmatpush2.msra.mxu0 0.0
        %3819 = vmatprep.subr.mxu0 0.0
        %3820 = vmatpush2.msra.mxu0 0.0
        %3821 = vmatprep.subr.mxu0 0.0
        %3822 = vmatpush2.msra.mxu0 0.0
        %3823 = vmatprep.subr.mxu0 0.0
        %3824 = vmatpush2.msra.mxu0 0.0
        %3825 = vmatprep.subr.mxu0 0.0
        %3826 = vmatpush2.msra.mxu0 0.0
        %3827 = vmatprep.subr.mxu0 0.0
        %3828 = vmatpush2.msra.mxu0 0.0
        %3829 = vmatprep.subr.mxu0 0.0
        %3830 = vmatpush2.msra.mxu0 0.0
        %3831 = vmatprep.subr.mxu0 0.0
        %3832 = vmatpush2.msra.mxu0 0.0
        %3833 = vmatprep.mubr.f32.mxu0 0.0
        %3834 = vmatmul.mubr.f32.gmra.mxu0 %v3765
        %v3835 = vpop.f32.mrf.mxu0
        %v3836 = vadd.f32 %v3747, %v3835
        %v3837 = vpop.f32.mrf.mxu0
        %3838 = vdwg.mxu0
        %vm3839 = vcmp.gt.f32.partialorder %v3836, 0.0
        %v3840 = vmin.f32 %v3836, 0.0
        %v3841 = vmul.f32 %v3840, 1.442695
        %v3842 = vpow.pop %v3841
        %v3843 = vsub.f32 %v3842, 1.0
        %v3844 = vsel %vm3839, %v3836, %v3843
        %v3845 = vld [vmem:[%s3 + $0x108] sm:$0xf]
        %3847 = vset.pattern.permute.xlu0 4
        %3848 = vperm.xlu0 %3847, %v3845
        %v3849 = vpop.permute.xlu0 %3848
        %v3851 = vsel %vm3628, %v3845, 0
        %v3854 = vsel %vm647, %v3844, 0
        %3856 = vmatprep.subr.mxu0 0.0
        %3857 = vmatpush1.msra.mxu0 0.0
        %3858 = vmatprep.subr.mxu0 0.0
        %3859 = vmatpush1.msra.mxu0 0.0
        %3860 = vmatprep.subr.mxu0 0.0
        %3861 = vmatpush1.msra.mxu0 0.0
        %3862 = vmatprep.subr.mxu0 0.0
        %3863 = vmatpush1.msra.mxu0 0.0
        %3864 = vmatprep.subr.mxu0 0.0
        %3865 = vmatpush1.msra.mxu0 0.0
        %3866 = vmatprep.subr.mxu0 0.0
        %3867 = vmatpush1.msra.mxu0 0.0
        %3868 = vmatprep.subr.mxu0 0.0
        %3869 = vmatpush1.msra.mxu0 0.0
        %3870 = vmatprep.subr.mxu0 0.0
        %3871 = vmatpush1.msra.mxu0 0.0
        %3872 = vmatprep.subr.mxu0 0.0
        %3873 = vmatpush1.msra.mxu0 0.0
        %3874 = vmatprep.subr.mxu0 0.0
        %3875 = vmatpush1.msra.mxu0 0.0
        %3876 = vmatprep.subr.mxu0 0.0
        %3877 = vmatpush1.msra.mxu0 0.0
        %3878 = vmatprep.subr.mxu0 0.0
        %3879 = vmatpush1.msra.mxu0 0.0
        %3880 = vmatprep.subr.mxu0 0.0
        %3881 = vmatpush1.msra.mxu0 0.0
        %3882 = vmatprep.subr.mxu0 0.0
        %3883 = vmatpush1.msra.mxu0 0.0
        %3884 = vmatprep.subr.mxu0 0.0
        %3885 = vmatpush1.msra.mxu0 0.0
        %3886 = vmatprep.subr.mxu0 0.0
        %3887 = vmatpush1.msra.mxu0 %v3854
        %3888 = vmatprep.subr.mxu0 0.0
        %3889 = vmatpush2.msra.mxu0 0.0
        %3890 = vmatprep.subr.mxu0 0.0
        %3891 = vmatpush2.msra.mxu0 0.0
        %3892 = vmatprep.subr.mxu0 0.0
        %3893 = vmatpush2.msra.mxu0 0.0
        %3894 = vmatprep.subr.mxu0 0.0
        %3895 = vmatpush2.msra.mxu0 0.0
        %3896 = vmatprep.subr.mxu0 0.0
        %3897 = vmatpush2.msra.mxu0 0.0
        %3898 = vmatprep.subr.mxu0 0.0
        %3899 = vmatpush2.msra.mxu0 0.0
        %3900 = vmatprep.subr.mxu0 0.0
        %3901 = vmatpush2.msra.mxu0 0.0
        %3902 = vmatprep.subr.mxu0 0.0
        %3903 = vmatpush2.msra.mxu0 0.0
        %3904 = vmatprep.subr.mxu0 0.0
        %3905 = vmatpush2.msra.mxu0 0.0
        %3906 = vmatprep.subr.mxu0 0.0
        %3907 = vmatpush2.msra.mxu0 0.0
        %3908 = vmatprep.subr.mxu0 0.0
        %3909 = vmatpush2.msra.mxu0 0.0
        %3910 = vmatprep.subr.mxu0 0.0
        %3911 = vmatpush2.msra.mxu0 0.0
        %3912 = vmatprep.subr.mxu0 0.0
        %3913 = vmatpush2.msra.mxu0 0.0
        %3914 = vmatprep.subr.mxu0 0.0
        %3915 = vmatpush2.msra.mxu0 0.0
        %3916 = vmatprep.subr.mxu0 0.0
        %3917 = vmatpush2.msra.mxu0 0.0
        %3918 = vmatprep.subr.mxu0 0.0
        %3919 = vmatpush2.msra.mxu0 0.0
        %3920 = vmatprep.mubr.f32.mxu0 0.0
        %3921 = vmatmul.mubr.f32.gmra.mxu0 %v3851
        %v3922 = vpop.f32.mrf.mxu0
        %v3923 = vadd.f32 %v3849, %v3922
        %v3924 = vpop.f32.mrf.mxu0
        %3925 = vdwg.mxu0
        %v3926 = vadd.f32 %v3716, %v3923
        %3928 = vset.pattern.permute.xlu0 0
        %3929 = vperm.xlu0 %3928, %v563
        %v3930 = vpop.permute.xlu0 %3929
        %v3932 = vmul.f32 %v3930, %v3926
        %3934 = vset.pattern.permute.xlu0 0
        %3935 = vperm.xlu0 %3934, %v488
        %v3936 = vpop.permute.xlu0 %3935
        %v3938 = vadd.f32 %v3932, %v3936
        %3939 = vst [vmem:[#allocation2] sm:$0xff] 0.0
        %3940 = vst.msk [vmem:[#allocation2 + $0x8] sm:$0xff] %vm844, 0.0
        %3941 = vst [vmem:[#allocation2 + $0x18] sm:$0xf] 0.0
        %vm3942 = vcmask 142336
        %3943 = vst.msk [vmem:[#allocation2 + $0x20] sm:$0xf] %vm3942, 0.0
        %3945 = vrot.lane.b32.xlu0 %v3938, 18
        %v3946 = vpop.permute.xlu0 %3945
        %vm3948 = vcmask 1043600
        %3949 = vst.msk [vmem:[#allocation2] sm:$0xf] %vm3948, %v3946
        %3950 = vst.msk [vmem:[#allocation2 + $0x8] sm:$0xf] %vm3942, %v3946
        %v3951 = vrot.slane %v3938, 4
        %3952 = vrot.lane.b32.xlu0 %v3951, 9
        %v3953 = vpop.permute.xlu0 %3952
        %vm3955 = vcmask 1047628
        %3956 = vst.msk [vmem:[#allocation2] sm:$0xf0] %vm3955, %v3953
        %vm3957 = vcmask 72708
        %3958 = vst.msk [vmem:[#allocation2 + $0x8] sm:$0xf0] %vm3957, %v3953
        %3959 = vst [vmem:[#allocation2 + $0x18] sm:$0xf] %v3938
        %v3960 = vld [vmem:[#allocation2] sm:$0xff]
        %v3961 = vld [vmem:[#allocation2 + $0x8] sm:$0xff]
        %v3962 = vld [vmem:[#allocation2 + $0x18] sm:$0xf]
        %v3963 = vld [vmem:[#allocation2 + $0x20] sm:$0xf]
        %v3964 = vld [vmem:[%s3 + $0x110] sm:$0xf]
        %3966 = vset.pattern.permute.xlu0 12
        %3967 = vperm.xlu0 %3966, %v3964
        %v3968 = vpop.permute.xlu0 %3967
        %3974 = vrot.lane.b32.xlu0 %v3960, 119
        %v3975 = vpop.permute.xlu0 %3974
        %3976 = vrot.lane.b32.xlu0 %v3961, 119
        %v3977 = vpop.permute.xlu0 %3976
        %3978 = vrot.lane.b32.xlu0 %v3962, 119
        %v3979 = vpop.permute.xlu0 %3978
        %3980 = vrot.lane.b32.xlu0 %v3963, 119
        %v3981 = vpop.permute.xlu0 %3980
        %vm3982 = vcmask 973824
        %v3983 = vsel %vm3982, %v3975, %v3977
        %v3984 = vsel %vm3982, %v3979, %v3981
        %v3986 = vsel %vm3541, %v3964, 0
        %v3988 = vsel %vm647, %v3984, 0
        %3990 = vmatprep.subr.mxu0 0.0
        %3991 = vmatpush1.msra.mxu0 0.0
        %3992 = vmatprep.subr.mxu0 0.0
        %3993 = vmatpush1.msra.mxu0 0.0
        %3994 = vmatprep.subr.mxu0 0.0
        %3995 = vmatpush1.msra.mxu0 0.0
        %3996 = vmatprep.subr.mxu0 0.0
        %3997 = vmatpush1.msra.mxu0 0.0
        %3998 = vmatprep.subr.mxu0 0.0
        %3999 = vmatpush1.msra.mxu0 0.0
        %4000 = vmatprep.subr.mxu0 0.0
        %4001 = vmatpush1.msra.mxu0 0.0
        %4002 = vmatprep.subr.mxu0 0.0
        %4003 = vmatpush1.msra.mxu0 0.0
        %4004 = vmatprep.subr.mxu0 0.0
        %4005 = vmatpush1.msra.mxu0 0.0
        %4006 = vmatprep.subr.mxu0 0.0
        %4007 = vmatpush1.msra.mxu0 0.0
        %4008 = vmatprep.subr.mxu0 0.0
        %4009 = vmatpush1.msra.mxu0 0.0
        %4010 = vmatprep.subr.mxu0 0.0
        %4011 = vmatpush1.msra.mxu0 0.0
        %4012 = vmatprep.subr.mxu0 0.0
        %4013 = vmatpush1.msra.mxu0 0.0
        %4014 = vmatprep.subr.mxu0 0.0
        %4015 = vmatpush1.msra.mxu0 0.0
        %4016 = vmatprep.subr.mxu0 0.0
        %4017 = vmatpush1.msra.mxu0 0.0
        %4018 = vmatprep.subr.mxu0 0.0
        %4019 = vmatpush1.msra.mxu0 %v3988
        %4020 = vmatprep.subr.mxu0 0.0
        %4021 = vmatpush1.msra.mxu0 %v3983
        %4022 = vmatprep.subr.mxu0 0.0
        %4023 = vmatpush2.msra.mxu0 0.0
        %4024 = vmatprep.subr.mxu0 0.0
        %4025 = vmatpush2.msra.mxu0 0.0
        %4026 = vmatprep.subr.mxu0 0.0
        %4027 = vmatpush2.msra.mxu0 0.0
        %4028 = vmatprep.subr.mxu0 0.0
        %4029 = vmatpush2.msra.mxu0 0.0
        %4030 = vmatprep.subr.mxu0 0.0
        %4031 = vmatpush2.msra.mxu0 0.0
        %4032 = vmatprep.subr.mxu0 0.0
        %4033 = vmatpush2.msra.mxu0 0.0
        %4034 = vmatprep.subr.mxu0 0.0
        %4035 = vmatpush2.msra.mxu0 0.0
        %4036 = vmatprep.subr.mxu0 0.0
        %4037 = vmatpush2.msra.mxu0 0.0
        %4038 = vmatprep.subr.mxu0 0.0
        %4039 = vmatpush2.msra.mxu0 0.0
        %4040 = vmatprep.subr.mxu0 0.0
        %4041 = vmatpush2.msra.mxu0 0.0
        %4042 = vmatprep.subr.mxu0 0.0
        %4043 = vmatpush2.msra.mxu0 0.0
        %4044 = vmatprep.subr.mxu0 0.0
        %4045 = vmatpush2.msra.mxu0 0.0
        %4046 = vmatprep.subr.mxu0 0.0
        %4047 = vmatpush2.msra.mxu0 0.0
        %4048 = vmatprep.subr.mxu0 0.0
        %4049 = vmatpush2.msra.mxu0 0.0
        %4050 = vmatprep.subr.mxu0 0.0
        %4051 = vmatpush2.msra.mxu0 0.0
        %4052 = vmatprep.subr.mxu0 0.0
        %4053 = vmatpush2.msra.mxu0 0.0
        %4054 = vmatprep.mubr.f32.mxu0 0.0
        %4055 = vmatmul.mubr.f32.gmra.mxu0 %v3986
        %v4056 = vpop.f32.mrf.mxu0
        %v4057 = vadd.f32 %v3968, %v4056
        %v4058 = vpop.f32.mrf.mxu0
        %4059 = vdwg.mxu0
        %vm4060 = vcmp.gt.f32.partialorder %v4057, 0.0
        %v4061 = vmin.f32 %v4057, 0.0
        %v4062 = vmul.f32 %v4061, 1.442695
        %v4063 = vpow.pop %v4062
        %v4064 = vsub.f32 %v4063, 1.0
        %v4065 = vsel %vm4060, %v4057, %v4064
        %v4066 = vld [vmem:[%s3 + $0x118] sm:$0xf]
        %4068 = vset.pattern.permute.xlu0 4
        %4069 = vperm.xlu0 %4068, %v4066
        %v4070 = vpop.permute.xlu0 %4069
        %v4072 = vsel %vm3628, %v4066, 0
        %v4075 = vsel %vm647, %v4065, 0
        %4077 = vmatprep.subr.mxu0 0.0
        %4078 = vmatpush1.msra.mxu0 0.0
        %4079 = vmatprep.subr.mxu0 0.0
        %4080 = vmatpush1.msra.mxu0 0.0
        %4081 = vmatprep.subr.mxu0 0.0
        %4082 = vmatpush1.msra.mxu0 0.0
        %4083 = vmatprep.subr.mxu0 0.0
        %4084 = vmatpush1.msra.mxu0 0.0
        %4085 = vmatprep.subr.mxu0 0.0
        %4086 = vmatpush1.msra.mxu0 0.0
        %4087 = vmatprep.subr.mxu0 0.0
        %4088 = vmatpush1.msra.mxu0 0.0
        %4089 = vmatprep.subr.mxu0 0.0
        %4090 = vmatpush1.msra.mxu0 0.0
        %4091 = vmatprep.subr.mxu0 0.0
        %4092 = vmatpush1.msra.mxu0 0.0
        %4093 = vmatprep.subr.mxu0 0.0
        %4094 = vmatpush1.msra.mxu0 0.0
        %4095 = vmatprep.subr.mxu0 0.0
        %4096 = vmatpush1.msra.mxu0 0.0
        %4097 = vmatprep.subr.mxu0 0.0
        %4098 = vmatpush1.msra.mxu0 0.0
        %4099 = vmatprep.subr.mxu0 0.0
        %4100 = vmatpush1.msra.mxu0 0.0
        %4101 = vmatprep.subr.mxu0 0.0
        %4102 = vmatpush1.msra.mxu0 0.0
        %4103 = vmatprep.subr.mxu0 0.0
        %4104 = vmatpush1.msra.mxu0 0.0
        %4105 = vmatprep.subr.mxu0 0.0
        %4106 = vmatpush1.msra.mxu0 0.0
        %4107 = vmatprep.subr.mxu0 0.0
        %4108 = vmatpush1.msra.mxu0 %v4075
        %4109 = vmatprep.subr.mxu0 0.0
        %4110 = vmatpush2.msra.mxu0 0.0
        %4111 = vmatprep.subr.mxu0 0.0
        %4112 = vmatpush2.msra.mxu0 0.0
        %4113 = vmatprep.subr.mxu0 0.0
        %4114 = vmatpush2.msra.mxu0 0.0
        %4115 = vmatprep.subr.mxu0 0.0
        %4116 = vmatpush2.msra.mxu0 0.0
        %4117 = vmatprep.subr.mxu0 0.0
        %4118 = vmatpush2.msra.mxu0 0.0
        %4119 = vmatprep.subr.mxu0 0.0
        %4120 = vmatpush2.msra.mxu0 0.0
        %4121 = vmatprep.subr.mxu0 0.0
        %4122 = vmatpush2.msra.mxu0 0.0
        %4123 = vmatprep.subr.mxu0 0.0
        %4124 = vmatpush2.msra.mxu0 0.0
        %4125 = vmatprep.subr.mxu0 0.0
        %4126 = vmatpush2.msra.mxu0 0.0
        %4127 = vmatprep.subr.mxu0 0.0
        %4128 = vmatpush2.msra.mxu0 0.0
        %4129 = vmatprep.subr.mxu0 0.0
        %4130 = vmatpush2.msra.mxu0 0.0
        %4131 = vmatprep.subr.mxu0 0.0
        %4132 = vmatpush2.msra.mxu0 0.0
        %4133 = vmatprep.subr.mxu0 0.0
        %4134 = vmatpush2.msra.mxu0 0.0
        %4135 = vmatprep.subr.mxu0 0.0
        %4136 = vmatpush2.msra.mxu0 0.0
        %4137 = vmatprep.subr.mxu0 0.0
        %4138 = vmatpush2.msra.mxu0 0.0
        %4139 = vmatprep.subr.mxu0 0.0
        %4140 = vmatpush2.msra.mxu0 0.0
        %4141 = vmatprep.mubr.f32.mxu0 0.0
        %4142 = vmatmul.mubr.f32.gmra.mxu0 %v4072
        %v4143 = vpop.f32.mrf.mxu0
        %v4144 = vadd.f32 %v4070, %v4143
        %v4145 = vpop.f32.mrf.mxu0
        %4146 = vdwg.mxu0
        %v4147 = vadd.f32 %v3938, %v4144
        %4148 = vst [vmem:[#allocation2] sm:$0xff] 0.0
        %4149 = vst.msk [vmem:[#allocation2 + $0x8] sm:$0xff] %vm3494, 0.0
        %4150 = vst [vmem:[#allocation2 + $0x18] sm:$0xf] 0.0
        %4151 = vst.msk [vmem:[#allocation2 + $0x20] sm:$0xf] %vm3497, 0.0
        %4153 = vrot.lane.b32.xlu0 %v4147, 2
        %v4154 = vpop.permute.xlu0 %4153
        %4156 = vst.msk [vmem:[#allocation2] sm:$0xf] %vm3503, %v4154
        %4157 = vst.msk [vmem:[#allocation2 + $0x8] sm:$0xf] %vm3497, %v4154
        %v4158 = vrot.slane %v4147, 4
        %4159 = vrot.lane.b32.xlu0 %v4158, 1
        %v4160 = vpop.permute.xlu0 %4159
        %4162 = vst.msk [vmem:[#allocation2] sm:$0xf0] %vm3510, %v4160
        %4163 = vst.msk [vmem:[#allocation2 + $0x8] sm:$0xf0] %vm3512, %v4160
        %4164 = vst [vmem:[#allocation2 + $0x18] sm:$0xf] %v4147
        %v4165 = vld [vmem:[#allocation2] sm:$0xff]
        %v4166 = vld [vmem:[#allocation2 + $0x8] sm:$0xff]
        %v4167 = vld [vmem:[#allocation2 + $0x18] sm:$0xf]
        %v4168 = vld [vmem:[#allocation2 + $0x20] sm:$0xf]
        %v4169 = vld [vmem:[%s3 + $0x120] sm:$0x3]
        %4171 = vset.pattern.permute.xlu0 12
        %4172 = vperm.xlu0 %4171, %v4169
        %v4173 = vpop.permute.xlu0 %4172
        %4179 = vrot.lane.b32.xlu0 %v4165, 127
        %v4180 = vpop.permute.xlu0 %4179
        %4181 = vrot.lane.b32.xlu0 %v4166, 127
        %v4182 = vpop.permute.xlu0 %4181
        %4183 = vrot.lane.b32.xlu0 %v4167, 127
        %v4184 = vpop.permute.xlu0 %4183
        %4185 = vrot.lane.b32.xlu0 %v4168, 127
        %v4186 = vpop.permute.xlu0 %4185
        %v4187 = vsel %vm3537, %v4180, %v4182
        %v4188 = vsel %vm3537, %v4184, %v4186
        %v4190 = vsel %vm3541, %v4169, 0
        %v4192 = vsel %vm647, %v4188, 0
        %4194 = vmatprep.subr.mxu0 0.0
        %4195 = vmatpush1.msra.mxu0 0.0
        %4196 = vmatprep.subr.mxu0 0.0
        %4197 = vmatpush1.msra.mxu0 0.0
        %4198 = vmatprep.subr.mxu0 0.0
        %4199 = vmatpush1.msra.mxu0 0.0
        %4200 = vmatprep.subr.mxu0 0.0
        %4201 = vmatpush1.msra.mxu0 0.0
        %4202 = vmatprep.subr.mxu0 0.0
        %4203 = vmatpush1.msra.mxu0 0.0
        %4204 = vmatprep.subr.mxu0 0.0
        %4205 = vmatpush1.msra.mxu0 0.0
        %4206 = vmatprep.subr.mxu0 0.0
        %4207 = vmatpush1.msra.mxu0 0.0
        %4208 = vmatprep.subr.mxu0 0.0
        %4209 = vmatpush1.msra.mxu0 0.0
        %4210 = vmatprep.subr.mxu0 0.0
        %4211 = vmatpush1.msra.mxu0 0.0
        %4212 = vmatprep.subr.mxu0 0.0
        %4213 = vmatpush1.msra.mxu0 0.0
        %4214 = vmatprep.subr.mxu0 0.0
        %4215 = vmatpush1.msra.mxu0 0.0
        %4216 = vmatprep.subr.mxu0 0.0
        %4217 = vmatpush1.msra.mxu0 0.0
        %4218 = vmatprep.subr.mxu0 0.0
        %4219 = vmatpush1.msra.mxu0 0.0
        %4220 = vmatprep.subr.mxu0 0.0
        %4221 = vmatpush1.msra.mxu0 0.0
        %4222 = vmatprep.subr.mxu0 0.0
        %4223 = vmatpush1.msra.mxu0 %v4192
        %4224 = vmatprep.subr.mxu0 0.0
        %4225 = vmatpush1.msra.mxu0 %v4187
        %4226 = vmatprep.subr.mxu0 0.0
        %4227 = vmatpush2.msra.mxu0 0.0
        %4228 = vmatprep.subr.mxu0 0.0
        %4229 = vmatpush2.msra.mxu0 0.0
        %4230 = vmatprep.subr.mxu0 0.0
        %4231 = vmatpush2.msra.mxu0 0.0
        %4232 = vmatprep.subr.mxu0 0.0
        %4233 = vmatpush2.msra.mxu0 0.0
        %4234 = vmatprep.subr.mxu0 0.0
        %4235 = vmatpush2.msra.mxu0 0.0
        %4236 = vmatprep.subr.mxu0 0.0
        %4237 = vmatpush2.msra.mxu0 0.0
        %4238 = vmatprep.subr.mxu0 0.0
        %4239 = vmatpush2.msra.mxu0 0.0
        %4240 = vmatprep.subr.mxu0 0.0
        %4241 = vmatpush2.msra.mxu0 0.0
        %4242 = vmatprep.subr.mxu0 0.0
        %4243 = vmatpush2.msra.mxu0 0.0
        %4244 = vmatprep.subr.mxu0 0.0
        %4245 = vmatpush2.msra.mxu0 0.0
        %4246 = vmatprep.subr.mxu0 0.0
        %4247 = vmatpush2.msra.mxu0 0.0
        %4248 = vmatprep.subr.mxu0 0.0
        %4249 = vmatpush2.msra.mxu0 0.0
        %4250 = vmatprep.subr.mxu0 0.0
        %4251 = vmatpush2.msra.mxu0 0.0
        %4252 = vmatprep.subr.mxu0 0.0
        %4253 = vmatpush2.msra.mxu0 0.0
        %4254 = vmatprep.subr.mxu0 0.0
        %4255 = vmatpush2.msra.mxu0 0.0
        %4256 = vmatprep.subr.mxu0 0.0
        %4257 = vmatpush2.msra.mxu0 0.0
        %4258 = vmatprep.mubr.f32.mxu0 0.0
        %4259 = vmatmul.mubr.f32.gmra.mxu0 %v4190
        %v4260 = vpop.f32.mrf.mxu0
        %v4261 = vadd.f32 %v4173, %v4260
        %v4262 = vpop.f32.mrf.mxu0
        %4263 = vdwg.mxu0
        %v4264 = vld [vmem:[%s3 + $0x128] sm:$0x3]
        %4266 = vset.pattern.permute.xlu0 12
        %4267 = vperm.xlu0 %4266, %v4264
        %v4268 = vpop.permute.xlu0 %4267
        %v4270 = vsel %vm3541, %v4264, 0
        %4272 = vmatprep.subr.mxu0 0.0
        %4273 = vmatpush1.msra.mxu0 0.0
        %4274 = vmatprep.subr.mxu0 0.0
        %4275 = vmatpush1.msra.mxu0 0.0
        %4276 = vmatprep.subr.mxu0 0.0
        %4277 = vmatpush1.msra.mxu0 0.0
        %4278 = vmatprep.subr.mxu0 0.0
        %4279 = vmatpush1.msra.mxu0 0.0
        %4280 = vmatprep.subr.mxu0 0.0
        %4281 = vmatpush1.msra.mxu0 0.0
        %4282 = vmatprep.subr.mxu0 0.0
        %4283 = vmatpush1.msra.mxu0 0.0
        %4284 = vmatprep.subr.mxu0 0.0
        %4285 = vmatpush1.msra.mxu0 0.0
        %4286 = vmatprep.subr.mxu0 0.0
        %4287 = vmatpush1.msra.mxu0 0.0
        %4288 = vmatprep.subr.mxu0 0.0
        %4289 = vmatpush1.msra.mxu0 0.0
        %4290 = vmatprep.subr.mxu0 0.0
        %4291 = vmatpush1.msra.mxu0 0.0
        %4292 = vmatprep.subr.mxu0 0.0
        %4293 = vmatpush1.msra.mxu0 0.0
        %4294 = vmatprep.subr.mxu0 0.0
        %4295 = vmatpush1.msra.mxu0 0.0
        %4296 = vmatprep.subr.mxu0 0.0
        %4297 = vmatpush1.msra.mxu0 0.0
        %4298 = vmatprep.subr.mxu0 0.0
        %4299 = vmatpush1.msra.mxu0 0.0
        %4300 = vmatprep.subr.mxu0 0.0
        %4301 = vmatpush1.msra.mxu0 %v4192
        %4302 = vmatprep.subr.mxu0 0.0
        %4303 = vmatpush1.msra.mxu0 %v4187
        %4304 = vmatprep.subr.mxu0 0.0
        %4305 = vmatpush2.msra.mxu0 0.0
        %4306 = vmatprep.subr.mxu0 0.0
        %4307 = vmatpush2.msra.mxu0 0.0
        %4308 = vmatprep.subr.mxu0 0.0
        %4309 = vmatpush2.msra.mxu0 0.0
        %4310 = vmatprep.subr.mxu0 0.0
        %4311 = vmatpush2.msra.mxu0 0.0
        %4312 = vmatprep.subr.mxu0 0.0
        %4313 = vmatpush2.msra.mxu0 0.0
        %4314 = vmatprep.subr.mxu0 0.0
        %4315 = vmatpush2.msra.mxu0 0.0
        %4316 = vmatprep.subr.mxu0 0.0
        %4317 = vmatpush2.msra.mxu0 0.0
        %4318 = vmatprep.subr.mxu0 0.0
        %4319 = vmatpush2.msra.mxu0 0.0
        %4320 = vmatprep.subr.mxu0 0.0
        %4321 = vmatpush2.msra.mxu0 0.0
        %4322 = vmatprep.subr.mxu0 0.0
        %4323 = vmatpush2.msra.mxu0 0.0
        %4324 = vmatprep.subr.mxu0 0.0
        %4325 = vmatpush2.msra.mxu0 0.0
        %4326 = vmatprep.subr.mxu0 0.0
        %4327 = vmatpush2.msra.mxu0 0.0
        %4328 = vmatprep.subr.mxu0 0.0
        %4329 = vmatpush2.msra.mxu0 0.0
        %4330 = vmatprep.subr.mxu0 0.0
        %4331 = vmatpush2.msra.mxu0 0.0
        %4332 = vmatprep.subr.mxu0 0.0
        %4333 = vmatpush2.msra.mxu0 0.0
        %4334 = vmatprep.subr.mxu0 0.0
        %4335 = vmatpush2.msra.mxu0 0.0
        %4336 = vmatprep.mubr.f32.mxu0 0.0
        %4337 = vmatmul.mubr.f32.gmra.mxu0 %v4270
        %v4338 = vpop.f32.mrf.mxu0
        %v4339 = vadd.f32 %v4268, %v4338
        %v4340 = vpop.f32.mrf.mxu0
        %4341 = vdwg.mxu0
        %v4342 = vld [vmem:[%s4] sm:$0xff]
        %v4343 = vld [vmem:[%s4 + $0x8] sm:$0xff]
        %v4344 = vld [vmem:[%s4 + $0x10] sm:$0xff]
        %v4345 = vld [vmem:[%s4 + $0x18] sm:$0xff]
        %v4346 = vld [vmem:[%s4 + $0x20] sm:$0xff]
        %v4347 = vld [vmem:[%s4 + $0x28] sm:$0xff]
        %v4348 = vld [vmem:[%s4 + $0x30] sm:$0xff]
        %v4349 = vld [vmem:[%s4 + $0x38] sm:$0xff]
        %v4350 = vld [vmem:[%s4 + $0x40] sm:$0xff]
        %v4351 = vld [vmem:[%s4 + $0x48] sm:$0xff]
        %v4352 = vld [vmem:[%s4 + $0x50] sm:$0xff]
        %v4353 = vld [vmem:[%s4 + $0x58] sm:$0xff]
        %v4354 = vld [vmem:[%s4 + $0x60] sm:$0xff]
        %v4355 = vld [vmem:[%s4 + $0x68] sm:$0xff]
        %v4356 = vld [vmem:[%s4 + $0x70] sm:$0xff]
        %v4357 = vld [vmem:[%s4 + $0x78] sm:$0xff]
        %v4358 = vld [vmem:[%s4 + $0x80] sm:$0xff]
        %v4359 = vld [vmem:[%s4 + $0x88] sm:$0xff]
        %v4360 = vld [vmem:[%s4 + $0x90] sm:$0xff]
        %v4361 = vld [vmem:[%s4 + $0x98] sm:$0xff]
        %v4362 = vld [vmem:[%s4 + $0xa0] sm:$0xff]
        %v4363 = vld [vmem:[%s4 + $0xa8] sm:$0xff]
        %v4364 = vld [vmem:[%s4 + $0xb0] sm:$0xff]
        %v4365 = vld [vmem:[%s4 + $0xb8] sm:$0xff]
        %v4366 = vld [vmem:[%s4 + $0xc0] sm:$0xff]
        %v4367 = vld [vmem:[%s4 + $0xc8] sm:$0xff]
        %v4368 = vld [vmem:[%s4 + $0xd0] sm:$0xff]
        %v4369 = vld [vmem:[%s4 + $0xd8] sm:$0xff]
        %v4370 = vld [vmem:[%s4 + $0xe0] sm:$0xff]
        %v4371 = vld [vmem:[%s4 + $0xe8] sm:$0xff]
        %v4372 = vld [vmem:[%s4 + $0xf0] sm:$0xff]
        %v4373 = vld [vmem:[%s4 + $0xf8] sm:$0xff]
        %v4374 = vld [vmem:[%s4 + $0x100] sm:$0xff]
        %v4375 = vld [vmem:[%s4 + $0x108] sm:$0xff]
        %v4376 = vld [vmem:[%s4 + $0x110] sm:$0xff]
        %v4377 = vld [vmem:[%s4 + $0x118] sm:$0xff]
        %v4378 = vld [vmem:[%s4 + $0x120] sm:$0xff]
        %v4379 = vld [vmem:[%s4 + $0x128] sm:$0xff]
        %v4380 = vld [vmem:[%s4 + $0x130] sm:$0xff]
        %v4381 = vld [vmem:[%s4 + $0x138] sm:$0xff]
        %v4382 = vld [vmem:[%s4 + $0x140] sm:$0xff]
        %v4383 = vld [vmem:[%s4 + $0x148] sm:$0xff]
        %v4384 = vld [vmem:[%s4 + $0x150] sm:$0xff]
        %v4385 = vld [vmem:[%s4 + $0x158] sm:$0xff]
        %v4386 = vld [vmem:[%s4 + $0x160] sm:$0xff]
        %v4387 = vld [vmem:[%s4 + $0x168] sm:$0xff]
        %v4388 = vld [vmem:[%s4 + $0x170] sm:$0xff]
        %v4389 = vld [vmem:[%s4 + $0x178] sm:$0xff]
        %v4390 = vld [vmem:[%s4 + $0x180] sm:$0xff]
        %v4391 = vld [vmem:[%s4 + $0x188] sm:$0xff]
        %v4392 = vld [vmem:[%s4 + $0x190] sm:$0xff]
        %v4393 = vld [vmem:[%s4 + $0x198] sm:$0xff]
        %v4394 = vld [vmem:[%s4 + $0x1a0] sm:$0xff]
        %v4395 = vld [vmem:[%s4 + $0x1a8] sm:$0xff]
        %v4396 = vld [vmem:[%s4 + $0x1b0] sm:$0xff]
        %v4397 = vld [vmem:[%s4 + $0x1b8] sm:$0xff]
        %v4398 = vld [vmem:[%s4 + $0x1c0] sm:$0xff]
        %v4399 = vld [vmem:[%s4 + $0x1c8] sm:$0xff]
        %v4400 = vld [vmem:[%s4 + $0x1d0] sm:$0xff]
        %v4401 = vld [vmem:[%s4 + $0x1d8] sm:$0xff]
        %v4402 = vld [vmem:[%s4 + $0x1e0] sm:$0xff]
        %v4403 = vld [vmem:[%s4 + $0x1e8] sm:$0xff]
        %v4404 = vld [vmem:[%s4 + $0x1f0] sm:$0xff]
        %v4405 = vld [vmem:[%s4 + $0x1f8] sm:$0xff]
        %4406 = vmatprep.subr.mxu0 %v4405
        %4407 = vmatpush1.msra.mxu0 %v4404
        %4408 = vmatprep.subr.mxu0 %v4403
        %4409 = vmatpush1.msra.mxu0 %v4402
        %4410 = vmatprep.subr.mxu0 %v4401
        %4411 = vmatpush1.msra.mxu0 %v4400
        %4412 = vmatprep.subr.mxu0 %v4399
        %4413 = vmatpush1.msra.mxu0 %v4398
        %4414 = vmatprep.subr.mxu0 %v4397
        %4415 = vmatpush1.msra.mxu0 %v4396
        %4416 = vmatprep.subr.mxu0 %v4395
        %4417 = vmatpush1.msra.mxu0 %v4394
        %4418 = vmatprep.subr.mxu0 %v4393
        %4419 = vmatpush1.msra.mxu0 %v4392
        %4420 = vmatprep.subr.mxu0 %v4391
        %4421 = vmatpush1.msra.mxu0 %v4390
        %4422 = vmatprep.subr.mxu0 %v4389
        %4423 = vmatpush1.msra.mxu0 %v4388
        %4424 = vmatprep.subr.mxu0 %v4387
        %4425 = vmatpush1.msra.mxu0 %v4386
        %4426 = vmatprep.subr.mxu0 %v4385
        %4427 = vmatpush1.msra.mxu0 %v4384
        %4428 = vmatprep.subr.mxu0 %v4383
        %4429 = vmatpush1.msra.mxu0 %v4382
        %4430 = vmatprep.subr.mxu0 %v4381
        %4431 = vmatpush1.msra.mxu0 %v4380
        %4432 = vmatprep.subr.mxu0 %v4379
        %4433 = vmatpush1.msra.mxu0 %v4378
        %4434 = vmatprep.subr.mxu0 %v4377
        %4435 = vmatpush1.msra.mxu0 %v4376
        %4436 = vmatprep.subr.mxu0 %v4375
        %4437 = vmatpush1.msra.mxu0 %v4374
        %4438 = vmatprep.subr.mxu0 0.0
        %4439 = vmatpush2.msra.mxu0 0.0
        %4440 = vmatprep.subr.mxu0 0.0
        %4441 = vmatpush2.msra.mxu0 0.0
        %4442 = vmatprep.subr.mxu0 0.0
        %4443 = vmatpush2.msra.mxu0 0.0
        %4444 = vmatprep.subr.mxu0 0.0
        %4445 = vmatpush2.msra.mxu0 0.0
        %4446 = vmatprep.subr.mxu0 0.0
        %4447 = vmatpush2.msra.mxu0 0.0
        %4448 = vmatprep.subr.mxu0 0.0
        %4449 = vmatpush2.msra.mxu0 0.0
        %4450 = vmatprep.subr.mxu0 0.0
        %4451 = vmatpush2.msra.mxu0 0.0
        %4452 = vmatprep.subr.mxu0 0.0
        %4453 = vmatpush2.msra.mxu0 0.0
        %4454 = vmatprep.subr.mxu0 0.0
        %4455 = vmatpush2.msra.mxu0 0.0
        %4456 = vmatprep.subr.mxu0 0.0
        %4457 = vmatpush2.msra.mxu0 0.0
        %4458 = vmatprep.subr.mxu0 0.0
        %4459 = vmatpush2.msra.mxu0 0.0
        %4460 = vmatprep.subr.mxu0 0.0
        %4461 = vmatpush2.msra.mxu0 0.0
        %4462 = vmatprep.subr.mxu0 0.0
        %4463 = vmatpush2.msra.mxu0 0.0
        %4464 = vmatprep.subr.mxu0 0.0
        %4465 = vmatpush2.msra.mxu0 0.0
        %4466 = vmatprep.subr.mxu0 0.0
        %4467 = vmatpush2.msra.mxu0 0.0
        %4468 = vmatprep.subr.mxu0 0.0
        %4469 = vmatpush2.msra.mxu0 0.0
        %4470 = vmatprep.mubr.f32.mxu0 0.0
        %4471 = vmatmul.mubr.f32.gmra.mxu0 %v4339
        %v4472 = vpop.f32.mrf.mxu0
        %v4473 = vadd.f32 0.0, %v4472
        %v4474 = vpop.f32.mrf.mxu0
        %v4475 = vadd.f32 0.0, %v4474
        %4476 = vdwg.mxu0
        %4477 = vmatprep.subr.mxu0 %v4373
        %4478 = vmatpush1.msra.mxu0 %v4372
        %4479 = vmatprep.subr.mxu0 %v4371
        %4480 = vmatpush1.msra.mxu0 %v4370
        %4481 = vmatprep.subr.mxu0 %v4369
        %4482 = vmatpush1.msra.mxu0 %v4368
        %4483 = vmatprep.subr.mxu0 %v4367
        %4484 = vmatpush1.msra.mxu0 %v4366
        %4485 = vmatprep.subr.mxu0 %v4365
        %4486 = vmatpush1.msra.mxu0 %v4364
        %4487 = vmatprep.subr.mxu0 %v4363
        %4488 = vmatpush1.msra.mxu0 %v4362
        %4489 = vmatprep.subr.mxu0 %v4361
        %4490 = vmatpush1.msra.mxu0 %v4360
        %4491 = vmatprep.subr.mxu0 %v4359
        %4492 = vmatpush1.msra.mxu0 %v4358
        %4493 = vmatprep.subr.mxu0 %v4357
        %4494 = vmatpush1.msra.mxu0 %v4356
        %4495 = vmatprep.subr.mxu0 %v4355
        %4496 = vmatpush1.msra.mxu0 %v4354
        %4497 = vmatprep.subr.mxu0 %v4353
        %4498 = vmatpush1.msra.mxu0 %v4352
        %4499 = vmatprep.subr.mxu0 %v4351
        %4500 = vmatpush1.msra.mxu0 %v4350
        %4501 = vmatprep.subr.mxu0 %v4349
        %4502 = vmatpush1.msra.mxu0 %v4348
        %4503 = vmatprep.subr.mxu0 %v4347
        %4504 = vmatpush1.msra.mxu0 %v4346
        %4505 = vmatprep.subr.mxu0 %v4345
        %4506 = vmatpush1.msra.mxu0 %v4344
        %4507 = vmatprep.subr.mxu0 %v4343
        %4508 = vmatpush1.msra.mxu0 %v4342
        %4509 = vmatprep.subr.mxu0 0.0
        %4510 = vmatpush2.msra.mxu0 0.0
        %4511 = vmatprep.subr.mxu0 0.0
        %4512 = vmatpush2.msra.mxu0 0.0
        %4513 = vmatprep.subr.mxu0 0.0
        %4514 = vmatpush2.msra.mxu0 0.0
        %4515 = vmatprep.subr.mxu0 0.0
        %4516 = vmatpush2.msra.mxu0 0.0
        %4517 = vmatprep.subr.mxu0 0.0
        %4518 = vmatpush2.msra.mxu0 0.0
        %4519 = vmatprep.subr.mxu0 0.0
        %4520 = vmatpush2.msra.mxu0 0.0
        %4521 = vmatprep.subr.mxu0 0.0
        %4522 = vmatpush2.msra.mxu0 0.0
        %4523 = vmatprep.subr.mxu0 0.0
        %4524 = vmatpush2.msra.mxu0 0.0
        %4525 = vmatprep.subr.mxu0 0.0
        %4526 = vmatpush2.msra.mxu0 0.0
        %4527 = vmatprep.subr.mxu0 0.0
        %4528 = vmatpush2.msra.mxu0 0.0
        %4529 = vmatprep.subr.mxu0 0.0
        %4530 = vmatpush2.msra.mxu0 0.0
        %4531 = vmatprep.subr.mxu0 0.0
        %4532 = vmatpush2.msra.mxu0 0.0
        %4533 = vmatprep.subr.mxu0 0.0
        %4534 = vmatpush2.msra.mxu0 0.0
        %4535 = vmatprep.subr.mxu0 0.0
        %4536 = vmatpush2.msra.mxu0 0.0
        %4537 = vmatprep.subr.mxu0 0.0
        %4538 = vmatpush2.msra.mxu0 0.0
        %4539 = vmatprep.subr.mxu0 0.0
        %4540 = vmatpush2.msra.mxu0 0.0
        %4541 = vmatprep.mubr.f32.mxu0 0.0
        %4542 = vmatmul.mubr.f32.gmra.mxu0 %v4261
        %v4543 = vpop.f32.mrf.mxu0
        %v4544 = vadd.f32 %v4473, %v4543
        %v4545 = vpop.f32.mrf.mxu0
        %v4546 = vadd.f32 %v4475, %v4545
        %4547 = vdwg.mxu0
        %4549 = vset.pattern.permute.xlu0 0
        %4550 = vperm.xlu0 %4549, %v568
        %v4551 = vpop.permute.xlu0 %4550
        %v4553 = vmul.f32 %v4551, %v4544
        %v4554 = vmul.f32 %v4551, %v4546
        %4556 = vset.pattern.permute.xlu0 0
        %4557 = vperm.xlu0 %4556, %v493
        %v4558 = vpop.permute.xlu0 %4557
        %v4560 = vadd.f32 %v4553, %v4558
        %v4561 = vadd.f32 %v4554, %v4558
        %4562 = vst [vmem:[#allocation2] sm:$0x3f] 0.0
        %4563 = vst [vmem:[#allocation2 + $0x8] sm:$0x3f] 0.0
        %vm4564 = vcmask 13312
        %4565 = vst.msk [vmem:[#allocation2 + $0x10] sm:$0x3f] %vm4564, 0.0
        %4568 = vrot.lane.b32.xlu0 %v4560, 2
        %v4569 = vpop.permute.xlu0 %4568
        %4570 = vrot.lane.b32.xlu0 %v4561, 2
        %v4571 = vpop.permute.xlu0 %4570
        %v4572 = vsel %vm3494, %v4569, %v4571
        %vm4576 = vcmask 1041424
        %4577 = vst.msk [vmem:[#allocation2] sm:$0x3] %vm4576, %v4569
        %4578 = vst [vmem:[#allocation2 + $0x8] sm:$0x3] %v4572
        %vm4579 = vcmask 9216
        %4580 = vst.msk [vmem:[#allocation2 + $0x10] sm:$0x3] %vm4579, %v4571
        %v4581 = vrot.slane %v4560, 6
        %v4582 = vrot.slane %v4561, 6
        %4583 = vrot.lane.b32.xlu0 %v4581, 1
        %v4584 = vpop.permute.xlu0 %4583
        %4585 = vrot.lane.b32.xlu0 %v4582, 1
        %v4586 = vpop.permute.xlu0 %4585
        %vm4587 = vcmask 7168
        %v4588 = vsel %vm4587, %v4584, %v4586
        %vm4592 = vcmask 1043466
        %4593 = vst.msk [vmem:[#allocation2] sm:$0xc] %vm4592, %v4584
        %4594 = vst [vmem:[#allocation2 + $0x8] sm:$0xc] %v4588
        %vm4595 = vcmask 3074
        %4596 = vst.msk [vmem:[#allocation2 + $0x10] sm:$0xc] %vm4595, %v4586
        %v4597 = vrot.slane %v4560, 4
        %v4598 = vrot.slane %v4561, 4
        %4601 = vst [vmem:[#allocation2] sm:$0x30] %v4597
        %4602 = vst [vmem:[#allocation2 + $0x8] sm:$0x30] %v4598
        %v4603 = vld [vmem:[#allocation2] sm:$0x3f]
        %v4604 = vld [vmem:[#allocation2 + $0x8] sm:$0x3f]
        %v4605 = vld [vmem:[#allocation2 + $0x10] sm:$0x3f]
        %v4606 = vld [vmem:[%s3 + $0x130] sm:$0x3]
        %4608 = vset.pattern.permute.xlu0 6
        %4609 = vperm.xlu0 %4608, %v4606
        %v4610 = vpop.permute.xlu0 %4609
        %4615 = vrot.lane.b32.xlu0 %v4603, 127
        %v4616 = vpop.permute.xlu0 %4615
        %4617 = vrot.lane.b32.xlu0 %v4604, 127
        %v4618 = vpop.permute.xlu0 %4617
        %4619 = vrot.lane.b32.xlu0 %v4605, 127
        %v4620 = vpop.permute.xlu0 %4619
        %v4621 = vsel %vm3537, %v4616, %v4618
        %v4622 = vsel %vm3537, %v4618, %v4620
        %v4623 = vsel %vm3718, %v4606, 0
        %v4625 = vsel %vm675, %v4621, 0
        %v4627 = vsel %vm675, %v4622, 0
        %4629 = vmatprep.subr.mxu0 0.0
        %4630 = vmatpush1.msra.mxu0 0.0
        %4631 = vmatprep.subr.mxu0 0.0
        %4632 = vmatpush1.msra.mxu0 0.0
        %4633 = vmatprep.subr.mxu0 0.0
        %4634 = vmatpush1.msra.mxu0 0.0
        %4635 = vmatprep.subr.mxu0 0.0
        %4636 = vmatpush1.msra.mxu0 0.0
        %4637 = vmatprep.subr.mxu0 0.0
        %4638 = vmatpush1.msra.mxu0 0.0
        %4639 = vmatprep.subr.mxu0 0.0
        %4640 = vmatpush1.msra.mxu0 0.0
        %4641 = vmatprep.subr.mxu0 0.0
        %4642 = vmatpush1.msra.mxu0 0.0
        %4643 = vmatprep.subr.mxu0 0.0
        %4644 = vmatpush1.msra.mxu0 0.0
        %4645 = vmatprep.subr.mxu0 0.0
        %4646 = vmatpush1.msra.mxu0 0.0
        %4647 = vmatprep.subr.mxu0 0.0
        %4648 = vmatpush1.msra.mxu0 0.0
        %4649 = vmatprep.subr.mxu0 0.0
        %4650 = vmatpush1.msra.mxu0 0.0
        %4651 = vmatprep.subr.mxu0 0.0
        %4652 = vmatpush1.msra.mxu0 0.0
        %4653 = vmatprep.subr.mxu0 0.0
        %4654 = vmatpush1.msra.mxu0 0.0
        %4655 = vmatprep.subr.mxu0 0.0
        %4656 = vmatpush1.msra.mxu0 0.0
        %4657 = vmatprep.subr.mxu0 0.0
        %4658 = vmatpush1.msra.mxu0 0.0
        %4659 = vmatprep.subr.mxu0 %v4627
        %4660 = vmatpush1.msra.mxu0 %v4625
        %4661 = vmatprep.subr.mxu0 0.0
        %4662 = vmatpush2.msra.mxu0 0.0
        %4663 = vmatprep.subr.mxu0 0.0
        %4664 = vmatpush2.msra.mxu0 0.0
        %4665 = vmatprep.subr.mxu0 0.0
        %4666 = vmatpush2.msra.mxu0 0.0
        %4667 = vmatprep.subr.mxu0 0.0
        %4668 = vmatpush2.msra.mxu0 0.0
        %4669 = vmatprep.subr.mxu0 0.0
        %4670 = vmatpush2.msra.mxu0 0.0
        %4671 = vmatprep.subr.mxu0 0.0
        %4672 = vmatpush2.msra.mxu0 0.0
        %4673 = vmatprep.subr.mxu0 0.0
        %4674 = vmatpush2.msra.mxu0 0.0
        %4675 = vmatprep.subr.mxu0 0.0
        %4676 = vmatpush2.msra.mxu0 0.0
        %4677 = vmatprep.subr.mxu0 0.0
        %4678 = vmatpush2.msra.mxu0 0.0
        %4679 = vmatprep.subr.mxu0 0.0
        %4680 = vmatpush2.msra.mxu0 0.0
        %4681 = vmatprep.subr.mxu0 0.0
        %4682 = vmatpush2.msra.mxu0 0.0
        %4683 = vmatprep.subr.mxu0 0.0
        %4684 = vmatpush2.msra.mxu0 0.0
        %4685 = vmatprep.subr.mxu0 0.0
        %4686 = vmatpush2.msra.mxu0 0.0
        %4687 = vmatprep.subr.mxu0 0.0
        %4688 = vmatpush2.msra.mxu0 0.0
        %4689 = vmatprep.subr.mxu0 0.0
        %4690 = vmatpush2.msra.mxu0 0.0
        %4691 = vmatprep.subr.mxu0 0.0
        %4692 = vmatpush2.msra.mxu0 0.0
        %4693 = vmatprep.mubr.f32.mxu0 0.0
        %4694 = vmatmul.mubr.f32.gmra.mxu0 %v4623
        %v4695 = vpop.f32.mrf.mxu0
        %v4696 = vadd.f32 %v4610, %v4695
        %v4697 = vpop.f32.mrf.mxu0
        %v4698 = vadd.f32 %v4610, %v4697
        %4699 = vdwg.mxu0
        %vm4700 = vcmp.gt.f32.partialorder %v4696, 0.0
        %vm4701 = vcmp.gt.f32.partialorder %v4698, 0.0
        %v4702 = vmin.f32 %v4696, 0.0
        %v4703 = vmin.f32 %v4698, 0.0
        %v4704 = vmul.f32 %v4702, 1.442695
        %v4705 = vpow.pop %v4704
        %v4706 = vmul.f32 %v4703, 1.442695
        %v4707 = vpow.pop %v4706
        %v4708 = vsub.f32 %v4705, 1.0
        %v4709 = vsub.f32 %v4707, 1.0
        %v4710 = vsel %vm4700, %v4696, %v4708
        %v4711 = vsel %vm4701, %v4698, %v4709
        %v4712 = vld [vmem:[%s3 + $0x138] sm:$0x3]
        %4714 = vset.pattern.permute.xlu0 2
        %4715 = vperm.xlu0 %4714, %v4712
        %v4716 = vpop.permute.xlu0 %4715
        %v4718 = vsel %vm3494, %v4712, 0
        %v4721 = vsel %vm619, %v4710, 0
        %v4724 = vsel %vm619, %v4711, 0
        %4726 = vmatprep.subr.mxu0 0.0
        %4727 = vmatpush1.msra.mxu0 0.0
        %4728 = vmatprep.subr.mxu0 0.0
        %4729 = vmatpush1.msra.mxu0 0.0
        %4730 = vmatprep.subr.mxu0 0.0
        %4731 = vmatpush1.msra.mxu0 0.0
        %4732 = vmatprep.subr.mxu0 0.0
        %4733 = vmatpush1.msra.mxu0 0.0
        %4734 = vmatprep.subr.mxu0 0.0
        %4735 = vmatpush1.msra.mxu0 0.0
        %4736 = vmatprep.subr.mxu0 0.0
        %4737 = vmatpush1.msra.mxu0 0.0
        %4738 = vmatprep.subr.mxu0 0.0
        %4739 = vmatpush1.msra.mxu0 0.0
        %4740 = vmatprep.subr.mxu0 0.0
        %4741 = vmatpush1.msra.mxu0 0.0
        %4742 = vmatprep.subr.mxu0 0.0
        %4743 = vmatpush1.msra.mxu0 0.0
        %4744 = vmatprep.subr.mxu0 0.0
        %4745 = vmatpush1.msra.mxu0 0.0
        %4746 = vmatprep.subr.mxu0 0.0
        %4747 = vmatpush1.msra.mxu0 0.0
        %4748 = vmatprep.subr.mxu0 0.0
        %4749 = vmatpush1.msra.mxu0 0.0
        %4750 = vmatprep.subr.mxu0 0.0
        %4751 = vmatpush1.msra.mxu0 0.0
        %4752 = vmatprep.subr.mxu0 0.0
        %4753 = vmatpush1.msra.mxu0 0.0
        %4754 = vmatprep.subr.mxu0 0.0
        %4755 = vmatpush1.msra.mxu0 0.0
        %4756 = vmatprep.subr.mxu0 %v4724
        %4757 = vmatpush1.msra.mxu0 %v4721
        %4758 = vmatprep.subr.mxu0 0.0
        %4759 = vmatpush2.msra.mxu0 0.0
        %4760 = vmatprep.subr.mxu0 0.0
        %4761 = vmatpush2.msra.mxu0 0.0
        %4762 = vmatprep.subr.mxu0 0.0
        %4763 = vmatpush2.msra.mxu0 0.0
        %4764 = vmatprep.subr.mxu0 0.0
        %4765 = vmatpush2.msra.mxu0 0.0
        %4766 = vmatprep.subr.mxu0 0.0
        %4767 = vmatpush2.msra.mxu0 0.0
        %4768 = vmatprep.subr.mxu0 0.0
        %4769 = vmatpush2.msra.mxu0 0.0
        %4770 = vmatprep.subr.mxu0 0.0
        %4771 = vmatpush2.msra.mxu0 0.0
        %4772 = vmatprep.subr.mxu0 0.0
        %4773 = vmatpush2.msra.mxu0 0.0
        %4774 = vmatprep.subr.mxu0 0.0
        %4775 = vmatpush2.msra.mxu0 0.0
        %4776 = vmatprep.subr.mxu0 0.0
        %4777 = vmatpush2.msra.mxu0 0.0
        %4778 = vmatprep.subr.mxu0 0.0
        %4779 = vmatpush2.msra.mxu0 0.0
        %4780 = vmatprep.subr.mxu0 0.0
        %4781 = vmatpush2.msra.mxu0 0.0
        %4782 = vmatprep.subr.mxu0 0.0
        %4783 = vmatpush2.msra.mxu0 0.0
        %4784 = vmatprep.subr.mxu0 0.0
        %4785 = vmatpush2.msra.mxu0 0.0
        %4786 = vmatprep.subr.mxu0 0.0
        %4787 = vmatpush2.msra.mxu0 0.0
        %4788 = vmatprep.subr.mxu0 0.0
        %4789 = vmatpush2.msra.mxu0 0.0
        %4790 = vmatprep.mubr.f32.mxu0 0.0
        %4791 = vmatmul.mubr.f32.gmra.mxu0 %v4718
        %v4792 = vpop.f32.mrf.mxu0
        %v4793 = vadd.f32 %v4716, %v4792
        %v4794 = vpop.f32.mrf.mxu0
        %v4795 = vadd.f32 %v4716, %v4794
        %4796 = vdwg.mxu0
        %v4797 = vadd.f32 %v4560, %v4793
        %v4798 = vadd.f32 %v4561, %v4795
        %4800 = vset.pattern.permute.xlu0 0
        %4801 = vperm.xlu0 %4800, %v573
        %v4802 = vpop.permute.xlu0 %4801
        %v4804 = vmul.f32 %v4802, %v4797
        %v4805 = vmul.f32 %v4802, %v4798
        %4807 = vset.pattern.permute.xlu0 0
        %4808 = vperm.xlu0 %4807, %v498
        %v4809 = vpop.permute.xlu0 %4808
        %v4811 = vadd.f32 %v4804, %v4809
        %v4812 = vadd.f32 %v4805, %v4809
        %4813 = vst [vmem:[#allocation2] sm:$0x3f] 0.0
        %4814 = vst [vmem:[#allocation2 + $0x8] sm:$0x3f] 0.0
        %vm4815 = vcmask 46080
        %4816 = vst.msk [vmem:[#allocation2 + $0x10] sm:$0x3f] %vm4815, 0.0
        %4819 = vrot.lane.b32.xlu0 %v4811, 6
        %v4820 = vpop.permute.xlu0 %4819
        %4821 = vrot.lane.b32.xlu0 %v4812, 6
        %v4822 = vpop.permute.xlu0 %4821
        %v4823 = vsel %vm3718, %v4820, %v4822
        %vm4827 = vcmask 1041456
        %4828 = vst.msk [vmem:[#allocation2] sm:$0x3] %vm4827, %v4820
        %4829 = vst [vmem:[#allocation2 + $0x8] sm:$0x3] %v4823
        %vm4830 = vcmask 41984
        %4831 = vst.msk [vmem:[#allocation2 + $0x10] sm:$0x3] %vm4830, %v4822
        %v4832 = vrot.slane %v4811, 6
        %v4833 = vrot.slane %v4812, 6
        %4834 = vrot.lane.b32.xlu0 %v4832, 3
        %v4835 = vpop.permute.xlu0 %4834
        %4836 = vrot.lane.b32.xlu0 %v4833, 3
        %v4837 = vpop.permute.xlu0 %4836
        %vm4838 = vcmask 23552
        %v4839 = vsel %vm4838, %v4835, %v4837
        %vm4843 = vcmask 1043482
        %4844 = vst.msk [vmem:[#allocation2] sm:$0xc] %vm4843, %v4835
        %4845 = vst [vmem:[#allocation2 + $0x8] sm:$0xc] %v4839
        %vm4846 = vcmask 19458
        %4847 = vst.msk [vmem:[#allocation2 + $0x10] sm:$0xc] %vm4846, %v4837
        %v4848 = vrot.slane %v4811, 4
        %v4849 = vrot.slane %v4812, 4
        %4852 = vst [vmem:[#allocation2] sm:$0x30] %v4848
        %4853 = vst [vmem:[#allocation2 + $0x8] sm:$0x30] %v4849
        %v4854 = vld [vmem:[#allocation2] sm:$0x3f]
        %v4855 = vld [vmem:[#allocation2 + $0x8] sm:$0x3f]
        %v4856 = vld [vmem:[#allocation2 + $0x10] sm:$0x3f]
        %v4857 = vld [vmem:[%s3 + $0x140] sm:$0x3]
        %4859 = vset.pattern.permute.xlu0 6
        %4860 = vperm.xlu0 %4859, %v4857
        %v4861 = vpop.permute.xlu0 %4860
        %4866 = vrot.lane.b32.xlu0 %v4854, 125
        %v4867 = vpop.permute.xlu0 %4866
        %4868 = vrot.lane.b32.xlu0 %v4855, 125
        %v4869 = vpop.permute.xlu0 %4868
        %4870 = vrot.lane.b32.xlu0 %v4856, 125
        %v4871 = vpop.permute.xlu0 %4870
        %v4872 = vsel %vm3761, %v4867, %v4869
        %v4873 = vsel %vm3761, %v4869, %v4871
        %v4874 = vsel %vm3718, %v4857, 0
        %v4876 = vsel %vm675, %v4872, 0
        %v4878 = vsel %vm675, %v4873, 0
        %4880 = vmatprep.subr.mxu0 0.0
        %4881 = vmatpush1.msra.mxu0 0.0
        %4882 = vmatprep.subr.mxu0 0.0
        %4883 = vmatpush1.msra.mxu0 0.0
        %4884 = vmatprep.subr.mxu0 0.0
        %4885 = vmatpush1.msra.mxu0 0.0
        %4886 = vmatprep.subr.mxu0 0.0
        %4887 = vmatpush1.msra.mxu0 0.0
        %4888 = vmatprep.subr.mxu0 0.0
        %4889 = vmatpush1.msra.mxu0 0.0
        %4890 = vmatprep.subr.mxu0 0.0
        %4891 = vmatpush1.msra.mxu0 0.0
        %4892 = vmatprep.subr.mxu0 0.0
        %4893 = vmatpush1.msra.mxu0 0.0
        %4894 = vmatprep.subr.mxu0 0.0
        %4895 = vmatpush1.msra.mxu0 0.0
        %4896 = vmatprep.subr.mxu0 0.0
        %4897 = vmatpush1.msra.mxu0 0.0
        %4898 = vmatprep.subr.mxu0 0.0
        %4899 = vmatpush1.msra.mxu0 0.0
        %4900 = vmatprep.subr.mxu0 0.0
        %4901 = vmatpush1.msra.mxu0 0.0
        %4902 = vmatprep.subr.mxu0 0.0
        %4903 = vmatpush1.msra.mxu0 0.0
        %4904 = vmatprep.subr.mxu0 0.0
        %4905 = vmatpush1.msra.mxu0 0.0
        %4906 = vmatprep.subr.mxu0 0.0
        %4907 = vmatpush1.msra.mxu0 0.0
        %4908 = vmatprep.subr.mxu0 0.0
        %4909 = vmatpush1.msra.mxu0 0.0
        %4910 = vmatprep.subr.mxu0 %v4878
        %4911 = vmatpush1.msra.mxu0 %v4876
        %4912 = vmatprep.subr.mxu0 0.0
        %4913 = vmatpush2.msra.mxu0 0.0
        %4914 = vmatprep.subr.mxu0 0.0
        %4915 = vmatpush2.msra.mxu0 0.0
        %4916 = vmatprep.subr.mxu0 0.0
        %4917 = vmatpush2.msra.mxu0 0.0
        %4918 = vmatprep.subr.mxu0 0.0
        %4919 = vmatpush2.msra.mxu0 0.0
        %4920 = vmatprep.subr.mxu0 0.0
        %4921 = vmatpush2.msra.mxu0 0.0
        %4922 = vmatprep.subr.mxu0 0.0
        %4923 = vmatpush2.msra.mxu0 0.0
        %4924 = vmatprep.subr.mxu0 0.0
        %4925 = vmatpush2.msra.mxu0 0.0
        %4926 = vmatprep.subr.mxu0 0.0
        %4927 = vmatpush2.msra.mxu0 0.0
        %4928 = vmatprep.subr.mxu0 0.0
        %4929 = vmatpush2.msra.mxu0 0.0
        %4930 = vmatprep.subr.mxu0 0.0
        %4931 = vmatpush2.msra.mxu0 0.0
        %4932 = vmatprep.subr.mxu0 0.0
        %4933 = vmatpush2.msra.mxu0 0.0
        %4934 = vmatprep.subr.mxu0 0.0
        %4935 = vmatpush2.msra.mxu0 0.0
        %4936 = vmatprep.subr.mxu0 0.0
        %4937 = vmatpush2.msra.mxu0 0.0
        %4938 = vmatprep.subr.mxu0 0.0
        %4939 = vmatpush2.msra.mxu0 0.0
        %4940 = vmatprep.subr.mxu0 0.0
        %4941 = vmatpush2.msra.mxu0 0.0
        %4942 = vmatprep.subr.mxu0 0.0
        %4943 = vmatpush2.msra.mxu0 0.0
        %4944 = vmatprep.mubr.f32.mxu0 0.0
        %4945 = vmatmul.mubr.f32.gmra.mxu0 %v4874
        %v4946 = vpop.f32.mrf.mxu0
        %v4947 = vadd.f32 %v4861, %v4946
        %v4948 = vpop.f32.mrf.mxu0
        %v4949 = vadd.f32 %v4861, %v4948
        %4950 = vdwg.mxu0
        %vm4951 = vcmp.gt.f32.partialorder %v4947, 0.0
        %vm4952 = vcmp.gt.f32.partialorder %v4949, 0.0
        %v4953 = vmin.f32 %v4947, 0.0
        %v4954 = vmin.f32 %v4949, 0.0
        %v4955 = vmul.f32 %v4953, 1.442695
        %v4956 = vpow.pop %v4955
        %v4957 = vmul.f32 %v4954, 1.442695
        %v4958 = vpow.pop %v4957
        %v4959 = vsub.f32 %v4956, 1.0
        %v4960 = vsub.f32 %v4958, 1.0
        %v4961 = vsel %vm4951, %v4947, %v4959
        %v4962 = vsel %vm4952, %v4949, %v4960
        %v4963 = vld [vmem:[%s3 + $0x148] sm:$0x3]
        %4965 = vset.pattern.permute.xlu0 2
        %4966 = vperm.xlu0 %4965, %v4963
        %v4967 = vpop.permute.xlu0 %4966
        %v4969 = vsel %vm3494, %v4963, 0
        %v4972 = vsel %vm619, %v4961, 0
        %v4975 = vsel %vm619, %v4962, 0
        %4977 = vmatprep.subr.mxu0 0.0
        %4978 = vmatpush1.msra.mxu0 0.0
        %4979 = vmatprep.subr.mxu0 0.0
        %4980 = vmatpush1.msra.mxu0 0.0
        %4981 = vmatprep.subr.mxu0 0.0
        %4982 = vmatpush1.msra.mxu0 0.0
        %4983 = vmatprep.subr.mxu0 0.0
        %4984 = vmatpush1.msra.mxu0 0.0
        %4985 = vmatprep.subr.mxu0 0.0
        %4986 = vmatpush1.msra.mxu0 0.0
        %4987 = vmatprep.subr.mxu0 0.0
        %4988 = vmatpush1.msra.mxu0 0.0
        %4989 = vmatprep.subr.mxu0 0.0
        %4990 = vmatpush1.msra.mxu0 0.0
        %4991 = vmatprep.subr.mxu0 0.0
        %4992 = vmatpush1.msra.mxu0 0.0
        %4993 = vmatprep.subr.mxu0 0.0
        %4994 = vmatpush1.msra.mxu0 0.0
        %4995 = vmatprep.subr.mxu0 0.0
        %4996 = vmatpush1.msra.mxu0 0.0
        %4997 = vmatprep.subr.mxu0 0.0
        %4998 = vmatpush1.msra.mxu0 0.0
        %4999 = vmatprep.subr.mxu0 0.0
        %5000 = vmatpush1.msra.mxu0 0.0
        %5001 = vmatprep.subr.mxu0 0.0
        %5002 = vmatpush1.msra.mxu0 0.0
        %5003 = vmatprep.subr.mxu0 0.0
        %5004 = vmatpush1.msra.mxu0 0.0
        %5005 = vmatprep.subr.mxu0 0.0
        %5006 = vmatpush1.msra.mxu0 0.0
        %5007 = vmatprep.subr.mxu0 %v4975
        %5008 = vmatpush1.msra.mxu0 %v4972
        %5009 = vmatprep.subr.mxu0 0.0
        %5010 = vmatpush2.msra.mxu0 0.0
        %5011 = vmatprep.subr.mxu0 0.0
        %5012 = vmatpush2.msra.mxu0 0.0
        %5013 = vmatprep.subr.mxu0 0.0
        %5014 = vmatpush2.msra.mxu0 0.0
        %5015 = vmatprep.subr.mxu0 0.0
        %5016 = vmatpush2.msra.mxu0 0.0
        %5017 = vmatprep.subr.mxu0 0.0
        %5018 = vmatpush2.msra.mxu0 0.0
        %5019 = vmatprep.subr.mxu0 0.0
        %5020 = vmatpush2.msra.mxu0 0.0
        %5021 = vmatprep.subr.mxu0 0.0
        %5022 = vmatpush2.msra.mxu0 0.0
        %5023 = vmatprep.subr.mxu0 0.0
        %5024 = vmatpush2.msra.mxu0 0.0
        %5025 = vmatprep.subr.mxu0 0.0
        %5026 = vmatpush2.msra.mxu0 0.0
        %5027 = vmatprep.subr.mxu0 0.0
        %5028 = vmatpush2.msra.mxu0 0.0
        %5029 = vmatprep.subr.mxu0 0.0
        %5030 = vmatpush2.msra.mxu0 0.0
        %5031 = vmatprep.subr.mxu0 0.0
        %5032 = vmatpush2.msra.mxu0 0.0
        %5033 = vmatprep.subr.mxu0 0.0
        %5034 = vmatpush2.msra.mxu0 0.0
        %5035 = vmatprep.subr.mxu0 0.0
        %5036 = vmatpush2.msra.mxu0 0.0
        %5037 = vmatprep.subr.mxu0 0.0
        %5038 = vmatpush2.msra.mxu0 0.0
        %5039 = vmatprep.subr.mxu0 0.0
        %5040 = vmatpush2.msra.mxu0 0.0
        %5041 = vmatprep.mubr.f32.mxu0 0.0
        %5042 = vmatmul.mubr.f32.gmra.mxu0 %v4969
        %v5043 = vpop.f32.mrf.mxu0
        %v5044 = vadd.f32 %v4967, %v5043
        %v5045 = vpop.f32.mrf.mxu0
        %v5046 = vadd.f32 %v4967, %v5045
        %5047 = vdwg.mxu0
        %v5048 = vadd.f32 %v4811, %v5044
        %v5049 = vadd.f32 %v4812, %v5046
        %5051 = vset.pattern.permute.xlu0 0
        %5052 = vperm.xlu0 %5051, %v578
        %v5053 = vpop.permute.xlu0 %5052
        %v5055 = vmul.f32 %v5053, %v5048
        %v5056 = vmul.f32 %v5053, %v5049
        %5058 = vset.pattern.permute.xlu0 0
        %5059 = vperm.xlu0 %5058, %v503
        %v5060 = vpop.permute.xlu0 %5059
        %v5062 = vadd.f32 %v5055, %v5060
        %v5063 = vadd.f32 %v5056, %v5060
        %5064 = vst [vmem:[#allocation2] sm:$0x3f] 0.0
        %5065 = vst [vmem:[#allocation2 + $0x8] sm:$0x3f] 0.0
        %vm5066 = vcmask 144384
        %5067 = vst.msk [vmem:[#allocation2 + $0x10] sm:$0x3f] %vm5066, 0.0
        %5070 = vrot.lane.b32.xlu0 %v5062, 18
        %v5071 = vpop.permute.xlu0 %5070
        %5072 = vrot.lane.b32.xlu0 %v5063, 18
        %v5073 = vpop.permute.xlu0 %5072
        %v5074 = vsel %vm844, %v5071, %v5073
        %vm5078 = vcmask 1041552
        %5079 = vst.msk [vmem:[#allocation2] sm:$0x3] %vm5078, %v5071
        %5080 = vst [vmem:[#allocation2 + $0x8] sm:$0x3] %v5074
        %vm5081 = vcmask 140288
        %5082 = vst.msk [vmem:[#allocation2 + $0x10] sm:$0x3] %vm5081, %v5073
        %v5083 = vrot.slane %v5062, 6
        %v5084 = vrot.slane %v5063, 6
        %5085 = vrot.lane.b32.xlu0 %v5083, 9
        %v5086 = vpop.permute.xlu0 %5085
        %5087 = vrot.lane.b32.xlu0 %v5084, 9
        %v5088 = vpop.permute.xlu0 %5087
        %vm5089 = vcmask 72704
        %v5090 = vsel %vm5089, %v5086, %v5088
        %vm5094 = vcmask 1043530
        %5095 = vst.msk [vmem:[#allocation2] sm:$0xc] %vm5094, %v5086
        %5096 = vst [vmem:[#allocation2 + $0x8] sm:$0xc] %v5090
        %vm5097 = vcmask 68610
        %5098 = vst.msk [vmem:[#allocation2 + $0x10] sm:$0xc] %vm5097, %v5088
        %v5099 = vrot.slane %v5062, 4
        %v5100 = vrot.slane %v5063, 4
        %5103 = vst [vmem:[#allocation2] sm:$0x30] %v5099
        %5104 = vst [vmem:[#allocation2 + $0x8] sm:$0x30] %v5100
        %v5105 = vld [vmem:[#allocation2] sm:$0x3f]
        %v5106 = vld [vmem:[#allocation2 + $0x8] sm:$0x3f]
        %v5107 = vld [vmem:[#allocation2 + $0x10] sm:$0x3f]
        %v5108 = vld [vmem:[%s3 + $0x150] sm:$0x3]
        %5110 = vset.pattern.permute.xlu0 6
        %5111 = vperm.xlu0 %5110, %v5108
        %v5112 = vpop.permute.xlu0 %5111
        %5117 = vrot.lane.b32.xlu0 %v5105, 119
        %v5118 = vpop.permute.xlu0 %5117
        %5119 = vrot.lane.b32.xlu0 %v5106, 119
        %v5120 = vpop.permute.xlu0 %5119
        %5121 = vrot.lane.b32.xlu0 %v5107, 119
        %v5122 = vpop.permute.xlu0 %5121
        %v5123 = vsel %vm3982, %v5118, %v5120
        %v5124 = vsel %vm3982, %v5120, %v5122
        %v5125 = vsel %vm3718, %v5108, 0
        %v5127 = vsel %vm675, %v5123, 0
        %v5129 = vsel %vm675, %v5124, 0
        %5131 = vmatprep.subr.mxu0 0.0
        %5132 = vmatpush1.msra.mxu0 0.0
        %5133 = vmatprep.subr.mxu0 0.0
        %5134 = vmatpush1.msra.mxu0 0.0
        %5135 = vmatprep.subr.mxu0 0.0
        %5136 = vmatpush1.msra.mxu0 0.0
        %5137 = vmatprep.subr.mxu0 0.0
        %5138 = vmatpush1.msra.mxu0 0.0
        %5139 = vmatprep.subr.mxu0 0.0
        %5140 = vmatpush1.msra.mxu0 0.0
        %5141 = vmatprep.subr.mxu0 0.0
        %5142 = vmatpush1.msra.mxu0 0.0
        %5143 = vmatprep.subr.mxu0 0.0
        %5144 = vmatpush1.msra.mxu0 0.0
        %5145 = vmatprep.subr.mxu0 0.0
        %5146 = vmatpush1.msra.mxu0 0.0
        %5147 = vmatprep.subr.mxu0 0.0
        %5148 = vmatpush1.msra.mxu0 0.0
        %5149 = vmatprep.subr.mxu0 0.0
        %5150 = vmatpush1.msra.mxu0 0.0
        %5151 = vmatprep.subr.mxu0 0.0
        %5152 = vmatpush1.msra.mxu0 0.0
        %5153 = vmatprep.subr.mxu0 0.0
        %5154 = vmatpush1.msra.mxu0 0.0
        %5155 = vmatprep.subr.mxu0 0.0
        %5156 = vmatpush1.msra.mxu0 0.0
        %5157 = vmatprep.subr.mxu0 0.0
        %5158 = vmatpush1.msra.mxu0 0.0
        %5159 = vmatprep.subr.mxu0 0.0
        %5160 = vmatpush1.msra.mxu0 0.0
        %5161 = vmatprep.subr.mxu0 %v5129
        %5162 = vmatpush1.msra.mxu0 %v5127
        %5163 = vmatprep.subr.mxu0 0.0
        %5164 = vmatpush2.msra.mxu0 0.0
        %5165 = vmatprep.subr.mxu0 0.0
        %5166 = vmatpush2.msra.mxu0 0.0
        %5167 = vmatprep.subr.mxu0 0.0
        %5168 = vmatpush2.msra.mxu0 0.0
        %5169 = vmatprep.subr.mxu0 0.0
        %5170 = vmatpush2.msra.mxu0 0.0
        %5171 = vmatprep.subr.mxu0 0.0
        %5172 = vmatpush2.msra.mxu0 0.0
        %5173 = vmatprep.subr.mxu0 0.0
        %5174 = vmatpush2.msra.mxu0 0.0
        %5175 = vmatprep.subr.mxu0 0.0
        %5176 = vmatpush2.msra.mxu0 0.0
        %5177 = vmatprep.subr.mxu0 0.0
        %5178 = vmatpush2.msra.mxu0 0.0
        %5179 = vmatprep.subr.mxu0 0.0
        %5180 = vmatpush2.msra.mxu0 0.0
        %5181 = vmatprep.subr.mxu0 0.0
        %5182 = vmatpush2.msra.mxu0 0.0
        %5183 = vmatprep.subr.mxu0 0.0
        %5184 = vmatpush2.msra.mxu0 0.0
        %5185 = vmatprep.subr.mxu0 0.0
        %5186 = vmatpush2.msra.mxu0 0.0
        %5187 = vmatprep.subr.mxu0 0.0
        %5188 = vmatpush2.msra.mxu0 0.0
        %5189 = vmatprep.subr.mxu0 0.0
        %5190 = vmatpush2.msra.mxu0 0.0
        %5191 = vmatprep.subr.mxu0 0.0
        %5192 = vmatpush2.msra.mxu0 0.0
        %5193 = vmatprep.subr.mxu0 0.0
        %5194 = vmatpush2.msra.mxu0 0.0
        %5195 = vmatprep.mubr.f32.mxu0 0.0
        %5196 = vmatmul.mubr.f32.gmra.mxu0 %v5125
        %v5197 = vpop.f32.mrf.mxu0
        %v5198 = vadd.f32 %v5112, %v5197
        %v5199 = vpop.f32.mrf.mxu0
        %v5200 = vadd.f32 %v5112, %v5199
        %5201 = vdwg.mxu0
        %vm5202 = vcmp.gt.f32.partialorder %v5198, 0.0
        %vm5203 = vcmp.gt.f32.partialorder %v5200, 0.0
        %v5204 = vmin.f32 %v5198, 0.0
        %v5205 = vmin.f32 %v5200, 0.0
        %v5206 = vmul.f32 %v5204, 1.442695
        %v5207 = vpow.pop %v5206
        %v5208 = vmul.f32 %v5205, 1.442695
        %v5209 = vpow.pop %v5208
        %v5210 = vsub.f32 %v5207, 1.0
        %v5211 = vsub.f32 %v5209, 1.0
        %v5212 = vsel %vm5202, %v5198, %v5210
        %v5213 = vsel %vm5203, %v5200, %v5211
        %v5214 = vld [vmem:[%s3 + $0x158] sm:$0x3]
        %5216 = vset.pattern.permute.xlu0 2
        %5217 = vperm.xlu0 %5216, %v5214
        %v5218 = vpop.permute.xlu0 %5217
        %v5220 = vsel %vm3494, %v5214, 0
        %v5223 = vsel %vm619, %v5212, 0
        %v5226 = vsel %vm619, %v5213, 0
        %5228 = vmatprep.subr.mxu0 0.0
        %5229 = vmatpush1.msra.mxu0 0.0
        %5230 = vmatprep.subr.mxu0 0.0
        %5231 = vmatpush1.msra.mxu0 0.0
        %5232 = vmatprep.subr.mxu0 0.0
        %5233 = vmatpush1.msra.mxu0 0.0
        %5234 = vmatprep.subr.mxu0 0.0
        %5235 = vmatpush1.msra.mxu0 0.0
        %5236 = vmatprep.subr.mxu0 0.0
        %5237 = vmatpush1.msra.mxu0 0.0
        %5238 = vmatprep.subr.mxu0 0.0
        %5239 = vmatpush1.msra.mxu0 0.0
        %5240 = vmatprep.subr.mxu0 0.0
        %5241 = vmatpush1.msra.mxu0 0.0
        %5242 = vmatprep.subr.mxu0 0.0
        %5243 = vmatpush1.msra.mxu0 0.0
        %5244 = vmatprep.subr.mxu0 0.0
        %5245 = vmatpush1.msra.mxu0 0.0
        %5246 = vmatprep.subr.mxu0 0.0
        %5247 = vmatpush1.msra.mxu0 0.0
        %5248 = vmatprep.subr.mxu0 0.0
        %5249 = vmatpush1.msra.mxu0 0.0
        %5250 = vmatprep.subr.mxu0 0.0
        %5251 = vmatpush1.msra.mxu0 0.0
        %5252 = vmatprep.subr.mxu0 0.0
        %5253 = vmatpush1.msra.mxu0 0.0
        %5254 = vmatprep.subr.mxu0 0.0
        %5255 = vmatpush1.msra.mxu0 0.0
        %5256 = vmatprep.subr.mxu0 0.0
        %5257 = vmatpush1.msra.mxu0 0.0
        %5258 = vmatprep.subr.mxu0 %v5226
        %5259 = vmatpush1.msra.mxu0 %v5223
        %5260 = vmatprep.subr.mxu0 0.0
        %5261 = vmatpush2.msra.mxu0 0.0
        %5262 = vmatprep.subr.mxu0 0.0
        %5263 = vmatpush2.msra.mxu0 0.0
        %5264 = vmatprep.subr.mxu0 0.0
        %5265 = vmatpush2.msra.mxu0 0.0
        %5266 = vmatprep.subr.mxu0 0.0
        %5267 = vmatpush2.msra.mxu0 0.0
        %5268 = vmatprep.subr.mxu0 0.0
        %5269 = vmatpush2.msra.mxu0 0.0
        %5270 = vmatprep.subr.mxu0 0.0
        %5271 = vmatpush2.msra.mxu0 0.0
        %5272 = vmatprep.subr.mxu0 0.0
        %5273 = vmatpush2.msra.mxu0 0.0
        %5274 = vmatprep.subr.mxu0 0.0
        %5275 = vmatpush2.msra.mxu0 0.0
        %5276 = vmatprep.subr.mxu0 0.0
        %5277 = vmatpush2.msra.mxu0 0.0
        %5278 = vmatprep.subr.mxu0 0.0
        %5279 = vmatpush2.msra.mxu0 0.0
        %5280 = vmatprep.subr.mxu0 0.0
        %5281 = vmatpush2.msra.mxu0 0.0
        %5282 = vmatprep.subr.mxu0 0.0
        %5283 = vmatpush2.msra.mxu0 0.0
        %5284 = vmatprep.subr.mxu0 0.0
        %5285 = vmatpush2.msra.mxu0 0.0
        %5286 = vmatprep.subr.mxu0 0.0
        %5287 = vmatpush2.msra.mxu0 0.0
        %5288 = vmatprep.subr.mxu0 0.0
        %5289 = vmatpush2.msra.mxu0 0.0
        %5290 = vmatprep.subr.mxu0 0.0
        %5291 = vmatpush2.msra.mxu0 0.0
        %5292 = vmatprep.mubr.f32.mxu0 0.0
        %5293 = vmatmul.mubr.f32.gmra.mxu0 %v5220
        %v5294 = vpop.f32.mrf.mxu0
        %v5295 = vadd.f32 %v5218, %v5294
        %v5296 = vpop.f32.mrf.mxu0
        %v5297 = vadd.f32 %v5218, %v5296
        %5298 = vdwg.mxu0
        %v5299 = vadd.f32 %v5062, %v5295
        %v5300 = vadd.f32 %v5063, %v5297
        %5301 = vst [vmem:[#allocation2] sm:$0xff] 0.0
        %5302 = vst [vmem:[#allocation2 + $0x8] sm:$0xff] 0.0
        %5303 = vst.msk [vmem:[#allocation2 + $0x10] sm:$0xff] %vm3718, 0.0
        %5304 = vst [vmem:[#allocation2 + $0x18] sm:$0x3f] 0.0
        %5305 = vst [vmem:[#allocation2 + $0x20] sm:$0x3f] 0.0
        %5306 = vst.msk [vmem:[#allocation2 + $0x28] sm:$0x3f] %vm4815, 0.0
        %5309 = vrot.lane.b32.xlu0 %v5299, 6
        %v5310 = vpop.permute.xlu0 %5309
        %5311 = vrot.lane.b32.xlu0 %v5300, 6
        %v5312 = vpop.permute.xlu0 %5311
        %v5313 = vsel %vm3718, %v5310, %v5312
        %5317 = vst.msk [vmem:[#allocation2] sm:$0x3] %vm4827, %v5310
        %5318 = vst [vmem:[#allocation2 + $0x8] sm:$0x3] %v5313
        %5319 = vst.msk [vmem:[#allocation2 + $0x10] sm:$0x3] %vm4830, %v5312
        %v5320 = vrot.slane %v5299, 6
        %v5321 = vrot.slane %v5300, 6
        %5322 = vrot.lane.b32.xlu0 %v5320, 5
        %v5323 = vpop.permute.xlu0 %5322
        %5324 = vrot.lane.b32.xlu0 %v5321, 5
        %v5325 = vpop.permute.xlu0 %5324
        %vm5326 = vcmask 39936
        %v5327 = vsel %vm5326, %v5323, %v5325
        %vm5331 = vcmask 1043498
        %5332 = vst.msk [vmem:[#allocation2] sm:$0xc] %vm5331, %v5323
        %5333 = vst [vmem:[#allocation2 + $0x8] sm:$0xc] %v5327
        %vm5334 = vcmask 35842
        %5335 = vst.msk [vmem:[#allocation2 + $0x10] sm:$0xc] %vm5334, %v5325
        %v5336 = vrot.slane %v5299, 4
        %v5337 = vrot.slane %v5300, 4
        %5338 = vrot.lane.b32.xlu0 %v5336, 4
        %v5339 = vpop.permute.xlu0 %5338
        %5340 = vrot.lane.b32.xlu0 %v5337, 4
        %v5341 = vpop.permute.xlu0 %5340
        %v5342 = vsel %vm3628, %v5339, %v5341
        %vm5346 = vcmask 1045540
        %5347 = vst.msk [vmem:[#allocation2] sm:$0x30] %vm5346, %v5339
        %5348 = vst [vmem:[#allocation2 + $0x8] sm:$0x30] %v5342
        %vm5349 = vcmask 29700
        %5350 = vst.msk [vmem:[#allocation2 + $0x10] sm:$0x30] %vm5349, %v5341
        %v5351 = vrot.slane %v5299, 2
        %v5352 = vrot.slane %v5300, 2
        %5353 = vrot.lane.b32.xlu0 %v5351, 3
        %v5354 = vpop.permute.xlu0 %5353
        %5355 = vrot.lane.b32.xlu0 %v5352, 3
        %v5356 = vpop.permute.xlu0 %5355
        %v5357 = vsel %vm4838, %v5354, %v5356
        %vm5361 = vcmask 1047582
        %5362 = vst.msk [vmem:[#allocation2] sm:$0xc0] %vm5361, %v5354
        %5363 = vst [vmem:[#allocation2 + $0x8] sm:$0xc0] %v5357
        %vm5364 = vcmask 23558
        %5365 = vst.msk [vmem:[#allocation2 + $0x10] sm:$0xc0] %vm5364, %v5356
        %5366 = vrot.lane.b32.xlu0 %v5299, 2
        %v5367 = vpop.permute.xlu0 %5366
        %5368 = vrot.lane.b32.xlu0 %v5300, 2
        %v5369 = vpop.permute.xlu0 %5368
        %v5370 = vsel %vm3494, %v5367, %v5369
        %5374 = vst.msk [vmem:[#allocation2 + $0x18] sm:$0x3] %vm4576, %v5367
        %5375 = vst [vmem:[#allocation2 + $0x20] sm:$0x3] %v5370
        %5376 = vst.msk [vmem:[#allocation2 + $0x28] sm:$0x3] %vm4579, %v5369
        %5377 = vrot.lane.b32.xlu0 %v5320, 1
        %v5378 = vpop.permute.xlu0 %5377
        %5379 = vrot.lane.b32.xlu0 %v5321, 1
        %v5380 = vpop.permute.xlu0 %5379
        %v5381 = vsel %vm4587, %v5378, %v5380
        %5385 = vst.msk [vmem:[#allocation2 + $0x18] sm:$0xc] %vm4592, %v5378
        %5386 = vst [vmem:[#allocation2 + $0x20] sm:$0xc] %v5381
        %5387 = vst.msk [vmem:[#allocation2 + $0x28] sm:$0xc] %vm4595, %v5380
        %5390 = vst [vmem:[#allocation2 + $0x18] sm:$0x30] %v5336
        %5391 = vst [vmem:[#allocation2 + $0x20] sm:$0x30] %v5337
        %v5392 = vld [vmem:[#allocation2] sm:$0xff]
        %v5393 = vld [vmem:[#allocation2 + $0x8] sm:$0xff]
        %v5394 = vld [vmem:[#allocation2 + $0x10] sm:$0xff]
        %v5395 = vld [vmem:[#allocation2 + $0x18] sm:$0x3f]
        %v5396 = vld [vmem:[#allocation2 + $0x20] sm:$0x3f]
        %v5397 = vld [vmem:[#allocation2 + $0x28] sm:$0x3f]
        %v5398 = vld [vmem:[%s3 + $0x160] sm:$0x1]
        %5400 = vset.pattern.permute.xlu0 14
        %5401 = vperm.xlu0 %5400, %v5398
        %v5402 = vpop.permute.xlu0 %5401
        %5410 = vrot.lane.b32.xlu0 %v5392, 125
        %v5411 = vpop.permute.xlu0 %5410
        %5412 = vrot.lane.b32.xlu0 %v5393, 125
        %v5413 = vpop.permute.xlu0 %5412
        %5414 = vrot.lane.b32.xlu0 %v5394, 125
        %v5415 = vpop.permute.xlu0 %5414
        %5416 = vrot.lane.b32.xlu0 %v5395, 125
        %v5417 = vpop.permute.xlu0 %5416
        %5418 = vrot.lane.b32.xlu0 %v5396, 125
        %v5419 = vpop.permute.xlu0 %5418
        %5420 = vrot.lane.b32.xlu0 %v5397, 125
        %v5421 = vpop.permute.xlu0 %5420
        %v5422 = vsel %vm3761, %v5411, %v5413
        %v5423 = vsel %vm3761, %v5413, %v5415
        %v5424 = vsel %vm3761, %v5417, %v5419
        %v5425 = vsel %vm3761, %v5419, %v5421
        %vm5428 = vcmask 113664
        %v5429 = vsel %vm5428, %v5398, 0
        %v5431 = vsel %vm675, %v5424, 0
        %v5433 = vsel %vm675, %v5425, 0
        %5435 = vmatprep.subr.mxu0 0.0
        %5436 = vmatpush1.msra.mxu0 0.0
        %5437 = vmatprep.subr.mxu0 0.0
        %5438 = vmatpush1.msra.mxu0 0.0
        %5439 = vmatprep.subr.mxu0 0.0
        %5440 = vmatpush1.msra.mxu0 0.0
        %5441 = vmatprep.subr.mxu0 0.0
        %5442 = vmatpush1.msra.mxu0 0.0
        %5443 = vmatprep.subr.mxu0 0.0
        %5444 = vmatpush1.msra.mxu0 0.0
        %5445 = vmatprep.subr.mxu0 0.0
        %5446 = vmatpush1.msra.mxu0 0.0
        %5447 = vmatprep.subr.mxu0 0.0
        %5448 = vmatpush1.msra.mxu0 0.0
        %5449 = vmatprep.subr.mxu0 0.0
        %5450 = vmatpush1.msra.mxu0 0.0
        %5451 = vmatprep.subr.mxu0 0.0
        %5452 = vmatpush1.msra.mxu0 0.0
        %5453 = vmatprep.subr.mxu0 0.0
        %5454 = vmatpush1.msra.mxu0 0.0
        %5455 = vmatprep.subr.mxu0 0.0
        %5456 = vmatpush1.msra.mxu0 0.0
        %5457 = vmatprep.subr.mxu0 0.0
        %5458 = vmatpush1.msra.mxu0 0.0
        %5459 = vmatprep.subr.mxu0 0.0
        %5460 = vmatpush1.msra.mxu0 0.0
        %5461 = vmatprep.subr.mxu0 0.0
        %5462 = vmatpush1.msra.mxu0 0.0
        %5463 = vmatprep.subr.mxu0 %v5433
        %5464 = vmatpush1.msra.mxu0 %v5431
        %5465 = vmatprep.subr.mxu0 %v5423
        %5466 = vmatpush1.msra.mxu0 %v5422
        %5467 = vmatprep.subr.mxu0 0.0
        %5468 = vmatpush2.msra.mxu0 0.0
        %5469 = vmatprep.subr.mxu0 0.0
        %5470 = vmatpush2.msra.mxu0 0.0
        %5471 = vmatprep.subr.mxu0 0.0
        %5472 = vmatpush2.msra.mxu0 0.0
        %5473 = vmatprep.subr.mxu0 0.0
        %5474 = vmatpush2.msra.mxu0 0.0
        %5475 = vmatprep.subr.mxu0 0.0
        %5476 = vmatpush2.msra.mxu0 0.0
        %5477 = vmatprep.subr.mxu0 0.0
        %5478 = vmatpush2.msra.mxu0 0.0
        %5479 = vmatprep.subr.mxu0 0.0
        %5480 = vmatpush2.msra.mxu0 0.0
        %5481 = vmatprep.subr.mxu0 0.0
        %5482 = vmatpush2.msra.mxu0 0.0
        %5483 = vmatprep.subr.mxu0 0.0
        %5484 = vmatpush2.msra.mxu0 0.0
        %5485 = vmatprep.subr.mxu0 0.0
        %5486 = vmatpush2.msra.mxu0 0.0
        %5487 = vmatprep.subr.mxu0 0.0
        %5488 = vmatpush2.msra.mxu0 0.0
        %5489 = vmatprep.subr.mxu0 0.0
        %5490 = vmatpush2.msra.mxu0 0.0
        %5491 = vmatprep.subr.mxu0 0.0
        %5492 = vmatpush2.msra.mxu0 0.0
        %5493 = vmatprep.subr.mxu0 0.0
        %5494 = vmatpush2.msra.mxu0 0.0
        %5495 = vmatprep.subr.mxu0 0.0
        %5496 = vmatpush2.msra.mxu0 0.0
        %5497 = vmatprep.subr.mxu0 0.0
        %5498 = vmatpush2.msra.mxu0 0.0
        %5499 = vmatprep.mubr.f32.mxu0 0.0
        %5500 = vmatmul.mubr.f32.gmra.mxu0 %v5429
        %v5501 = vpop.f32.mrf.mxu0
        %v5502 = vadd.f32 %v5402, %v5501
        %v5503 = vpop.f32.mrf.mxu0
        %v5504 = vadd.f32 %v5402, %v5503
        %5505 = vdwg.mxu0
        %v5508 = vcombine.low %v5502, %v5504
        %v5510 = vunpack.c.l.s4 1966171168
        %v5511 = vunpack.c.0.s8 %v5510
        %v5512 = vlaneseq
        %v5513 = vshrl.u32 %v5512, 7
        %v5514 = vsub.s32 %v5511, %v5513
        %v5515 = vrot.slane %v5508, %v5514
        %v5517 = vunpack.c.l.s4 1966171168
        %v5518 = vunpack.c.0.s8 %v5517
        %v5519 = vlaneseq
        %v5520 = vshrl.u32 %v5519, 7
        %v5521 = vsub.s32 %v5518, %v5520
        %v5522 = vrot.slane %v5515, %v5521
        %v5524 = vlaneseq
        %vm5525 = vcmp.ge.s32.totalorder %v5524, 0
        %vm5526 = vcmp.lt.s32.totalorder %v5524, 256
        %vm5527 = vmand %vm5525, %vm5526
        %5528 = vst.msk [vmem:[%s230] sm:$0x3] %vm5527, %v5522
        %s5529 = sand.u32 %s142, 1
        %s5530 = scalar_lea.sflag [#allocation4], %s5529
        %s5531 = sand.u32 %s142, 1
        %s5532 = smul.addr %s5531, 2
        %s5533 = scalar_lea.vmem [#allocation3], %s5532
        // Predicated region
        $region41: #{filmed_decoder_forward.1} parent=39 // pred_check
          %p5534 = pneg %p152
        $region42: #{filmed_decoder_forward.1} parent=39 // pred_check_branch
          %5536 = sbr.rel (%p5534) target = $region44
        $region43: #{filmed_decoder_forward.1} parent=39 // pred_region
          %s5538 = ssub.s32 32, 32
          %5539 = vsyncadd %s5530, %s5538
          %s5540 = smul.addr %s19, 2
          %s5541 = smul.addr %s5540, 16
          %s5542 = scalar_lea.hbm %s5, %s5541
          %s5544 = sshll.u32 %s5533, 4
          %s5545 = int_to_ptr.vmem [resolvable:$true] %s5544
          %5547 = dma.vmem_to_hbm [thread:$0]  %s5545, 32, %s5542, %s5530
        $region44: #{filmed_decoder_forward.1} parent=39 // pred_fallthru
          _
      $region40: #{filmed_decoder_forward.1} parent=5 // pred_fallthru
        _
      %p5548 = scmp.le.s32.totalorder 2, %s14
      // Predicated region
      $region45: #{filmed_decoder_forward.1} parent=5 // pred_check
        %p5549 = pneg %p5548
      $region46: #{filmed_decoder_forward.1} parent=5 // pred_check_branch
        %5551 = sbr.rel (%p5549) target = $region48
      $region47: #{filmed_decoder_forward.1} parent=5 // pred_region
        %s5552 = ssub.s32 %s14, 2
        // Predicated region
        $region49: #{filmed_decoder_forward.1} parent=47 // pred_check
          %p5553 = pneg %p158
        $region50: #{filmed_decoder_forward.1} parent=47 // pred_check_branch
          %5555 = sbr.rel (%p5553) target = $region52
        $region51: #{filmed_decoder_forward.1} parent=47 // pred_region
          %s5556 = sand.u32 %s143, 1
          %s5557 = scalar_lea.sflag [#allocation4], %s5556
          %s5558 = sand.u32 %s143, 1
          %s5559 = smul.addr %s5558, 2
          %s5560 = scalar_lea.vmem [#allocation3], %s5559
          %5561 = dma.done %s5557, 32
        $region52: #{filmed_decoder_forward.1} parent=47 // pred_fallthru
          _
      $region48: #{filmed_decoder_forward.1} parent=5 // pred_fallthru
        _
    $region6: #{filmed_decoder_forward.1} parent=1 // loop_footer
      %s18 = sadd.s32 1, %s14
    $region7: #{filmed_decoder_forward.1} parent=1 // loop_footer_branch
      %13 = sbr.rel target = $region3
    $region8: #{filmed_decoder_forward.1} parent=1 // loop_exit
      _
    %5562 = vsyncpa [#allocation4], 1
    %s5563 = scalar_lea.sflag [#allocation4], 1
    %5564 = vsyncpa %s5563, 1

</llo_original>
